<compile_context>
chip_gen: v7x
topology: tpu7x:2x2x1
jax: 0.10.0
libtpu: 0.0.40
codegen_flags: <defaults>
</compile_context>

<pallas_src>
import functools

import jax
import jax.numpy as jnp
from jax.experimental import pallas as pl
from jax.experimental.pallas import tpu as pltpu

TEMPORAL_K = 9          # temporal window (kernel_size=[9,2] in ResGCN)
GRAPH_K = 3             # adjacency partitions (max_graph_distance=2 -> 3)

VMEM_SPEC = pl.BlockSpec(memory_space=pltpu.MemorySpace.VMEM)


# ------------------------------- kernels ---------------------------------- #

def make_module_kernel(NM, T_in, V, Cin, Cout, stride, res_mode):
    """Fused ResGCN 'Basic' module kernel factory (all dims static)."""
    K, pad = TEMPORAL_K, (TEMPORAL_K - 1) // 2
    T_out = (T_in + 2 * pad - K) // stride + 1
    rows_in = NM * T_in * V
    rows_out = NM * T_out * V

    # Trace-time analysis of which temporal taps ever touch a valid frame.
    taps, need_pad = [], False
    for k in range(K):
        samples = [t * stride + k - pad for t in range(T_out)]
        if any(0 <= s < T_in for s in samples):
            taps.append(k)
            if any(not (0 <= s < T_in) for s in samples):
                need_pad = True

    def gather_t(x4, start, count):
        """Take `count` frames starting at `start` with step `stride` (axis 1)."""
        if count == 1:
            return x4[:, start:start + 1]
        if stride == 1:
            return x4[:, start:start + count]
        return jnp.concatenate(
            [x4[:, start + t * stride:start + t * stride + 1] for t in range(count)],
            axis=1)

    def kernel(x_ref, ws_ref, bs_ref, ac_ref, wt_ref, bt_ref, *rest):
        if res_mode == 'proj':
            wr_ref, br_ref, o_ref = rest
        else:
            (o_ref,) = rest

        x2d = x_ref[...]                                        # (rows_in, Cin) bf16

        # ---- spatial graph conv -------------------------------------------------
        # one wide channel matmul: (rows_in, Cin) @ (Cin, Kg*Cout)
        h = jnp.dot(x2d, ws_ref[...], preferred_element_type=jnp.float32)
        h = h.astype(jnp.bfloat16)
        # Kg adjacency matmuls with the batch-block-diagonal A^T (no broadcasts).
        y = jnp.zeros((rows_in, Cout), jnp.float32)
        for k in range(GRAPH_K):
            y = y + jnp.dot(ac_ref[k], h[:, k * Cout:(k + 1) * Cout],
                            preferred_element_type=jnp.float32)
        y = jnp.maximum(y + bs_ref[...], 0.0).astype(jnp.bfloat16)

        # ---- temporal 9x1 conv (stride), accumulated per tap in VMEM ------------
        y4 = y.reshape(NM, T_in, V, Cout)
        if need_pad:
            zp = jnp.zeros((NM, pad, V, Cout), jnp.bfloat16)
            y4 = jnp.concatenate([zp, y4, zp], axis=1)
            off = pad
        else:
            off = 0
        acc = jnp.zeros((rows_out, Cout), jnp.float32)
        for k in taps:
            ytap = gather_t(y4, k - pad + off, T_out).reshape(rows_out, Cout)
            acc = acc + jnp.dot(ytap, wt_ref[k], preferred_element_type=jnp.float32)
        acc = acc + bt_ref[...]

        # ---- module residual -----------------------------------------------------
        if res_mode == 'identity':
            acc = acc + x2d.astype(jnp.float32)
        elif res_mode == 'proj':
            x4 = x2d.reshape(NM, T_in, V, Cin)
            xs = gather_t(x4, 0, T_out).reshape(rows_out, Cin)
            acc = acc + (jnp.dot(xs, wr_ref[...], preferred_element_type=jnp.float32)
                         + br_ref[...])

        o_ref[...] = jnp.maximum(acc, 0.0).astype(jnp.bfloat16)

    return kernel, rows_out, T_out


def head_kernel(xa_ref, xc_ref, wa_ref, ba_ref, wc_ref, bc_ref, oa_ref, oc_ref):
    """Fused global mean pooling + concatenated FC head for BOTH streams."""
    inv_a = 1.0 / xa_ref.shape[1]
    inv_c = 1.0 / xc_ref.shape[1]
    pa = (jnp.sum(xa_ref[...].astype(jnp.float32), axis=1) * inv_a).astype(jnp.bfloat16)
    pc = (jnp.sum(xc_ref[...].astype(jnp.float32), axis=1) * inv_c).astype(jnp.bfloat16)
    oa_ref[...] = (jnp.dot(pa, wa_ref[...], preferred_element_type=jnp.float32)
                   + ba_ref[...])
    oc_ref[...] = (jnp.dot(pc, wc_ref[...], preferred_element_type=jnp.float32)
                   + bc_ref[...])


# ------------------------------ module glue -------------------------------- #

def double_tpgcn_forward(x, params):
    """x: (N, M, V, C) as in the torch forward (N, M, V, C = x.size())."""
    N, M, V, C = x.shape
    NM, T = N * M, 1
    # torch: permute(0,3,2,1)[:,None,:,None] -> (N,1,C,T=1,V,M); reshaped to
    # (N*M, C, T, V) inside the input branch.  Channel-last, rows = (n,m,t,v).
    h = x.reshape(NM * T * V, C).astype(jnp.bfloat16)

    # Batch-block-diagonal A^T per spatial-conv batch size (shared across
    # modules since T stays 1 for this model).
    acomb_cache = {}

    def get_acomb(b2):
        if b2 not in acomb_cache:
            at = params['at']                                    # (Kg, V, V) f32
            eye_b = jnp.eye(b2, dtype=at.dtype)
            ac = jnp.einsum('kwv,bc->kbwcv', at, eye_b)
            acomb_cache[b2] = ac.reshape(GRAPH_K, b2 * V, b2 * V).astype(jnp.bfloat16)
        return acomb_cache[b2]

    def run_module(h2d, t_in, p):
        kernel, rows_out, t_out = make_module_kernel(
            NM, t_in, V, p['cin'], p['cout'], p['stride'], p['res_mode'])
        args = [h2d, p['ws'], p['bs'], get_acomb(NM * t_in), p['wt'], p['bt']]
        if p['res_mode'] == 'proj':
            args += [p['wr'], p['br']]
        out = pl.pallas_call(
            kernel,
            in_specs=[VMEM_SPEC] * len(args),
            out_specs=VMEM_SPEC,
            out_shape=jax.ShapeDtypeStruct((rows_out, p['cout']), jnp.bfloat16),
        )(*args)
        return out, t_out

    for p in params['input_branch']:
        h, T = run_module(h, T, p)

    xa, Ta = h, T
    xc, Tc = h, T
    for p in params['adult_stream']:
        xa, Ta = run_module(xa, Ta, p)
    for p in params['child_stream']:
        xc, Tc = run_module(xc, Tc, p)

    Ca = params['adult_stream'][-1]['cout']
    Cc = params['child_stream'][-1]['cout']
    xa3 = xa.reshape(N, M * Ta * V, Ca)
    xc3 = xc.reshape(N, M * Tc * V, Cc)

    fc_a, fc_c = pl.pallas_call(
        head_kernel,
        in_specs=[VMEM_SPEC] * 6,
        out_specs=(VMEM_SPEC, VMEM_SPEC),
        out_shape=(jax.ShapeDtypeStruct((N, 54), jnp.float32),
                   jax.ShapeDtypeStruct((N, 54), jnp.float32)),
    )(xa3, xc3, params['adult_fc']['w'], params['adult_fc']['b'],
      params['child_fc']['w'], params['child_fc']['b'])

    # FC outputs concatenated as [fcn21 | fcn6 | fcn21x21 | fcn6x6].
    a21, a6, a21x21, a6x6 = fc_a[:, :21], fc_a[:, 21:27], fc_a[:, 27:48], fc_a[:, 48:54]
    c21, c6, c21x21, c6x6 = fc_c[:, :21], fc_c[:, 21:27], fc_c[:, 27:48], fc_c[:, 48:54]

    # Tiny (<4 KB) outer products / concats: plain-JAX glue, not worth a launch.
    x21x21 = (a21x21[:, :, None] * c21x21[:, None, :]).reshape(N, 21 * 21)
    x6x6 = (a6x6[:, :, None] * c6x6[:, None, :]).reshape(N, 6 * 6)
    x42 = jnp.concatenate([a21, c21], axis=1)
    x12 = jnp.concatenate([a6, c6], axis=1)

    # torch: view(N,M,C,T,V).permute(0,2,3,4,1) -> (N, C, T, V, M)
    child_feature = jnp.transpose(
        xc.reshape(N, M, Tc, V, Cc).astype(jnp.float32), (0, 4, 2, 3, 1))
    adult_feature = jnp.transpose(
        xa.reshape(N, M, Ta, V, Ca).astype(jnp.float32), (0, 4, 2, 3, 1))
    feature = jnp.concatenate([child_feature, adult_feature], axis=1)
    return (x42, x12, x21x21, x6x6), feature


# ------------------------------ parameters --------------------------------- #

def init_params(key, *, num_channel, V, structure=(1, 2, 2, 2)):
    keys = jax.random.split(key, 128)
    ki = iter(keys)

    # deterministic adjacency partitions (row-normalized ring graph)
    eye = jnp.eye(V, dtype=jnp.float32)
    A = jnp.stack([jnp.roll(eye, k, axis=1) + jnp.roll(eye, -k, axis=1)
                   for k in range(GRAPH_K)])
    A = A / jnp.sum(A, axis=1, keepdims=True)
    At = jnp.transpose(A, (0, 2, 1))                 # At[k, w, v] = A[k, v, w]

    def he(k, shape, fan_in):
        return jax.random.normal(k, shape, jnp.float32) * (2.0 / fan_in) ** 0.5

    def module(cin, cout, stride, module_res):
        k1, k2, k3 = next(ki), next(ki), next(ki)
        w_s = he(k1, (GRAPH_K, cin, cout), GRAPH_K * cin)
        ws_stacked = jnp.transpose(w_s, (1, 0, 2)).reshape(cin, GRAPH_K * cout)
        p = {
            'ws': ws_stacked.astype(jnp.bfloat16),
            'bs': jnp.zeros((1, cout), jnp.float32),
            'wt': he(k2, (TEMPORAL_K, cout, cout),
                     TEMPORAL_K * cout).astype(jnp.bfloat16),
            'bt': jnp.zeros((1, cout), jnp.float32),
            'cin': cin, 'cout': cout, 'stride': stride,
        }
        if not module_res:
            p['res_mode'] = 'none'
        elif stride == 1 and cin == cout:
            p['res_mode'] = 'identity'
        else:
            p['res_mode'] = 'proj'
            p['wr'] = he(k3, (cin, cout), cin).astype(jnp.bfloat16)
            p['br'] = jnp.zeros((1, cout), jnp.float32)
        return p

    # input branch (ResGCNInputBranch, 'Basic' blocks)
    input_branch = [module(num_channel, 64, 1, False)]
    input_branch += [module(64, 64, 1, False) for _ in range(structure[0] - 1)]
    input_branch += [module(64, 64, 1, True) for _ in range(structure[1] - 1)]
    input_branch += [module(64, 32, 1, True)]

    def stream():
        mods = [module(32, 128, 2, True)]
        mods += [module(128, 128, 1, True) for _ in range(structure[2] - 1)]
        mods += [module(128, 256, 2, True)]
        mods += [module(256, 256, 1, True) for _ in range(structure[3] - 1)]
        return mods

    def fc_head():
        # concatenated [fcn21 | fcn6 | fcn21x21 | fcn6x6] -> single (256, 54) matmul
        ws, bs = [], []
        for d in (21, 6, 21, 6):
            kw, kb = next(ki), next(ki)
            ws.append(jax.random.normal(kw, (256, d), jnp.float32) * (1.0 / 256) ** 0.5)
            bs.append(jax.random.uniform(kb, (1, d), jnp.float32, -0.05, 0.05))
        return {'w': jnp.concatenate(ws, axis=1).astype(jnp.bfloat16),
                'b': jnp.concatenate(bs, axis=1)}

    return {
        'at': At,
        'input_branch': input_branch,
        'adult_stream': stream(),
        'child_stream': stream(),
        'adult_fc': fc_head(),
        'child_fc': fc_head(),
    }


# --------------------------------- main ------------------------------------ #

if __name__ == "__main__":
    N, M, V, C = 2, 2, 21, 4      # torch forward: N, M, V, C = x.size()
    key = jax.random.PRNGKey(0)
    kx, kp = jax.random.split(key)
    x = jax.random.normal(kx, (N, M, V, C), jnp.float32)
    params = init_params(kp, num_channel=C, V=V)

    fwd = jax.jit(functools.partial(double_tpgcn_forward, params=params))
    (x42, x12, x21x21, x6x6), feature = fwd(x)
    jax.block_until_ready((x42, x12, x21x21, x6x6, feature))

    assert x42.shape == (N, 42)
    assert x12.shape == (N, 12)
    assert x21x21.shape == (N, 21 * 21)
    assert x6x6.shape == (N, 6 * 6)
    assert feature.shape == (N, 512, 1, V, M)
    print("KERNEL_OK")
</pallas_src>

<mosaic_0001>
module attributes {stable_mosaic.version = 11 : i64} {
  func.func @kernel(%arg0: memref<84x64xbf16, #tpu.memory_space<vmem>>, %arg1: memref<64x96xbf16, #tpu.memory_space<vmem>>, %arg2: memref<1x32xf32, #tpu.memory_space<vmem>>, %arg3: memref<3x84x84xbf16, #tpu.memory_space<vmem>>, %arg4: memref<9x32x32xbf16, #tpu.memory_space<vmem>>, %arg5: memref<1x32xf32, #tpu.memory_space<vmem>>, %arg6: memref<64x32xbf16, #tpu.memory_space<vmem>>, %arg7: memref<1x32xf32, #tpu.memory_space<vmem>>, %arg8: memref<84x32xbf16, #tpu.memory_space<vmem>>) attributes {dimension_semantics = [], scalar_prefetch = 0 : i64, scratch_operands = 0 : i64, tpu.core_type = #tpu.core_type<tc>} {
    %c0 = arith.constant 0 : index
    %c0_0 = arith.constant 0 : index
    %0 = vector.load %arg0[%c0, %c0_0] : memref<84x64xbf16, #tpu.memory_space<vmem>>, vector<84x64xbf16>
    %c0_1 = arith.constant 0 : index
    %c0_2 = arith.constant 0 : index
    %1 = vector.load %arg1[%c0_1, %c0_2] : memref<64x96xbf16, #tpu.memory_space<vmem>>, vector<64x96xbf16>
    %cst = arith.constant dense<0.000000e+00> : vector<84x96xf32>
    %2 = tpu.matmul %0, %1, %cst {dimension_numbers = #tpu.dot_dimension_numbers<[1], [0], [0], [1], [0, 0, 1, 1], [], []>} : vector<84x64xbf16>, vector<64x96xbf16>, vector<84x96xf32> -> vector<84x96xf32>
    %3 = arith.truncf %2 : vector<84x96xf32> to vector<84x96xbf16>
    %cst_3 = arith.constant 0.000000e+00 : f32
    %4 = vector.broadcast %cst_3 : f32 to vector<84x32xf32>
    %c0_4 = arith.constant 0 : index
    %c0_5 = arith.constant 0 : index
    %c0_6 = arith.constant 0 : index
    %5 = vector.load %arg3[%c0_4, %c0_5, %c0_6] : memref<3x84x84xbf16, #tpu.memory_space<vmem>>, vector<1x84x84xbf16>
    %6 = vector.shape_cast %5 : vector<1x84x84xbf16> to vector<84x84xbf16>
    %7 = vector.extract_strided_slice %3 {offsets = [0, 0], sizes = [84, 32], strides = [1, 1]} : vector<84x96xbf16> to vector<84x32xbf16>
    %cst_7 = arith.constant dense<0.000000e+00> : vector<84x32xf32>
    %8 = tpu.matmul %6, %7, %cst_7 {dimension_numbers = #tpu.dot_dimension_numbers<[1], [0], [0], [1], [0, 0, 1, 1], [], []>} : vector<84x84xbf16>, vector<84x32xbf16>, vector<84x32xf32> -> vector<84x32xf32>
    %9 = arith.addf %4, %8 : vector<84x32xf32>
    %c1 = arith.constant 1 : index
    %c0_8 = arith.constant 0 : index
    %c0_9 = arith.constant 0 : index
    %10 = vector.load %arg3[%c1, %c0_8, %c0_9] : memref<3x84x84xbf16, #tpu.memory_space<vmem>>, vector<1x84x84xbf16>
    %11 = vector.shape_cast %10 : vector<1x84x84xbf16> to vector<84x84xbf16>
    %12 = vector.extract_strided_slice %3 {offsets = [0, 32], sizes = [84, 32], strides = [1, 1]} : vector<84x96xbf16> to vector<84x32xbf16>
    %cst_10 = arith.constant dense<0.000000e+00> : vector<84x32xf32>
    %13 = tpu.matmul %11, %12, %cst_10 {dimension_numbers = #tpu.dot_dimension_numbers<[1], [0], [0], [1], [0, 0, 1, 1], [], []>} : vector<84x84xbf16>, vector<84x32xbf16>, vector<84x32xf32> -> vector<84x32xf32>
    %14 = arith.addf %9, %13 : vector<84x32xf32>
    %c2 = arith.constant 2 : index
    %c0_11 = arith.constant 0 : index
    %c0_12 = arith.constant 0 : index
    %15 = vector.load %arg3[%c2, %c0_11, %c0_12] : memref<3x84x84xbf16, #tpu.memory_space<vmem>>, vector<1x84x84xbf16>
    %16 = vector.shape_cast %15 : vector<1x84x84xbf16> to vector<84x84xbf16>
    %17 = vector.extract_strided_slice %3 {offsets = [0, 64], sizes = [84, 32], strides = [1, 1]} : vector<84x96xbf16> to vector<84x32xbf16>
    %cst_13 = arith.constant dense<0.000000e+00> : vector<84x32xf32>
    %18 = tpu.matmul %16, %17, %cst_13 {dimension_numbers = #tpu.dot_dimension_numbers<[1], [0], [0], [1], [0, 0, 1, 1], [], []>} : vector<84x84xbf16>, vector<84x32xbf16>, vector<84x32xf32> -> vector<84x32xf32>
    %19 = arith.addf %14, %18 : vector<84x32xf32>
    %c0_14 = arith.constant 0 : index
    %c0_15 = arith.constant 0 : index
    %20 = vector.load %arg2[%c0_14, %c0_15] : memref<1x32xf32, #tpu.memory_space<vmem>>, vector<1x32xf32>
    %21 = vector.broadcast %20 : vector<1x32xf32> to vector<84x32xf32>
    %22 = arith.addf %19, %21 : vector<84x32xf32>
    %cst_16 = arith.constant 0.000000e+00 : f32
    %23 = vector.broadcast %cst_16 : f32 to vector<84x32xf32>
    %24 = arith.maximumf %22, %23 : vector<84x32xf32>
    %25 = arith.truncf %24 : vector<84x32xf32> to vector<84x32xbf16>
    %26 = vector.shape_cast %25 : vector<84x32xbf16> to vector<4x1x21x32xbf16>
    %cst_17 = arith.constant 0.000000e+00 : f32
    %27 = vector.broadcast %cst_17 : f32 to vector<84x32xf32>
    %28 = vector.shape_cast %26 : vector<4x1x21x32xbf16> to vector<84x32xbf16>
    %c4 = arith.constant 4 : index
    %c0_18 = arith.constant 0 : index
    %c0_19 = arith.constant 0 : index
    %29 = vector.load %arg4[%c4, %c0_18, %c0_19] : memref<9x32x32xbf16, #tpu.memory_space<vmem>>, vector<1x32x32xbf16>
    %30 = vector.shape_cast %29 : vector<1x32x32xbf16> to vector<32x32xbf16>
    %cst_20 = arith.constant dense<0.000000e+00> : vector<84x32xf32>
    %31 = tpu.matmul %28, %30, %cst_20 {dimension_numbers = #tpu.dot_dimension_numbers<[1], [0], [0], [1], [0, 0, 1, 1], [], []>} : vector<84x32xbf16>, vector<32x32xbf16>, vector<84x32xf32> -> vector<84x32xf32>
    %32 = arith.addf %27, %31 : vector<84x32xf32>
    %c0_21 = arith.constant 0 : index
    %c0_22 = arith.constant 0 : index
    %33 = vector.load %arg5[%c0_21, %c0_22] : memref<1x32xf32, #tpu.memory_space<vmem>>, vector<1x32xf32>
    %34 = vector.broadcast %33 : vector<1x32xf32> to vector<84x32xf32>
    %35 = arith.addf %32, %34 : vector<84x32xf32>
    %36 = vector.shape_cast %0 : vector<84x64xbf16> to vector<4x1x21x64xbf16>
    %37 = vector.shape_cast %36 : vector<4x1x21x64xbf16> to vector<84x64xbf16>
    %c0_23 = arith.constant 0 : index
    %c0_24 = arith.constant 0 : index
    %38 = vector.load %arg6[%c0_23, %c0_24] : memref<64x32xbf16, #tpu.memory_space<vmem>>, vector<64x32xbf16>
    %cst_25 = arith.constant dense<0.000000e+00> : vector<84x32xf32>
    %39 = tpu.matmul %37, %38, %cst_25 {dimension_numbers = #tpu.dot_dimension_numbers<[1], [0], [0], [1], [0, 0, 1, 1], [], []>} : vector<84x64xbf16>, vector<64x32xbf16>, vector<84x32xf32> -> vector<84x32xf32>
    %c0_26 = arith.constant 0 : index
    %c0_27 = arith.constant 0 : index
    %40 = vector.load %arg7[%c0_26, %c0_27] : memref<1x32xf32, #tpu.memory_space<vmem>>, vector<1x32xf32>
    %41 = vector.broadcast %40 : vector<1x32xf32> to vector<84x32xf32>
    %42 = arith.addf %39, %41 : vector<84x32xf32>
    %43 = arith.addf %35, %42 : vector<84x32xf32>
    %cst_28 = arith.constant 0.000000e+00 : f32
    %44 = vector.broadcast %cst_28 : f32 to vector<84x32xf32>
    %45 = arith.maximumf %43, %44 : vector<84x32xf32>
    %46 = arith.truncf %45 : vector<84x32xf32> to vector<84x32xbf16>
    %c0_29 = arith.constant 0 : index
    %c0_30 = arith.constant 0 : index
    %47 = vector.load %arg8[%c0_29, %c0_30] : memref<84x32xbf16, #tpu.memory_space<vmem>>, vector<84x32xbf16>
    tpu.vector_store %arg8[%c0_29, %c0_30], %46 {strides = array<i32>} : memref<84x32xbf16, #tpu.memory_space<vmem>>, vector<84x32xbf16>,
    return
  }
}

module attributes {stable_mosaic.version = 11 : i64} {
  func.func @kernel(%arg0: memref<84x4xbf16, #tpu.memory_space<vmem>>, %arg1: memref<4x192xbf16, #tpu.memory_space<vmem>>, %arg2: memref<1x64xf32, #tpu.memory_space<vmem>>, %arg3: memref<3x84x84xbf16, #tpu.memory_space<vmem>>, %arg4: memref<9x64x64xbf16, #tpu.memory_space<vmem>>, %arg5: memref<1x64xf32, #tpu.memory_space<vmem>>, %arg6: memref<84x64xbf16, #tpu.memory_space<vmem>>) attributes {dimension_semantics = [], scalar_prefetch = 0 : i64, scratch_operands = 0 : i64, tpu.core_type = #tpu.core_type<tc>} {
    %c0 = arith.constant 0 : index
    %c0_0 = arith.constant 0 : index
    %0 = vector.load %arg0[%c0, %c0_0] : memref<84x4xbf16, #tpu.memory_space<vmem>>, vector<84x4xbf16>
    %c0_1 = arith.constant 0 : index
    %c0_2 = arith.constant 0 : index
    %1 = vector.load %arg1[%c0_1, %c0_2] : memref<4x192xbf16, #tpu.memory_space<vmem>>, vector<4x192xbf16>
    %cst = arith.constant dense<0.000000e+00> : vector<84x192xf32>
    %2 = tpu.matmul %0, %1, %cst {dimension_numbers = #tpu.dot_dimension_numbers<[1], [0], [0], [1], [0, 0, 1, 1], [], []>} : vector<84x4xbf16>, vector<4x192xbf16>, vector<84x192xf32> -> vector<84x192xf32>
    %3 = arith.truncf %2 : vector<84x192xf32> to vector<84x192xbf16>
    %cst_3 = arith.constant 0.000000e+00 : f32
    %4 = vector.broadcast %cst_3 : f32 to vector<84x64xf32>
    %c0_4 = arith.constant 0 : index
    %c0_5 = arith.constant 0 : index
    %c0_6 = arith.constant 0 : index
    %5 = vector.load %arg3[%c0_4, %c0_5, %c0_6] : memref<3x84x84xbf16, #tpu.memory_space<vmem>>, vector<1x84x84xbf16>
    %6 = vector.shape_cast %5 : vector<1x84x84xbf16> to vector<84x84xbf16>
    %7 = vector.extract_strided_slice %3 {offsets = [0, 0], sizes = [84, 64], strides = [1, 1]} : vector<84x192xbf16> to vector<84x64xbf16>
    %cst_7 = arith.constant dense<0.000000e+00> : vector<84x64xf32>
    %8 = tpu.matmul %6, %7, %cst_7 {dimension_numbers = #tpu.dot_dimension_numbers<[1], [0], [0], [1], [0, 0, 1, 1], [], []>} : vector<84x84xbf16>, vector<84x64xbf16>, vector<84x64xf32> -> vector<84x64xf32>
    %9 = arith.addf %4, %8 : vector<84x64xf32>
    %c1 = arith.constant 1 : index
    %c0_8 = arith.constant 0 : index
    %c0_9 = arith.constant 0 : index
    %10 = vector.load %arg3[%c1, %c0_8, %c0_9] : memref<3x84x84xbf16, #tpu.memory_space<vmem>>, vector<1x84x84xbf16>
    %11 = vector.shape_cast %10 : vector<1x84x84xbf16> to vector<84x84xbf16>
    %12 = vector.extract_strided_slice %3 {offsets = [0, 64], sizes = [84, 64], strides = [1, 1]} : vector<84x192xbf16> to vector<84x64xbf16>
    %cst_10 = arith.constant dense<0.000000e+00> : vector<84x64xf32>
    %13 = tpu.matmul %11, %12, %cst_10 {dimension_numbers = #tpu.dot_dimension_numbers<[1], [0], [0], [1], [0, 0, 1, 1], [], []>} : vector<84x84xbf16>, vector<84x64xbf16>, vector<84x64xf32> -> vector<84x64xf32>
    %14 = arith.addf %9, %13 : vector<84x64xf32>
    %c2 = arith.constant 2 : index
    %c0_11 = arith.constant 0 : index
    %c0_12 = arith.constant 0 : index
    %15 = vector.load %arg3[%c2, %c0_11, %c0_12] : memref<3x84x84xbf16, #tpu.memory_space<vmem>>, vector<1x84x84xbf16>
    %16 = vector.shape_cast %15 : vector<1x84x84xbf16> to vector<84x84xbf16>
    %17 = vector.extract_strided_slice %3 {offsets = [0, 128], sizes = [84, 64], strides = [1, 1]} : vector<84x192xbf16> to vector<84x64xbf16>
    %cst_13 = arith.constant dense<0.000000e+00> : vector<84x64xf32>
    %18 = tpu.matmul %16, %17, %cst_13 {dimension_numbers = #tpu.dot_dimension_numbers<[1], [0], [0], [1], [0, 0, 1, 1], [], []>} : vector<84x84xbf16>, vector<84x64xbf16>, vector<84x64xf32> -> vector<84x64xf32>
    %19 = arith.addf %14, %18 : vector<84x64xf32>
    %c0_14 = arith.constant 0 : index
    %c0_15 = arith.constant 0 : index
    %20 = vector.load %arg2[%c0_14, %c0_15] : memref<1x64xf32, #tpu.memory_space<vmem>>, vector<1x64xf32>
    %21 = vector.broadcast %20 : vector<1x64xf32> to vector<84x64xf32>
    %22 = arith.addf %19, %21 : vector<84x64xf32>
    %cst_16 = arith.constant 0.000000e+00 : f32
    %23 = vector.broadcast %cst_16 : f32 to vector<84x64xf32>
    %24 = arith.maximumf %22, %23 : vector<84x64xf32>
    %25 = arith.truncf %24 : vector<84x64xf32> to vector<84x64xbf16>
    %26 = vector.shape_cast %25 : vector<84x64xbf16> to vector<4x1x21x64xbf16>
    %cst_17 = arith.constant 0.000000e+00 : f32
    %27 = vector.broadcast %cst_17 : f32 to vector<84x64xf32>
    %28 = vector.shape_cast %26 : vector<4x1x21x64xbf16> to vector<84x64xbf16>
    %c4 = arith.constant 4 : index
    %c0_18 = arith.constant 0 : index
    %c0_19 = arith.constant 0 : index
    %29 = vector.load %arg4[%c4, %c0_18, %c0_19] : memref<9x64x64xbf16, #tpu.memory_space<vmem>>, vector<1x64x64xbf16>
    %30 = vector.shape_cast %29 : vector<1x64x64xbf16> to vector<64x64xbf16>
    %cst_20 = arith.constant dense<0.000000e+00> : vector<84x64xf32>
    %31 = tpu.matmul %28, %30, %cst_20 {dimension_numbers = #tpu.dot_dimension_numbers<[1], [0], [0], [1], [0, 0, 1, 1], [], []>} : vector<84x64xbf16>, vector<64x64xbf16>, vector<84x64xf32> -> vector<84x64xf32>
    %32 = arith.addf %27, %31 : vector<84x64xf32>
    %c0_21 = arith.constant 0 : index
    %c0_22 = arith.constant 0 : index
    %33 = vector.load %arg5[%c0_21, %c0_22] : memref<1x64xf32, #tpu.memory_space<vmem>>, vector<1x64xf32>
    %34 = vector.broadcast %33 : vector<1x64xf32> to vector<84x64xf32>
    %35 = arith.addf %32, %34 : vector<84x64xf32>
    %cst_23 = arith.constant 0.000000e+00 : f32
    %36 = vector.broadcast %cst_23 : f32 to vector<84x64xf32>
    %37 = arith.maximumf %35, %36 : vector<84x64xf32>
    %38 = arith.truncf %37 : vector<84x64xf32> to vector<84x64xbf16>
    %c0_24 = arith.constant 0 : index
    %c0_25 = arith.constant 0 : index
    %39 = vector.load %arg6[%c0_24, %c0_25] : memref<84x64xbf16, #tpu.memory_space<vmem>>, vector<84x64xbf16>
    tpu.vector_store %arg6[%c0_24, %c0_25], %38 {strides = array<i32>} : memref<84x64xbf16, #tpu.memory_space<vmem>>, vector<84x64xbf16>,
    return
  }
}

module attributes {stable_mosaic.version = 11 : i64} {
  func.func @kernel(%arg0: memref<84x64xbf16, #tpu.memory_space<vmem>>, %arg1: memref<64x192xbf16, #tpu.memory_space<vmem>>, %arg2: memref<1x64xf32, #tpu.memory_space<vmem>>, %arg3: memref<3x84x84xbf16, #tpu.memory_space<vmem>>, %arg4: memref<9x64x64xbf16, #tpu.memory_space<vmem>>, %arg5: memref<1x64xf32, #tpu.memory_space<vmem>>, %arg6: memref<84x64xbf16, #tpu.memory_space<vmem>>) attributes {dimension_semantics = [], scalar_prefetch = 0 : i64, scratch_operands = 0 : i64, tpu.core_type = #tpu.core_type<tc>} {
    %c0 = arith.constant 0 : index
    %c0_0 = arith.constant 0 : index
    %0 = vector.load %arg0[%c0, %c0_0] : memref<84x64xbf16, #tpu.memory_space<vmem>>, vector<84x64xbf16>
    %c0_1 = arith.constant 0 : index
    %c0_2 = arith.constant 0 : index
    %1 = vector.load %arg1[%c0_1, %c0_2] : memref<64x192xbf16, #tpu.memory_space<vmem>>, vector<64x192xbf16>
    %cst = arith.constant dense<0.000000e+00> : vector<84x192xf32>
    %2 = tpu.matmul %0, %1, %cst {dimension_numbers = #tpu.dot_dimension_numbers<[1], [0], [0], [1], [0, 0, 1, 1], [], []>} : vector<84x64xbf16>, vector<64x192xbf16>, vector<84x192xf32> -> vector<84x192xf32>
    %3 = arith.truncf %2 : vector<84x192xf32> to vector<84x192xbf16>
    %cst_3 = arith.constant 0.000000e+00 : f32
    %4 = vector.broadcast %cst_3 : f32 to vector<84x64xf32>
    %c0_4 = arith.constant 0 : index
    %c0_5 = arith.constant 0 : index
    %c0_6 = arith.constant 0 : index
    %5 = vector.load %arg3[%c0_4, %c0_5, %c0_6] : memref<3x84x84xbf16, #tpu.memory_space<vmem>>, vector<1x84x84xbf16>
    %6 = vector.shape_cast %5 : vector<1x84x84xbf16> to vector<84x84xbf16>
    %7 = vector.extract_strided_slice %3 {offsets = [0, 0], sizes = [84, 64], strides = [1, 1]} : vector<84x192xbf16> to vector<84x64xbf16>
    %cst_7 = arith.constant dense<0.000000e+00> : vector<84x64xf32>
    %8 = tpu.matmul %6, %7, %cst_7 {dimension_numbers = #tpu.dot_dimension_numbers<[1], [0], [0], [1], [0, 0, 1, 1], [], []>} : vector<84x84xbf16>, vector<84x64xbf16>, vector<84x64xf32> -> vector<84x64xf32>
    %9 = arith.addf %4, %8 : vector<84x64xf32>
    %c1 = arith.constant 1 : index
    %c0_8 = arith.constant 0 : index
    %c0_9 = arith.constant 0 : index
    %10 = vector.load %arg3[%c1, %c0_8, %c0_9] : memref<3x84x84xbf16, #tpu.memory_space<vmem>>, vector<1x84x84xbf16>
    %11 = vector.shape_cast %10 : vector<1x84x84xbf16> to vector<84x84xbf16>
    %12 = vector.extract_strided_slice %3 {offsets = [0, 64], sizes = [84, 64], strides = [1, 1]} : vector<84x192xbf16> to vector<84x64xbf16>
    %cst_10 = arith.constant dense<0.000000e+00> : vector<84x64xf32>
    %13 = tpu.matmul %11, %12, %cst_10 {dimension_numbers = #tpu.dot_dimension_numbers<[1], [0], [0], [1], [0, 0, 1, 1], [], []>} : vector<84x84xbf16>, vector<84x64xbf16>, vector<84x64xf32> -> vector<84x64xf32>
    %14 = arith.addf %9, %13 : vector<84x64xf32>
    %c2 = arith.constant 2 : index
    %c0_11 = arith.constant 0 : index
    %c0_12 = arith.constant 0 : index
    %15 = vector.load %arg3[%c2, %c0_11, %c0_12] : memref<3x84x84xbf16, #tpu.memory_space<vmem>>, vector<1x84x84xbf16>
    %16 = vector.shape_cast %15 : vector<1x84x84xbf16> to vector<84x84xbf16>
    %17 = vector.extract_strided_slice %3 {offsets = [0, 128], sizes = [84, 64], strides = [1, 1]} : vector<84x192xbf16> to vector<84x64xbf16>
    %cst_13 = arith.constant dense<0.000000e+00> : vector<84x64xf32>
    %18 = tpu.matmul %16, %17, %cst_13 {dimension_numbers = #tpu.dot_dimension_numbers<[1], [0], [0], [1], [0, 0, 1, 1], [], []>} : vector<84x84xbf16>, vector<84x64xbf16>, vector<84x64xf32> -> vector<84x64xf32>
    %19 = arith.addf %14, %18 : vector<84x64xf32>
    %c0_14 = arith.constant 0 : index
    %c0_15 = arith.constant 0 : index
    %20 = vector.load %arg2[%c0_14, %c0_15] : memref<1x64xf32, #tpu.memory_space<vmem>>, vector<1x64xf32>
    %21 = vector.broadcast %20 : vector<1x64xf32> to vector<84x64xf32>
    %22 = arith.addf %19, %21 : vector<84x64xf32>
    %cst_16 = arith.constant 0.000000e+00 : f32
    %23 = vector.broadcast %cst_16 : f32 to vector<84x64xf32>
    %24 = arith.maximumf %22, %23 : vector<84x64xf32>
    %25 = arith.truncf %24 : vector<84x64xf32> to vector<84x64xbf16>
    %26 = vector.shape_cast %25 : vector<84x64xbf16> to vector<4x1x21x64xbf16>
    %cst_17 = arith.constant 0.000000e+00 : f32
    %27 = vector.broadcast %cst_17 : f32 to vector<84x64xf32>
    %28 = vector.shape_cast %26 : vector<4x1x21x64xbf16> to vector<84x64xbf16>
    %c4 = arith.constant 4 : index
    %c0_18 = arith.constant 0 : index
    %c0_19 = arith.constant 0 : index
    %29 = vector.load %arg4[%c4, %c0_18, %c0_19] : memref<9x64x64xbf16, #tpu.memory_space<vmem>>, vector<1x64x64xbf16>
    %30 = vector.shape_cast %29 : vector<1x64x64xbf16> to vector<64x64xbf16>
    %cst_20 = arith.constant dense<0.000000e+00> : vector<84x64xf32>
    %31 = tpu.matmul %28, %30, %cst_20 {dimension_numbers = #tpu.dot_dimension_numbers<[1], [0], [0], [1], [0, 0, 1, 1], [], []>} : vector<84x64xbf16>, vector<64x64xbf16>, vector<84x64xf32> -> vector<84x64xf32>
    %32 = arith.addf %27, %31 : vector<84x64xf32>
    %c0_21 = arith.constant 0 : index
    %c0_22 = arith.constant 0 : index
    %33 = vector.load %arg5[%c0_21, %c0_22] : memref<1x64xf32, #tpu.memory_space<vmem>>, vector<1x64xf32>
    %34 = vector.broadcast %33 : vector<1x64xf32> to vector<84x64xf32>
    %35 = arith.addf %32, %34 : vector<84x64xf32>
    %36 = arith.extf %0 : vector<84x64xbf16> to vector<84x64xf32>
    %37 = arith.addf %35, %36 : vector<84x64xf32>
    %cst_23 = arith.constant 0.000000e+00 : f32
    %38 = vector.broadcast %cst_23 : f32 to vector<84x64xf32>
    %39 = arith.maximumf %37, %38 : vector<84x64xf32>
    %40 = arith.truncf %39 : vector<84x64xf32> to vector<84x64xbf16>
    %c0_24 = arith.constant 0 : index
    %c0_25 = arith.constant 0 : index
    %41 = vector.load %arg6[%c0_24, %c0_25] : memref<84x64xbf16, #tpu.memory_space<vmem>>, vector<84x64xbf16>
    tpu.vector_store %arg6[%c0_24, %c0_25], %40 {strides = array<i32>} : memref<84x64xbf16, #tpu.memory_space<vmem>>, vector<84x64xbf16>,
    return
  }
}

module attributes {stable_mosaic.version = 11 : i64} {
  func.func @kernel(%arg0: memref<84x32xbf16, #tpu.memory_space<vmem>>, %arg1: memref<32x384xbf16, #tpu.memory_space<vmem>>, %arg2: memref<1x128xf32, #tpu.memory_space<vmem>>, %arg3: memref<3x84x84xbf16, #tpu.memory_space<vmem>>, %arg4: memref<9x128x128xbf16, #tpu.memory_space<vmem>>, %arg5: memref<1x128xf32, #tpu.memory_space<vmem>>, %arg6: memref<32x128xbf16, #tpu.memory_space<vmem>>, %arg7: memref<1x128xf32, #tpu.memory_space<vmem>>, %arg8: memref<84x128xbf16, #tpu.memory_space<vmem>>) attributes {dimension_semantics = [], scalar_prefetch = 0 : i64, scratch_operands = 0 : i64, tpu.core_type = #tpu.core_type<tc>} {
    %c0 = arith.constant 0 : index
    %c0_0 = arith.constant 0 : index
    %0 = vector.load %arg0[%c0, %c0_0] : memref<84x32xbf16, #tpu.memory_space<vmem>>, vector<84x32xbf16>
    %c0_1 = arith.constant 0 : index
    %c0_2 = arith.constant 0 : index
    %1 = vector.load %arg1[%c0_1, %c0_2] : memref<32x384xbf16, #tpu.memory_space<vmem>>, vector<32x384xbf16>
    %cst = arith.constant dense<0.000000e+00> : vector<84x384xf32>
    %2 = tpu.matmul %0, %1, %cst {dimension_numbers = #tpu.dot_dimension_numbers<[1], [0], [0], [1], [0, 0, 1, 1], [], []>} : vector<84x32xbf16>, vector<32x384xbf16>, vector<84x384xf32> -> vector<84x384xf32>
    %3 = arith.truncf %2 : vector<84x384xf32> to vector<84x384xbf16>
    %cst_3 = arith.constant 0.000000e+00 : f32
    %4 = vector.broadcast %cst_3 : f32 to vector<84x128xf32>
    %c0_4 = arith.constant 0 : index
    %c0_5 = arith.constant 0 : index
    %c0_6 = arith.constant 0 : index
    %5 = vector.load %arg3[%c0_4, %c0_5, %c0_6] : memref<3x84x84xbf16, #tpu.memory_space<vmem>>, vector<1x84x84xbf16>
    %6 = vector.shape_cast %5 : vector<1x84x84xbf16> to vector<84x84xbf16>
    %7 = vector.extract_strided_slice %3 {offsets = [0, 0], sizes = [84, 128], strides = [1, 1]} : vector<84x384xbf16> to vector<84x128xbf16>
    %cst_7 = arith.constant dense<0.000000e+00> : vector<84x128xf32>
    %8 = tpu.matmul %6, %7, %cst_7 {dimension_numbers = #tpu.dot_dimension_numbers<[1], [0], [0], [1], [0, 0, 1, 1], [], []>} : vector<84x84xbf16>, vector<84x128xbf16>, vector<84x128xf32> -> vector<84x128xf32>
    %9 = arith.addf %4, %8 : vector<84x128xf32>
    %c1 = arith.constant 1 : index
    %c0_8 = arith.constant 0 : index
    %c0_9 = arith.constant 0 : index
    %10 = vector.load %arg3[%c1, %c0_8, %c0_9] : memref<3x84x84xbf16, #tpu.memory_space<vmem>>, vector<1x84x84xbf16>
    %11 = vector.shape_cast %10 : vector<1x84x84xbf16> to vector<84x84xbf16>
    %12 = vector.extract_strided_slice %3 {offsets = [0, 128], sizes = [84, 128], strides = [1, 1]} : vector<84x384xbf16> to vector<84x128xbf16>
    %cst_10 = arith.constant dense<0.000000e+00> : vector<84x128xf32>
    %13 = tpu.matmul %11, %12, %cst_10 {dimension_numbers = #tpu.dot_dimension_numbers<[1], [0], [0], [1], [0, 0, 1, 1], [], []>} : vector<84x84xbf16>, vector<84x128xbf16>, vector<84x128xf32> -> vector<84x128xf32>
    %14 = arith.addf %9, %13 : vector<84x128xf32>
    %c2 = arith.constant 2 : index
    %c0_11 = arith.constant 0 : index
    %c0_12 = arith.constant 0 : index
    %15 = vector.load %arg3[%c2, %c0_11, %c0_12] : memref<3x84x84xbf16, #tpu.memory_space<vmem>>, vector<1x84x84xbf16>
    %16 = vector.shape_cast %15 : vector<1x84x84xbf16> to vector<84x84xbf16>
    %17 = vector.extract_strided_slice %3 {offsets = [0, 256], sizes = [84, 128], strides = [1, 1]} : vector<84x384xbf16> to vector<84x128xbf16>
    %cst_13 = arith.constant dense<0.000000e+00> : vector<84x128xf32>
    %18 = tpu.matmul %16, %17, %cst_13 {dimension_numbers = #tpu.dot_dimension_numbers<[1], [0], [0], [1], [0, 0, 1, 1], [], []>} : vector<84x84xbf16>, vector<84x128xbf16>, vector<84x128xf32> -> vector<84x128xf32>
    %19 = arith.addf %14, %18 : vector<84x128xf32>
    %c0_14 = arith.constant 0 : index
    %c0_15 = arith.constant 0 : index
    %20 = vector.load %arg2[%c0_14, %c0_15] : memref<1x128xf32, #tpu.memory_space<vmem>>, vector<1x128xf32>
    %21 = vector.broadcast %20 : vector<1x128xf32> to vector<84x128xf32>
    %22 = arith.addf %19, %21 : vector<84x128xf32>
    %cst_16 = arith.constant 0.000000e+00 : f32
    %23 = vector.broadcast %cst_16 : f32 to vector<84x128xf32>
    %24 = arith.maximumf %22, %23 : vector<84x128xf32>
    %25 = arith.truncf %24 : vector<84x128xf32> to vector<84x128xbf16>
    %26 = vector.shape_cast %25 : vector<84x128xbf16> to vector<4x1x21x128xbf16>
    %cst_17 = arith.constant 0.000000e+00 : f32
    %27 = vector.broadcast %cst_17 : f32 to vector<84x128xf32>
    %28 = vector.shape_cast %26 : vector<4x1x21x128xbf16> to vector<84x128xbf16>
    %c4 = arith.constant 4 : index
    %c0_18 = arith.constant 0 : index
    %c0_19 = arith.constant 0 : index
    %29 = vector.load %arg4[%c4, %c0_18, %c0_19] : memref<9x128x128xbf16, #tpu.memory_space<vmem>>, vector<1x128x128xbf16>
    %30 = vector.shape_cast %29 : vector<1x128x128xbf16> to vector<128x128xbf16>
    %cst_20 = arith.constant dense<0.000000e+00> : vector<84x128xf32>
    %31 = tpu.matmul %28, %30, %cst_20 {dimension_numbers = #tpu.dot_dimension_numbers<[1], [0], [0], [1], [0, 0, 1, 1], [], []>} : vector<84x128xbf16>, vector<128x128xbf16>, vector<84x128xf32> -> vector<84x128xf32>
    %32 = arith.addf %27, %31 : vector<84x128xf32>
    %c0_21 = arith.constant 0 : index
    %c0_22 = arith.constant 0 : index
    %33 = vector.load %arg5[%c0_21, %c0_22] : memref<1x128xf32, #tpu.memory_space<vmem>>, vector<1x128xf32>
    %34 = vector.broadcast %33 : vector<1x128xf32> to vector<84x128xf32>
    %35 = arith.addf %32, %34 : vector<84x128xf32>
    %36 = vector.shape_cast %0 : vector<84x32xbf16> to vector<4x1x21x32xbf16>
    %37 = vector.shape_cast %36 : vector<4x1x21x32xbf16> to vector<84x32xbf16>
    %c0_23 = arith.constant 0 : index
    %c0_24 = arith.constant 0 : index
    %38 = vector.load %arg6[%c0_23, %c0_24] : memref<32x128xbf16, #tpu.memory_space<vmem>>, vector<32x128xbf16>
    %cst_25 = arith.constant dense<0.000000e+00> : vector<84x128xf32>
    %39 = tpu.matmul %37, %38, %cst_25 {dimension_numbers = #tpu.dot_dimension_numbers<[1], [0], [0], [1], [0, 0, 1, 1], [], []>} : vector<84x32xbf16>, vector<32x128xbf16>, vector<84x128xf32> -> vector<84x128xf32>
    %c0_26 = arith.constant 0 : index
    %c0_27 = arith.constant 0 : index
    %40 = vector.load %arg7[%c0_26, %c0_27] : memref<1x128xf32, #tpu.memory_space<vmem>>, vector<1x128xf32>
    %41 = vector.broadcast %40 : vector<1x128xf32> to vector<84x128xf32>
    %42 = arith.addf %39, %41 : vector<84x128xf32>
    %43 = arith.addf %35, %42 : vector<84x128xf32>
    %cst_28 = arith.constant 0.000000e+00 : f32
    %44 = vector.broadcast %cst_28 : f32 to vector<84x128xf32>
    %45 = arith.maximumf %43, %44 : vector<84x128xf32>
    %46 = arith.truncf %45 : vector<84x128xf32> to vector<84x128xbf16>
    %c0_29 = arith.constant 0 : index
    %c0_30 = arith.constant 0 : index
    %47 = vector.load %arg8[%c0_29, %c0_30] : memref<84x128xbf16, #tpu.memory_space<vmem>>, vector<84x128xbf16>
    tpu.vector_store %arg8[%c0_29, %c0_30], %46 {strides = array<i32>} : memref<84x128xbf16, #tpu.memory_space<vmem>>, vector<84x128xbf16>,
    return
  }
}

module attributes {stable_mosaic.version = 11 : i64} {
  func.func @kernel(%arg0: memref<84x128xbf16, #tpu.memory_space<vmem>>, %arg1: memref<128x384xbf16, #tpu.memory_space<vmem>>, %arg2: memref<1x128xf32, #tpu.memory_space<vmem>>, %arg3: memref<3x84x84xbf16, #tpu.memory_space<vmem>>, %arg4: memref<9x128x128xbf16, #tpu.memory_space<vmem>>, %arg5: memref<1x128xf32, #tpu.memory_space<vmem>>, %arg6: memref<84x128xbf16, #tpu.memory_space<vmem>>) attributes {dimension_semantics = [], scalar_prefetch = 0 : i64, scratch_operands = 0 : i64, tpu.core_type = #tpu.core_type<tc>} {
    %c0 = arith.constant 0 : index
    %c0_0 = arith.constant 0 : index
    %0 = vector.load %arg0[%c0, %c0_0] : memref<84x128xbf16, #tpu.memory_space<vmem>>, vector<84x128xbf16>
    %c0_1 = arith.constant 0 : index
    %c0_2 = arith.constant 0 : index
    %1 = vector.load %arg1[%c0_1, %c0_2] : memref<128x384xbf16, #tpu.memory_space<vmem>>, vector<128x384xbf16>
    %cst = arith.constant dense<0.000000e+00> : vector<84x384xf32>
    %2 = tpu.matmul %0, %1, %cst {dimension_numbers = #tpu.dot_dimension_numbers<[1], [0], [0], [1], [0, 0, 1, 1], [], []>} : vector<84x128xbf16>, vector<128x384xbf16>, vector<84x384xf32> -> vector<84x384xf32>
    %3 = arith.truncf %2 : vector<84x384xf32> to vector<84x384xbf16>
    %cst_3 = arith.constant 0.000000e+00 : f32
    %4 = vector.broadcast %cst_3 : f32 to vector<84x128xf32>
    %c0_4 = arith.constant 0 : index
    %c0_5 = arith.constant 0 : index
    %c0_6 = arith.constant 0 : index
    %5 = vector.load %arg3[%c0_4, %c0_5, %c0_6] : memref<3x84x84xbf16, #tpu.memory_space<vmem>>, vector<1x84x84xbf16>
    %6 = vector.shape_cast %5 : vector<1x84x84xbf16> to vector<84x84xbf16>
    %7 = vector.extract_strided_slice %3 {offsets = [0, 0], sizes = [84, 128], strides = [1, 1]} : vector<84x384xbf16> to vector<84x128xbf16>
    %cst_7 = arith.constant dense<0.000000e+00> : vector<84x128xf32>
    %8 = tpu.matmul %6, %7, %cst_7 {dimension_numbers = #tpu.dot_dimension_numbers<[1], [0], [0], [1], [0, 0, 1, 1], [], []>} : vector<84x84xbf16>, vector<84x128xbf16>, vector<84x128xf32> -> vector<84x128xf32>
    %9 = arith.addf %4, %8 : vector<84x128xf32>
    %c1 = arith.constant 1 : index
    %c0_8 = arith.constant 0 : index
    %c0_9 = arith.constant 0 : index
    %10 = vector.load %arg3[%c1, %c0_8, %c0_9] : memref<3x84x84xbf16, #tpu.memory_space<vmem>>, vector<1x84x84xbf16>
    %11 = vector.shape_cast %10 : vector<1x84x84xbf16> to vector<84x84xbf16>
    %12 = vector.extract_strided_slice %3 {offsets = [0, 128], sizes = [84, 128], strides = [1, 1]} : vector<84x384xbf16> to vector<84x128xbf16>
    %cst_10 = arith.constant dense<0.000000e+00> : vector<84x128xf32>
    %13 = tpu.matmul %11, %12, %cst_10 {dimension_numbers = #tpu.dot_dimension_numbers<[1], [0], [0], [1], [0, 0, 1, 1], [], []>} : vector<84x84xbf16>, vector<84x128xbf16>, vector<84x128xf32> -> vector<84x128xf32>
    %14 = arith.addf %9, %13 : vector<84x128xf32>
    %c2 = arith.constant 2 : index
    %c0_11 = arith.constant 0 : index
    %c0_12 = arith.constant 0 : index
    %15 = vector.load %arg3[%c2, %c0_11, %c0_12] : memref<3x84x84xbf16, #tpu.memory_space<vmem>>, vector<1x84x84xbf16>
    %16 = vector.shape_cast %15 : vector<1x84x84xbf16> to vector<84x84xbf16>
    %17 = vector.extract_strided_slice %3 {offsets = [0, 256], sizes = [84, 128], strides = [1, 1]} : vector<84x384xbf16> to vector<84x128xbf16>
    %cst_13 = arith.constant dense<0.000000e+00> : vector<84x128xf32>
    %18 = tpu.matmul %16, %17, %cst_13 {dimension_numbers = #tpu.dot_dimension_numbers<[1], [0], [0], [1], [0, 0, 1, 1], [], []>} : vector<84x84xbf16>, vector<84x128xbf16>, vector<84x128xf32> -> vector<84x128xf32>
    %19 = arith.addf %14, %18 : vector<84x128xf32>
    %c0_14 = arith.constant 0 : index
    %c0_15 = arith.constant 0 : index
    %20 = vector.load %arg2[%c0_14, %c0_15] : memref<1x128xf32, #tpu.memory_space<vmem>>, vector<1x128xf32>
    %21 = vector.broadcast %20 : vector<1x128xf32> to vector<84x128xf32>
    %22 = arith.addf %19, %21 : vector<84x128xf32>
    %cst_16 = arith.constant 0.000000e+00 : f32
    %23 = vector.broadcast %cst_16 : f32 to vector<84x128xf32>
    %24 = arith.maximumf %22, %23 : vector<84x128xf32>
    %25 = arith.truncf %24 : vector<84x128xf32> to vector<84x128xbf16>
    %26 = vector.shape_cast %25 : vector<84x128xbf16> to vector<4x1x21x128xbf16>
    %cst_17 = arith.constant 0.000000e+00 : f32
    %27 = vector.broadcast %cst_17 : f32 to vector<84x128xf32>
    %28 = vector.shape_cast %26 : vector<4x1x21x128xbf16> to vector<84x128xbf16>
    %c4 = arith.constant 4 : index
    %c0_18 = arith.constant 0 : index
    %c0_19 = arith.constant 0 : index
    %29 = vector.load %arg4[%c4, %c0_18, %c0_19] : memref<9x128x128xbf16, #tpu.memory_space<vmem>>, vector<1x128x128xbf16>
    %30 = vector.shape_cast %29 : vector<1x128x128xbf16> to vector<128x128xbf16>
    %cst_20 = arith.constant dense<0.000000e+00> : vector<84x128xf32>
    %31 = tpu.matmul %28, %30, %cst_20 {dimension_numbers = #tpu.dot_dimension_numbers<[1], [0], [0], [1], [0, 0, 1, 1], [], []>} : vector<84x128xbf16>, vector<128x128xbf16>, vector<84x128xf32> -> vector<84x128xf32>
    %32 = arith.addf %27, %31 : vector<84x128xf32>
    %c0_21 = arith.constant 0 : index
    %c0_22 = arith.constant 0 : index
    %33 = vector.load %arg5[%c0_21, %c0_22] : memref<1x128xf32, #tpu.memory_space<vmem>>, vector<1x128xf32>
    %34 = vector.broadcast %33 : vector<1x128xf32> to vector<84x128xf32>
    %35 = arith.addf %32, %34 : vector<84x128xf32>
    %36 = arith.extf %0 : vector<84x128xbf16> to vector<84x128xf32>
    %37 = arith.addf %35, %36 : vector<84x128xf32>
    %cst_23 = arith.constant 0.000000e+00 : f32
    %38 = vector.broadcast %cst_23 : f32 to vector<84x128xf32>
    %39 = arith.maximumf %37, %38 : vector<84x128xf32>
    %40 = arith.truncf %39 : vector<84x128xf32> to vector<84x128xbf16>
    %c0_24 = arith.constant 0 : index
    %c0_25 = arith.constant 0 : index
    %41 = vector.load %arg6[%c0_24, %c0_25] : memref<84x128xbf16, #tpu.memory_space<vmem>>, vector<84x128xbf16>
    tpu.vector_store %arg6[%c0_24, %c0_25], %40 {strides = array<i32>} : memref<84x128xbf16, #tpu.memory_space<vmem>>, vector<84x128xbf16>,
    return
  }
}

module attributes {stable_mosaic.version = 11 : i64} {
  func.func @kernel(%arg0: memref<84x128xbf16, #tpu.memory_space<vmem>>, %arg1: memref<128x768xbf16, #tpu.memory_space<vmem>>, %arg2: memref<1x256xf32, #tpu.memory_space<vmem>>, %arg3: memref<3x84x84xbf16, #tpu.memory_space<vmem>>, %arg4: memref<9x256x256xbf16, #tpu.memory_space<vmem>>, %arg5: memref<1x256xf32, #tpu.memory_space<vmem>>, %arg6: memref<128x256xbf16, #tpu.memory_space<vmem>>, %arg7: memref<1x256xf32, #tpu.memory_space<vmem>>, %arg8: memref<84x256xbf16, #tpu.memory_space<vmem>>) attributes {dimension_semantics = [], scalar_prefetch = 0 : i64, scratch_operands = 0 : i64, tpu.core_type = #tpu.core_type<tc>} {
    %c0 = arith.constant 0 : index
    %c0_0 = arith.constant 0 : index
    %0 = vector.load %arg0[%c0, %c0_0] : memref<84x128xbf16, #tpu.memory_space<vmem>>, vector<84x128xbf16>
    %c0_1 = arith.constant 0 : index
    %c0_2 = arith.constant 0 : index
    %1 = vector.load %arg1[%c0_1, %c0_2] : memref<128x768xbf16, #tpu.memory_space<vmem>>, vector<128x768xbf16>
    %cst = arith.constant dense<0.000000e+00> : vector<84x768xf32>
    %2 = tpu.matmul %0, %1, %cst {dimension_numbers = #tpu.dot_dimension_numbers<[1], [0], [0], [1], [0, 0, 1, 1], [], []>} : vector<84x128xbf16>, vector<128x768xbf16>, vector<84x768xf32> -> vector<84x768xf32>
    %3 = arith.truncf %2 : vector<84x768xf32> to vector<84x768xbf16>
    %cst_3 = arith.constant 0.000000e+00 : f32
    %4 = vector.broadcast %cst_3 : f32 to vector<84x256xf32>
    %c0_4 = arith.constant 0 : index
    %c0_5 = arith.constant 0 : index
    %c0_6 = arith.constant 0 : index
    %5 = vector.load %arg3[%c0_4, %c0_5, %c0_6] : memref<3x84x84xbf16, #tpu.memory_space<vmem>>, vector<1x84x84xbf16>
    %6 = vector.shape_cast %5 : vector<1x84x84xbf16> to vector<84x84xbf16>
    %7 = vector.extract_strided_slice %3 {offsets = [0, 0], sizes = [84, 256], strides = [1, 1]} : vector<84x768xbf16> to vector<84x256xbf16>
    %cst_7 = arith.constant dense<0.000000e+00> : vector<84x256xf32>
    %8 = tpu.matmul %6, %7, %cst_7 {dimension_numbers = #tpu.dot_dimension_numbers<[1], [0], [0], [1], [0, 0, 1, 1], [], []>} : vector<84x84xbf16>, vector<84x256xbf16>, vector<84x256xf32> -> vector<84x256xf32>
    %9 = arith.addf %4, %8 : vector<84x256xf32>
    %c1 = arith.constant 1 : index
    %c0_8 = arith.constant 0 : index
    %c0_9 = arith.constant 0 : index
    %10 = vector.load %arg3[%c1, %c0_8, %c0_9] : memref<3x84x84xbf16, #tpu.memory_space<vmem>>, vector<1x84x84xbf16>
    %11 = vector.shape_cast %10 : vector<1x84x84xbf16> to vector<84x84xbf16>
    %12 = vector.extract_strided_slice %3 {offsets = [0, 256], sizes = [84, 256], strides = [1, 1]} : vector<84x768xbf16> to vector<84x256xbf16>
    %cst_10 = arith.constant dense<0.000000e+00> : vector<84x256xf32>
    %13 = tpu.matmul %11, %12, %cst_10 {dimension_numbers = #tpu.dot_dimension_numbers<[1], [0], [0], [1], [0, 0, 1, 1], [], []>} : vector<84x84xbf16>, vector<84x256xbf16>, vector<84x256xf32> -> vector<84x256xf32>
    %14 = arith.addf %9, %13 : vector<84x256xf32>
    %c2 = arith.constant 2 : index
    %c0_11 = arith.constant 0 : index
    %c0_12 = arith.constant 0 : index
    %15 = vector.load %arg3[%c2, %c0_11, %c0_12] : memref<3x84x84xbf16, #tpu.memory_space<vmem>>, vector<1x84x84xbf16>
    %16 = vector.shape_cast %15 : vector<1x84x84xbf16> to vector<84x84xbf16>
    %17 = vector.extract_strided_slice %3 {offsets = [0, 512], sizes = [84, 256], strides = [1, 1]} : vector<84x768xbf16> to vector<84x256xbf16>
    %cst_13 = arith.constant dense<0.000000e+00> : vector<84x256xf32>
    %18 = tpu.matmul %16, %17, %cst_13 {dimension_numbers = #tpu.dot_dimension_numbers<[1], [0], [0], [1], [0, 0, 1, 1], [], []>} : vector<84x84xbf16>, vector<84x256xbf16>, vector<84x256xf32> -> vector<84x256xf32>
    %19 = arith.addf %14, %18 : vector<84x256xf32>
    %c0_14 = arith.constant 0 : index
    %c0_15 = arith.constant 0 : index
    %20 = vector.load %arg2[%c0_14, %c0_15] : memref<1x256xf32, #tpu.memory_space<vmem>>, vector<1x256xf32>
    %21 = vector.broadcast %20 : vector<1x256xf32> to vector<84x256xf32>
    %22 = arith.addf %19, %21 : vector<84x256xf32>
    %cst_16 = arith.constant 0.000000e+00 : f32
    %23 = vector.broadcast %cst_16 : f32 to vector<84x256xf32>
    %24 = arith.maximumf %22, %23 : vector<84x256xf32>
    %25 = arith.truncf %24 : vector<84x256xf32> to vector<84x256xbf16>
    %26 = vector.shape_cast %25 : vector<84x256xbf16> to vector<4x1x21x256xbf16>
    %cst_17 = arith.constant 0.000000e+00 : f32
    %27 = vector.broadcast %cst_17 : f32 to vector<84x256xf32>
    %28 = vector.shape_cast %26 : vector<4x1x21x256xbf16> to vector<84x256xbf16>
    %c4 = arith.constant 4 : index
    %c0_18 = arith.constant 0 : index
    %c0_19 = arith.constant 0 : index
    %29 = vector.load %arg4[%c4, %c0_18, %c0_19] : memref<9x256x256xbf16, #tpu.memory_space<vmem>>, vector<1x256x256xbf16>
    %30 = vector.shape_cast %29 : vector<1x256x256xbf16> to vector<256x256xbf16>
    %cst_20 = arith.constant dense<0.000000e+00> : vector<84x256xf32>
    %31 = tpu.matmul %28, %30, %cst_20 {dimension_numbers = #tpu.dot_dimension_numbers<[1], [0], [0], [1], [0, 0, 1, 1], [], []>} : vector<84x256xbf16>, vector<256x256xbf16>, vector<84x256xf32> -> vector<84x256xf32>
    %32 = arith.addf %27, %31 : vector<84x256xf32>
    %c0_21 = arith.constant 0 : index
    %c0_22 = arith.constant 0 : index
    %33 = vector.load %arg5[%c0_21, %c0_22] : memref<1x256xf32, #tpu.memory_space<vmem>>, vector<1x256xf32>
    %34 = vector.broadcast %33 : vector<1x256xf32> to vector<84x256xf32>
    %35 = arith.addf %32, %34 : vector<84x256xf32>
    %36 = vector.shape_cast %0 : vector<84x128xbf16> to vector<4x1x21x128xbf16>
    %37 = vector.shape_cast %36 : vector<4x1x21x128xbf16> to vector<84x128xbf16>
    %c0_23 = arith.constant 0 : index
    %c0_24 = arith.constant 0 : index
    %38 = vector.load %arg6[%c0_23, %c0_24] : memref<128x256xbf16, #tpu.memory_space<vmem>>, vector<128x256xbf16>
    %cst_25 = arith.constant dense<0.000000e+00> : vector<84x256xf32>
    %39 = tpu.matmul %37, %38, %cst_25 {dimension_numbers = #tpu.dot_dimension_numbers<[1], [0], [0], [1], [0, 0, 1, 1], [], []>} : vector<84x128xbf16>, vector<128x256xbf16>, vector<84x256xf32> -> vector<84x256xf32>
    %c0_26 = arith.constant 0 : index
    %c0_27 = arith.constant 0 : index
    %40 = vector.load %arg7[%c0_26, %c0_27] : memref<1x256xf32, #tpu.memory_space<vmem>>, vector<1x256xf32>
    %41 = vector.broadcast %40 : vector<1x256xf32> to vector<84x256xf32>
    %42 = arith.addf %39, %41 : vector<84x256xf32>
    %43 = arith.addf %35, %42 : vector<84x256xf32>
    %cst_28 = arith.constant 0.000000e+00 : f32
    %44 = vector.broadcast %cst_28 : f32 to vector<84x256xf32>
    %45 = arith.maximumf %43, %44 : vector<84x256xf32>
    %46 = arith.truncf %45 : vector<84x256xf32> to vector<84x256xbf16>
    %c0_29 = arith.constant 0 : index
    %c0_30 = arith.constant 0 : index
    %47 = vector.load %arg8[%c0_29, %c0_30] : memref<84x256xbf16, #tpu.memory_space<vmem>>, vector<84x256xbf16>
    tpu.vector_store %arg8[%c0_29, %c0_30], %46 {strides = array<i32>} : memref<84x256xbf16, #tpu.memory_space<vmem>>, vector<84x256xbf16>,
    return
  }
}

module attributes {stable_mosaic.version = 11 : i64} {
  func.func @kernel(%arg0: memref<84x256xbf16, #tpu.memory_space<vmem>>, %arg1: memref<256x768xbf16, #tpu.memory_space<vmem>>, %arg2: memref<1x256xf32, #tpu.memory_space<vmem>>, %arg3: memref<3x84x84xbf16, #tpu.memory_space<vmem>>, %arg4: memref<9x256x256xbf16, #tpu.memory_space<vmem>>, %arg5: memref<1x256xf32, #tpu.memory_space<vmem>>, %arg6: memref<84x256xbf16, #tpu.memory_space<vmem>>) attributes {dimension_semantics = [], scalar_prefetch = 0 : i64, scratch_operands = 0 : i64, tpu.core_type = #tpu.core_type<tc>} {
    %c0 = arith.constant 0 : index
    %c0_0 = arith.constant 0 : index
    %0 = vector.load %arg0[%c0, %c0_0] : memref<84x256xbf16, #tpu.memory_space<vmem>>, vector<84x256xbf16>
    %c0_1 = arith.constant 0 : index
    %c0_2 = arith.constant 0 : index
    %1 = vector.load %arg1[%c0_1, %c0_2] : memref<256x768xbf16, #tpu.memory_space<vmem>>, vector<256x768xbf16>
    %cst = arith.constant dense<0.000000e+00> : vector<84x768xf32>
    %2 = tpu.matmul %0, %1, %cst {dimension_numbers = #tpu.dot_dimension_numbers<[1], [0], [0], [1], [0, 0, 1, 1], [], []>} : vector<84x256xbf16>, vector<256x768xbf16>, vector<84x768xf32> -> vector<84x768xf32>
    %3 = arith.truncf %2 : vector<84x768xf32> to vector<84x768xbf16>
    %cst_3 = arith.constant 0.000000e+00 : f32
    %4 = vector.broadcast %cst_3 : f32 to vector<84x256xf32>
    %c0_4 = arith.constant 0 : index
    %c0_5 = arith.constant 0 : index
    %c0_6 = arith.constant 0 : index
    %5 = vector.load %arg3[%c0_4, %c0_5, %c0_6] : memref<3x84x84xbf16, #tpu.memory_space<vmem>>, vector<1x84x84xbf16>
    %6 = vector.shape_cast %5 : vector<1x84x84xbf16> to vector<84x84xbf16>
    %7 = vector.extract_strided_slice %3 {offsets = [0, 0], sizes = [84, 256], strides = [1, 1]} : vector<84x768xbf16> to vector<84x256xbf16>
    %cst_7 = arith.constant dense<0.000000e+00> : vector<84x256xf32>
    %8 = tpu.matmul %6, %7, %cst_7 {dimension_numbers = #tpu.dot_dimension_numbers<[1], [0], [0], [1], [0, 0, 1, 1], [], []>} : vector<84x84xbf16>, vector<84x256xbf16>, vector<84x256xf32> -> vector<84x256xf32>
    %9 = arith.addf %4, %8 : vector<84x256xf32>
    %c1 = arith.constant 1 : index
    %c0_8 = arith.constant 0 : index
    %c0_9 = arith.constant 0 : index
    %10 = vector.load %arg3[%c1, %c0_8, %c0_9] : memref<3x84x84xbf16, #tpu.memory_space<vmem>>, vector<1x84x84xbf16>
    %11 = vector.shape_cast %10 : vector<1x84x84xbf16> to vector<84x84xbf16>
    %12 = vector.extract_strided_slice %3 {offsets = [0, 256], sizes = [84, 256], strides = [1, 1]} : vector<84x768xbf16> to vector<84x256xbf16>
    %cst_10 = arith.constant dense<0.000000e+00> : vector<84x256xf32>
    %13 = tpu.matmul %11, %12, %cst_10 {dimension_numbers = #tpu.dot_dimension_numbers<[1], [0], [0], [1], [0, 0, 1, 1], [], []>} : vector<84x84xbf16>, vector<84x256xbf16>, vector<84x256xf32> -> vector<84x256xf32>
    %14 = arith.addf %9, %13 : vector<84x256xf32>
    %c2 = arith.constant 2 : index
    %c0_11 = arith.constant 0 : index
    %c0_12 = arith.constant 0 : index
    %15 = vector.load %arg3[%c2, %c0_11, %c0_12] : memref<3x84x84xbf16, #tpu.memory_space<vmem>>, vector<1x84x84xbf16>
    %16 = vector.shape_cast %15 : vector<1x84x84xbf16> to vector<84x84xbf16>
    %17 = vector.extract_strided_slice %3 {offsets = [0, 512], sizes = [84, 256], strides = [1, 1]} : vector<84x768xbf16> to vector<84x256xbf16>
    %cst_13 = arith.constant dense<0.000000e+00> : vector<84x256xf32>
    %18 = tpu.matmul %16, %17, %cst_13 {dimension_numbers = #tpu.dot_dimension_numbers<[1], [0], [0], [1], [0, 0, 1, 1], [], []>} : vector<84x84xbf16>, vector<84x256xbf16>, vector<84x256xf32> -> vector<84x256xf32>
    %19 = arith.addf %14, %18 : vector<84x256xf32>
    %c0_14 = arith.constant 0 : index
    %c0_15 = arith.constant 0 : index
    %20 = vector.load %arg2[%c0_14, %c0_15] : memref<1x256xf32, #tpu.memory_space<vmem>>, vector<1x256xf32>
    %21 = vector.broadcast %20 : vector<1x256xf32> to vector<84x256xf32>
    %22 = arith.addf %19, %21 : vector<84x256xf32>
    %cst_16 = arith.constant 0.000000e+00 : f32
    %23 = vector.broadcast %cst_16 : f32 to vector<84x256xf32>
    %24 = arith.maximumf %22, %23 : vector<84x256xf32>
    %25 = arith.truncf %24 : vector<84x256xf32> to vector<84x256xbf16>
    %26 = vector.shape_cast %25 : vector<84x256xbf16> to vector<4x1x21x256xbf16>
    %cst_17 = arith.constant 0.000000e+00 : f32
    %27 = vector.broadcast %cst_17 : f32 to vector<84x256xf32>
    %28 = vector.shape_cast %26 : vector<4x1x21x256xbf16> to vector<84x256xbf16>
    %c4 = arith.constant 4 : index
    %c0_18 = arith.constant 0 : index
    %c0_19 = arith.constant 0 : index
    %29 = vector.load %arg4[%c4, %c0_18, %c0_19] : memref<9x256x256xbf16, #tpu.memory_space<vmem>>, vector<1x256x256xbf16>
    %30 = vector.shape_cast %29 : vector<1x256x256xbf16> to vector<256x256xbf16>
    %cst_20 = arith.constant dense<0.000000e+00> : vector<84x256xf32>
    %31 = tpu.matmul %28, %30, %cst_20 {dimension_numbers = #tpu.dot_dimension_numbers<[1], [0], [0], [1], [0, 0, 1, 1], [], []>} : vector<84x256xbf16>, vector<256x256xbf16>, vector<84x256xf32> -> vector<84x256xf32>
    %32 = arith.addf %27, %31 : vector<84x256xf32>
    %c0_21 = arith.constant 0 : index
    %c0_22 = arith.constant 0 : index
    %33 = vector.load %arg5[%c0_21, %c0_22] : memref<1x256xf32, #tpu.memory_space<vmem>>, vector<1x256xf32>
    %34 = vector.broadcast %33 : vector<1x256xf32> to vector<84x256xf32>
    %35 = arith.addf %32, %34 : vector<84x256xf32>
    %36 = arith.extf %0 : vector<84x256xbf16> to vector<84x256xf32>
    %37 = arith.addf %35, %36 : vector<84x256xf32>
    %cst_23 = arith.constant 0.000000e+00 : f32
    %38 = vector.broadcast %cst_23 : f32 to vector<84x256xf32>
    %39 = arith.maximumf %37, %38 : vector<84x256xf32>
    %40 = arith.truncf %39 : vector<84x256xf32> to vector<84x256xbf16>
    %c0_24 = arith.constant 0 : index
    %c0_25 = arith.constant 0 : index
    %41 = vector.load %arg6[%c0_24, %c0_25] : memref<84x256xbf16, #tpu.memory_space<vmem>>, vector<84x256xbf16>
    tpu.vector_store %arg6[%c0_24, %c0_25], %40 {strides = array<i32>} : memref<84x256xbf16, #tpu.memory_space<vmem>>, vector<84x256xbf16>,
    return
  }
}

module attributes {stable_mosaic.version = 11 : i64} {
  func.func @head_kernel(%arg0: memref<2x42x256xbf16, #tpu.memory_space<vmem>>, %arg1: memref<2x42x256xbf16, #tpu.memory_space<vmem>>, %arg2: memref<256x54xbf16, #tpu.memory_space<vmem>>, %arg3: memref<1x54xf32, #tpu.memory_space<vmem>>, %arg4: memref<256x54xbf16, #tpu.memory_space<vmem>>, %arg5: memref<1x54xf32, #tpu.memory_space<vmem>>, %arg6: memref<2x54xf32, #tpu.memory_space<vmem>>, %arg7: memref<2x54xf32, #tpu.memory_space<vmem>>) attributes {dimension_semantics = [], scalar_prefetch = 0 : i64, scratch_operands = 0 : i64, tpu.core_type = #tpu.core_type<tc>} {
    %c0 = arith.constant 0 : index
    %c0_0 = arith.constant 0 : index
    %c0_1 = arith.constant 0 : index
    %0 = vector.load %arg0[%c0, %c0_0, %c0_1] : memref<2x42x256xbf16, #tpu.memory_space<vmem>>, vector<2x42x256xbf16>
    %1 = arith.extf %0 : vector<2x42x256xbf16> to vector<2x42x256xf32>
    %cst = arith.constant dense<0.000000e+00> : vector<2x256xf32>
    %2 = vector.multi_reduction <add>, %1, %cst [1] : vector<2x42x256xf32> to vector<2x256xf32>
    %cst_2 = arith.constant 0.0238095243 : f32
    %3 = vector.broadcast %cst_2 : f32 to vector<2x256xf32>
    %4 = arith.mulf %2, %3 : vector<2x256xf32>
    %5 = arith.truncf %4 : vector<2x256xf32> to vector<2x256xbf16>
    %c0_3 = arith.constant 0 : index
    %c0_4 = arith.constant 0 : index
    %c0_5 = arith.constant 0 : index
    %6 = vector.load %arg1[%c0_3, %c0_4, %c0_5] : memref<2x42x256xbf16, #tpu.memory_space<vmem>>, vector<2x42x256xbf16>
    %7 = arith.extf %6 : vector<2x42x256xbf16> to vector<2x42x256xf32>
    %cst_6 = arith.constant dense<0.000000e+00> : vector<2x256xf32>
    %8 = vector.multi_reduction <add>, %7, %cst_6 [1] : vector<2x42x256xf32> to vector<2x256xf32>
    %cst_7 = arith.constant 0.0238095243 : f32
    %9 = vector.broadcast %cst_7 : f32 to vector<2x256xf32>
    %10 = arith.mulf %8, %9 : vector<2x256xf32>
    %11 = arith.truncf %10 : vector<2x256xf32> to vector<2x256xbf16>
    %c0_8 = arith.constant 0 : index
    %c0_9 = arith.constant 0 : index
    %12 = vector.load %arg2[%c0_8, %c0_9] : memref<256x54xbf16, #tpu.memory_space<vmem>>, vector<256x54xbf16>
    %cst_10 = arith.constant dense<0.000000e+00> : vector<2x54xf32>
    %13 = tpu.matmul %5, %12, %cst_10 {dimension_numbers = #tpu.dot_dimension_numbers<[1], [0], [0], [1], [0, 0, 1, 1], [], []>} : vector<2x256xbf16>, vector<256x54xbf16>, vector<2x54xf32> -> vector<2x54xf32>
    %c0_11 = arith.constant 0 : index
    %c0_12 = arith.constant 0 : index
    %14 = vector.load %arg3[%c0_11, %c0_12] : memref<1x54xf32, #tpu.memory_space<vmem>>, vector<1x54xf32>
    %15 = vector.broadcast %14 : vector<1x54xf32> to vector<2x54xf32>
    %16 = arith.addf %13, %15 : vector<2x54xf32>
    %c0_13 = arith.constant 0 : index
    %c0_14 = arith.constant 0 : index
    %17 = vector.load %arg6[%c0_13, %c0_14] : memref<2x54xf32, #tpu.memory_space<vmem>>, vector<2x54xf32>
    tpu.vector_store %arg6[%c0_13, %c0_14], %16 {strides = array<i32>} : memref<2x54xf32, #tpu.memory_space<vmem>>, vector<2x54xf32>,
    %c0_15 = arith.constant 0 : index
    %c0_16 = arith.constant 0 : index
    %18 = vector.load %arg4[%c0_15, %c0_16] : memref<256x54xbf16, #tpu.memory_space<vmem>>, vector<256x54xbf16>
    %cst_17 = arith.constant dense<0.000000e+00> : vector<2x54xf32>
    %19 = tpu.matmul %11, %18, %cst_17 {dimension_numbers = #tpu.dot_dimension_numbers<[1], [0], [0], [1], [0, 0, 1, 1], [], []>} : vector<2x256xbf16>, vector<256x54xbf16>, vector<2x54xf32> -> vector<2x54xf32>
    %c0_18 = arith.constant 0 : index
    %c0_19 = arith.constant 0 : index
    %20 = vector.load %arg5[%c0_18, %c0_19] : memref<1x54xf32, #tpu.memory_space<vmem>>, vector<1x54xf32>
    %21 = vector.broadcast %20 : vector<1x54xf32> to vector<2x54xf32>
    %22 = arith.addf %19, %21 : vector<2x54xf32>
    %c0_20 = arith.constant 0 : index
    %c0_21 = arith.constant 0 : index
    %23 = vector.load %arg7[%c0_20, %c0_21] : memref<2x54xf32, #tpu.memory_space<vmem>>, vector<2x54xf32>
    tpu.vector_store %arg7[%c0_20, %c0_21], %22 {strides = array<i32>} : memref<2x54xf32, #tpu.memory_space<vmem>>, vector<2x54xf32>,
    return
  }
}

</mosaic_0001>

<llo_original>
// kernel: double_tpgcn_forward.14
$region0: #{double_tpgcn_forward.14}
  #allocation0 [shape = 'u32[]', space=smem, size = 0x4, offset = 0x4, fixed_abs, tag = 'smem constant byte address 0x4 - core index']
  #allocation1 [shape = 'u32[144,128]{1,0:T(1,128)}', space=vmem, size = 0x12000, scoped, tag = 'internal scratch']
  %s0 = inlined_call_operand.vmem [shape: bf16[84,64], index: 0, kind: input, shape index: {}]
  %s1 = inlined_call_operand.vmem [shape: bf16[64,96], index: 1, kind: input, shape index: {}]
  %s2 = inlined_call_operand.vmem [shape: f32[1,32], index: 2, kind: input, shape index: {}, may-alias: {2,5,7}]
  %s3 = inlined_call_operand.vmem [shape: bf16[3,84,84], index: 3, kind: input, shape index: {}]
  %s4 = inlined_call_operand.vmem [shape: bf16[9,32,32], index: 4, kind: input, shape index: {}]
  %s5 = inlined_call_operand.vmem [shape: f32[1,32], index: 5, kind: input, shape index: {}, may-alias: {2,5,7}]
  %s6 = inlined_call_operand.vmem [shape: bf16[64,32], index: 6, kind: input, shape index: {}]
  %s7 = inlined_call_operand.vmem [shape: f32[1,32], index: 7, kind: input, shape index: {}, may-alias: {2,5,7}]
  %s8 = inlined_call_operand.vmem [shape: bf16[84,32], index: 8, kind: output, shape index: {}]
  %s9 = sld [smem:[#allocation0]]
  $region42: #{double_tpgcn_forward.14} parent=0
    _
  %s11 = ssub.s32 1, %s9
  %s12 = scalar_select 0, %s11, %s9
  // Predicated region
  $region2: #{double_tpgcn_forward.14} parent=0 // pred_check
    _
  $region3: #{double_tpgcn_forward.14} parent=0 // pred_check_branch
    %14 = sbr.rel (0) target = $region5
  $region4: #{double_tpgcn_forward.14} parent=0 // pred_region
    _
  $region5: #{double_tpgcn_forward.14} parent=0 // pred_fallthru
    _
  // Predicated region
  $region6: #{double_tpgcn_forward.14} parent=0 // pred_check
    _
  $region7: #{double_tpgcn_forward.14} parent=0 // pred_check_branch
    %16 = sbr.rel (0) target = $region9
  $region8: #{double_tpgcn_forward.14} parent=0 // pred_region
    _
  $region9: #{double_tpgcn_forward.14} parent=0 // pred_fallthru
    _
  // Predicated region
  $region10: #{double_tpgcn_forward.14} parent=0 // pred_check
    _
  $region11: #{double_tpgcn_forward.14} parent=0 // pred_check_branch
    %18 = sbr.rel (0) target = $region13
  $region12: #{double_tpgcn_forward.14} parent=0 // pred_region
    _
  $region13: #{double_tpgcn_forward.14} parent=0 // pred_fallthru
    _
  // Predicated region
  $region14: #{double_tpgcn_forward.14} parent=0 // pred_check
    _
  $region15: #{double_tpgcn_forward.14} parent=0 // pred_check_branch
    %20 = sbr.rel (0) target = $region17
  $region16: #{double_tpgcn_forward.14} parent=0 // pred_region
    _
  $region17: #{double_tpgcn_forward.14} parent=0 // pred_fallthru
    _
  // Predicated region
  $region18: #{double_tpgcn_forward.14} parent=0 // pred_check
    _
  $region19: #{double_tpgcn_forward.14} parent=0 // pred_check_branch
    %22 = sbr.rel (0) target = $region21
  $region20: #{double_tpgcn_forward.14} parent=0 // pred_region
    _
  $region21: #{double_tpgcn_forward.14} parent=0 // pred_fallthru
    _
  // Predicated region
  $region22: #{double_tpgcn_forward.14} parent=0 // pred_check
    _
  $region23: #{double_tpgcn_forward.14} parent=0 // pred_check_branch
    %24 = sbr.rel (0) target = $region25
  $region24: #{double_tpgcn_forward.14} parent=0 // pred_region
    _
  $region25: #{double_tpgcn_forward.14} parent=0 // pred_fallthru
    _
  // Predicated region
  $region26: #{double_tpgcn_forward.14} parent=0 // pred_check
    _
  $region27: #{double_tpgcn_forward.14} parent=0 // pred_check_branch
    %26 = sbr.rel (0) target = $region29
  $region28: #{double_tpgcn_forward.14} parent=0 // pred_region
    _
  $region29: #{double_tpgcn_forward.14} parent=0 // pred_fallthru
    _
  // Predicated region
  $region30: #{double_tpgcn_forward.14} parent=0 // pred_check
    _
  $region31: #{double_tpgcn_forward.14} parent=0 // pred_check_branch
    %28 = sbr.rel (0) target = $region33
  $region32: #{double_tpgcn_forward.14} parent=0 // pred_region
    _
  $region33: #{double_tpgcn_forward.14} parent=0 // pred_fallthru
    _
  %v30 = vld [vmem:[%s0] sm:$0xf]
  %v31 = vld [vmem:[%s0 + $0x4] sm:$0xf]
  %v32 = vld [vmem:[%s0 + $0x8] sm:$0xf]
  %v33 = vld [vmem:[%s0 + $0xc] sm:$0xf]
  %v34 = vld [vmem:[%s0 + $0x10] sm:$0xf]
  %v35 = vld [vmem:[%s0 + $0x14] sm:$0xf]
  %v36 = vld [vmem:[%s0 + $0x18] sm:$0xf]
  %v37 = vld [vmem:[%s0 + $0x1c] sm:$0xf]
  %v38 = vld [vmem:[%s0 + $0x20] sm:$0xf]
  %v39 = vld [vmem:[%s0 + $0x24] sm:$0xf]
  %v40 = vld [vmem:[%s0 + $0x28] sm:$0x3]
  %v41 = vld [vmem:[%s1] sm:$0xf]
  %v42 = vld [vmem:[%s1 + $0x4] sm:$0xf]
  %v43 = vld [vmem:[%s1 + $0x8] sm:$0xf]
  %v44 = vld [vmem:[%s1 + $0xc] sm:$0xf]
  %v45 = vld [vmem:[%s1 + $0x10] sm:$0xf]
  %v46 = vld [vmem:[%s1 + $0x14] sm:$0xf]
  %v47 = vld [vmem:[%s1 + $0x18] sm:$0xf]
  %v48 = vld [vmem:[%s1 + $0x1c] sm:$0xf]
  %v60 = vunpack.c.l.b16 %v30
  %v61 = vunpack.c.l.b16 %v31
  %v62 = vunpack.c.l.b16 %v32
  %v63 = vunpack.c.l.b16 %v33
  %v64 = vunpack.c.l.b16 %v34
  %v65 = vunpack.c.l.b16 %v35
  %v66 = vunpack.c.l.b16 %v36
  %v67 = vunpack.c.l.b16 %v37
  %v68 = vunpack.c.l.b16 %v38
  %v69 = vunpack.c.l.b16 %v39
  %v70 = vunpack.c.l.b16 %v40
  %v71 = vpack.c.b16 %v61, %v60
  %v72 = vpack.c.b16 %v63, %v62
  %v73 = vpack.c.b16 %v65, %v64
  %v74 = vpack.c.b16 %v67, %v66
  %v75 = vpack.c.b16 %v69, %v68
  %v76 = vpack.c.b16 %v70, %v70
  %v85 = vunpack.c.l.b16 %v41
  %v86 = vunpack.c.l.b16 %v42
  %v87 = vunpack.c.l.b16 %v43
  %v88 = vunpack.c.l.b16 %v44
  %v89 = vunpack.c.l.b16 %v45
  %v90 = vunpack.c.l.b16 %v46
  %v91 = vunpack.c.l.b16 %v47
  %v92 = vunpack.c.l.b16 %v48
  %v93 = vpack.c.b16 %v86, %v85
  %v94 = vpack.c.b16 %v88, %v87
  %v95 = vpack.c.b16 %v90, %v89
  %v96 = vpack.c.b16 %v92, %v91
  %vm101 = vcmask 523264
  %v103 = vsel %vm101, %v71, 0
  %v106 = vsel %vm101, %v72, 0
  %v109 = vsel %vm101, %v73, 0
  %v112 = vsel %vm101, %v74, 0
  %v115 = vsel %vm101, %v75, 0
  %v118 = vsel %vm101, %v76, 0
  %120 = vmatprep.subr.bf16.mxu0 0
  %121 = vmatpush1.bf16.msra.mxu0 %v93
  %122 = vmatprep.subr.bf16.mxu0 0
  %123 = vmatpush1.bf16.msra.mxu0 %v94
  %124 = vmatprep.subr.bf16.mxu0 0
  %125 = vmatpush1.bf16.msra.mxu0 %v95
  %126 = vmatprep.subr.bf16.mxu0 0
  %127 = vmatpush1.bf16.msra.mxu0 %v96
  %128 = vmatprep.subr.bf16.mxu0 0
  %129 = vmatpush1.bf16.msra.mxu0 0
  %130 = vmatprep.subr.bf16.mxu0 0
  %131 = vmatpush1.bf16.msra.mxu0 0
  %132 = vmatprep.subr.bf16.mxu0 0
  %133 = vmatpush1.bf16.msra.mxu0 0
  %134 = vmatprep.subr.bf16.mxu0 0
  %135 = vmatpush1.bf16.msra.mxu0 0
  %136 = vmatprep.subr.bf16.mxu0 0
  %137 = vmatpush1.bf16.msra.mxu0 0
  %138 = vmatprep.subr.bf16.mxu0 0
  %139 = vmatpush1.bf16.msra.mxu0 0
  %140 = vmatprep.subr.bf16.mxu0 0
  %141 = vmatpush1.bf16.msra.mxu0 0
  %142 = vmatprep.subr.bf16.mxu0 0
  %143 = vmatpush1.bf16.msra.mxu0 0
  %144 = vmatprep.subr.bf16.mxu0 0
  %145 = vmatpush1.bf16.msra.mxu0 0
  %146 = vmatprep.subr.bf16.mxu0 0
  %147 = vmatpush1.bf16.msra.mxu0 0
  %148 = vmatprep.subr.bf16.mxu0 0
  %149 = vmatpush1.bf16.msra.mxu0 0
  %150 = vmatprep.subr.bf16.mxu0 0
  %151 = vmatpush1.bf16.msra.mxu0 0
  %152 = vmatprep.mubr.bf16.mxu0 0
  %153 = vmatmul.mubr.bf16.gmra.mrb[0].mxu0 %v103
  %v154 = vpop.f32.mrb[0].mxu0
  %v155 = vadd.f32 0.0, %v154
  %v156 = vpop.f32.mrb[0].mxu0
  %v157 = vpop.f32.mrb[0].mxu0
  %v158 = vadd.f32 0.0, %v157
  %v159 = vpop.f32.mrb[0].mxu0
  %160 = vmatprep.mubr.bf16.mxu0 0
  %161 = vmatmul.mubr.bf16.gmra.mrb[0].mxu0 %v106
  %v162 = vpop.f32.mrb[0].mxu0
  %v163 = vadd.f32 0.0, %v162
  %v164 = vpop.f32.mrb[0].mxu0
  %v165 = vpop.f32.mrb[0].mxu0
  %v166 = vadd.f32 0.0, %v165
  %v167 = vpop.f32.mrb[0].mxu0
  %168 = vmatprep.mubr.bf16.mxu0 0
  %169 = vmatmul.mubr.bf16.gmra.mrb[0].mxu0 %v109
  %v170 = vpop.f32.mrb[0].mxu0
  %v171 = vadd.f32 0.0, %v170
  %v172 = vpop.f32.mrb[0].mxu0
  %v173 = vpop.f32.mrb[0].mxu0
  %v174 = vadd.f32 0.0, %v173
  %v175 = vpop.f32.mrb[0].mxu0
  %176 = vmatprep.mubr.bf16.mxu0 0
  %177 = vmatmul.mubr.bf16.gmra.mrb[0].mxu0 %v112
  %v178 = vpop.f32.mrb[0].mxu0
  %v179 = vadd.f32 0.0, %v178
  %v180 = vpop.f32.mrb[0].mxu0
  %v181 = vpop.f32.mrb[0].mxu0
  %v182 = vadd.f32 0.0, %v181
  %v183 = vpop.f32.mrb[0].mxu0
  %184 = vmatprep.mubr.bf16.mxu0 0
  %185 = vmatmul.mubr.bf16.gmra.mrb[0].mxu0 %v115
  %v186 = vpop.f32.mrb[0].mxu0
  %v187 = vadd.f32 0.0, %v186
  %v188 = vpop.f32.mrb[0].mxu0
  %v189 = vpop.f32.mrb[0].mxu0
  %v190 = vadd.f32 0.0, %v189
  %v191 = vpop.f32.mrb[0].mxu0
  %192 = vmatprep.mubr.bf16.mxu0 0
  %193 = vmatmul.mubr.bf16.gmra.mrb[0].mxu0 %v118
  %v194 = vpop.f32.mrb[0].mxu0
  %v195 = vadd.f32 0.0, %v194
  %v196 = vpop.f32.mrb[0].mxu0
  %v197 = vpop.f32.mrb[0].mxu0
  %v198 = vpop.f32.mrb[0].mxu0
  %199 = vdwg.mxu0
  %v200 = vpack.c.bf16 %v158, %v155
  %v201 = vpack.c.bf16 %v166, %v163
  %v202 = vpack.c.bf16 %v174, %v171
  %v203 = vpack.c.bf16 %v182, %v179
  %v204 = vpack.c.bf16 %v190, %v187
  %v205 = vpack.c.bf16 %v195, %v195
  %v206 = vld [vmem:[%s3] sm:$0xf]
  %v207 = vld [vmem:[%s3 + $0x4] sm:$0xf]
  %v208 = vld [vmem:[%s3 + $0x8] sm:$0xf]
  %v209 = vld [vmem:[%s3 + $0xc] sm:$0xf]
  %v210 = vld [vmem:[%s3 + $0x10] sm:$0xf]
  %v211 = vld [vmem:[%s3 + $0x14] sm:$0xf]
  %v212 = vld [vmem:[%s3 + $0x18] sm:$0xf]
  %v213 = vld [vmem:[%s3 + $0x1c] sm:$0xf]
  %v214 = vld [vmem:[%s3 + $0x20] sm:$0xf]
  %v215 = vld [vmem:[%s3 + $0x24] sm:$0xf]
  %v216 = vld [vmem:[%s3 + $0x28] sm:$0x3]
  %s217 = scalar_lea.vmem %s3, 44
  %v218 = vld [vmem:[%s217] sm:$0xf]
  %v219 = vld [vmem:[%s217 + $0x4] sm:$0xf]
  %v220 = vld [vmem:[%s217 + $0x8] sm:$0xf]
  %v221 = vld [vmem:[%s217 + $0xc] sm:$0xf]
  %v222 = vld [vmem:[%s217 + $0x10] sm:$0xf]
  %v223 = vld [vmem:[%s217 + $0x14] sm:$0xf]
  %v224 = vld [vmem:[%s217 + $0x18] sm:$0xf]
  %v225 = vld [vmem:[%s217 + $0x1c] sm:$0xf]
  %v226 = vld [vmem:[%s217 + $0x20] sm:$0xf]
  %v227 = vld [vmem:[%s217 + $0x24] sm:$0xf]
  %v228 = vld [vmem:[%s217 + $0x28] sm:$0x3]
  %v240 = vunpack.c.l.b16 %v218
  %v241 = vunpack.c.l.b16 %v219
  %v242 = vunpack.c.l.b16 %v220
  %v243 = vunpack.c.l.b16 %v221
  %v244 = vunpack.c.l.b16 %v222
  %v245 = vunpack.c.l.b16 %v223
  %v246 = vunpack.c.l.b16 %v224
  %v247 = vunpack.c.l.b16 %v225
  %v248 = vunpack.c.l.b16 %v226
  %v249 = vunpack.c.l.b16 %v227
  %v250 = vunpack.c.l.b16 %v228
  %v251 = vpack.c.b16 %v241, %v240
  %v252 = vpack.c.b16 %v243, %v242
  %v253 = vpack.c.b16 %v245, %v244
  %v254 = vpack.c.b16 %v247, %v246
  %v255 = vpack.c.b16 %v249, %v248
  %v256 = vpack.c.b16 %v250, %v250
  %263 = vrot.lane.b32.xlu0 %v200, 96
  %v264 = vpop.permute.xlu0 %263
  %265 = vrot.lane.b32.xlu0 %v201, 96
  %v266 = vpop.permute.xlu0 %265
  %267 = vrot.lane.b32.xlu0 %v202, 96
  %v268 = vpop.permute.xlu0 %267
  %269 = vrot.lane.b32.xlu0 %v203, 96
  %v270 = vpop.permute.xlu0 %269
  %271 = vrot.lane.b32.xlu0 %v204, 96
  %v272 = vpop.permute.xlu0 %271
  %273 = vrot.lane.b32.xlu0 %v205, 96
  %v274 = vpop.permute.xlu0 %273
  %vm280 = vcmask 687104
  %v282 = vsel %vm280, %v251, 0
  %v285 = vsel %vm280, %v252, 0
  %v288 = vsel %vm280, %v253, 0
  %v291 = vsel %vm280, %v254, 0
  %v294 = vsel %vm280, %v255, 0
  %v297 = vsel %vm280, %v256, 0
  %vm299 = vcmask 1041408
  %v301 = vsel %vm299, %v274, 0
  %303 = vmatprep.subr.bf16.mxu0 0
  %304 = vmatpush1.bf16.msra.mxu0 %v264
  %305 = vmatprep.subr.bf16.mxu0 0
  %306 = vmatpush1.bf16.msra.mxu0 %v266
  %307 = vmatprep.subr.bf16.mxu0 0
  %308 = vmatpush1.bf16.msra.mxu0 %v268
  %309 = vmatprep.subr.bf16.mxu0 0
  %310 = vmatpush1.bf16.msra.mxu0 %v270
  %311 = vmatprep.subr.bf16.mxu0 0
  %312 = vmatpush1.bf16.msra.mxu0 %v272
  %313 = vmatprep.subr.bf16.mxu0 0
  %314 = vmatpush1.bf16.msra.mxu0 %v301
  %315 = vmatprep.subr.bf16.mxu0 0
  %316 = vmatpush1.bf16.msra.mxu0 0
  %317 = vmatprep.subr.bf16.mxu0 0
  %318 = vmatpush1.bf16.msra.mxu0 0
  %319 = vmatprep.subr.bf16.mxu0 0
  %320 = vmatpush1.bf16.msra.mxu0 0
  %321 = vmatprep.subr.bf16.mxu0 0
  %322 = vmatpush1.bf16.msra.mxu0 0
  %323 = vmatprep.subr.bf16.mxu0 0
  %324 = vmatpush1.bf16.msra.mxu0 0
  %325 = vmatprep.subr.bf16.mxu0 0
  %326 = vmatpush1.bf16.msra.mxu0 0
  %327 = vmatprep.subr.bf16.mxu0 0
  %328 = vmatpush1.bf16.msra.mxu0 0
  %329 = vmatprep.subr.bf16.mxu0 0
  %330 = vmatpush1.bf16.msra.mxu0 0
  %331 = vmatprep.subr.bf16.mxu0 0
  %332 = vmatpush1.bf16.msra.mxu0 0
  %333 = vmatprep.subr.bf16.mxu0 0
  %334 = vmatpush1.bf16.msra.mxu0 0
  %335 = vmatprep.mubr.bf16.mxu0 0
  %336 = vmatmul.mubr.bf16.gmra.mrb[0].mxu0 %v282
  %v337 = vpop.f32.mrb[0].mxu0
  %v338 = vadd.f32 0.0, %v337
  %v339 = vpop.f32.mrb[0].mxu0
  %v340 = vpop.f32.mrb[0].mxu0
  %v341 = vadd.f32 0.0, %v340
  %v342 = vpop.f32.mrb[0].mxu0
  %343 = vmatprep.mubr.bf16.mxu0 0
  %344 = vmatmul.mubr.bf16.gmra.mrb[0].mxu0 %v285
  %v345 = vpop.f32.mrb[0].mxu0
  %v346 = vadd.f32 0.0, %v345
  %v347 = vpop.f32.mrb[0].mxu0
  %v348 = vpop.f32.mrb[0].mxu0
  %v349 = vadd.f32 0.0, %v348
  %v350 = vpop.f32.mrb[0].mxu0
  %351 = vmatprep.mubr.bf16.mxu0 0
  %352 = vmatmul.mubr.bf16.gmra.mrb[0].mxu0 %v288
  %v353 = vpop.f32.mrb[0].mxu0
  %v354 = vadd.f32 0.0, %v353
  %v355 = vpop.f32.mrb[0].mxu0
  %v356 = vpop.f32.mrb[0].mxu0
  %v357 = vadd.f32 0.0, %v356
  %v358 = vpop.f32.mrb[0].mxu0
  %359 = vmatprep.mubr.bf16.mxu0 0
  %360 = vmatmul.mubr.bf16.gmra.mrb[0].mxu0 %v291
  %v361 = vpop.f32.mrb[0].mxu0
  %v362 = vadd.f32 0.0, %v361
  %v363 = vpop.f32.mrb[0].mxu0
  %v364 = vpop.f32.mrb[0].mxu0
  %v365 = vadd.f32 0.0, %v364
  %v366 = vpop.f32.mrb[0].mxu0
  %367 = vmatprep.mubr.bf16.mxu0 0
  %368 = vmatmul.mubr.bf16.gmra.mrb[0].mxu0 %v294
  %v369 = vpop.f32.mrb[0].mxu0
  %v370 = vadd.f32 0.0, %v369
  %v371 = vpop.f32.mrb[0].mxu0
  %v372 = vpop.f32.mrb[0].mxu0
  %v373 = vadd.f32 0.0, %v372
  %v374 = vpop.f32.mrb[0].mxu0
  %375 = vmatprep.mubr.bf16.mxu0 0
  %376 = vmatmul.mubr.bf16.gmra.mrb[0].mxu0 %v297
  %v377 = vpop.f32.mrb[0].mxu0
  %v378 = vadd.f32 0.0, %v377
  %v379 = vpop.f32.mrb[0].mxu0
  %v380 = vpop.f32.mrb[0].mxu0
  %v381 = vpop.f32.mrb[0].mxu0
  %382 = vdwg.mxu0
  %v394 = vunpack.c.l.b16 %v206
  %v395 = vunpack.c.l.b16 %v207
  %v396 = vunpack.c.l.b16 %v208
  %v397 = vunpack.c.l.b16 %v209
  %v398 = vunpack.c.l.b16 %v210
  %v399 = vunpack.c.l.b16 %v211
  %v400 = vunpack.c.l.b16 %v212
  %v401 = vunpack.c.l.b16 %v213
  %v402 = vunpack.c.l.b16 %v214
  %v403 = vunpack.c.l.b16 %v215
  %v404 = vunpack.c.l.b16 %v216
  %v405 = vpack.c.b16 %v395, %v394
  %v406 = vpack.c.b16 %v397, %v396
  %v407 = vpack.c.b16 %v399, %v398
  %v408 = vpack.c.b16 %v401, %v400
  %v409 = vpack.c.b16 %v403, %v402
  %v410 = vpack.c.b16 %v404, %v404
  %v412 = vsel %vm280, %v405, 0
  %v415 = vsel %vm280, %v406, 0
  %v418 = vsel %vm280, %v407, 0
  %v421 = vsel %vm280, %v408, 0
  %v424 = vsel %vm280, %v409, 0
  %v427 = vsel %vm280, %v410, 0
  %v430 = vsel %vm299, %v205, 0
  %432 = vmatprep.subr.bf16.mxu0 0
  %433 = vmatpush1.bf16.msra.mxu0 %v200
  %434 = vmatprep.subr.bf16.mxu0 0
  %435 = vmatpush1.bf16.msra.mxu0 %v201
  %436 = vmatprep.subr.bf16.mxu0 0
  %437 = vmatpush1.bf16.msra.mxu0 %v202
  %438 = vmatprep.subr.bf16.mxu0 0
  %439 = vmatpush1.bf16.msra.mxu0 %v203
  %440 = vmatprep.subr.bf16.mxu0 0
  %441 = vmatpush1.bf16.msra.mxu0 %v204
  %442 = vmatprep.subr.bf16.mxu0 0
  %443 = vmatpush1.bf16.msra.mxu0 %v430
  %444 = vmatprep.subr.bf16.mxu0 0
  %445 = vmatpush1.bf16.msra.mxu0 0
  %446 = vmatprep.subr.bf16.mxu0 0
  %447 = vmatpush1.bf16.msra.mxu0 0
  %448 = vmatprep.subr.bf16.mxu0 0
  %449 = vmatpush1.bf16.msra.mxu0 0
  %450 = vmatprep.subr.bf16.mxu0 0
  %451 = vmatpush1.bf16.msra.mxu0 0
  %452 = vmatprep.subr.bf16.mxu0 0
  %453 = vmatpush1.bf16.msra.mxu0 0
  %454 = vmatprep.subr.bf16.mxu0 0
  %455 = vmatpush1.bf16.msra.mxu0 0
  %456 = vmatprep.subr.bf16.mxu0 0
  %457 = vmatpush1.bf16.msra.mxu0 0
  %458 = vmatprep.subr.bf16.mxu0 0
  %459 = vmatpush1.bf16.msra.mxu0 0
  %460 = vmatprep.subr.bf16.mxu0 0
  %461 = vmatpush1.bf16.msra.mxu0 0
  %462 = vmatprep.subr.bf16.mxu0 0
  %463 = vmatpush1.bf16.msra.mxu0 0
  %464 = vmatprep.mubr.bf16.mxu0 0
  %465 = vmatmul.mubr.bf16.gmra.mrb[0].mxu0 %v412
  %v466 = vpop.f32.mrb[0].mxu0
  %v467 = vadd.f32 %v338, %v466
  %v468 = vpop.f32.mrb[0].mxu0
  %v469 = vpop.f32.mrb[0].mxu0
  %v470 = vadd.f32 %v341, %v469
  %v471 = vpop.f32.mrb[0].mxu0
  %472 = vmatprep.mubr.bf16.mxu0 0
  %473 = vmatmul.mubr.bf16.gmra.mrb[0].mxu0 %v415
  %v474 = vpop.f32.mrb[0].mxu0
  %v475 = vadd.f32 %v346, %v474
  %v476 = vpop.f32.mrb[0].mxu0
  %v477 = vpop.f32.mrb[0].mxu0
  %v478 = vadd.f32 %v349, %v477
  %v479 = vpop.f32.mrb[0].mxu0
  %480 = vmatprep.mubr.bf16.mxu0 0
  %481 = vmatmul.mubr.bf16.gmra.mrb[0].mxu0 %v418
  %v482 = vpop.f32.mrb[0].mxu0
  %v483 = vadd.f32 %v354, %v482
  %v484 = vpop.f32.mrb[0].mxu0
  %v485 = vpop.f32.mrb[0].mxu0
  %v486 = vadd.f32 %v357, %v485
  %v487 = vpop.f32.mrb[0].mxu0
  %488 = vmatprep.mubr.bf16.mxu0 0
  %489 = vmatmul.mubr.bf16.gmra.mrb[0].mxu0 %v421
  %v490 = vpop.f32.mrb[0].mxu0
  %v491 = vadd.f32 %v362, %v490
  %v492 = vpop.f32.mrb[0].mxu0
  %v493 = vpop.f32.mrb[0].mxu0
  %v494 = vadd.f32 %v365, %v493
  %v495 = vpop.f32.mrb[0].mxu0
  %496 = vmatprep.mubr.bf16.mxu0 0
  %497 = vmatmul.mubr.bf16.gmra.mrb[0].mxu0 %v424
  %v498 = vpop.f32.mrb[0].mxu0
  %v499 = vadd.f32 %v370, %v498
  %v500 = vpop.f32.mrb[0].mxu0
  %v501 = vpop.f32.mrb[0].mxu0
  %v502 = vadd.f32 %v373, %v501
  %v503 = vpop.f32.mrb[0].mxu0
  %504 = vmatprep.mubr.bf16.mxu0 0
  %505 = vmatmul.mubr.bf16.gmra.mrb[0].mxu0 %v427
  %v506 = vpop.f32.mrb[0].mxu0
  %v507 = vadd.f32 %v378, %v506
  %v508 = vpop.f32.mrb[0].mxu0
  %v509 = vpop.f32.mrb[0].mxu0
  %v510 = vpop.f32.mrb[0].mxu0
  %511 = vdwg.mxu0
  %s512 = scalar_lea.vmem %s3, 88
  %v513 = vld [vmem:[%s512] sm:$0xf]
  %v514 = vld [vmem:[%s512 + $0x4] sm:$0xf]
  %v515 = vld [vmem:[%s512 + $0x8] sm:$0xf]
  %v516 = vld [vmem:[%s512 + $0xc] sm:$0xf]
  %v517 = vld [vmem:[%s512 + $0x10] sm:$0xf]
  %v518 = vld [vmem:[%s512 + $0x14] sm:$0xf]
  %v519 = vld [vmem:[%s512 + $0x18] sm:$0xf]
  %v520 = vld [vmem:[%s512 + $0x1c] sm:$0xf]
  %v521 = vld [vmem:[%s512 + $0x20] sm:$0xf]
  %v522 = vld [vmem:[%s512 + $0x24] sm:$0xf]
  %v523 = vld [vmem:[%s512 + $0x28] sm:$0x3]
  %v535 = vunpack.c.l.b16 %v513
  %v536 = vunpack.c.l.b16 %v514
  %v537 = vunpack.c.l.b16 %v515
  %v538 = vunpack.c.l.b16 %v516
  %v539 = vunpack.c.l.b16 %v517
  %v540 = vunpack.c.l.b16 %v518
  %v541 = vunpack.c.l.b16 %v519
  %v542 = vunpack.c.l.b16 %v520
  %v543 = vunpack.c.l.b16 %v521
  %v544 = vunpack.c.l.b16 %v522
  %v545 = vunpack.c.l.b16 %v523
  %v546 = vpack.c.b16 %v536, %v535
  %v547 = vpack.c.b16 %v538, %v537
  %v548 = vpack.c.b16 %v540, %v539
  %v549 = vpack.c.b16 %v542, %v541
  %v550 = vpack.c.b16 %v544, %v543
  %v551 = vpack.c.b16 %v545, %v545
  %552 = vrot.lane.b32.xlu0 %v200, 64
  %v553 = vpop.permute.xlu0 %552
  %554 = vrot.lane.b32.xlu0 %v201, 64
  %v555 = vpop.permute.xlu0 %554
  %556 = vrot.lane.b32.xlu0 %v202, 64
  %v557 = vpop.permute.xlu0 %556
  %558 = vrot.lane.b32.xlu0 %v203, 64
  %v559 = vpop.permute.xlu0 %558
  %560 = vrot.lane.b32.xlu0 %v204, 64
  %v561 = vpop.permute.xlu0 %560
  %562 = vrot.lane.b32.xlu0 %v205, 64
  %v563 = vpop.permute.xlu0 %562
  %v570 = vsel %vm280, %v546, 0
  %v573 = vsel %vm280, %v547, 0
  %v576 = vsel %vm280, %v548, 0
  %v579 = vsel %vm280, %v549, 0
  %v582 = vsel %vm280, %v550, 0
  %v585 = vsel %vm280, %v551, 0
  %v588 = vsel %vm299, %v563, 0
  %590 = vmatprep.subr.bf16.mxu0 0
  %591 = vmatpush1.bf16.msra.mxu0 %v553
  %592 = vmatprep.subr.bf16.mxu0 0
  %593 = vmatpush1.bf16.msra.mxu0 %v555
  %594 = vmatprep.subr.bf16.mxu0 0
  %595 = vmatpush1.bf16.msra.mxu0 %v557
  %596 = vmatprep.subr.bf16.mxu0 0
  %597 = vmatpush1.bf16.msra.mxu0 %v559
  %598 = vmatprep.subr.bf16.mxu0 0
  %599 = vmatpush1.bf16.msra.mxu0 %v561
  %600 = vmatprep.subr.bf16.mxu0 0
  %601 = vmatpush1.bf16.msra.mxu0 %v588
  %602 = vmatprep.subr.bf16.mxu0 0
  %603 = vmatpush1.bf16.msra.mxu0 0
  %604 = vmatprep.subr.bf16.mxu0 0
  %605 = vmatpush1.bf16.msra.mxu0 0
  %606 = vmatprep.subr.bf16.mxu0 0
  %607 = vmatpush1.bf16.msra.mxu0 0
  %608 = vmatprep.subr.bf16.mxu0 0
  %609 = vmatpush1.bf16.msra.mxu0 0
  %610 = vmatprep.subr.bf16.mxu0 0
  %611 = vmatpush1.bf16.msra.mxu0 0
  %612 = vmatprep.subr.bf16.mxu0 0
  %613 = vmatpush1.bf16.msra.mxu0 0
  %614 = vmatprep.subr.bf16.mxu0 0
  %615 = vmatpush1.bf16.msra.mxu0 0
  %616 = vmatprep.subr.bf16.mxu0 0
  %617 = vmatpush1.bf16.msra.mxu0 0
  %618 = vmatprep.subr.bf16.mxu0 0
  %619 = vmatpush1.bf16.msra.mxu0 0
  %620 = vmatprep.subr.bf16.mxu0 0
  %621 = vmatpush1.bf16.msra.mxu0 0
  %622 = vmatprep.mubr.bf16.mxu0 0
  %623 = vmatmul.mubr.bf16.gmra.mrb[0].mxu0 %v570
  %v624 = vpop.f32.mrb[0].mxu0
  %v625 = vadd.f32 0.0, %v624
  %v626 = vpop.f32.mrb[0].mxu0
  %v627 = vpop.f32.mrb[0].mxu0
  %v628 = vadd.f32 0.0, %v627
  %v629 = vpop.f32.mrb[0].mxu0
  %630 = vmatprep.mubr.bf16.mxu0 0
  %631 = vmatmul.mubr.bf16.gmra.mrb[0].mxu0 %v573
  %v632 = vpop.f32.mrb[0].mxu0
  %v633 = vadd.f32 0.0, %v632
  %v634 = vpop.f32.mrb[0].mxu0
  %v635 = vpop.f32.mrb[0].mxu0
  %v636 = vadd.f32 0.0, %v635
  %v637 = vpop.f32.mrb[0].mxu0
  %638 = vmatprep.mubr.bf16.mxu0 0
  %639 = vmatmul.mubr.bf16.gmra.mrb[0].mxu0 %v576
  %v640 = vpop.f32.mrb[0].mxu0
  %v641 = vadd.f32 0.0, %v640
  %v642 = vpop.f32.mrb[0].mxu0
  %v643 = vpop.f32.mrb[0].mxu0
  %v644 = vadd.f32 0.0, %v643
  %v645 = vpop.f32.mrb[0].mxu0
  %646 = vmatprep.mubr.bf16.mxu0 0
  %647 = vmatmul.mubr.bf16.gmra.mrb[0].mxu0 %v579
  %v648 = vpop.f32.mrb[0].mxu0
  %v649 = vadd.f32 0.0, %v648
  %v650 = vpop.f32.mrb[0].mxu0
  %v651 = vpop.f32.mrb[0].mxu0
  %v652 = vadd.f32 0.0, %v651
  %v653 = vpop.f32.mrb[0].mxu0
  %654 = vmatprep.mubr.bf16.mxu0 0
  %655 = vmatmul.mubr.bf16.gmra.mrb[0].mxu0 %v582
  %v656 = vpop.f32.mrb[0].mxu0
  %v657 = vadd.f32 0.0, %v656
  %v658 = vpop.f32.mrb[0].mxu0
  %v659 = vpop.f32.mrb[0].mxu0
  %v660 = vadd.f32 0.0, %v659
  %v661 = vpop.f32.mrb[0].mxu0
  %662 = vmatprep.mubr.bf16.mxu0 0
  %663 = vmatmul.mubr.bf16.gmra.mrb[0].mxu0 %v585
  %v664 = vpop.f32.mrb[0].mxu0
  %v665 = vadd.f32 0.0, %v664
  %v666 = vpop.f32.mrb[0].mxu0
  %v667 = vpop.f32.mrb[0].mxu0
  %v668 = vpop.f32.mrb[0].mxu0
  %669 = vdwg.mxu0
  %v670 = vadd.f32 %v467, %v625
  %v671 = vadd.f32 %v470, %v628
  %v672 = vadd.f32 %v475, %v633
  %v673 = vadd.f32 %v478, %v636
  %v674 = vadd.f32 %v483, %v641
  %v675 = vadd.f32 %v486, %v644
  %v676 = vadd.f32 %v491, %v649
  %v677 = vadd.f32 %v494, %v652
  %v678 = vadd.f32 %v499, %v657
  %v679 = vadd.f32 %v502, %v660
  %v680 = vadd.f32 %v507, %v665
  %v681 = vld [vmem:[%s2] sm:$0x1]
  %v683 = vlaneseq
  %v684 = vshrl.u32 %v683, 7
  %v685 = vsub.s32 0, %v684
  %v686 = vrot.slane %v681, %v685
  %v688 = vadd.f32 %v670, %v686
  %v689 = vadd.f32 %v671, %v686
  %v690 = vadd.f32 %v672, %v686
  %v691 = vadd.f32 %v673, %v686
  %v692 = vadd.f32 %v674, %v686
  %v693 = vadd.f32 %v675, %v686
  %v694 = vadd.f32 %v676, %v686
  %v695 = vadd.f32 %v677, %v686
  %v696 = vadd.f32 %v678, %v686
  %v697 = vadd.f32 %v679, %v686
  %v698 = vadd.f32 %v680, %v686
  %v699 = vmax.f32 %v688, 0.0
  %v700 = vmax.f32 %v689, 0.0
  %v701 = vmax.f32 %v690, 0.0
  %v702 = vmax.f32 %v691, 0.0
  %v703 = vmax.f32 %v692, 0.0
  %v704 = vmax.f32 %v693, 0.0
  %v705 = vmax.f32 %v694, 0.0
  %v706 = vmax.f32 %v695, 0.0
  %v707 = vmax.f32 %v696, 0.0
  %v708 = vmax.f32 %v697, 0.0
  %v709 = vmax.f32 %v698, 0.0
  %v710 = vpack.c.bf16 %v700, %v699
  %v711 = vpack.c.bf16 %v702, %v701
  %v712 = vpack.c.bf16 %v704, %v703
  %v713 = vpack.c.bf16 %v706, %v705
  %v714 = vpack.c.bf16 %v708, %v707
  %v715 = vpack.c.bf16 %v709, %v709
  %s716 = scalar_lea.vmem %s4, 64
  %v717 = vld [vmem:[%s716] sm:$0xf]
  %v718 = vld [vmem:[%s716 + $0x4] sm:$0xf]
  %v719 = vld [vmem:[%s716 + $0x8] sm:$0xf]
  %v720 = vld [vmem:[%s716 + $0xc] sm:$0xf]
  %v721 = vld [vmem:[%s5] sm:$0x1]
  %v723 = vlaneseq
  %v724 = vshrl.u32 %v723, 7
  %v725 = vsub.s32 0, %v724
  %v726 = vrot.slane %v721, %v725
  %v732 = vunpack.c.l.b16 %v717
  %v733 = vunpack.c.l.b16 %v718
  %v734 = vunpack.c.l.b16 %v719
  %v735 = vunpack.c.l.b16 %v720
  %v736 = vpack.c.b16 %v733, %v732
  %v737 = vpack.c.b16 %v735, %v734
  %vm740 = vcmask 261120
  %v742 = vsel %vm740, %v710, 0
  %v745 = vsel %vm740, %v711, 0
  %v748 = vsel %vm740, %v712, 0
  %v751 = vsel %vm740, %v713, 0
  %v754 = vsel %vm740, %v714, 0
  %v757 = vsel %vm740, %v715, 0
  %759 = vmatprep.subr.bf16.mxu0 0
  %760 = vmatpush1.bf16.msra.mxu0 %v736
  %761 = vmatprep.subr.bf16.mxu0 0
  %762 = vmatpush1.bf16.msra.mxu0 %v737
  %763 = vmatprep.subr.bf16.mxu0 0
  %764 = vmatpush1.bf16.msra.mxu0 0
  %765 = vmatprep.subr.bf16.mxu0 0
  %766 = vmatpush1.bf16.msra.mxu0 0
  %767 = vmatprep.subr.bf16.mxu0 0
  %768 = vmatpush1.bf16.msra.mxu0 0
  %769 = vmatprep.subr.bf16.mxu0 0
  %770 = vmatpush1.bf16.msra.mxu0 0
  %771 = vmatprep.subr.bf16.mxu0 0
  %772 = vmatpush1.bf16.msra.mxu0 0
  %773 = vmatprep.subr.bf16.mxu0 0
  %774 = vmatpush1.bf16.msra.mxu0 0
  %775 = vmatprep.subr.bf16.mxu0 0
  %776 = vmatpush1.bf16.msra.mxu0 0
  %777 = vmatprep.subr.bf16.mxu0 0
  %778 = vmatpush1.bf16.msra.mxu0 0
  %779 = vmatprep.subr.bf16.mxu0 0
  %780 = vmatpush1.bf16.msra.mxu0 0
  %781 = vmatprep.subr.bf16.mxu0 0
  %782 = vmatpush1.bf16.msra.mxu0 0
  %783 = vmatprep.subr.bf16.mxu0 0
  %784 = vmatpush1.bf16.msra.mxu0 0
  %785 = vmatprep.subr.bf16.mxu0 0
  %786 = vmatpush1.bf16.msra.mxu0 0
  %787 = vmatprep.subr.bf16.mxu0 0
  %788 = vmatpush1.bf16.msra.mxu0 0
  %789 = vmatprep.subr.bf16.mxu0 0
  %790 = vmatpush1.bf16.msra.mxu0 0
  %791 = vmatprep.mubr.bf16.mxu0 0
  %792 = vmatmul.mubr.bf16.gmra.mrb[0].mxu0 %v742
  %v793 = vpop.f32.mrb[0].mxu0
  %v794 = vadd.f32 %v726, %v793
  %v795 = vpop.f32.mrb[0].mxu0
  %v796 = vpop.f32.mrb[0].mxu0
  %v797 = vadd.f32 %v726, %v796
  %v798 = vpop.f32.mrb[0].mxu0
  %799 = vmatprep.mubr.bf16.mxu0 0
  %800 = vmatmul.mubr.bf16.gmra.mrb[0].mxu0 %v745
  %v801 = vpop.f32.mrb[0].mxu0
  %v802 = vadd.f32 %v726, %v801
  %v803 = vpop.f32.mrb[0].mxu0
  %v804 = vpop.f32.mrb[0].mxu0
  %v805 = vadd.f32 %v726, %v804
  %v806 = vpop.f32.mrb[0].mxu0
  %807 = vmatprep.mubr.bf16.mxu0 0
  %808 = vmatmul.mubr.bf16.gmra.mrb[0].mxu0 %v748
  %v809 = vpop.f32.mrb[0].mxu0
  %v810 = vadd.f32 %v726, %v809
  %v811 = vpop.f32.mrb[0].mxu0
  %v812 = vpop.f32.mrb[0].mxu0
  %v813 = vadd.f32 %v726, %v812
  %v814 = vpop.f32.mrb[0].mxu0
  %815 = vmatprep.mubr.bf16.mxu0 0
  %816 = vmatmul.mubr.bf16.gmra.mrb[0].mxu0 %v751
  %v817 = vpop.f32.mrb[0].mxu0
  %v818 = vadd.f32 %v726, %v817
  %v819 = vpop.f32.mrb[0].mxu0
  %v820 = vpop.f32.mrb[0].mxu0
  %v821 = vadd.f32 %v726, %v820
  %v822 = vpop.f32.mrb[0].mxu0
  %823 = vmatprep.mubr.bf16.mxu0 0
  %824 = vmatmul.mubr.bf16.gmra.mrb[0].mxu0 %v754
  %v825 = vpop.f32.mrb[0].mxu0
  %v826 = vadd.f32 %v726, %v825
  %v827 = vpop.f32.mrb[0].mxu0
  %v828 = vpop.f32.mrb[0].mxu0
  %v829 = vadd.f32 %v726, %v828
  %v830 = vpop.f32.mrb[0].mxu0
  %831 = vmatprep.mubr.bf16.mxu0 0
  %832 = vmatmul.mubr.bf16.gmra.mrb[0].mxu0 %v757
  %v833 = vpop.f32.mrb[0].mxu0
  %v834 = vadd.f32 %v726, %v833
  %v835 = vpop.f32.mrb[0].mxu0
  %v836 = vpop.f32.mrb[0].mxu0
  %v837 = vpop.f32.mrb[0].mxu0
  %838 = vdwg.mxu0
  %v839 = vld [vmem:[%s6] sm:$0xf]
  %v840 = vld [vmem:[%s6 + $0x4] sm:$0xf]
  %v841 = vld [vmem:[%s6 + $0x8] sm:$0xf]
  %v842 = vld [vmem:[%s6 + $0xc] sm:$0xf]
  %v843 = vld [vmem:[%s6 + $0x10] sm:$0xf]
  %v844 = vld [vmem:[%s6 + $0x14] sm:$0xf]
  %v845 = vld [vmem:[%s6 + $0x18] sm:$0xf]
  %v846 = vld [vmem:[%s6 + $0x1c] sm:$0xf]
  %v847 = vld [vmem:[%s7] sm:$0x1]
  %v849 = vlaneseq
  %v850 = vshrl.u32 %v849, 7
  %v851 = vsub.s32 0, %v850
  %v852 = vrot.slane %v847, %v851
  %v862 = vunpack.c.l.b16 %v839
  %v863 = vunpack.c.l.b16 %v840
  %v864 = vunpack.c.l.b16 %v841
  %v865 = vunpack.c.l.b16 %v842
  %v866 = vunpack.c.l.b16 %v843
  %v867 = vunpack.c.l.b16 %v844
  %v868 = vunpack.c.l.b16 %v845
  %v869 = vunpack.c.l.b16 %v846
  %v870 = vpack.c.b16 %v863, %v862
  %v871 = vpack.c.b16 %v865, %v864
  %v872 = vpack.c.b16 %v867, %v866
  %v873 = vpack.c.b16 %v869, %v868
  %878 = vmatprep.subr.bf16.mxu0 0
  %879 = vmatpush1.bf16.msra.mxu0 %v870
  %880 = vmatprep.subr.bf16.mxu0 0
  %881 = vmatpush1.bf16.msra.mxu0 %v871
  %882 = vmatprep.subr.bf16.mxu0 0
  %883 = vmatpush1.bf16.msra.mxu0 %v872
  %884 = vmatprep.subr.bf16.mxu0 0
  %885 = vmatpush1.bf16.msra.mxu0 %v873
  %886 = vmatprep.subr.bf16.mxu0 0
  %887 = vmatpush1.bf16.msra.mxu0 0
  %888 = vmatprep.subr.bf16.mxu0 0
  %889 = vmatpush1.bf16.msra.mxu0 0
  %890 = vmatprep.subr.bf16.mxu0 0
  %891 = vmatpush1.bf16.msra.mxu0 0
  %892 = vmatprep.subr.bf16.mxu0 0
  %893 = vmatpush1.bf16.msra.mxu0 0
  %894 = vmatprep.subr.bf16.mxu0 0
  %895 = vmatpush1.bf16.msra.mxu0 0
  %896 = vmatprep.subr.bf16.mxu0 0
  %897 = vmatpush1.bf16.msra.mxu0 0
  %898 = vmatprep.subr.bf16.mxu0 0
  %899 = vmatpush1.bf16.msra.mxu0 0
  %900 = vmatprep.subr.bf16.mxu0 0
  %901 = vmatpush1.bf16.msra.mxu0 0
  %902 = vmatprep.subr.bf16.mxu0 0
  %903 = vmatpush1.bf16.msra.mxu0 0
  %904 = vmatprep.subr.bf16.mxu0 0
  %905 = vmatpush1.bf16.msra.mxu0 0
  %906 = vmatprep.subr.bf16.mxu0 0
  %907 = vmatpush1.bf16.msra.mxu0 0
  %908 = vmatprep.subr.bf16.mxu0 0
  %909 = vmatpush1.bf16.msra.mxu0 0
  %910 = vmatprep.mubr.bf16.mxu0 0
  %911 = vmatmul.mubr.bf16.gmra.mrb[0].mxu0 %v103
  %v912 = vpop.f32.mrb[0].mxu0
  %v913 = vadd.f32 %v852, %v912
  %v914 = vpop.f32.mrb[0].mxu0
  %v915 = vpop.f32.mrb[0].mxu0
  %v916 = vadd.f32 %v852, %v915
  %v917 = vpop.f32.mrb[0].mxu0
  %918 = vmatprep.mubr.bf16.mxu0 0
  %919 = vmatmul.mubr.bf16.gmra.mrb[0].mxu0 %v106
  %v920 = vpop.f32.mrb[0].mxu0
  %v921 = vadd.f32 %v852, %v920
  %v922 = vpop.f32.mrb[0].mxu0
  %v923 = vpop.f32.mrb[0].mxu0
  %v924 = vadd.f32 %v852, %v923
  %v925 = vpop.f32.mrb[0].mxu0
  %926 = vmatprep.mubr.bf16.mxu0 0
  %927 = vmatmul.mubr.bf16.gmra.mrb[0].mxu0 %v109
  %v928 = vpop.f32.mrb[0].mxu0
  %v929 = vadd.f32 %v852, %v928
  %v930 = vpop.f32.mrb[0].mxu0
  %v931 = vpop.f32.mrb[0].mxu0
  %v932 = vadd.f32 %v852, %v931
  %v933 = vpop.f32.mrb[0].mxu0
  %934 = vmatprep.mubr.bf16.mxu0 0
  %935 = vmatmul.mubr.bf16.gmra.mrb[0].mxu0 %v112
  %v936 = vpop.f32.mrb[0].mxu0
  %v937 = vadd.f32 %v852, %v936
  %v938 = vpop.f32.mrb[0].mxu0
  %v939 = vpop.f32.mrb[0].mxu0
  %v940 = vadd.f32 %v852, %v939
  %v941 = vpop.f32.mrb[0].mxu0
  %942 = vmatprep.mubr.bf16.mxu0 0
  %943 = vmatmul.mubr.bf16.gmra.mrb[0].mxu0 %v115
  %v944 = vpop.f32.mrb[0].mxu0
  %v945 = vadd.f32 %v852, %v944
  %v946 = vpop.f32.mrb[0].mxu0
  %v947 = vpop.f32.mrb[0].mxu0
  %v948 = vadd.f32 %v852, %v947
  %v949 = vpop.f32.mrb[0].mxu0
  %950 = vmatprep.mubr.bf16.mxu0 0
  %951 = vmatmul.mubr.bf16.gmra.mrb[0].mxu0 %v118
  %v952 = vpop.f32.mrb[0].mxu0
  %v953 = vadd.f32 %v852, %v952
  %v954 = vpop.f32.mrb[0].mxu0
  %v955 = vpop.f32.mrb[0].mxu0
  %v956 = vpop.f32.mrb[0].mxu0
  %957 = vdwg.mxu0
  %v958 = vadd.f32 %v794, %v913
  %v959 = vadd.f32 %v797, %v916
  %v960 = vadd.f32 %v802, %v921
  %v961 = vadd.f32 %v805, %v924
  %v962 = vadd.f32 %v810, %v929
  %v963 = vadd.f32 %v813, %v932
  %v964 = vadd.f32 %v818, %v937
  %v965 = vadd.f32 %v821, %v940
  %v966 = vadd.f32 %v826, %v945
  %v967 = vadd.f32 %v829, %v948
  %v968 = vadd.f32 %v834, %v953
  %v969 = vmax.f32 %v958, 0.0
  %v970 = vmax.f32 %v959, 0.0
  %v971 = vmax.f32 %v960, 0.0
  %v972 = vmax.f32 %v961, 0.0
  %v973 = vmax.f32 %v962, 0.0
  %v974 = vmax.f32 %v963, 0.0
  %v975 = vmax.f32 %v964, 0.0
  %v976 = vmax.f32 %v965, 0.0
  %v977 = vmax.f32 %v966, 0.0
  %v978 = vmax.f32 %v967, 0.0
  %v979 = vmax.f32 %v968, 0.0
  %v980 = vpack.c.bf16 %v970, %v969
  %v981 = vpack.c.bf16 %v972, %v971
  %v982 = vpack.c.bf16 %v974, %v973
  %v983 = vpack.c.bf16 %v976, %v975
  %v984 = vpack.c.bf16 %v978, %v977
  %v985 = vpack.c.bf16 %v979, %v979
  %v992 = vunpack.c.l.b16 %v980
  %v993 = vunpack.c.h.b16 %v980
  %v994 = vunpack.c.l.b16 %v981
  %v995 = vunpack.c.h.b16 %v981
  %v996 = vunpack.c.l.b16 %v982
  %v997 = vunpack.c.h.b16 %v982
  %v998 = vunpack.c.l.b16 %v983
  %v999 = vunpack.c.h.b16 %v983
  %v1000 = vunpack.c.l.b16 %v984
  %v1001 = vunpack.c.h.b16 %v984
  %v1002 = vunpack.c.l.b16 %v985
  %v1003 = vpack.c.b16 %v992, %v992
  %v1004 = vpack.c.b16 %v993, %v993
  %v1005 = vpack.c.b16 %v994, %v994
  %v1006 = vpack.c.b16 %v995, %v995
  %v1007 = vpack.c.b16 %v996, %v996
  %v1008 = vpack.c.b16 %v997, %v997
  %v1009 = vpack.c.b16 %v998, %v998
  %v1010 = vpack.c.b16 %v999, %v999
  %v1011 = vpack.c.b16 %v1000, %v1000
  %v1012 = vpack.c.b16 %v1001, %v1001
  %v1013 = vpack.c.b16 %v1002, %v1002
  %vm1025 = vcmask 257024
  %1026 = vst.msk [vmem:[%s8] sm:$0xf] %vm1025, %v1003
  %1027 = vst.msk [vmem:[%s8 + $0x4] sm:$0xf] %vm1025, %v1004
  %1028 = vst.msk [vmem:[%s8 + $0x8] sm:$0xf] %vm1025, %v1005
  %1029 = vst.msk [vmem:[%s8 + $0xc] sm:$0xf] %vm1025, %v1006
  %1030 = vst.msk [vmem:[%s8 + $0x10] sm:$0xf] %vm1025, %v1007
  %1031 = vst.msk [vmem:[%s8 + $0x14] sm:$0xf] %vm1025, %v1008
  %1032 = vst.msk [vmem:[%s8 + $0x18] sm:$0xf] %vm1025, %v1009
  %1033 = vst.msk [vmem:[%s8 + $0x1c] sm:$0xf] %vm1025, %v1010
  %1034 = vst.msk [vmem:[%s8 + $0x20] sm:$0xf] %vm1025, %v1011
  %1035 = vst.msk [vmem:[%s8 + $0x24] sm:$0xf] %vm1025, %v1012
  %vm1036 = vcmask 254976
  %1037 = vst.msk [vmem:[%s8 + $0x28] sm:$0x3] %vm1036, %v1013
  // Predicated region
  $region34: #{double_tpgcn_forward.14} parent=0 // pred_check
    _
  $region35: #{double_tpgcn_forward.14} parent=0 // pred_check_branch
    %1039 = sbr.rel (0) target = $region37
  $region36: #{double_tpgcn_forward.14} parent=0 // pred_region
    _
  $region37: #{double_tpgcn_forward.14} parent=0 // pred_fallthru
    _
  // Predicated region
  $region38: #{double_tpgcn_forward.14} parent=0 // pred_check
    _
  $region39: #{double_tpgcn_forward.14} parent=0 // pred_check_branch
    %1041 = sbr.rel (0) target = $region41
  $region40: #{double_tpgcn_forward.14} parent=0 // pred_region
    _
  $region41: #{double_tpgcn_forward.14} parent=0 // pred_fallthru
    _

// kernel: double_tpgcn_forward.12
$region0: #{double_tpgcn_forward.12}
  #allocation0 [shape = 'u32[]', space=smem, size = 0x4, offset = 0x4, fixed_abs, tag = 'smem constant byte address 0x4 - core index']
  #allocation1 [shape = 'u32[144,128]{1,0:T(1,128)}', space=vmem, size = 0x12000, scoped, tag = 'internal scratch']
  %s0 = inlined_call_operand.vmem [shape: bf16[84,4], index: 0, kind: input, shape index: {}]
  %s1 = inlined_call_operand.hbm [shape: bf16[4,192], index: 1, kind: input, shape index: {}]
  %s2 = inlined_call_operand.vmem [shape: f32[1,64], index: 2, kind: input, shape index: {}, may-alias: {2,5}]
  %s3 = inlined_call_operand.vmem [shape: bf16[3,84,84], index: 3, kind: input, shape index: {}]
  %s4 = inlined_call_operand.hbm [shape: bf16[9,64,64], index: 4, kind: input, shape index: {}]
  %s5 = inlined_call_operand.vmem [shape: f32[1,64], index: 5, kind: input, shape index: {}, may-alias: {2,5}]
  %s6 = inlined_call_operand.vmem [shape: bf16[84,64], index: 6, kind: output, shape index: {}]
  %s7 = sld [smem:[#allocation0]]
  $region42: #{double_tpgcn_forward.12} parent=0
    _
  %s9 = ssub.s32 1, %s7
  %s10 = scalar_select 0, %s9, %s7
  $region1: #{double_tpgcn_forward.12} parent=0
    #allocation2 [shape = 'u8[2048]{0}', space=vmem, size = 0x800, scoped, tag = 'input window, operand 1, single buffered']
    #allocation3 [shape = 's32[1]{0}', space=sflag, size = 0x4, scoped, tag = 'scoped memory for double_tpgcn_forward.12']
    #allocation4 [shape = 'u8[147456]{0}', space=vmem, size = 0x24000, scoped, tag = 'input window, operand 4, single buffered']
    #allocation5 [shape = 's32[1]{0}', space=sflag, size = 0x4, scoped, tag = 'scoped memory for double_tpgcn_forward.12']
    %11 = vsyncpa [#allocation3], 0
    %12 = vsyncpa [#allocation5], 0
    // Predicated region
    $region2: #{double_tpgcn_forward.12} parent=1 // pred_check
      _
    $region3: #{double_tpgcn_forward.12} parent=1 // pred_check_branch
      %14 = sbr.rel (0) target = $region5
    $region4: #{double_tpgcn_forward.12} parent=1 // pred_region
      _
    $region5: #{double_tpgcn_forward.12} parent=1 // pred_fallthru
      _
    // Predicated region
    $region6: #{double_tpgcn_forward.12} parent=1 // pred_check
      _
    $region7: #{double_tpgcn_forward.12} parent=1 // pred_check_branch
      %16 = sbr.rel (0) target = $region9
    $region8: #{double_tpgcn_forward.12} parent=1 // pred_region
      %s18 = ssub.s32 64, 64
      %19 = vsyncadd [#allocation3], %s18
      %s21 = sshll.u32 [#allocation2], 4
      %s22 = int_to_ptr.vmem [resolvable:$true] %s21
      %24 = dma.hbm_to_vmem [thread:$0]  %s1, 64, %s22, [#allocation3]
    $region9: #{double_tpgcn_forward.12} parent=1 // pred_fallthru
      _
    // Predicated region
    $region10: #{double_tpgcn_forward.12} parent=1 // pred_check
      _
    $region11: #{double_tpgcn_forward.12} parent=1 // pred_check_branch
      %26 = sbr.rel (0) target = $region13
    $region12: #{double_tpgcn_forward.12} parent=1 // pred_region
      _
    $region13: #{double_tpgcn_forward.12} parent=1 // pred_fallthru
      _
    // Predicated region
    $region14: #{double_tpgcn_forward.12} parent=1 // pred_check
      _
    $region15: #{double_tpgcn_forward.12} parent=1 // pred_check_branch
      %28 = sbr.rel (0) target = $region17
    $region16: #{double_tpgcn_forward.12} parent=1 // pred_region
      _
    $region17: #{double_tpgcn_forward.12} parent=1 // pred_fallthru
      _
    // Predicated region
    $region18: #{double_tpgcn_forward.12} parent=1 // pred_check
      _
    $region19: #{double_tpgcn_forward.12} parent=1 // pred_check_branch
      %30 = sbr.rel (0) target = $region21
    $region20: #{double_tpgcn_forward.12} parent=1 // pred_region
      %s32 = ssub.s32 4608, 4608
      %33 = vsyncadd [#allocation5], %s32
      %s34 = sshll.u32 [#allocation4], 4
      %s35 = int_to_ptr.vmem [resolvable:$true] %s34
      %40 = dma.hbm_to_vmem [thread:$0]  %s4, 4608, %s35, [#allocation5], 64, 64, 4
    $region21: #{double_tpgcn_forward.12} parent=1 // pred_fallthru
      _
    // Predicated region
    $region22: #{double_tpgcn_forward.12} parent=1 // pred_check
      _
    $region23: #{double_tpgcn_forward.12} parent=1 // pred_check_branch
      %42 = sbr.rel (0) target = $region25
    $region24: #{double_tpgcn_forward.12} parent=1 // pred_region
      _
    $region25: #{double_tpgcn_forward.12} parent=1 // pred_fallthru
      _
    // Predicated region
    $region26: #{double_tpgcn_forward.12} parent=1 // pred_check
      _
    $region27: #{double_tpgcn_forward.12} parent=1 // pred_check_branch
      %44 = sbr.rel (0) target = $region29
    $region28: #{double_tpgcn_forward.12} parent=1 // pred_region
      %45 = dma.done [#allocation3], 64
    $region29: #{double_tpgcn_forward.12} parent=1 // pred_fallthru
      _
    // Predicated region
    $region30: #{double_tpgcn_forward.12} parent=1 // pred_check
      _
    $region31: #{double_tpgcn_forward.12} parent=1 // pred_check_branch
      %47 = sbr.rel (0) target = $region33
    $region32: #{double_tpgcn_forward.12} parent=1 // pred_region
      %48 = dma.done [#allocation5], 4608
    $region33: #{double_tpgcn_forward.12} parent=1 // pred_fallthru
      _
    %v50 = vld [vmem:[%s0] sm:$0xf]
    %v51 = vld [vmem:[%s0 + $0x4] sm:$0xf]
    %v52 = vld [vmem:[%s0 + $0x8] sm:$0xf]
    %v53 = vld [vmem:[%s0 + $0xc] sm:$0xf]
    %v54 = vld [vmem:[%s0 + $0x10] sm:$0xf]
    %v55 = vld [vmem:[%s0 + $0x14] sm:$0xf]
    %v56 = vld [vmem:[%s0 + $0x18] sm:$0xf]
    %v57 = vld [vmem:[%s0 + $0x1c] sm:$0xf]
    %v58 = vld [vmem:[%s0 + $0x20] sm:$0xf]
    %v59 = vld [vmem:[%s0 + $0x24] sm:$0xf]
    %v60 = vld [vmem:[%s0 + $0x28] sm:$0x3]
    %v61 = vld [vmem:[#allocation2] sm:$0xf]
    %v73 = vunpack.c.l.b16 %v50
    %v74 = vunpack.c.l.b16 %v51
    %v75 = vunpack.c.l.b16 %v52
    %v76 = vunpack.c.l.b16 %v53
    %v77 = vunpack.c.l.b16 %v54
    %v78 = vunpack.c.l.b16 %v55
    %v79 = vunpack.c.l.b16 %v56
    %v80 = vunpack.c.l.b16 %v57
    %v81 = vunpack.c.l.b16 %v58
    %v82 = vunpack.c.l.b16 %v59
    %v83 = vunpack.c.l.b16 %v60
    %v84 = vpack.c.b16 %v74, %v73
    %v85 = vpack.c.b16 %v76, %v75
    %v86 = vpack.c.b16 %v78, %v77
    %v87 = vpack.c.b16 %v80, %v79
    %v88 = vpack.c.b16 %v82, %v81
    %v89 = vpack.c.b16 %v83, %v83
    %v92 = vunpack.c.l.s4 1983009808
    %v93 = vunpack.c.0.s8 %v92
    %v94 = vlaneseq
    %v95 = vshrl.u32 %v94, 7
    %v96 = vsub.s32 %v93, %v95
    %v97 = vrot.slane %v61, %v96
    %v98 = vcombine.high %v97, %v97
    %vm99 = vcmask 31744
    %v101 = vsel %vm99, %v84, 0
    %v104 = vsel %vm99, %v85, 0
    %v107 = vsel %vm99, %v86, 0
    %v110 = vsel %vm99, %v87, 0
    %v113 = vsel %vm99, %v88, 0
    %v116 = vsel %vm99, %v89, 0
    %vm118 = vcmask 1041408
    %v120 = vsel %vm118, %v97, 0
    %v123 = vsel %vm118, %v98, 0
    %125 = vmatprep.subr.bf16.mxu0 %v123
    %126 = vmatpush1.bf16.msra.mxu0 %v120
    %127 = vmatprep.subr.bf16.mxu0 0
    %128 = vmatpush1.bf16.msra.mxu0 0
    %129 = vmatprep.subr.bf16.mxu0 0
    %130 = vmatpush1.bf16.msra.mxu0 0
    %131 = vmatprep.subr.bf16.mxu0 0
    %132 = vmatpush1.bf16.msra.mxu0 0
    %133 = vmatprep.subr.bf16.mxu0 0
    %134 = vmatpush1.bf16.msra.mxu0 0
    %135 = vmatprep.subr.bf16.mxu0 0
    %136 = vmatpush1.bf16.msra.mxu0 0
    %137 = vmatprep.subr.bf16.mxu0 0
    %138 = vmatpush1.bf16.msra.mxu0 0
    %139 = vmatprep.subr.bf16.mxu0 0
    %140 = vmatpush1.bf16.msra.mxu0 0
    %141 = vmatprep.subr.bf16.mxu0 0
    %142 = vmatpush1.bf16.msra.mxu0 0
    %143 = vmatprep.subr.bf16.mxu0 0
    %144 = vmatpush1.bf16.msra.mxu0 0
    %145 = vmatprep.subr.bf16.mxu0 0
    %146 = vmatpush1.bf16.msra.mxu0 0
    %147 = vmatprep.subr.bf16.mxu0 0
    %148 = vmatpush1.bf16.msra.mxu0 0
    %149 = vmatprep.subr.bf16.mxu0 0
    %150 = vmatpush1.bf16.msra.mxu0 0
    %151 = vmatprep.subr.bf16.mxu0 0
    %152 = vmatpush1.bf16.msra.mxu0 0
    %153 = vmatprep.subr.bf16.mxu0 0
    %154 = vmatpush1.bf16.msra.mxu0 0
    %155 = vmatprep.subr.bf16.mxu0 0
    %156 = vmatpush1.bf16.msra.mxu0 0
    %157 = vmatprep.mubr.bf16.mxu0 0
    %158 = vmatmul.mubr.bf16.gmra.mrb[0].mxu0 %v101
    %v159 = vpop.f32.mrb[0].mxu0
    %v160 = vadd.f32 0.0, %v159
    %v161 = vpop.f32.mrb[0].mxu0
    %v162 = vadd.f32 0.0, %v161
    %v163 = vpop.f32.mrb[0].mxu0
    %v164 = vadd.f32 0.0, %v163
    %v165 = vpop.f32.mrb[0].mxu0
    %v166 = vadd.f32 0.0, %v165
    %167 = vmatprep.mubr.bf16.mxu0 0
    %168 = vmatmul.mubr.bf16.gmra.mrb[0].mxu0 %v104
    %v169 = vpop.f32.mrb[0].mxu0
    %v170 = vadd.f32 0.0, %v169
    %v171 = vpop.f32.mrb[0].mxu0
    %v172 = vadd.f32 0.0, %v171
    %v173 = vpop.f32.mrb[0].mxu0
    %v174 = vadd.f32 0.0, %v173
    %v175 = vpop.f32.mrb[0].mxu0
    %v176 = vadd.f32 0.0, %v175
    %177 = vmatprep.mubr.bf16.mxu0 0
    %178 = vmatmul.mubr.bf16.gmra.mrb[0].mxu0 %v107
    %v179 = vpop.f32.mrb[0].mxu0
    %v180 = vadd.f32 0.0, %v179
    %v181 = vpop.f32.mrb[0].mxu0
    %v182 = vadd.f32 0.0, %v181
    %v183 = vpop.f32.mrb[0].mxu0
    %v184 = vadd.f32 0.0, %v183
    %v185 = vpop.f32.mrb[0].mxu0
    %v186 = vadd.f32 0.0, %v185
    %187 = vmatprep.mubr.bf16.mxu0 0
    %188 = vmatmul.mubr.bf16.gmra.mrb[0].mxu0 %v110
    %v189 = vpop.f32.mrb[0].mxu0
    %v190 = vadd.f32 0.0, %v189
    %v191 = vpop.f32.mrb[0].mxu0
    %v192 = vadd.f32 0.0, %v191
    %v193 = vpop.f32.mrb[0].mxu0
    %v194 = vadd.f32 0.0, %v193
    %v195 = vpop.f32.mrb[0].mxu0
    %v196 = vadd.f32 0.0, %v195
    %197 = vmatprep.mubr.bf16.mxu0 0
    %198 = vmatmul.mubr.bf16.gmra.mrb[0].mxu0 %v113
    %v199 = vpop.f32.mrb[0].mxu0
    %v200 = vadd.f32 0.0, %v199
    %v201 = vpop.f32.mrb[0].mxu0
    %v202 = vadd.f32 0.0, %v201
    %v203 = vpop.f32.mrb[0].mxu0
    %v204 = vadd.f32 0.0, %v203
    %v205 = vpop.f32.mrb[0].mxu0
    %v206 = vadd.f32 0.0, %v205
    %207 = vmatprep.mubr.bf16.mxu0 0
    %208 = vmatmul.mubr.bf16.gmra.mrb[0].mxu0 %v116
    %v209 = vpop.f32.mrb[0].mxu0
    %v210 = vadd.f32 0.0, %v209
    %v211 = vpop.f32.mrb[0].mxu0
    %v212 = vadd.f32 0.0, %v211
    %v213 = vpop.f32.mrb[0].mxu0
    %v214 = vpop.f32.mrb[0].mxu0
    %215 = vdwg.mxu0
    %v216 = vpack.c.bf16 %v164, %v160
    %v217 = vpack.c.bf16 %v166, %v162
    %v218 = vpack.c.bf16 %v174, %v170
    %v219 = vpack.c.bf16 %v176, %v172
    %v220 = vpack.c.bf16 %v184, %v180
    %v221 = vpack.c.bf16 %v186, %v182
    %v222 = vpack.c.bf16 %v194, %v190
    %v223 = vpack.c.bf16 %v196, %v192
    %v224 = vpack.c.bf16 %v204, %v200
    %v225 = vpack.c.bf16 %v206, %v202
    %v226 = vpack.c.bf16 %v210, %v210
    %v227 = vpack.c.bf16 %v212, %v212
    %v228 = vld [vmem:[%s3] sm:$0xf]
    %v229 = vld [vmem:[%s3 + $0x4] sm:$0xf]
    %v230 = vld [vmem:[%s3 + $0x8] sm:$0xf]
    %v231 = vld [vmem:[%s3 + $0xc] sm:$0xf]
    %v232 = vld [vmem:[%s3 + $0x10] sm:$0xf]
    %v233 = vld [vmem:[%s3 + $0x14] sm:$0xf]
    %v234 = vld [vmem:[%s3 + $0x18] sm:$0xf]
    %v235 = vld [vmem:[%s3 + $0x1c] sm:$0xf]
    %v236 = vld [vmem:[%s3 + $0x20] sm:$0xf]
    %v237 = vld [vmem:[%s3 + $0x24] sm:$0xf]
    %v238 = vld [vmem:[%s3 + $0x28] sm:$0x3]
    %s239 = scalar_lea.vmem %s3, 44
    %v240 = vld [vmem:[%s239] sm:$0xf]
    %v241 = vld [vmem:[%s239 + $0x4] sm:$0xf]
    %v242 = vld [vmem:[%s239 + $0x8] sm:$0xf]
    %v243 = vld [vmem:[%s239 + $0xc] sm:$0xf]
    %v244 = vld [vmem:[%s239 + $0x10] sm:$0xf]
    %v245 = vld [vmem:[%s239 + $0x14] sm:$0xf]
    %v246 = vld [vmem:[%s239 + $0x18] sm:$0xf]
    %v247 = vld [vmem:[%s239 + $0x1c] sm:$0xf]
    %v248 = vld [vmem:[%s239 + $0x20] sm:$0xf]
    %v249 = vld [vmem:[%s239 + $0x24] sm:$0xf]
    %v250 = vld [vmem:[%s239 + $0x28] sm:$0x3]
    %v262 = vunpack.c.l.b16 %v240
    %v263 = vunpack.c.l.b16 %v241
    %v264 = vunpack.c.l.b16 %v242
    %v265 = vunpack.c.l.b16 %v243
    %v266 = vunpack.c.l.b16 %v244
    %v267 = vunpack.c.l.b16 %v245
    %v268 = vunpack.c.l.b16 %v246
    %v269 = vunpack.c.l.b16 %v247
    %v270 = vunpack.c.l.b16 %v248
    %v271 = vunpack.c.l.b16 %v249
    %v272 = vunpack.c.l.b16 %v250
    %v273 = vpack.c.b16 %v263, %v262
    %v274 = vpack.c.b16 %v265, %v264
    %v275 = vpack.c.b16 %v267, %v266
    %v276 = vpack.c.b16 %v269, %v268
    %v277 = vpack.c.b16 %v271, %v270
    %v278 = vpack.c.b16 %v272, %v272
    %285 = vrot.lane.b32.xlu0 %v216, 64
    %v286 = vpop.permute.xlu0 %285
    %287 = vrot.lane.b32.xlu0 %v218, 64
    %v288 = vpop.permute.xlu0 %287
    %289 = vrot.lane.b32.xlu0 %v220, 64
    %v290 = vpop.permute.xlu0 %289
    %291 = vrot.lane.b32.xlu0 %v222, 64
    %v292 = vpop.permute.xlu0 %291
    %293 = vrot.lane.b32.xlu0 %v224, 64
    %v294 = vpop.permute.xlu0 %293
    %295 = vrot.lane.b32.xlu0 %v226, 64
    %v296 = vpop.permute.xlu0 %295
    %vm302 = vcmask 687104
    %v304 = vsel %vm302, %v273, 0
    %v307 = vsel %vm302, %v274, 0
    %v310 = vsel %vm302, %v275, 0
    %v313 = vsel %vm302, %v276, 0
    %v316 = vsel %vm302, %v277, 0
    %v319 = vsel %vm302, %v278, 0
    %v322 = vsel %vm118, %v296, 0
    %324 = vmatprep.subr.bf16.mxu0 0
    %325 = vmatpush1.bf16.msra.mxu0 %v286
    %326 = vmatprep.subr.bf16.mxu0 0
    %327 = vmatpush1.bf16.msra.mxu0 %v288
    %328 = vmatprep.subr.bf16.mxu0 0
    %329 = vmatpush1.bf16.msra.mxu0 %v290
    %330 = vmatprep.subr.bf16.mxu0 0
    %331 = vmatpush1.bf16.msra.mxu0 %v292
    %332 = vmatprep.subr.bf16.mxu0 0
    %333 = vmatpush1.bf16.msra.mxu0 %v294
    %334 = vmatprep.subr.bf16.mxu0 0
    %335 = vmatpush1.bf16.msra.mxu0 %v322
    %336 = vmatprep.subr.bf16.mxu0 0
    %337 = vmatpush1.bf16.msra.mxu0 0
    %338 = vmatprep.subr.bf16.mxu0 0
    %339 = vmatpush1.bf16.msra.mxu0 0
    %340 = vmatprep.subr.bf16.mxu0 0
    %341 = vmatpush1.bf16.msra.mxu0 0
    %342 = vmatprep.subr.bf16.mxu0 0
    %343 = vmatpush1.bf16.msra.mxu0 0
    %344 = vmatprep.subr.bf16.mxu0 0
    %345 = vmatpush1.bf16.msra.mxu0 0
    %346 = vmatprep.subr.bf16.mxu0 0
    %347 = vmatpush1.bf16.msra.mxu0 0
    %348 = vmatprep.subr.bf16.mxu0 0
    %349 = vmatpush1.bf16.msra.mxu0 0
    %350 = vmatprep.subr.bf16.mxu0 0
    %351 = vmatpush1.bf16.msra.mxu0 0
    %352 = vmatprep.subr.bf16.mxu0 0
    %353 = vmatpush1.bf16.msra.mxu0 0
    %354 = vmatprep.subr.bf16.mxu0 0
    %355 = vmatpush1.bf16.msra.mxu0 0
    %356 = vmatprep.mubr.bf16.mxu0 0
    %357 = vmatmul.mubr.bf16.gmra.mrb[0].mxu0 %v304
    %v358 = vpop.f32.mrb[0].mxu0
    %v359 = vadd.f32 0.0, %v358
    %v360 = vpop.f32.mrb[0].mxu0
    %v361 = vpop.f32.mrb[0].mxu0
    %v362 = vadd.f32 0.0, %v361
    %v363 = vpop.f32.mrb[0].mxu0
    %364 = vmatprep.mubr.bf16.mxu0 0
    %365 = vmatmul.mubr.bf16.gmra.mrb[0].mxu0 %v307
    %v366 = vpop.f32.mrb[0].mxu0
    %v367 = vadd.f32 0.0, %v366
    %v368 = vpop.f32.mrb[0].mxu0
    %v369 = vpop.f32.mrb[0].mxu0
    %v370 = vadd.f32 0.0, %v369
    %v371 = vpop.f32.mrb[0].mxu0
    %372 = vmatprep.mubr.bf16.mxu0 0
    %373 = vmatmul.mubr.bf16.gmra.mrb[0].mxu0 %v310
    %v374 = vpop.f32.mrb[0].mxu0
    %v375 = vadd.f32 0.0, %v374
    %v376 = vpop.f32.mrb[0].mxu0
    %v377 = vpop.f32.mrb[0].mxu0
    %v378 = vadd.f32 0.0, %v377
    %v379 = vpop.f32.mrb[0].mxu0
    %380 = vmatprep.mubr.bf16.mxu0 0
    %381 = vmatmul.mubr.bf16.gmra.mrb[0].mxu0 %v313
    %v382 = vpop.f32.mrb[0].mxu0
    %v383 = vadd.f32 0.0, %v382
    %v384 = vpop.f32.mrb[0].mxu0
    %v385 = vpop.f32.mrb[0].mxu0
    %v386 = vadd.f32 0.0, %v385
    %v387 = vpop.f32.mrb[0].mxu0
    %388 = vmatprep.mubr.bf16.mxu0 0
    %389 = vmatmul.mubr.bf16.gmra.mrb[0].mxu0 %v316
    %v390 = vpop.f32.mrb[0].mxu0
    %v391 = vadd.f32 0.0, %v390
    %v392 = vpop.f32.mrb[0].mxu0
    %v393 = vpop.f32.mrb[0].mxu0
    %v394 = vadd.f32 0.0, %v393
    %v395 = vpop.f32.mrb[0].mxu0
    %396 = vmatprep.mubr.bf16.mxu0 0
    %397 = vmatmul.mubr.bf16.gmra.mrb[0].mxu0 %v319
    %v398 = vpop.f32.mrb[0].mxu0
    %v399 = vadd.f32 0.0, %v398
    %v400 = vpop.f32.mrb[0].mxu0
    %v401 = vpop.f32.mrb[0].mxu0
    %v402 = vpop.f32.mrb[0].mxu0
    %403 = vdwg.mxu0
    %v415 = vunpack.c.l.b16 %v228
    %v416 = vunpack.c.l.b16 %v229
    %v417 = vunpack.c.l.b16 %v230
    %v418 = vunpack.c.l.b16 %v231
    %v419 = vunpack.c.l.b16 %v232
    %v420 = vunpack.c.l.b16 %v233
    %v421 = vunpack.c.l.b16 %v234
    %v422 = vunpack.c.l.b16 %v235
    %v423 = vunpack.c.l.b16 %v236
    %v424 = vunpack.c.l.b16 %v237
    %v425 = vunpack.c.l.b16 %v238
    %v426 = vpack.c.b16 %v416, %v415
    %v427 = vpack.c.b16 %v418, %v417
    %v428 = vpack.c.b16 %v420, %v419
    %v429 = vpack.c.b16 %v422, %v421
    %v430 = vpack.c.b16 %v424, %v423
    %v431 = vpack.c.b16 %v425, %v425
    %v433 = vsel %vm302, %v426, 0
    %v436 = vsel %vm302, %v427, 0
    %v439 = vsel %vm302, %v428, 0
    %v442 = vsel %vm302, %v429, 0
    %v445 = vsel %vm302, %v430, 0
    %v448 = vsel %vm302, %v431, 0
    %v451 = vsel %vm118, %v226, 0
    %453 = vmatprep.subr.bf16.mxu0 0
    %454 = vmatpush1.bf16.msra.mxu0 %v216
    %455 = vmatprep.subr.bf16.mxu0 0
    %456 = vmatpush1.bf16.msra.mxu0 %v218
    %457 = vmatprep.subr.bf16.mxu0 0
    %458 = vmatpush1.bf16.msra.mxu0 %v220
    %459 = vmatprep.subr.bf16.mxu0 0
    %460 = vmatpush1.bf16.msra.mxu0 %v222
    %461 = vmatprep.subr.bf16.mxu0 0
    %462 = vmatpush1.bf16.msra.mxu0 %v224
    %463 = vmatprep.subr.bf16.mxu0 0
    %464 = vmatpush1.bf16.msra.mxu0 %v451
    %465 = vmatprep.subr.bf16.mxu0 0
    %466 = vmatpush1.bf16.msra.mxu0 0
    %467 = vmatprep.subr.bf16.mxu0 0
    %468 = vmatpush1.bf16.msra.mxu0 0
    %469 = vmatprep.subr.bf16.mxu0 0
    %470 = vmatpush1.bf16.msra.mxu0 0
    %471 = vmatprep.subr.bf16.mxu0 0
    %472 = vmatpush1.bf16.msra.mxu0 0
    %473 = vmatprep.subr.bf16.mxu0 0
    %474 = vmatpush1.bf16.msra.mxu0 0
    %475 = vmatprep.subr.bf16.mxu0 0
    %476 = vmatpush1.bf16.msra.mxu0 0
    %477 = vmatprep.subr.bf16.mxu0 0
    %478 = vmatpush1.bf16.msra.mxu0 0
    %479 = vmatprep.subr.bf16.mxu0 0
    %480 = vmatpush1.bf16.msra.mxu0 0
    %481 = vmatprep.subr.bf16.mxu0 0
    %482 = vmatpush1.bf16.msra.mxu0 0
    %483 = vmatprep.subr.bf16.mxu0 0
    %484 = vmatpush1.bf16.msra.mxu0 0
    %485 = vmatprep.mubr.bf16.mxu0 0
    %486 = vmatmul.mubr.bf16.gmra.mrb[0].mxu0 %v433
    %v487 = vpop.f32.mrb[0].mxu0
    %v488 = vadd.f32 %v359, %v487
    %v489 = vpop.f32.mrb[0].mxu0
    %v490 = vpop.f32.mrb[0].mxu0
    %v491 = vadd.f32 %v362, %v490
    %v492 = vpop.f32.mrb[0].mxu0
    %493 = vmatprep.mubr.bf16.mxu0 0
    %494 = vmatmul.mubr.bf16.gmra.mrb[0].mxu0 %v436
    %v495 = vpop.f32.mrb[0].mxu0
    %v496 = vadd.f32 %v367, %v495
    %v497 = vpop.f32.mrb[0].mxu0
    %v498 = vpop.f32.mrb[0].mxu0
    %v499 = vadd.f32 %v370, %v498
    %v500 = vpop.f32.mrb[0].mxu0
    %501 = vmatprep.mubr.bf16.mxu0 0
    %502 = vmatmul.mubr.bf16.gmra.mrb[0].mxu0 %v439
    %v503 = vpop.f32.mrb[0].mxu0
    %v504 = vadd.f32 %v375, %v503
    %v505 = vpop.f32.mrb[0].mxu0
    %v506 = vpop.f32.mrb[0].mxu0
    %v507 = vadd.f32 %v378, %v506
    %v508 = vpop.f32.mrb[0].mxu0
    %509 = vmatprep.mubr.bf16.mxu0 0
    %510 = vmatmul.mubr.bf16.gmra.mrb[0].mxu0 %v442
    %v511 = vpop.f32.mrb[0].mxu0
    %v512 = vadd.f32 %v383, %v511
    %v513 = vpop.f32.mrb[0].mxu0
    %v514 = vpop.f32.mrb[0].mxu0
    %v515 = vadd.f32 %v386, %v514
    %v516 = vpop.f32.mrb[0].mxu0
    %517 = vmatprep.mubr.bf16.mxu0 0
    %518 = vmatmul.mubr.bf16.gmra.mrb[0].mxu0 %v445
    %v519 = vpop.f32.mrb[0].mxu0
    %v520 = vadd.f32 %v391, %v519
    %v521 = vpop.f32.mrb[0].mxu0
    %v522 = vpop.f32.mrb[0].mxu0
    %v523 = vadd.f32 %v394, %v522
    %v524 = vpop.f32.mrb[0].mxu0
    %525 = vmatprep.mubr.bf16.mxu0 0
    %526 = vmatmul.mubr.bf16.gmra.mrb[0].mxu0 %v448
    %v527 = vpop.f32.mrb[0].mxu0
    %v528 = vadd.f32 %v399, %v527
    %v529 = vpop.f32.mrb[0].mxu0
    %v530 = vpop.f32.mrb[0].mxu0
    %v531 = vpop.f32.mrb[0].mxu0
    %532 = vdwg.mxu0
    %s533 = scalar_lea.vmem %s3, 88
    %v534 = vld [vmem:[%s533] sm:$0xf]
    %v535 = vld [vmem:[%s533 + $0x4] sm:$0xf]
    %v536 = vld [vmem:[%s533 + $0x8] sm:$0xf]
    %v537 = vld [vmem:[%s533 + $0xc] sm:$0xf]
    %v538 = vld [vmem:[%s533 + $0x10] sm:$0xf]
    %v539 = vld [vmem:[%s533 + $0x14] sm:$0xf]
    %v540 = vld [vmem:[%s533 + $0x18] sm:$0xf]
    %v541 = vld [vmem:[%s533 + $0x1c] sm:$0xf]
    %v542 = vld [vmem:[%s533 + $0x20] sm:$0xf]
    %v543 = vld [vmem:[%s533 + $0x24] sm:$0xf]
    %v544 = vld [vmem:[%s533 + $0x28] sm:$0x3]
    %v556 = vunpack.c.l.b16 %v534
    %v557 = vunpack.c.l.b16 %v535
    %v558 = vunpack.c.l.b16 %v536
    %v559 = vunpack.c.l.b16 %v537
    %v560 = vunpack.c.l.b16 %v538
    %v561 = vunpack.c.l.b16 %v539
    %v562 = vunpack.c.l.b16 %v540
    %v563 = vunpack.c.l.b16 %v541
    %v564 = vunpack.c.l.b16 %v542
    %v565 = vunpack.c.l.b16 %v543
    %v566 = vunpack.c.l.b16 %v544
    %v567 = vpack.c.b16 %v557, %v556
    %v568 = vpack.c.b16 %v559, %v558
    %v569 = vpack.c.b16 %v561, %v560
    %v570 = vpack.c.b16 %v563, %v562
    %v571 = vpack.c.b16 %v565, %v564
    %v572 = vpack.c.b16 %v566, %v566
    %v574 = vsel %vm302, %v567, 0
    %v577 = vsel %vm302, %v568, 0
    %v580 = vsel %vm302, %v569, 0
    %v583 = vsel %vm302, %v570, 0
    %v586 = vsel %vm302, %v571, 0
    %v589 = vsel %vm302, %v572, 0
    %v592 = vsel %vm118, %v227, 0
    %594 = vmatprep.subr.bf16.mxu0 0
    %595 = vmatpush1.bf16.msra.mxu0 %v217
    %596 = vmatprep.subr.bf16.mxu0 0
    %597 = vmatpush1.bf16.msra.mxu0 %v219
    %598 = vmatprep.subr.bf16.mxu0 0
    %599 = vmatpush1.bf16.msra.mxu0 %v221
    %600 = vmatprep.subr.bf16.mxu0 0
    %601 = vmatpush1.bf16.msra.mxu0 %v223
    %602 = vmatprep.subr.bf16.mxu0 0
    %603 = vmatpush1.bf16.msra.mxu0 %v225
    %604 = vmatprep.subr.bf16.mxu0 0
    %605 = vmatpush1.bf16.msra.mxu0 %v592
    %606 = vmatprep.subr.bf16.mxu0 0
    %607 = vmatpush1.bf16.msra.mxu0 0
    %608 = vmatprep.subr.bf16.mxu0 0
    %609 = vmatpush1.bf16.msra.mxu0 0
    %610 = vmatprep.subr.bf16.mxu0 0
    %611 = vmatpush1.bf16.msra.mxu0 0
    %612 = vmatprep.subr.bf16.mxu0 0
    %613 = vmatpush1.bf16.msra.mxu0 0
    %614 = vmatprep.subr.bf16.mxu0 0
    %615 = vmatpush1.bf16.msra.mxu0 0
    %616 = vmatprep.subr.bf16.mxu0 0
    %617 = vmatpush1.bf16.msra.mxu0 0
    %618 = vmatprep.subr.bf16.mxu0 0
    %619 = vmatpush1.bf16.msra.mxu0 0
    %620 = vmatprep.subr.bf16.mxu0 0
    %621 = vmatpush1.bf16.msra.mxu0 0
    %622 = vmatprep.subr.bf16.mxu0 0
    %623 = vmatpush1.bf16.msra.mxu0 0
    %624 = vmatprep.subr.bf16.mxu0 0
    %625 = vmatpush1.bf16.msra.mxu0 0
    %626 = vmatprep.mubr.bf16.mxu0 0
    %627 = vmatmul.mubr.bf16.gmra.mrb[0].mxu0 %v574
    %v628 = vpop.f32.mrb[0].mxu0
    %v629 = vadd.f32 0.0, %v628
    %v630 = vpop.f32.mrb[0].mxu0
    %v631 = vpop.f32.mrb[0].mxu0
    %v632 = vadd.f32 0.0, %v631
    %v633 = vpop.f32.mrb[0].mxu0
    %634 = vmatprep.mubr.bf16.mxu0 0
    %635 = vmatmul.mubr.bf16.gmra.mrb[0].mxu0 %v577
    %v636 = vpop.f32.mrb[0].mxu0
    %v637 = vadd.f32 0.0, %v636
    %v638 = vpop.f32.mrb[0].mxu0
    %v639 = vpop.f32.mrb[0].mxu0
    %v640 = vadd.f32 0.0, %v639
    %v641 = vpop.f32.mrb[0].mxu0
    %642 = vmatprep.mubr.bf16.mxu0 0
    %643 = vmatmul.mubr.bf16.gmra.mrb[0].mxu0 %v580
    %v644 = vpop.f32.mrb[0].mxu0
    %v645 = vadd.f32 0.0, %v644
    %v646 = vpop.f32.mrb[0].mxu0
    %v647 = vpop.f32.mrb[0].mxu0
    %v648 = vadd.f32 0.0, %v647
    %v649 = vpop.f32.mrb[0].mxu0
    %650 = vmatprep.mubr.bf16.mxu0 0
    %651 = vmatmul.mubr.bf16.gmra.mrb[0].mxu0 %v583
    %v652 = vpop.f32.mrb[0].mxu0
    %v653 = vadd.f32 0.0, %v652
    %v654 = vpop.f32.mrb[0].mxu0
    %v655 = vpop.f32.mrb[0].mxu0
    %v656 = vadd.f32 0.0, %v655
    %v657 = vpop.f32.mrb[0].mxu0
    %658 = vmatprep.mubr.bf16.mxu0 0
    %659 = vmatmul.mubr.bf16.gmra.mrb[0].mxu0 %v586
    %v660 = vpop.f32.mrb[0].mxu0
    %v661 = vadd.f32 0.0, %v660
    %v662 = vpop.f32.mrb[0].mxu0
    %v663 = vpop.f32.mrb[0].mxu0
    %v664 = vadd.f32 0.0, %v663
    %v665 = vpop.f32.mrb[0].mxu0
    %666 = vmatprep.mubr.bf16.mxu0 0
    %667 = vmatmul.mubr.bf16.gmra.mrb[0].mxu0 %v589
    %v668 = vpop.f32.mrb[0].mxu0
    %v669 = vadd.f32 0.0, %v668
    %v670 = vpop.f32.mrb[0].mxu0
    %v671 = vpop.f32.mrb[0].mxu0
    %v672 = vpop.f32.mrb[0].mxu0
    %673 = vdwg.mxu0
    %v674 = vadd.f32 %v488, %v629
    %v675 = vadd.f32 %v491, %v632
    %v676 = vadd.f32 %v496, %v637
    %v677 = vadd.f32 %v499, %v640
    %v678 = vadd.f32 %v504, %v645
    %v679 = vadd.f32 %v507, %v648
    %v680 = vadd.f32 %v512, %v653
    %v681 = vadd.f32 %v515, %v656
    %v682 = vadd.f32 %v520, %v661
    %v683 = vadd.f32 %v523, %v664
    %v684 = vadd.f32 %v528, %v669
    %v685 = vld [vmem:[%s2] sm:$0x1]
    %v687 = vlaneseq
    %v688 = vshrl.u32 %v687, 7
    %v689 = vsub.s32 0, %v688
    %v690 = vrot.slane %v685, %v689
    %v692 = vadd.f32 %v674, %v690
    %v693 = vadd.f32 %v675, %v690
    %v694 = vadd.f32 %v676, %v690
    %v695 = vadd.f32 %v677, %v690
    %v696 = vadd.f32 %v678, %v690
    %v697 = vadd.f32 %v679, %v690
    %v698 = vadd.f32 %v680, %v690
    %v699 = vadd.f32 %v681, %v690
    %v700 = vadd.f32 %v682, %v690
    %v701 = vadd.f32 %v683, %v690
    %v702 = vadd.f32 %v684, %v690
    %v703 = vmax.f32 %v692, 0.0
    %v704 = vmax.f32 %v693, 0.0
    %v705 = vmax.f32 %v694, 0.0
    %v706 = vmax.f32 %v695, 0.0
    %v707 = vmax.f32 %v696, 0.0
    %v708 = vmax.f32 %v697, 0.0
    %v709 = vmax.f32 %v698, 0.0
    %v710 = vmax.f32 %v699, 0.0
    %v711 = vmax.f32 %v700, 0.0
    %v712 = vmax.f32 %v701, 0.0
    %v713 = vmax.f32 %v702, 0.0
    %v714 = vpack.c.bf16 %v704, %v703
    %v715 = vpack.c.bf16 %v706, %v705
    %v716 = vpack.c.bf16 %v708, %v707
    %v717 = vpack.c.bf16 %v710, %v709
    %v718 = vpack.c.bf16 %v712, %v711
    %v719 = vpack.c.bf16 %v713, %v713
    %s720 = scalar_lea.vmem [#allocation4], 128
    %v721 = vld [vmem:[%s720] sm:$0xf]
    %v722 = vld [vmem:[%s720 + $0x4] sm:$0xf]
    %v723 = vld [vmem:[%s720 + $0x8] sm:$0xf]
    %v724 = vld [vmem:[%s720 + $0xc] sm:$0xf]
    %v725 = vld [vmem:[%s720 + $0x10] sm:$0xf]
    %v726 = vld [vmem:[%s720 + $0x14] sm:$0xf]
    %v727 = vld [vmem:[%s720 + $0x18] sm:$0xf]
    %v728 = vld [vmem:[%s720 + $0x1c] sm:$0xf]
    %v729 = vld [vmem:[%s5] sm:$0x1]
    %v731 = vlaneseq
    %v732 = vshrl.u32 %v731, 7
    %v733 = vsub.s32 0, %v732
    %v734 = vrot.slane %v729, %v733
    %v744 = vunpack.c.l.b16 %v721
    %v745 = vunpack.c.l.b16 %v722
    %v746 = vunpack.c.l.b16 %v723
    %v747 = vunpack.c.l.b16 %v724
    %v748 = vunpack.c.l.b16 %v725
    %v749 = vunpack.c.l.b16 %v726
    %v750 = vunpack.c.l.b16 %v727
    %v751 = vunpack.c.l.b16 %v728
    %v752 = vpack.c.b16 %v745, %v744
    %v753 = vpack.c.b16 %v747, %v746
    %v754 = vpack.c.b16 %v749, %v748
    %v755 = vpack.c.b16 %v751, %v750
    %vm760 = vcmask 523264
    %v762 = vsel %vm760, %v714, 0
    %v765 = vsel %vm760, %v715, 0
    %v768 = vsel %vm760, %v716, 0
    %v771 = vsel %vm760, %v717, 0
    %v774 = vsel %vm760, %v718, 0
    %v777 = vsel %vm760, %v719, 0
    %779 = vmatprep.subr.bf16.mxu0 0
    %780 = vmatpush1.bf16.msra.mxu0 %v752
    %781 = vmatprep.subr.bf16.mxu0 0
    %782 = vmatpush1.bf16.msra.mxu0 %v753
    %783 = vmatprep.subr.bf16.mxu0 0
    %784 = vmatpush1.bf16.msra.mxu0 %v754
    %785 = vmatprep.subr.bf16.mxu0 0
    %786 = vmatpush1.bf16.msra.mxu0 %v755
    %787 = vmatprep.subr.bf16.mxu0 0
    %788 = vmatpush1.bf16.msra.mxu0 0
    %789 = vmatprep.subr.bf16.mxu0 0
    %790 = vmatpush1.bf16.msra.mxu0 0
    %791 = vmatprep.subr.bf16.mxu0 0
    %792 = vmatpush1.bf16.msra.mxu0 0
    %793 = vmatprep.subr.bf16.mxu0 0
    %794 = vmatpush1.bf16.msra.mxu0 0
    %795 = vmatprep.subr.bf16.mxu0 0
    %796 = vmatpush1.bf16.msra.mxu0 0
    %797 = vmatprep.subr.bf16.mxu0 0
    %798 = vmatpush1.bf16.msra.mxu0 0
    %799 = vmatprep.subr.bf16.mxu0 0
    %800 = vmatpush1.bf16.msra.mxu0 0
    %801 = vmatprep.subr.bf16.mxu0 0
    %802 = vmatpush1.bf16.msra.mxu0 0
    %803 = vmatprep.subr.bf16.mxu0 0
    %804 = vmatpush1.bf16.msra.mxu0 0
    %805 = vmatprep.subr.bf16.mxu0 0
    %806 = vmatpush1.bf16.msra.mxu0 0
    %807 = vmatprep.subr.bf16.mxu0 0
    %808 = vmatpush1.bf16.msra.mxu0 0
    %809 = vmatprep.subr.bf16.mxu0 0
    %810 = vmatpush1.bf16.msra.mxu0 0
    %811 = vmatprep.mubr.bf16.mxu0 0
    %812 = vmatmul.mubr.bf16.gmra.mrb[0].mxu0 %v762
    %v813 = vpop.f32.mrb[0].mxu0
    %v814 = vadd.f32 %v734, %v813
    %v815 = vpop.f32.mrb[0].mxu0
    %v816 = vpop.f32.mrb[0].mxu0
    %v817 = vadd.f32 %v734, %v816
    %v818 = vpop.f32.mrb[0].mxu0
    %819 = vmatprep.mubr.bf16.mxu0 0
    %820 = vmatmul.mubr.bf16.gmra.mrb[0].mxu0 %v765
    %v821 = vpop.f32.mrb[0].mxu0
    %v822 = vadd.f32 %v734, %v821
    %v823 = vpop.f32.mrb[0].mxu0
    %v824 = vpop.f32.mrb[0].mxu0
    %v825 = vadd.f32 %v734, %v824
    %v826 = vpop.f32.mrb[0].mxu0
    %827 = vmatprep.mubr.bf16.mxu0 0
    %828 = vmatmul.mubr.bf16.gmra.mrb[0].mxu0 %v768
    %v829 = vpop.f32.mrb[0].mxu0
    %v830 = vadd.f32 %v734, %v829
    %v831 = vpop.f32.mrb[0].mxu0
    %v832 = vpop.f32.mrb[0].mxu0
    %v833 = vadd.f32 %v734, %v832
    %v834 = vpop.f32.mrb[0].mxu0
    %835 = vmatprep.mubr.bf16.mxu0 0
    %836 = vmatmul.mubr.bf16.gmra.mrb[0].mxu0 %v771
    %v837 = vpop.f32.mrb[0].mxu0
    %v838 = vadd.f32 %v734, %v837
    %v839 = vpop.f32.mrb[0].mxu0
    %v840 = vpop.f32.mrb[0].mxu0
    %v841 = vadd.f32 %v734, %v840
    %v842 = vpop.f32.mrb[0].mxu0
    %843 = vmatprep.mubr.bf16.mxu0 0
    %844 = vmatmul.mubr.bf16.gmra.mrb[0].mxu0 %v774
    %v845 = vpop.f32.mrb[0].mxu0
    %v846 = vadd.f32 %v734, %v845
    %v847 = vpop.f32.mrb[0].mxu0
    %v848 = vpop.f32.mrb[0].mxu0
    %v849 = vadd.f32 %v734, %v848
    %v850 = vpop.f32.mrb[0].mxu0
    %851 = vmatprep.mubr.bf16.mxu0 0
    %852 = vmatmul.mubr.bf16.gmra.mrb[0].mxu0 %v777
    %v853 = vpop.f32.mrb[0].mxu0
    %v854 = vadd.f32 %v734, %v853
    %v855 = vpop.f32.mrb[0].mxu0
    %v856 = vpop.f32.mrb[0].mxu0
    %v857 = vpop.f32.mrb[0].mxu0
    %858 = vdwg.mxu0
    %v859 = vmax.f32 %v814, 0.0
    %v860 = vmax.f32 %v817, 0.0
    %v861 = vmax.f32 %v822, 0.0
    %v862 = vmax.f32 %v825, 0.0
    %v863 = vmax.f32 %v830, 0.0
    %v864 = vmax.f32 %v833, 0.0
    %v865 = vmax.f32 %v838, 0.0
    %v866 = vmax.f32 %v841, 0.0
    %v867 = vmax.f32 %v846, 0.0
    %v868 = vmax.f32 %v849, 0.0
    %v869 = vmax.f32 %v854, 0.0
    %v870 = vpack.c.bf16 %v860, %v859
    %v871 = vpack.c.bf16 %v862, %v861
    %v872 = vpack.c.bf16 %v864, %v863
    %v873 = vpack.c.bf16 %v866, %v865
    %v874 = vpack.c.bf16 %v868, %v867
    %v875 = vpack.c.bf16 %v869, %v869
    %v882 = vunpack.c.l.b16 %v870
    %v883 = vunpack.c.h.b16 %v870
    %v884 = vunpack.c.l.b16 %v871
    %v885 = vunpack.c.h.b16 %v871
    %v886 = vunpack.c.l.b16 %v872
    %v887 = vunpack.c.h.b16 %v872
    %v888 = vunpack.c.l.b16 %v873
    %v889 = vunpack.c.h.b16 %v873
    %v890 = vunpack.c.l.b16 %v874
    %v891 = vunpack.c.h.b16 %v874
    %v892 = vunpack.c.l.b16 %v875
    %v893 = vpack.c.b16 %v882, %v882
    %v894 = vpack.c.b16 %v883, %v883
    %v895 = vpack.c.b16 %v884, %v884
    %v896 = vpack.c.b16 %v885, %v885
    %v897 = vpack.c.b16 %v886, %v886
    %v898 = vpack.c.b16 %v887, %v887
    %v899 = vpack.c.b16 %v888, %v888
    %v900 = vpack.c.b16 %v889, %v889
    %v901 = vpack.c.b16 %v890, %v890
    %v902 = vpack.c.b16 %v891, %v891
    %v903 = vpack.c.b16 %v892, %v892
    %vm915 = vcmask 519168
    %916 = vst.msk [vmem:[%s6] sm:$0xf] %vm915, %v893
    %917 = vst.msk [vmem:[%s6 + $0x4] sm:$0xf] %vm915, %v894
    %918 = vst.msk [vmem:[%s6 + $0x8] sm:$0xf] %vm915, %v895
    %919 = vst.msk [vmem:[%s6 + $0xc] sm:$0xf] %vm915, %v896
    %920 = vst.msk [vmem:[%s6 + $0x10] sm:$0xf] %vm915, %v897
    %921 = vst.msk [vmem:[%s6 + $0x14] sm:$0xf] %vm915, %v898
    %922 = vst.msk [vmem:[%s6 + $0x18] sm:$0xf] %vm915, %v899
    %923 = vst.msk [vmem:[%s6 + $0x1c] sm:$0xf] %vm915, %v900
    %924 = vst.msk [vmem:[%s6 + $0x20] sm:$0xf] %vm915, %v901
    %925 = vst.msk [vmem:[%s6 + $0x24] sm:$0xf] %vm915, %v902
    %vm926 = vcmask 517120
    %927 = vst.msk [vmem:[%s6 + $0x28] sm:$0x3] %vm926, %v903
    // Predicated region
    $region34: #{double_tpgcn_forward.12} parent=1 // pred_check
      _
    $region35: #{double_tpgcn_forward.12} parent=1 // pred_check_branch
      %929 = sbr.rel (0) target = $region37
    $region36: #{double_tpgcn_forward.12} parent=1 // pred_region
      _
    $region37: #{double_tpgcn_forward.12} parent=1 // pred_fallthru
      _
    // Predicated region
    $region38: #{double_tpgcn_forward.12} parent=1 // pred_check
      _
    $region39: #{double_tpgcn_forward.12} parent=1 // pred_check_branch
      %931 = sbr.rel (0) target = $region41
    $region40: #{double_tpgcn_forward.12} parent=1 // pred_region
      _
    $region41: #{double_tpgcn_forward.12} parent=1 // pred_fallthru
      _
    %932 = vsyncpa [#allocation3], 1
    %933 = vsyncpa [#allocation5], 1

// kernel: double_tpgcn_forward.13
$region0: #{double_tpgcn_forward.13}
  #allocation0 [shape = 'u32[]', space=smem, size = 0x4, offset = 0x4, fixed_abs, tag = 'smem constant byte address 0x4 - core index']
  #allocation1 [shape = 'u32[144,128]{1,0:T(1,128)}', space=vmem, size = 0x12000, scoped, tag = 'internal scratch']
  %s0 = inlined_call_operand.vmem [shape: bf16[84,64], index: 0, kind: input, shape index: {}]
  %s1 = inlined_call_operand.vmem [shape: bf16[64,192], index: 1, kind: input, shape index: {}]
  %s2 = inlined_call_operand.vmem [shape: f32[1,64], index: 2, kind: input, shape index: {}, may-alias: {2,5}]
  %s3 = inlined_call_operand.vmem [shape: bf16[3,84,84], index: 3, kind: input, shape index: {}]
  %s4 = inlined_call_operand.hbm [shape: bf16[9,64,64], index: 4, kind: input, shape index: {}]
  %s5 = inlined_call_operand.vmem [shape: f32[1,64], index: 5, kind: input, shape index: {}, may-alias: {2,5}]
  %s6 = inlined_call_operand.vmem [shape: bf16[84,64], index: 6, kind: output, shape index: {}]
  %s7 = sld [smem:[#allocation0]]
  $region38: #{double_tpgcn_forward.13} parent=0
    _
  %s9 = ssub.s32 1, %s7
  %s10 = scalar_select 0, %s9, %s7
  $region1: #{double_tpgcn_forward.13} parent=0
    #allocation2 [shape = 'u8[147456]{0}', space=vmem, size = 0x24000, scoped, tag = 'input window, operand 4, single buffered']
    #allocation3 [shape = 's32[1]{0}', space=sflag, size = 0x4, scoped, tag = 'scoped memory for double_tpgcn_forward.13']
    %11 = vsyncpa [#allocation3], 0
    // Predicated region
    $region2: #{double_tpgcn_forward.13} parent=1 // pred_check
      _
    $region3: #{double_tpgcn_forward.13} parent=1 // pred_check_branch
      %13 = sbr.rel (0) target = $region5
    $region4: #{double_tpgcn_forward.13} parent=1 // pred_region
      _
    $region5: #{double_tpgcn_forward.13} parent=1 // pred_fallthru
      _
    // Predicated region
    $region6: #{double_tpgcn_forward.13} parent=1 // pred_check
      _
    $region7: #{double_tpgcn_forward.13} parent=1 // pred_check_branch
      %15 = sbr.rel (0) target = $region9
    $region8: #{double_tpgcn_forward.13} parent=1 // pred_region
      _
    $region9: #{double_tpgcn_forward.13} parent=1 // pred_fallthru
      _
    // Predicated region
    $region10: #{double_tpgcn_forward.13} parent=1 // pred_check
      _
    $region11: #{double_tpgcn_forward.13} parent=1 // pred_check_branch
      %17 = sbr.rel (0) target = $region13
    $region12: #{double_tpgcn_forward.13} parent=1 // pred_region
      _
    $region13: #{double_tpgcn_forward.13} parent=1 // pred_fallthru
      _
    // Predicated region
    $region14: #{double_tpgcn_forward.13} parent=1 // pred_check
      _
    $region15: #{double_tpgcn_forward.13} parent=1 // pred_check_branch
      %19 = sbr.rel (0) target = $region17
    $region16: #{double_tpgcn_forward.13} parent=1 // pred_region
      _
    $region17: #{double_tpgcn_forward.13} parent=1 // pred_fallthru
      _
    // Predicated region
    $region18: #{double_tpgcn_forward.13} parent=1 // pred_check
      _
    $region19: #{double_tpgcn_forward.13} parent=1 // pred_check_branch
      %21 = sbr.rel (0) target = $region21
    $region20: #{double_tpgcn_forward.13} parent=1 // pred_region
      %s23 = ssub.s32 4608, 4608
      %24 = vsyncadd [#allocation3], %s23
      %s25 = sshll.u32 [#allocation2], 4
      %s26 = int_to_ptr.vmem [resolvable:$true] %s25
      %31 = dma.hbm_to_vmem [thread:$0]  %s4, 4608, %s26, [#allocation3], 64, 64, 4
    $region21: #{double_tpgcn_forward.13} parent=1 // pred_fallthru
      _
    // Predicated region
    $region22: #{double_tpgcn_forward.13} parent=1 // pred_check
      _
    $region23: #{double_tpgcn_forward.13} parent=1 // pred_check_branch
      %33 = sbr.rel (0) target = $region25
    $region24: #{double_tpgcn_forward.13} parent=1 // pred_region
      _
    $region25: #{double_tpgcn_forward.13} parent=1 // pred_fallthru
      _
    // Predicated region
    $region26: #{double_tpgcn_forward.13} parent=1 // pred_check
      _
    $region27: #{double_tpgcn_forward.13} parent=1 // pred_check_branch
      %35 = sbr.rel (0) target = $region29
    $region28: #{double_tpgcn_forward.13} parent=1 // pred_region
      %36 = dma.done [#allocation3], 4608
    $region29: #{double_tpgcn_forward.13} parent=1 // pred_fallthru
      _
    %v38 = vld [vmem:[%s0] sm:$0xf]
    %v39 = vld [vmem:[%s0 + $0x4] sm:$0xf]
    %v40 = vld [vmem:[%s0 + $0x8] sm:$0xf]
    %v41 = vld [vmem:[%s0 + $0xc] sm:$0xf]
    %v42 = vld [vmem:[%s0 + $0x10] sm:$0xf]
    %v43 = vld [vmem:[%s0 + $0x14] sm:$0xf]
    %v44 = vld [vmem:[%s0 + $0x18] sm:$0xf]
    %v45 = vld [vmem:[%s0 + $0x1c] sm:$0xf]
    %v46 = vld [vmem:[%s0 + $0x20] sm:$0xf]
    %v47 = vld [vmem:[%s0 + $0x24] sm:$0xf]
    %v48 = vld [vmem:[%s0 + $0x28] sm:$0x3]
    %v49 = vld [vmem:[%s1] sm:$0xff]
    %v50 = vld [vmem:[%s1 + $0x8] sm:$0xff]
    %v51 = vld [vmem:[%s1 + $0x10] sm:$0xff]
    %v52 = vld [vmem:[%s1 + $0x18] sm:$0xff]
    %v53 = vld [vmem:[%s1 + $0x20] sm:$0xff]
    %v54 = vld [vmem:[%s1 + $0x28] sm:$0xff]
    %v55 = vld [vmem:[%s1 + $0x30] sm:$0xff]
    %v56 = vld [vmem:[%s1 + $0x38] sm:$0xff]
    %v68 = vunpack.c.l.b16 %v38
    %v69 = vunpack.c.l.b16 %v39
    %v70 = vunpack.c.l.b16 %v40
    %v71 = vunpack.c.l.b16 %v41
    %v72 = vunpack.c.l.b16 %v42
    %v73 = vunpack.c.l.b16 %v43
    %v74 = vunpack.c.l.b16 %v44
    %v75 = vunpack.c.l.b16 %v45
    %v76 = vunpack.c.l.b16 %v46
    %v77 = vunpack.c.l.b16 %v47
    %v78 = vunpack.c.l.b16 %v48
    %v79 = vpack.c.b16 %v69, %v68
    %v80 = vpack.c.b16 %v71, %v70
    %v81 = vpack.c.b16 %v73, %v72
    %v82 = vpack.c.b16 %v75, %v74
    %v83 = vpack.c.b16 %v77, %v76
    %v84 = vpack.c.b16 %v78, %v78
    %v93 = vunpack.c.l.b16 %v49
    %v94 = vunpack.c.h.b16 %v49
    %v95 = vunpack.c.l.b16 %v50
    %v96 = vunpack.c.h.b16 %v50
    %v97 = vunpack.c.l.b16 %v51
    %v98 = vunpack.c.h.b16 %v51
    %v99 = vunpack.c.l.b16 %v52
    %v100 = vunpack.c.h.b16 %v52
    %v101 = vunpack.c.l.b16 %v53
    %v102 = vunpack.c.h.b16 %v53
    %v103 = vunpack.c.l.b16 %v54
    %v104 = vunpack.c.h.b16 %v54
    %v105 = vunpack.c.l.b16 %v55
    %v106 = vunpack.c.h.b16 %v55
    %v107 = vunpack.c.l.b16 %v56
    %v108 = vunpack.c.h.b16 %v56
    %v109 = vpack.c.b16 %v95, %v93
    %v110 = vpack.c.b16 %v96, %v94
    %v111 = vpack.c.b16 %v99, %v97
    %v112 = vpack.c.b16 %v100, %v98
    %v113 = vpack.c.b16 %v103, %v101
    %v114 = vpack.c.b16 %v104, %v102
    %v115 = vpack.c.b16 %v107, %v105
    %v116 = vpack.c.b16 %v108, %v106
    %vm125 = vcmask 523264
    %v127 = vsel %vm125, %v79, 0
    %v130 = vsel %vm125, %v80, 0
    %v133 = vsel %vm125, %v81, 0
    %v136 = vsel %vm125, %v82, 0
    %v139 = vsel %vm125, %v83, 0
    %v142 = vsel %vm125, %v84, 0
    %144 = vmatprep.subr.bf16.mxu0 %v110
    %145 = vmatpush1.bf16.msra.mxu0 %v109
    %146 = vmatprep.subr.bf16.mxu0 %v112
    %147 = vmatpush1.bf16.msra.mxu0 %v111
    %148 = vmatprep.subr.bf16.mxu0 %v114
    %149 = vmatpush1.bf16.msra.mxu0 %v113
    %150 = vmatprep.subr.bf16.mxu0 %v116
    %151 = vmatpush1.bf16.msra.mxu0 %v115
    %152 = vmatprep.subr.bf16.mxu0 0
    %153 = vmatpush1.bf16.msra.mxu0 0
    %154 = vmatprep.subr.bf16.mxu0 0
    %155 = vmatpush1.bf16.msra.mxu0 0
    %156 = vmatprep.subr.bf16.mxu0 0
    %157 = vmatpush1.bf16.msra.mxu0 0
    %158 = vmatprep.subr.bf16.mxu0 0
    %159 = vmatpush1.bf16.msra.mxu0 0
    %160 = vmatprep.subr.bf16.mxu0 0
    %161 = vmatpush1.bf16.msra.mxu0 0
    %162 = vmatprep.subr.bf16.mxu0 0
    %163 = vmatpush1.bf16.msra.mxu0 0
    %164 = vmatprep.subr.bf16.mxu0 0
    %165 = vmatpush1.bf16.msra.mxu0 0
    %166 = vmatprep.subr.bf16.mxu0 0
    %167 = vmatpush1.bf16.msra.mxu0 0
    %168 = vmatprep.subr.bf16.mxu0 0
    %169 = vmatpush1.bf16.msra.mxu0 0
    %170 = vmatprep.subr.bf16.mxu0 0
    %171 = vmatpush1.bf16.msra.mxu0 0
    %172 = vmatprep.subr.bf16.mxu0 0
    %173 = vmatpush1.bf16.msra.mxu0 0
    %174 = vmatprep.subr.bf16.mxu0 0
    %175 = vmatpush1.bf16.msra.mxu0 0
    %176 = vmatprep.mubr.bf16.mxu0 0
    %177 = vmatmul.mubr.bf16.gmra.mrb[0].mxu0 %v127
    %v178 = vpop.f32.mrb[0].mxu0
    %v179 = vadd.f32 0.0, %v178
    %v180 = vpop.f32.mrb[0].mxu0
    %v181 = vadd.f32 0.0, %v180
    %v182 = vpop.f32.mrb[0].mxu0
    %v183 = vadd.f32 0.0, %v182
    %v184 = vpop.f32.mrb[0].mxu0
    %v185 = vadd.f32 0.0, %v184
    %186 = vmatprep.mubr.bf16.mxu0 0
    %187 = vmatmul.mubr.bf16.gmra.mrb[0].mxu0 %v130
    %v188 = vpop.f32.mrb[0].mxu0
    %v189 = vadd.f32 0.0, %v188
    %v190 = vpop.f32.mrb[0].mxu0
    %v191 = vadd.f32 0.0, %v190
    %v192 = vpop.f32.mrb[0].mxu0
    %v193 = vadd.f32 0.0, %v192
    %v194 = vpop.f32.mrb[0].mxu0
    %v195 = vadd.f32 0.0, %v194
    %196 = vmatprep.mubr.bf16.mxu0 0
    %197 = vmatmul.mubr.bf16.gmra.mrb[0].mxu0 %v133
    %v198 = vpop.f32.mrb[0].mxu0
    %v199 = vadd.f32 0.0, %v198
    %v200 = vpop.f32.mrb[0].mxu0
    %v201 = vadd.f32 0.0, %v200
    %v202 = vpop.f32.mrb[0].mxu0
    %v203 = vadd.f32 0.0, %v202
    %v204 = vpop.f32.mrb[0].mxu0
    %v205 = vadd.f32 0.0, %v204
    %206 = vmatprep.mubr.bf16.mxu0 0
    %207 = vmatmul.mubr.bf16.gmra.mrb[0].mxu0 %v136
    %v208 = vpop.f32.mrb[0].mxu0
    %v209 = vadd.f32 0.0, %v208
    %v210 = vpop.f32.mrb[0].mxu0
    %v211 = vadd.f32 0.0, %v210
    %v212 = vpop.f32.mrb[0].mxu0
    %v213 = vadd.f32 0.0, %v212
    %v214 = vpop.f32.mrb[0].mxu0
    %v215 = vadd.f32 0.0, %v214
    %216 = vmatprep.mubr.bf16.mxu0 0
    %217 = vmatmul.mubr.bf16.gmra.mrb[0].mxu0 %v139
    %v218 = vpop.f32.mrb[0].mxu0
    %v219 = vadd.f32 0.0, %v218
    %v220 = vpop.f32.mrb[0].mxu0
    %v221 = vadd.f32 0.0, %v220
    %v222 = vpop.f32.mrb[0].mxu0
    %v223 = vadd.f32 0.0, %v222
    %v224 = vpop.f32.mrb[0].mxu0
    %v225 = vadd.f32 0.0, %v224
    %226 = vmatprep.mubr.bf16.mxu0 0
    %227 = vmatmul.mubr.bf16.gmra.mrb[0].mxu0 %v142
    %v228 = vpop.f32.mrb[0].mxu0
    %v229 = vadd.f32 0.0, %v228
    %v230 = vpop.f32.mrb[0].mxu0
    %v231 = vadd.f32 0.0, %v230
    %v232 = vpop.f32.mrb[0].mxu0
    %v233 = vpop.f32.mrb[0].mxu0
    %234 = vdwg.mxu0
    %v235 = vpack.c.bf16 %v183, %v179
    %v236 = vpack.c.bf16 %v185, %v181
    %v237 = vpack.c.bf16 %v193, %v189
    %v238 = vpack.c.bf16 %v195, %v191
    %v239 = vpack.c.bf16 %v203, %v199
    %v240 = vpack.c.bf16 %v205, %v201
    %v241 = vpack.c.bf16 %v213, %v209
    %v242 = vpack.c.bf16 %v215, %v211
    %v243 = vpack.c.bf16 %v223, %v219
    %v244 = vpack.c.bf16 %v225, %v221
    %v245 = vpack.c.bf16 %v229, %v229
    %v246 = vpack.c.bf16 %v231, %v231
    %v247 = vld [vmem:[%s3] sm:$0xf]
    %v248 = vld [vmem:[%s3 + $0x4] sm:$0xf]
    %v249 = vld [vmem:[%s3 + $0x8] sm:$0xf]
    %v250 = vld [vmem:[%s3 + $0xc] sm:$0xf]
    %v251 = vld [vmem:[%s3 + $0x10] sm:$0xf]
    %v252 = vld [vmem:[%s3 + $0x14] sm:$0xf]
    %v253 = vld [vmem:[%s3 + $0x18] sm:$0xf]
    %v254 = vld [vmem:[%s3 + $0x1c] sm:$0xf]
    %v255 = vld [vmem:[%s3 + $0x20] sm:$0xf]
    %v256 = vld [vmem:[%s3 + $0x24] sm:$0xf]
    %v257 = vld [vmem:[%s3 + $0x28] sm:$0x3]
    %s258 = scalar_lea.vmem %s3, 44
    %v259 = vld [vmem:[%s258] sm:$0xf]
    %v260 = vld [vmem:[%s258 + $0x4] sm:$0xf]
    %v261 = vld [vmem:[%s258 + $0x8] sm:$0xf]
    %v262 = vld [vmem:[%s258 + $0xc] sm:$0xf]
    %v263 = vld [vmem:[%s258 + $0x10] sm:$0xf]
    %v264 = vld [vmem:[%s258 + $0x14] sm:$0xf]
    %v265 = vld [vmem:[%s258 + $0x18] sm:$0xf]
    %v266 = vld [vmem:[%s258 + $0x1c] sm:$0xf]
    %v267 = vld [vmem:[%s258 + $0x20] sm:$0xf]
    %v268 = vld [vmem:[%s258 + $0x24] sm:$0xf]
    %v269 = vld [vmem:[%s258 + $0x28] sm:$0x3]
    %v281 = vunpack.c.l.b16 %v259
    %v282 = vunpack.c.l.b16 %v260
    %v283 = vunpack.c.l.b16 %v261
    %v284 = vunpack.c.l.b16 %v262
    %v285 = vunpack.c.l.b16 %v263
    %v286 = vunpack.c.l.b16 %v264
    %v287 = vunpack.c.l.b16 %v265
    %v288 = vunpack.c.l.b16 %v266
    %v289 = vunpack.c.l.b16 %v267
    %v290 = vunpack.c.l.b16 %v268
    %v291 = vunpack.c.l.b16 %v269
    %v292 = vpack.c.b16 %v282, %v281
    %v293 = vpack.c.b16 %v284, %v283
    %v294 = vpack.c.b16 %v286, %v285
    %v295 = vpack.c.b16 %v288, %v287
    %v296 = vpack.c.b16 %v290, %v289
    %v297 = vpack.c.b16 %v291, %v291
    %304 = vrot.lane.b32.xlu0 %v235, 64
    %v305 = vpop.permute.xlu0 %304
    %306 = vrot.lane.b32.xlu0 %v237, 64
    %v307 = vpop.permute.xlu0 %306
    %308 = vrot.lane.b32.xlu0 %v239, 64
    %v309 = vpop.permute.xlu0 %308
    %310 = vrot.lane.b32.xlu0 %v241, 64
    %v311 = vpop.permute.xlu0 %310
    %312 = vrot.lane.b32.xlu0 %v243, 64
    %v313 = vpop.permute.xlu0 %312
    %314 = vrot.lane.b32.xlu0 %v245, 64
    %v315 = vpop.permute.xlu0 %314
    %vm321 = vcmask 687104
    %v323 = vsel %vm321, %v292, 0
    %v326 = vsel %vm321, %v293, 0
    %v329 = vsel %vm321, %v294, 0
    %v332 = vsel %vm321, %v295, 0
    %v335 = vsel %vm321, %v296, 0
    %v338 = vsel %vm321, %v297, 0
    %vm340 = vcmask 1041408
    %v342 = vsel %vm340, %v315, 0
    %344 = vmatprep.subr.bf16.mxu0 0
    %345 = vmatpush1.bf16.msra.mxu0 %v305
    %346 = vmatprep.subr.bf16.mxu0 0
    %347 = vmatpush1.bf16.msra.mxu0 %v307
    %348 = vmatprep.subr.bf16.mxu0 0
    %349 = vmatpush1.bf16.msra.mxu0 %v309
    %350 = vmatprep.subr.bf16.mxu0 0
    %351 = vmatpush1.bf16.msra.mxu0 %v311
    %352 = vmatprep.subr.bf16.mxu0 0
    %353 = vmatpush1.bf16.msra.mxu0 %v313
    %354 = vmatprep.subr.bf16.mxu0 0
    %355 = vmatpush1.bf16.msra.mxu0 %v342
    %356 = vmatprep.subr.bf16.mxu0 0
    %357 = vmatpush1.bf16.msra.mxu0 0
    %358 = vmatprep.subr.bf16.mxu0 0
    %359 = vmatpush1.bf16.msra.mxu0 0
    %360 = vmatprep.subr.bf16.mxu0 0
    %361 = vmatpush1.bf16.msra.mxu0 0
    %362 = vmatprep.subr.bf16.mxu0 0
    %363 = vmatpush1.bf16.msra.mxu0 0
    %364 = vmatprep.subr.bf16.mxu0 0
    %365 = vmatpush1.bf16.msra.mxu0 0
    %366 = vmatprep.subr.bf16.mxu0 0
    %367 = vmatpush1.bf16.msra.mxu0 0
    %368 = vmatprep.subr.bf16.mxu0 0
    %369 = vmatpush1.bf16.msra.mxu0 0
    %370 = vmatprep.subr.bf16.mxu0 0
    %371 = vmatpush1.bf16.msra.mxu0 0
    %372 = vmatprep.subr.bf16.mxu0 0
    %373 = vmatpush1.bf16.msra.mxu0 0
    %374 = vmatprep.subr.bf16.mxu0 0
    %375 = vmatpush1.bf16.msra.mxu0 0
    %376 = vmatprep.mubr.bf16.mxu0 0
    %377 = vmatmul.mubr.bf16.gmra.mrb[0].mxu0 %v323
    %v378 = vpop.f32.mrb[0].mxu0
    %v379 = vadd.f32 0.0, %v378
    %v380 = vpop.f32.mrb[0].mxu0
    %v381 = vpop.f32.mrb[0].mxu0
    %v382 = vadd.f32 0.0, %v381
    %v383 = vpop.f32.mrb[0].mxu0
    %384 = vmatprep.mubr.bf16.mxu0 0
    %385 = vmatmul.mubr.bf16.gmra.mrb[0].mxu0 %v326
    %v386 = vpop.f32.mrb[0].mxu0
    %v387 = vadd.f32 0.0, %v386
    %v388 = vpop.f32.mrb[0].mxu0
    %v389 = vpop.f32.mrb[0].mxu0
    %v390 = vadd.f32 0.0, %v389
    %v391 = vpop.f32.mrb[0].mxu0
    %392 = vmatprep.mubr.bf16.mxu0 0
    %393 = vmatmul.mubr.bf16.gmra.mrb[0].mxu0 %v329
    %v394 = vpop.f32.mrb[0].mxu0
    %v395 = vadd.f32 0.0, %v394
    %v396 = vpop.f32.mrb[0].mxu0
    %v397 = vpop.f32.mrb[0].mxu0
    %v398 = vadd.f32 0.0, %v397
    %v399 = vpop.f32.mrb[0].mxu0
    %400 = vmatprep.mubr.bf16.mxu0 0
    %401 = vmatmul.mubr.bf16.gmra.mrb[0].mxu0 %v332
    %v402 = vpop.f32.mrb[0].mxu0
    %v403 = vadd.f32 0.0, %v402
    %v404 = vpop.f32.mrb[0].mxu0
    %v405 = vpop.f32.mrb[0].mxu0
    %v406 = vadd.f32 0.0, %v405
    %v407 = vpop.f32.mrb[0].mxu0
    %408 = vmatprep.mubr.bf16.mxu0 0
    %409 = vmatmul.mubr.bf16.gmra.mrb[0].mxu0 %v335
    %v410 = vpop.f32.mrb[0].mxu0
    %v411 = vadd.f32 0.0, %v410
    %v412 = vpop.f32.mrb[0].mxu0
    %v413 = vpop.f32.mrb[0].mxu0
    %v414 = vadd.f32 0.0, %v413
    %v415 = vpop.f32.mrb[0].mxu0
    %416 = vmatprep.mubr.bf16.mxu0 0
    %417 = vmatmul.mubr.bf16.gmra.mrb[0].mxu0 %v338
    %v418 = vpop.f32.mrb[0].mxu0
    %v419 = vadd.f32 0.0, %v418
    %v420 = vpop.f32.mrb[0].mxu0
    %v421 = vpop.f32.mrb[0].mxu0
    %v422 = vpop.f32.mrb[0].mxu0
    %423 = vdwg.mxu0
    %v435 = vunpack.c.l.b16 %v247
    %v436 = vunpack.c.l.b16 %v248
    %v437 = vunpack.c.l.b16 %v249
    %v438 = vunpack.c.l.b16 %v250
    %v439 = vunpack.c.l.b16 %v251
    %v440 = vunpack.c.l.b16 %v252
    %v441 = vunpack.c.l.b16 %v253
    %v442 = vunpack.c.l.b16 %v254
    %v443 = vunpack.c.l.b16 %v255
    %v444 = vunpack.c.l.b16 %v256
    %v445 = vunpack.c.l.b16 %v257
    %v446 = vpack.c.b16 %v436, %v435
    %v447 = vpack.c.b16 %v438, %v437
    %v448 = vpack.c.b16 %v440, %v439
    %v449 = vpack.c.b16 %v442, %v441
    %v450 = vpack.c.b16 %v444, %v443
    %v451 = vpack.c.b16 %v445, %v445
    %v453 = vsel %vm321, %v446, 0
    %v456 = vsel %vm321, %v447, 0
    %v459 = vsel %vm321, %v448, 0
    %v462 = vsel %vm321, %v449, 0
    %v465 = vsel %vm321, %v450, 0
    %v468 = vsel %vm321, %v451, 0
    %v471 = vsel %vm340, %v245, 0
    %473 = vmatprep.subr.bf16.mxu0 0
    %474 = vmatpush1.bf16.msra.mxu0 %v235
    %475 = vmatprep.subr.bf16.mxu0 0
    %476 = vmatpush1.bf16.msra.mxu0 %v237
    %477 = vmatprep.subr.bf16.mxu0 0
    %478 = vmatpush1.bf16.msra.mxu0 %v239
    %479 = vmatprep.subr.bf16.mxu0 0
    %480 = vmatpush1.bf16.msra.mxu0 %v241
    %481 = vmatprep.subr.bf16.mxu0 0
    %482 = vmatpush1.bf16.msra.mxu0 %v243
    %483 = vmatprep.subr.bf16.mxu0 0
    %484 = vmatpush1.bf16.msra.mxu0 %v471
    %485 = vmatprep.subr.bf16.mxu0 0
    %486 = vmatpush1.bf16.msra.mxu0 0
    %487 = vmatprep.subr.bf16.mxu0 0
    %488 = vmatpush1.bf16.msra.mxu0 0
    %489 = vmatprep.subr.bf16.mxu0 0
    %490 = vmatpush1.bf16.msra.mxu0 0
    %491 = vmatprep.subr.bf16.mxu0 0
    %492 = vmatpush1.bf16.msra.mxu0 0
    %493 = vmatprep.subr.bf16.mxu0 0
    %494 = vmatpush1.bf16.msra.mxu0 0
    %495 = vmatprep.subr.bf16.mxu0 0
    %496 = vmatpush1.bf16.msra.mxu0 0
    %497 = vmatprep.subr.bf16.mxu0 0
    %498 = vmatpush1.bf16.msra.mxu0 0
    %499 = vmatprep.subr.bf16.mxu0 0
    %500 = vmatpush1.bf16.msra.mxu0 0
    %501 = vmatprep.subr.bf16.mxu0 0
    %502 = vmatpush1.bf16.msra.mxu0 0
    %503 = vmatprep.subr.bf16.mxu0 0
    %504 = vmatpush1.bf16.msra.mxu0 0
    %505 = vmatprep.mubr.bf16.mxu0 0
    %506 = vmatmul.mubr.bf16.gmra.mrb[0].mxu0 %v453
    %v507 = vpop.f32.mrb[0].mxu0
    %v508 = vadd.f32 %v379, %v507
    %v509 = vpop.f32.mrb[0].mxu0
    %v510 = vpop.f32.mrb[0].mxu0
    %v511 = vadd.f32 %v382, %v510
    %v512 = vpop.f32.mrb[0].mxu0
    %513 = vmatprep.mubr.bf16.mxu0 0
    %514 = vmatmul.mubr.bf16.gmra.mrb[0].mxu0 %v456
    %v515 = vpop.f32.mrb[0].mxu0
    %v516 = vadd.f32 %v387, %v515
    %v517 = vpop.f32.mrb[0].mxu0
    %v518 = vpop.f32.mrb[0].mxu0
    %v519 = vadd.f32 %v390, %v518
    %v520 = vpop.f32.mrb[0].mxu0
    %521 = vmatprep.mubr.bf16.mxu0 0
    %522 = vmatmul.mubr.bf16.gmra.mrb[0].mxu0 %v459
    %v523 = vpop.f32.mrb[0].mxu0
    %v524 = vadd.f32 %v395, %v523
    %v525 = vpop.f32.mrb[0].mxu0
    %v526 = vpop.f32.mrb[0].mxu0
    %v527 = vadd.f32 %v398, %v526
    %v528 = vpop.f32.mrb[0].mxu0
    %529 = vmatprep.mubr.bf16.mxu0 0
    %530 = vmatmul.mubr.bf16.gmra.mrb[0].mxu0 %v462
    %v531 = vpop.f32.mrb[0].mxu0
    %v532 = vadd.f32 %v403, %v531
    %v533 = vpop.f32.mrb[0].mxu0
    %v534 = vpop.f32.mrb[0].mxu0
    %v535 = vadd.f32 %v406, %v534
    %v536 = vpop.f32.mrb[0].mxu0
    %537 = vmatprep.mubr.bf16.mxu0 0
    %538 = vmatmul.mubr.bf16.gmra.mrb[0].mxu0 %v465
    %v539 = vpop.f32.mrb[0].mxu0
    %v540 = vadd.f32 %v411, %v539
    %v541 = vpop.f32.mrb[0].mxu0
    %v542 = vpop.f32.mrb[0].mxu0
    %v543 = vadd.f32 %v414, %v542
    %v544 = vpop.f32.mrb[0].mxu0
    %545 = vmatprep.mubr.bf16.mxu0 0
    %546 = vmatmul.mubr.bf16.gmra.mrb[0].mxu0 %v468
    %v547 = vpop.f32.mrb[0].mxu0
    %v548 = vadd.f32 %v419, %v547
    %v549 = vpop.f32.mrb[0].mxu0
    %v550 = vpop.f32.mrb[0].mxu0
    %v551 = vpop.f32.mrb[0].mxu0
    %552 = vdwg.mxu0
    %s553 = scalar_lea.vmem %s3, 88
    %v554 = vld [vmem:[%s553] sm:$0xf]
    %v555 = vld [vmem:[%s553 + $0x4] sm:$0xf]
    %v556 = vld [vmem:[%s553 + $0x8] sm:$0xf]
    %v557 = vld [vmem:[%s553 + $0xc] sm:$0xf]
    %v558 = vld [vmem:[%s553 + $0x10] sm:$0xf]
    %v559 = vld [vmem:[%s553 + $0x14] sm:$0xf]
    %v560 = vld [vmem:[%s553 + $0x18] sm:$0xf]
    %v561 = vld [vmem:[%s553 + $0x1c] sm:$0xf]
    %v562 = vld [vmem:[%s553 + $0x20] sm:$0xf]
    %v563 = vld [vmem:[%s553 + $0x24] sm:$0xf]
    %v564 = vld [vmem:[%s553 + $0x28] sm:$0x3]
    %v576 = vunpack.c.l.b16 %v554
    %v577 = vunpack.c.l.b16 %v555
    %v578 = vunpack.c.l.b16 %v556
    %v579 = vunpack.c.l.b16 %v557
    %v580 = vunpack.c.l.b16 %v558
    %v581 = vunpack.c.l.b16 %v559
    %v582 = vunpack.c.l.b16 %v560
    %v583 = vunpack.c.l.b16 %v561
    %v584 = vunpack.c.l.b16 %v562
    %v585 = vunpack.c.l.b16 %v563
    %v586 = vunpack.c.l.b16 %v564
    %v587 = vpack.c.b16 %v577, %v576
    %v588 = vpack.c.b16 %v579, %v578
    %v589 = vpack.c.b16 %v581, %v580
    %v590 = vpack.c.b16 %v583, %v582
    %v591 = vpack.c.b16 %v585, %v584
    %v592 = vpack.c.b16 %v586, %v586
    %v594 = vsel %vm321, %v587, 0
    %v597 = vsel %vm321, %v588, 0
    %v600 = vsel %vm321, %v589, 0
    %v603 = vsel %vm321, %v590, 0
    %v606 = vsel %vm321, %v591, 0
    %v609 = vsel %vm321, %v592, 0
    %v612 = vsel %vm340, %v246, 0
    %614 = vmatprep.subr.bf16.mxu0 0
    %615 = vmatpush1.bf16.msra.mxu0 %v236
    %616 = vmatprep.subr.bf16.mxu0 0
    %617 = vmatpush1.bf16.msra.mxu0 %v238
    %618 = vmatprep.subr.bf16.mxu0 0
    %619 = vmatpush1.bf16.msra.mxu0 %v240
    %620 = vmatprep.subr.bf16.mxu0 0
    %621 = vmatpush1.bf16.msra.mxu0 %v242
    %622 = vmatprep.subr.bf16.mxu0 0
    %623 = vmatpush1.bf16.msra.mxu0 %v244
    %624 = vmatprep.subr.bf16.mxu0 0
    %625 = vmatpush1.bf16.msra.mxu0 %v612
    %626 = vmatprep.subr.bf16.mxu0 0
    %627 = vmatpush1.bf16.msra.mxu0 0
    %628 = vmatprep.subr.bf16.mxu0 0
    %629 = vmatpush1.bf16.msra.mxu0 0
    %630 = vmatprep.subr.bf16.mxu0 0
    %631 = vmatpush1.bf16.msra.mxu0 0
    %632 = vmatprep.subr.bf16.mxu0 0
    %633 = vmatpush1.bf16.msra.mxu0 0
    %634 = vmatprep.subr.bf16.mxu0 0
    %635 = vmatpush1.bf16.msra.mxu0 0
    %636 = vmatprep.subr.bf16.mxu0 0
    %637 = vmatpush1.bf16.msra.mxu0 0
    %638 = vmatprep.subr.bf16.mxu0 0
    %639 = vmatpush1.bf16.msra.mxu0 0
    %640 = vmatprep.subr.bf16.mxu0 0
    %641 = vmatpush1.bf16.msra.mxu0 0
    %642 = vmatprep.subr.bf16.mxu0 0
    %643 = vmatpush1.bf16.msra.mxu0 0
    %644 = vmatprep.subr.bf16.mxu0 0
    %645 = vmatpush1.bf16.msra.mxu0 0
    %646 = vmatprep.mubr.bf16.mxu0 0
    %647 = vmatmul.mubr.bf16.gmra.mrb[0].mxu0 %v594
    %v648 = vpop.f32.mrb[0].mxu0
    %v649 = vadd.f32 0.0, %v648
    %v650 = vpop.f32.mrb[0].mxu0
    %v651 = vpop.f32.mrb[0].mxu0
    %v652 = vadd.f32 0.0, %v651
    %v653 = vpop.f32.mrb[0].mxu0
    %654 = vmatprep.mubr.bf16.mxu0 0
    %655 = vmatmul.mubr.bf16.gmra.mrb[0].mxu0 %v597
    %v656 = vpop.f32.mrb[0].mxu0
    %v657 = vadd.f32 0.0, %v656
    %v658 = vpop.f32.mrb[0].mxu0
    %v659 = vpop.f32.mrb[0].mxu0
    %v660 = vadd.f32 0.0, %v659
    %v661 = vpop.f32.mrb[0].mxu0
    %662 = vmatprep.mubr.bf16.mxu0 0
    %663 = vmatmul.mubr.bf16.gmra.mrb[0].mxu0 %v600
    %v664 = vpop.f32.mrb[0].mxu0
    %v665 = vadd.f32 0.0, %v664
    %v666 = vpop.f32.mrb[0].mxu0
    %v667 = vpop.f32.mrb[0].mxu0
    %v668 = vadd.f32 0.0, %v667
    %v669 = vpop.f32.mrb[0].mxu0
    %670 = vmatprep.mubr.bf16.mxu0 0
    %671 = vmatmul.mubr.bf16.gmra.mrb[0].mxu0 %v603
    %v672 = vpop.f32.mrb[0].mxu0
    %v673 = vadd.f32 0.0, %v672
    %v674 = vpop.f32.mrb[0].mxu0
    %v675 = vpop.f32.mrb[0].mxu0
    %v676 = vadd.f32 0.0, %v675
    %v677 = vpop.f32.mrb[0].mxu0
    %678 = vmatprep.mubr.bf16.mxu0 0
    %679 = vmatmul.mubr.bf16.gmra.mrb[0].mxu0 %v606
    %v680 = vpop.f32.mrb[0].mxu0
    %v681 = vadd.f32 0.0, %v680
    %v682 = vpop.f32.mrb[0].mxu0
    %v683 = vpop.f32.mrb[0].mxu0
    %v684 = vadd.f32 0.0, %v683
    %v685 = vpop.f32.mrb[0].mxu0
    %686 = vmatprep.mubr.bf16.mxu0 0
    %687 = vmatmul.mubr.bf16.gmra.mrb[0].mxu0 %v609
    %v688 = vpop.f32.mrb[0].mxu0
    %v689 = vadd.f32 0.0, %v688
    %v690 = vpop.f32.mrb[0].mxu0
    %v691 = vpop.f32.mrb[0].mxu0
    %v692 = vpop.f32.mrb[0].mxu0
    %693 = vdwg.mxu0
    %v694 = vadd.f32 %v508, %v649
    %v695 = vadd.f32 %v511, %v652
    %v696 = vadd.f32 %v516, %v657
    %v697 = vadd.f32 %v519, %v660
    %v698 = vadd.f32 %v524, %v665
    %v699 = vadd.f32 %v527, %v668
    %v700 = vadd.f32 %v532, %v673
    %v701 = vadd.f32 %v535, %v676
    %v702 = vadd.f32 %v540, %v681
    %v703 = vadd.f32 %v543, %v684
    %v704 = vadd.f32 %v548, %v689
    %v705 = vld [vmem:[%s2] sm:$0x1]
    %v707 = vlaneseq
    %v708 = vshrl.u32 %v707, 7
    %v709 = vsub.s32 0, %v708
    %v710 = vrot.slane %v705, %v709
    %v712 = vadd.f32 %v694, %v710
    %v713 = vadd.f32 %v695, %v710
    %v714 = vadd.f32 %v696, %v710
    %v715 = vadd.f32 %v697, %v710
    %v716 = vadd.f32 %v698, %v710
    %v717 = vadd.f32 %v699, %v710
    %v718 = vadd.f32 %v700, %v710
    %v719 = vadd.f32 %v701, %v710
    %v720 = vadd.f32 %v702, %v710
    %v721 = vadd.f32 %v703, %v710
    %v722 = vadd.f32 %v704, %v710
    %v723 = vmax.f32 %v712, 0.0
    %v724 = vmax.f32 %v713, 0.0
    %v725 = vmax.f32 %v714, 0.0
    %v726 = vmax.f32 %v715, 0.0
    %v727 = vmax.f32 %v716, 0.0
    %v728 = vmax.f32 %v717, 0.0
    %v729 = vmax.f32 %v718, 0.0
    %v730 = vmax.f32 %v719, 0.0
    %v731 = vmax.f32 %v720, 0.0
    %v732 = vmax.f32 %v721, 0.0
    %v733 = vmax.f32 %v722, 0.0
    %v734 = vpack.c.bf16 %v724, %v723
    %v735 = vpack.c.bf16 %v726, %v725
    %v736 = vpack.c.bf16 %v728, %v727
    %v737 = vpack.c.bf16 %v730, %v729
    %v738 = vpack.c.bf16 %v732, %v731
    %v739 = vpack.c.bf16 %v733, %v733
    %s740 = scalar_lea.vmem [#allocation2], 128
    %v741 = vld [vmem:[%s740] sm:$0xf]
    %v742 = vld [vmem:[%s740 + $0x4] sm:$0xf]
    %v743 = vld [vmem:[%s740 + $0x8] sm:$0xf]
    %v744 = vld [vmem:[%s740 + $0xc] sm:$0xf]
    %v745 = vld [vmem:[%s740 + $0x10] sm:$0xf]
    %v746 = vld [vmem:[%s740 + $0x14] sm:$0xf]
    %v747 = vld [vmem:[%s740 + $0x18] sm:$0xf]
    %v748 = vld [vmem:[%s740 + $0x1c] sm:$0xf]
    %v749 = vld [vmem:[%s5] sm:$0x1]
    %v751 = vlaneseq
    %v752 = vshrl.u32 %v751, 7
    %v753 = vsub.s32 0, %v752
    %v754 = vrot.slane %v749, %v753
    %v764 = vunpack.c.l.b16 %v741
    %v765 = vunpack.c.l.b16 %v742
    %v766 = vunpack.c.l.b16 %v743
    %v767 = vunpack.c.l.b16 %v744
    %v768 = vunpack.c.l.b16 %v745
    %v769 = vunpack.c.l.b16 %v746
    %v770 = vunpack.c.l.b16 %v747
    %v771 = vunpack.c.l.b16 %v748
    %v772 = vpack.c.b16 %v765, %v764
    %v773 = vpack.c.b16 %v767, %v766
    %v774 = vpack.c.b16 %v769, %v768
    %v775 = vpack.c.b16 %v771, %v770
    %v781 = vsel %vm125, %v734, 0
    %v784 = vsel %vm125, %v735, 0
    %v787 = vsel %vm125, %v736, 0
    %v790 = vsel %vm125, %v737, 0
    %v793 = vsel %vm125, %v738, 0
    %v796 = vsel %vm125, %v739, 0
    %798 = vmatprep.subr.bf16.mxu0 0
    %799 = vmatpush1.bf16.msra.mxu0 %v772
    %800 = vmatprep.subr.bf16.mxu0 0
    %801 = vmatpush1.bf16.msra.mxu0 %v773
    %802 = vmatprep.subr.bf16.mxu0 0
    %803 = vmatpush1.bf16.msra.mxu0 %v774
    %804 = vmatprep.subr.bf16.mxu0 0
    %805 = vmatpush1.bf16.msra.mxu0 %v775
    %806 = vmatprep.subr.bf16.mxu0 0
    %807 = vmatpush1.bf16.msra.mxu0 0
    %808 = vmatprep.subr.bf16.mxu0 0
    %809 = vmatpush1.bf16.msra.mxu0 0
    %810 = vmatprep.subr.bf16.mxu0 0
    %811 = vmatpush1.bf16.msra.mxu0 0
    %812 = vmatprep.subr.bf16.mxu0 0
    %813 = vmatpush1.bf16.msra.mxu0 0
    %814 = vmatprep.subr.bf16.mxu0 0
    %815 = vmatpush1.bf16.msra.mxu0 0
    %816 = vmatprep.subr.bf16.mxu0 0
    %817 = vmatpush1.bf16.msra.mxu0 0
    %818 = vmatprep.subr.bf16.mxu0 0
    %819 = vmatpush1.bf16.msra.mxu0 0
    %820 = vmatprep.subr.bf16.mxu0 0
    %821 = vmatpush1.bf16.msra.mxu0 0
    %822 = vmatprep.subr.bf16.mxu0 0
    %823 = vmatpush1.bf16.msra.mxu0 0
    %824 = vmatprep.subr.bf16.mxu0 0
    %825 = vmatpush1.bf16.msra.mxu0 0
    %826 = vmatprep.subr.bf16.mxu0 0
    %827 = vmatpush1.bf16.msra.mxu0 0
    %828 = vmatprep.subr.bf16.mxu0 0
    %829 = vmatpush1.bf16.msra.mxu0 0
    %830 = vmatprep.mubr.bf16.mxu0 0
    %831 = vmatmul.mubr.bf16.gmra.mrb[0].mxu0 %v781
    %v832 = vpop.f32.mrb[0].mxu0
    %v833 = vadd.f32 %v754, %v832
    %v834 = vpop.f32.mrb[0].mxu0
    %v835 = vpop.f32.mrb[0].mxu0
    %v836 = vadd.f32 %v754, %v835
    %v837 = vpop.f32.mrb[0].mxu0
    %838 = vmatprep.mubr.bf16.mxu0 0
    %839 = vmatmul.mubr.bf16.gmra.mrb[0].mxu0 %v784
    %v840 = vpop.f32.mrb[0].mxu0
    %v841 = vadd.f32 %v754, %v840
    %v842 = vpop.f32.mrb[0].mxu0
    %v843 = vpop.f32.mrb[0].mxu0
    %v844 = vadd.f32 %v754, %v843
    %v845 = vpop.f32.mrb[0].mxu0
    %846 = vmatprep.mubr.bf16.mxu0 0
    %847 = vmatmul.mubr.bf16.gmra.mrb[0].mxu0 %v787
    %v848 = vpop.f32.mrb[0].mxu0
    %v849 = vadd.f32 %v754, %v848
    %v850 = vpop.f32.mrb[0].mxu0
    %v851 = vpop.f32.mrb[0].mxu0
    %v852 = vadd.f32 %v754, %v851
    %v853 = vpop.f32.mrb[0].mxu0
    %854 = vmatprep.mubr.bf16.mxu0 0
    %855 = vmatmul.mubr.bf16.gmra.mrb[0].mxu0 %v790
    %v856 = vpop.f32.mrb[0].mxu0
    %v857 = vadd.f32 %v754, %v856
    %v858 = vpop.f32.mrb[0].mxu0
    %v859 = vpop.f32.mrb[0].mxu0
    %v860 = vadd.f32 %v754, %v859
    %v861 = vpop.f32.mrb[0].mxu0
    %862 = vmatprep.mubr.bf16.mxu0 0
    %863 = vmatmul.mubr.bf16.gmra.mrb[0].mxu0 %v793
    %v864 = vpop.f32.mrb[0].mxu0
    %v865 = vadd.f32 %v754, %v864
    %v866 = vpop.f32.mrb[0].mxu0
    %v867 = vpop.f32.mrb[0].mxu0
    %v868 = vadd.f32 %v754, %v867
    %v869 = vpop.f32.mrb[0].mxu0
    %870 = vmatprep.mubr.bf16.mxu0 0
    %871 = vmatmul.mubr.bf16.gmra.mrb[0].mxu0 %v796
    %v872 = vpop.f32.mrb[0].mxu0
    %v873 = vadd.f32 %v754, %v872
    %v874 = vpop.f32.mrb[0].mxu0
    %v875 = vpop.f32.mrb[0].mxu0
    %v876 = vpop.f32.mrb[0].mxu0
    %877 = vdwg.mxu0
    %v878 = vunpack.c.l.bf16 %v38
    %v879 = vunpack.c.l.bf16 %v39
    %v880 = vunpack.c.l.bf16 %v40
    %v881 = vunpack.c.l.bf16 %v41
    %v882 = vunpack.c.l.bf16 %v42
    %v883 = vunpack.c.l.bf16 %v43
    %v884 = vunpack.c.l.bf16 %v44
    %v885 = vunpack.c.l.bf16 %v45
    %v886 = vunpack.c.l.bf16 %v46
    %v887 = vunpack.c.l.bf16 %v47
    %v888 = vunpack.c.l.bf16 %v48
    %v889 = vadd.f32 %v833, %v878
    %v890 = vadd.f32 %v836, %v879
    %v891 = vadd.f32 %v841, %v880
    %v892 = vadd.f32 %v844, %v881
    %v893 = vadd.f32 %v849, %v882
    %v894 = vadd.f32 %v852, %v883
    %v895 = vadd.f32 %v857, %v884
    %v896 = vadd.f32 %v860, %v885
    %v897 = vadd.f32 %v865, %v886
    %v898 = vadd.f32 %v868, %v887
    %v899 = vadd.f32 %v873, %v888
    %v900 = vmax.f32 %v889, 0.0
    %v901 = vmax.f32 %v890, 0.0
    %v902 = vmax.f32 %v891, 0.0
    %v903 = vmax.f32 %v892, 0.0
    %v904 = vmax.f32 %v893, 0.0
    %v905 = vmax.f32 %v894, 0.0
    %v906 = vmax.f32 %v895, 0.0
    %v907 = vmax.f32 %v896, 0.0
    %v908 = vmax.f32 %v897, 0.0
    %v909 = vmax.f32 %v898, 0.0
    %v910 = vmax.f32 %v899, 0.0
    %v911 = vpack.c.bf16 %v901, %v900
    %v912 = vpack.c.bf16 %v903, %v902
    %v913 = vpack.c.bf16 %v905, %v904
    %v914 = vpack.c.bf16 %v907, %v906
    %v915 = vpack.c.bf16 %v909, %v908
    %v916 = vpack.c.bf16 %v910, %v910
    %v923 = vunpack.c.l.b16 %v911
    %v924 = vunpack.c.h.b16 %v911
    %v925 = vunpack.c.l.b16 %v912
    %v926 = vunpack.c.h.b16 %v912
    %v927 = vunpack.c.l.b16 %v913
    %v928 = vunpack.c.h.b16 %v913
    %v929 = vunpack.c.l.b16 %v914
    %v930 = vunpack.c.h.b16 %v914
    %v931 = vunpack.c.l.b16 %v915
    %v932 = vunpack.c.h.b16 %v915
    %v933 = vunpack.c.l.b16 %v916
    %v934 = vpack.c.b16 %v923, %v923
    %v935 = vpack.c.b16 %v924, %v924
    %v936 = vpack.c.b16 %v925, %v925
    %v937 = vpack.c.b16 %v926, %v926
    %v938 = vpack.c.b16 %v927, %v927
    %v939 = vpack.c.b16 %v928, %v928
    %v940 = vpack.c.b16 %v929, %v929
    %v941 = vpack.c.b16 %v930, %v930
    %v942 = vpack.c.b16 %v931, %v931
    %v943 = vpack.c.b16 %v932, %v932
    %v944 = vpack.c.b16 %v933, %v933
    %vm956 = vcmask 519168
    %957 = vst.msk [vmem:[%s6] sm:$0xf] %vm956, %v934
    %958 = vst.msk [vmem:[%s6 + $0x4] sm:$0xf] %vm956, %v935
    %959 = vst.msk [vmem:[%s6 + $0x8] sm:$0xf] %vm956, %v936
    %960 = vst.msk [vmem:[%s6 + $0xc] sm:$0xf] %vm956, %v937
    %961 = vst.msk [vmem:[%s6 + $0x10] sm:$0xf] %vm956, %v938
    %962 = vst.msk [vmem:[%s6 + $0x14] sm:$0xf] %vm956, %v939
    %963 = vst.msk [vmem:[%s6 + $0x18] sm:$0xf] %vm956, %v940
    %964 = vst.msk [vmem:[%s6 + $0x1c] sm:$0xf] %vm956, %v941
    %965 = vst.msk [vmem:[%s6 + $0x20] sm:$0xf] %vm956, %v942
    %966 = vst.msk [vmem:[%s6 + $0x24] sm:$0xf] %vm956, %v943
    %vm967 = vcmask 517120
    %968 = vst.msk [vmem:[%s6 + $0x28] sm:$0x3] %vm967, %v944
    // Predicated region
    $region30: #{double_tpgcn_forward.13} parent=1 // pred_check
      _
    $region31: #{double_tpgcn_forward.13} parent=1 // pred_check_branch
      %970 = sbr.rel (0) target = $region33
    $region32: #{double_tpgcn_forward.13} parent=1 // pred_region
      _
    $region33: #{double_tpgcn_forward.13} parent=1 // pred_fallthru
      _
    // Predicated region
    $region34: #{double_tpgcn_forward.13} parent=1 // pred_check
      _
    $region35: #{double_tpgcn_forward.13} parent=1 // pred_check_branch
      %972 = sbr.rel (0) target = $region37
    $region36: #{double_tpgcn_forward.13} parent=1 // pred_region
      _
    $region37: #{double_tpgcn_forward.13} parent=1 // pred_fallthru
      _
    %973 = vsyncpa [#allocation3], 1

// kernel: double_tpgcn_forward.19
$region0: #{double_tpgcn_forward.19}
  #allocation0 [shape = 'u32[]', space=smem, size = 0x4, offset = 0x4, fixed_abs, tag = 'smem constant byte address 0x4 - core index']
  #allocation1 [shape = 'u32[144,128]{1,0:T(1,128)}', space=vmem, size = 0x12000, scoped, tag = 'internal scratch']
  %s0 = inlined_call_operand.vmem [shape: bf16[84,32], index: 0, kind: input, shape index: {}]
  %s1 = inlined_call_operand.vmem [shape: bf16[32,384], index: 1, kind: input, shape index: {}]
  %s2 = inlined_call_operand.vmem [shape: f32[1,128], index: 2, kind: input, shape index: {}, may-alias: {2,5,7}]
  %s3 = inlined_call_operand.vmem [shape: bf16[3,84,84], index: 3, kind: input, shape index: {}]
  %s4 = inlined_call_operand.vmem [shape: bf16[9,128,128], index: 4, kind: input, shape index: {}]
  %s5 = inlined_call_operand.vmem [shape: f32[1,128], index: 5, kind: input, shape index: {}, may-alias: {2,5,7}]
  %s6 = inlined_call_operand.vmem [shape: bf16[32,128], index: 6, kind: input, shape index: {}]
  %s7 = inlined_call_operand.vmem [shape: f32[1,128], index: 7, kind: input, shape index: {}, may-alias: {2,5,7}]
  %s8 = inlined_call_operand.vmem [shape: bf16[84,128], index: 8, kind: output, shape index: {}]
  %s9 = sld [smem:[#allocation0]]
  $region42: #{double_tpgcn_forward.19} parent=0
    _
  %s11 = ssub.s32 1, %s9
  %s12 = scalar_select 0, %s11, %s9
  // Predicated region
  $region2: #{double_tpgcn_forward.19} parent=0 // pred_check
    _
  $region3: #{double_tpgcn_forward.19} parent=0 // pred_check_branch
    %14 = sbr.rel (0) target = $region5
  $region4: #{double_tpgcn_forward.19} parent=0 // pred_region
    _
  $region5: #{double_tpgcn_forward.19} parent=0 // pred_fallthru
    _
  // Predicated region
  $region6: #{double_tpgcn_forward.19} parent=0 // pred_check
    _
  $region7: #{double_tpgcn_forward.19} parent=0 // pred_check_branch
    %16 = sbr.rel (0) target = $region9
  $region8: #{double_tpgcn_forward.19} parent=0 // pred_region
    _
  $region9: #{double_tpgcn_forward.19} parent=0 // pred_fallthru
    _
  // Predicated region
  $region10: #{double_tpgcn_forward.19} parent=0 // pred_check
    _
  $region11: #{double_tpgcn_forward.19} parent=0 // pred_check_branch
    %18 = sbr.rel (0) target = $region13
  $region12: #{double_tpgcn_forward.19} parent=0 // pred_region
    _
  $region13: #{double_tpgcn_forward.19} parent=0 // pred_fallthru
    _
  // Predicated region
  $region14: #{double_tpgcn_forward.19} parent=0 // pred_check
    _
  $region15: #{double_tpgcn_forward.19} parent=0 // pred_check_branch
    %20 = sbr.rel (0) target = $region17
  $region16: #{double_tpgcn_forward.19} parent=0 // pred_region
    _
  $region17: #{double_tpgcn_forward.19} parent=0 // pred_fallthru
    _
  // Predicated region
  $region18: #{double_tpgcn_forward.19} parent=0 // pred_check
    _
  $region19: #{double_tpgcn_forward.19} parent=0 // pred_check_branch
    %22 = sbr.rel (0) target = $region21
  $region20: #{double_tpgcn_forward.19} parent=0 // pred_region
    _
  $region21: #{double_tpgcn_forward.19} parent=0 // pred_fallthru
    _
  // Predicated region
  $region22: #{double_tpgcn_forward.19} parent=0 // pred_check
    _
  $region23: #{double_tpgcn_forward.19} parent=0 // pred_check_branch
    %24 = sbr.rel (0) target = $region25
  $region24: #{double_tpgcn_forward.19} parent=0 // pred_region
    _
  $region25: #{double_tpgcn_forward.19} parent=0 // pred_fallthru
    _
  // Predicated region
  $region26: #{double_tpgcn_forward.19} parent=0 // pred_check
    _
  $region27: #{double_tpgcn_forward.19} parent=0 // pred_check_branch
    %26 = sbr.rel (0) target = $region29
  $region28: #{double_tpgcn_forward.19} parent=0 // pred_region
    _
  $region29: #{double_tpgcn_forward.19} parent=0 // pred_fallthru
    _
  // Predicated region
  $region30: #{double_tpgcn_forward.19} parent=0 // pred_check
    _
  $region31: #{double_tpgcn_forward.19} parent=0 // pred_check_branch
    %28 = sbr.rel (0) target = $region33
  $region32: #{double_tpgcn_forward.19} parent=0 // pred_region
    _
  $region33: #{double_tpgcn_forward.19} parent=0 // pred_fallthru
    _
  %v30 = vld [vmem:[%s0] sm:$0xf]
  %v31 = vld [vmem:[%s0 + $0x4] sm:$0xf]
  %v32 = vld [vmem:[%s0 + $0x8] sm:$0xf]
  %v33 = vld [vmem:[%s0 + $0xc] sm:$0xf]
  %v34 = vld [vmem:[%s0 + $0x10] sm:$0xf]
  %v35 = vld [vmem:[%s0 + $0x14] sm:$0xf]
  %v36 = vld [vmem:[%s0 + $0x18] sm:$0xf]
  %v37 = vld [vmem:[%s0 + $0x1c] sm:$0xf]
  %v38 = vld [vmem:[%s0 + $0x20] sm:$0xf]
  %v39 = vld [vmem:[%s0 + $0x24] sm:$0xf]
  %v40 = vld [vmem:[%s0 + $0x28] sm:$0x3]
  %v41 = vld [vmem:[%s1] sm:$0xff]
  %v42 = vld [vmem:[%s1 + $0x8] sm:$0xf]
  %v43 = vld [vmem:[%s1 + $0xc] sm:$0xff]
  %v44 = vld [vmem:[%s1 + $0x14] sm:$0xf]
  %v45 = vld [vmem:[%s1 + $0x18] sm:$0xff]
  %v46 = vld [vmem:[%s1 + $0x20] sm:$0xf]
  %v47 = vld [vmem:[%s1 + $0x24] sm:$0xff]
  %v48 = vld [vmem:[%s1 + $0x2c] sm:$0xf]
  %v60 = vunpack.c.l.b16 %v30
  %v61 = vunpack.c.l.b16 %v31
  %v62 = vunpack.c.l.b16 %v32
  %v63 = vunpack.c.l.b16 %v33
  %v64 = vunpack.c.l.b16 %v34
  %v65 = vunpack.c.l.b16 %v35
  %v66 = vunpack.c.l.b16 %v36
  %v67 = vunpack.c.l.b16 %v37
  %v68 = vunpack.c.l.b16 %v38
  %v69 = vunpack.c.l.b16 %v39
  %v70 = vunpack.c.l.b16 %v40
  %v71 = vpack.c.b16 %v61, %v60
  %v72 = vpack.c.b16 %v63, %v62
  %v73 = vpack.c.b16 %v65, %v64
  %v74 = vpack.c.b16 %v67, %v66
  %v75 = vpack.c.b16 %v69, %v68
  %v76 = vpack.c.b16 %v70, %v70
  %v85 = vunpack.c.l.b16 %v41
  %v86 = vunpack.c.h.b16 %v41
  %v87 = vunpack.c.l.b16 %v42
  %v88 = vunpack.c.l.b16 %v43
  %v89 = vunpack.c.h.b16 %v43
  %v90 = vunpack.c.l.b16 %v44
  %v91 = vunpack.c.l.b16 %v45
  %v92 = vunpack.c.h.b16 %v45
  %v93 = vunpack.c.l.b16 %v46
  %v94 = vunpack.c.l.b16 %v47
  %v95 = vunpack.c.h.b16 %v47
  %v96 = vunpack.c.l.b16 %v48
  %v97 = vpack.c.b16 %v88, %v85
  %v98 = vpack.c.b16 %v89, %v86
  %v99 = vpack.c.b16 %v90, %v87
  %v100 = vpack.c.b16 %v94, %v91
  %v101 = vpack.c.b16 %v95, %v92
  %v102 = vpack.c.b16 %v96, %v93
  %vm109 = vcmask 261120
  %v111 = vsel %vm109, %v71, 0
  %v114 = vsel %vm109, %v72, 0
  %v117 = vsel %vm109, %v73, 0
  %v120 = vsel %vm109, %v74, 0
  %v123 = vsel %vm109, %v75, 0
  %v126 = vsel %vm109, %v76, 0
  %128 = vmatprep.subr.bf16.mxu0 %v98
  %129 = vmatpush1.bf16.msra.mxu0 %v97
  %130 = vmatprep.subr.bf16.mxu0 %v101
  %131 = vmatpush1.bf16.msra.mxu0 %v100
  %132 = vmatprep.subr.bf16.mxu0 0
  %133 = vmatpush1.bf16.msra.mxu0 0
  %134 = vmatprep.subr.bf16.mxu0 0
  %135 = vmatpush1.bf16.msra.mxu0 0
  %136 = vmatprep.subr.bf16.mxu0 0
  %137 = vmatpush1.bf16.msra.mxu0 0
  %138 = vmatprep.subr.bf16.mxu0 0
  %139 = vmatpush1.bf16.msra.mxu0 0
  %140 = vmatprep.subr.bf16.mxu0 0
  %141 = vmatpush1.bf16.msra.mxu0 0
  %142 = vmatprep.subr.bf16.mxu0 0
  %143 = vmatpush1.bf16.msra.mxu0 0
  %144 = vmatprep.subr.bf16.mxu0 0
  %145 = vmatpush1.bf16.msra.mxu0 0
  %146 = vmatprep.subr.bf16.mxu0 0
  %147 = vmatpush1.bf16.msra.mxu0 0
  %148 = vmatprep.subr.bf16.mxu0 0
  %149 = vmatpush1.bf16.msra.mxu0 0
  %150 = vmatprep.subr.bf16.mxu0 0
  %151 = vmatpush1.bf16.msra.mxu0 0
  %152 = vmatprep.subr.bf16.mxu0 0
  %153 = vmatpush1.bf16.msra.mxu0 0
  %154 = vmatprep.subr.bf16.mxu0 0
  %155 = vmatpush1.bf16.msra.mxu0 0
  %156 = vmatprep.subr.bf16.mxu0 0
  %157 = vmatpush1.bf16.msra.mxu0 0
  %158 = vmatprep.subr.bf16.mxu0 0
  %159 = vmatpush1.bf16.msra.mxu0 0
  %160 = vmatprep.mubr.bf16.mxu0 0
  %161 = vmatmul.mubr.bf16.gmra.mrb[0].mxu0 %v111
  %v162 = vpop.f32.mrb[0].mxu0
  %v163 = vadd.f32 0.0, %v162
  %v164 = vpop.f32.mrb[0].mxu0
  %v165 = vadd.f32 0.0, %v164
  %v166 = vpop.f32.mrb[0].mxu0
  %v167 = vadd.f32 0.0, %v166
  %v168 = vpop.f32.mrb[0].mxu0
  %v169 = vadd.f32 0.0, %v168
  %170 = vmatprep.mubr.bf16.mxu0 0
  %171 = vmatmul.mubr.bf16.gmra.mrb[0].mxu0 %v114
  %v172 = vpop.f32.mrb[0].mxu0
  %v173 = vadd.f32 0.0, %v172
  %v174 = vpop.f32.mrb[0].mxu0
  %v175 = vadd.f32 0.0, %v174
  %v176 = vpop.f32.mrb[0].mxu0
  %v177 = vadd.f32 0.0, %v176
  %v178 = vpop.f32.mrb[0].mxu0
  %v179 = vadd.f32 0.0, %v178
  %180 = vmatprep.mubr.bf16.mxu0 0
  %181 = vmatmul.mubr.bf16.gmra.mrb[0].mxu0 %v117
  %v182 = vpop.f32.mrb[0].mxu0
  %v183 = vadd.f32 0.0, %v182
  %v184 = vpop.f32.mrb[0].mxu0
  %v185 = vadd.f32 0.0, %v184
  %v186 = vpop.f32.mrb[0].mxu0
  %v187 = vadd.f32 0.0, %v186
  %v188 = vpop.f32.mrb[0].mxu0
  %v189 = vadd.f32 0.0, %v188
  %190 = vmatprep.mubr.bf16.mxu0 0
  %191 = vmatmul.mubr.bf16.gmra.mrb[0].mxu0 %v120
  %v192 = vpop.f32.mrb[0].mxu0
  %v193 = vadd.f32 0.0, %v192
  %v194 = vpop.f32.mrb[0].mxu0
  %v195 = vadd.f32 0.0, %v194
  %v196 = vpop.f32.mrb[0].mxu0
  %v197 = vadd.f32 0.0, %v196
  %v198 = vpop.f32.mrb[0].mxu0
  %v199 = vadd.f32 0.0, %v198
  %200 = vmatprep.mubr.bf16.mxu0 0
  %201 = vmatmul.mubr.bf16.gmra.mrb[0].mxu0 %v123
  %v202 = vpop.f32.mrb[0].mxu0
  %v203 = vadd.f32 0.0, %v202
  %v204 = vpop.f32.mrb[0].mxu0
  %v205 = vadd.f32 0.0, %v204
  %v206 = vpop.f32.mrb[0].mxu0
  %v207 = vadd.f32 0.0, %v206
  %v208 = vpop.f32.mrb[0].mxu0
  %v209 = vadd.f32 0.0, %v208
  %210 = vmatprep.mubr.bf16.mxu0 0
  %211 = vmatmul.mubr.bf16.gmra.mrb[0].mxu0 %v126
  %v212 = vpop.f32.mrb[0].mxu0
  %v213 = vadd.f32 0.0, %v212
  %v214 = vpop.f32.mrb[0].mxu0
  %v215 = vadd.f32 0.0, %v214
  %v216 = vpop.f32.mrb[0].mxu0
  %v217 = vpop.f32.mrb[0].mxu0
  %218 = vdwg.mxu0
  %219 = vmatprep.subr.bf16.mxu0 0
  %220 = vmatpush1.bf16.msra.mxu0 %v99
  %221 = vmatprep.subr.bf16.mxu0 0
  %222 = vmatpush1.bf16.msra.mxu0 %v102
  %223 = vmatprep.subr.bf16.mxu0 0
  %224 = vmatpush1.bf16.msra.mxu0 0
  %225 = vmatprep.subr.bf16.mxu0 0
  %226 = vmatpush1.bf16.msra.mxu0 0
  %227 = vmatprep.subr.bf16.mxu0 0
  %228 = vmatpush1.bf16.msra.mxu0 0
  %229 = vmatprep.subr.bf16.mxu0 0
  %230 = vmatpush1.bf16.msra.mxu0 0
  %231 = vmatprep.subr.bf16.mxu0 0
  %232 = vmatpush1.bf16.msra.mxu0 0
  %233 = vmatprep.subr.bf16.mxu0 0
  %234 = vmatpush1.bf16.msra.mxu0 0
  %235 = vmatprep.subr.bf16.mxu0 0
  %236 = vmatpush1.bf16.msra.mxu0 0
  %237 = vmatprep.subr.bf16.mxu0 0
  %238 = vmatpush1.bf16.msra.mxu0 0
  %239 = vmatprep.subr.bf16.mxu0 0
  %240 = vmatpush1.bf16.msra.mxu0 0
  %241 = vmatprep.subr.bf16.mxu0 0
  %242 = vmatpush1.bf16.msra.mxu0 0
  %243 = vmatprep.subr.bf16.mxu0 0
  %244 = vmatpush1.bf16.msra.mxu0 0
  %245 = vmatprep.subr.bf16.mxu0 0
  %246 = vmatpush1.bf16.msra.mxu0 0
  %247 = vmatprep.subr.bf16.mxu0 0
  %248 = vmatpush1.bf16.msra.mxu0 0
  %249 = vmatprep.subr.bf16.mxu0 0
  %250 = vmatpush1.bf16.msra.mxu0 0
  %251 = vmatprep.mubr.bf16.mxu0 0
  %252 = vmatmul.mubr.bf16.gmra.mrb[0].mxu0 %v111
  %v253 = vpop.f32.mrb[0].mxu0
  %v254 = vadd.f32 0.0, %v253
  %v255 = vpop.f32.mrb[0].mxu0
  %v256 = vpop.f32.mrb[0].mxu0
  %v257 = vadd.f32 0.0, %v256
  %v258 = vpop.f32.mrb[0].mxu0
  %259 = vmatprep.mubr.bf16.mxu0 0
  %260 = vmatmul.mubr.bf16.gmra.mrb[0].mxu0 %v114
  %v261 = vpop.f32.mrb[0].mxu0
  %v262 = vadd.f32 0.0, %v261
  %v263 = vpop.f32.mrb[0].mxu0
  %v264 = vpop.f32.mrb[0].mxu0
  %v265 = vadd.f32 0.0, %v264
  %v266 = vpop.f32.mrb[0].mxu0
  %267 = vmatprep.mubr.bf16.mxu0 0
  %268 = vmatmul.mubr.bf16.gmra.mrb[0].mxu0 %v117
  %v269 = vpop.f32.mrb[0].mxu0
  %v270 = vadd.f32 0.0, %v269
  %v271 = vpop.f32.mrb[0].mxu0
  %v272 = vpop.f32.mrb[0].mxu0
  %v273 = vadd.f32 0.0, %v272
  %v274 = vpop.f32.mrb[0].mxu0
  %275 = vmatprep.mubr.bf16.mxu0 0
  %276 = vmatmul.mubr.bf16.gmra.mrb[0].mxu0 %v120
  %v277 = vpop.f32.mrb[0].mxu0
  %v278 = vadd.f32 0.0, %v277
  %v279 = vpop.f32.mrb[0].mxu0
  %v280 = vpop.f32.mrb[0].mxu0
  %v281 = vadd.f32 0.0, %v280
  %v282 = vpop.f32.mrb[0].mxu0
  %283 = vmatprep.mubr.bf16.mxu0 0
  %284 = vmatmul.mubr.bf16.gmra.mrb[0].mxu0 %v123
  %v285 = vpop.f32.mrb[0].mxu0
  %v286 = vadd.f32 0.0, %v285
  %v287 = vpop.f32.mrb[0].mxu0
  %v288 = vpop.f32.mrb[0].mxu0
  %v289 = vadd.f32 0.0, %v288
  %v290 = vpop.f32.mrb[0].mxu0
  %291 = vmatprep.mubr.bf16.mxu0 0
  %292 = vmatmul.mubr.bf16.gmra.mrb[0].mxu0 %v126
  %v293 = vpop.f32.mrb[0].mxu0
  %v294 = vadd.f32 0.0, %v293
  %v295 = vpop.f32.mrb[0].mxu0
  %v296 = vpop.f32.mrb[0].mxu0
  %v297 = vpop.f32.mrb[0].mxu0
  %298 = vdwg.mxu0
  %v299 = vpack.c.bf16 %v167, %v163
  %v300 = vpack.c.bf16 %v169, %v165
  %v301 = vpack.c.bf16 %v257, %v254
  %v302 = vpack.c.bf16 %v177, %v173
  %v303 = vpack.c.bf16 %v179, %v175
  %v304 = vpack.c.bf16 %v265, %v262
  %v305 = vpack.c.bf16 %v187, %v183
  %v306 = vpack.c.bf16 %v189, %v185
  %v307 = vpack.c.bf16 %v273, %v270
  %v308 = vpack.c.bf16 %v197, %v193
  %v309 = vpack.c.bf16 %v199, %v195
  %v310 = vpack.c.bf16 %v281, %v278
  %v311 = vpack.c.bf16 %v207, %v203
  %v312 = vpack.c.bf16 %v209, %v205
  %v313 = vpack.c.bf16 %v289, %v286
  %v314 = vpack.c.bf16 %v213, %v213
  %v315 = vpack.c.bf16 %v215, %v215
  %v316 = vpack.c.bf16 %v294, %v294
  %v317 = vld [vmem:[%s3] sm:$0xf]
  %v318 = vld [vmem:[%s3 + $0x4] sm:$0xf]
  %v319 = vld [vmem:[%s3 + $0x8] sm:$0xf]
  %v320 = vld [vmem:[%s3 + $0xc] sm:$0xf]
  %v321 = vld [vmem:[%s3 + $0x10] sm:$0xf]
  %v322 = vld [vmem:[%s3 + $0x14] sm:$0xf]
  %v323 = vld [vmem:[%s3 + $0x18] sm:$0xf]
  %v324 = vld [vmem:[%s3 + $0x1c] sm:$0xf]
  %v325 = vld [vmem:[%s3 + $0x20] sm:$0xf]
  %v326 = vld [vmem:[%s3 + $0x24] sm:$0xf]
  %v327 = vld [vmem:[%s3 + $0x28] sm:$0x3]
  %s328 = scalar_lea.vmem %s3, 44
  %v329 = vld [vmem:[%s328] sm:$0xf]
  %v330 = vld [vmem:[%s328 + $0x4] sm:$0xf]
  %v331 = vld [vmem:[%s328 + $0x8] sm:$0xf]
  %v332 = vld [vmem:[%s328 + $0xc] sm:$0xf]
  %v333 = vld [vmem:[%s328 + $0x10] sm:$0xf]
  %v334 = vld [vmem:[%s328 + $0x14] sm:$0xf]
  %v335 = vld [vmem:[%s328 + $0x18] sm:$0xf]
  %v336 = vld [vmem:[%s328 + $0x1c] sm:$0xf]
  %v337 = vld [vmem:[%s328 + $0x20] sm:$0xf]
  %v338 = vld [vmem:[%s328 + $0x24] sm:$0xf]
  %v339 = vld [vmem:[%s328 + $0x28] sm:$0x3]
  %v351 = vunpack.c.l.b16 %v329
  %v352 = vunpack.c.l.b16 %v330
  %v353 = vunpack.c.l.b16 %v331
  %v354 = vunpack.c.l.b16 %v332
  %v355 = vunpack.c.l.b16 %v333
  %v356 = vunpack.c.l.b16 %v334
  %v357 = vunpack.c.l.b16 %v335
  %v358 = vunpack.c.l.b16 %v336
  %v359 = vunpack.c.l.b16 %v337
  %v360 = vunpack.c.l.b16 %v338
  %v361 = vunpack.c.l.b16 %v339
  %v362 = vpack.c.b16 %v352, %v351
  %v363 = vpack.c.b16 %v354, %v353
  %v364 = vpack.c.b16 %v356, %v355
  %v365 = vpack.c.b16 %v358, %v357
  %v366 = vpack.c.b16 %v360, %v359
  %v367 = vpack.c.b16 %v361, %v361
  %vm368 = vcmask 687104
  %v370 = vsel %vm368, %v362, 0
  %v373 = vsel %vm368, %v363, 0
  %v376 = vsel %vm368, %v364, 0
  %v379 = vsel %vm368, %v365, 0
  %v382 = vsel %vm368, %v366, 0
  %v385 = vsel %vm368, %v367, 0
  %vm387 = vcmask 1041408
  %v389 = vsel %vm387, %v315, 0
  %391 = vmatprep.subr.bf16.mxu0 0
  %392 = vmatpush1.bf16.msra.mxu0 %v300
  %393 = vmatprep.subr.bf16.mxu0 0
  %394 = vmatpush1.bf16.msra.mxu0 %v303
  %395 = vmatprep.subr.bf16.mxu0 0
  %396 = vmatpush1.bf16.msra.mxu0 %v306
  %397 = vmatprep.subr.bf16.mxu0 0
  %398 = vmatpush1.bf16.msra.mxu0 %v309
  %399 = vmatprep.subr.bf16.mxu0 0
  %400 = vmatpush1.bf16.msra.mxu0 %v312
  %401 = vmatprep.subr.bf16.mxu0 0
  %402 = vmatpush1.bf16.msra.mxu0 %v389
  %403 = vmatprep.subr.bf16.mxu0 0
  %404 = vmatpush1.bf16.msra.mxu0 0
  %405 = vmatprep.subr.bf16.mxu0 0
  %406 = vmatpush1.bf16.msra.mxu0 0
  %407 = vmatprep.subr.bf16.mxu0 0
  %408 = vmatpush1.bf16.msra.mxu0 0
  %409 = vmatprep.subr.bf16.mxu0 0
  %410 = vmatpush1.bf16.msra.mxu0 0
  %411 = vmatprep.subr.bf16.mxu0 0
  %412 = vmatpush1.bf16.msra.mxu0 0
  %413 = vmatprep.subr.bf16.mxu0 0
  %414 = vmatpush1.bf16.msra.mxu0 0
  %415 = vmatprep.subr.bf16.mxu0 0
  %416 = vmatpush1.bf16.msra.mxu0 0
  %417 = vmatprep.subr.bf16.mxu0 0
  %418 = vmatpush1.bf16.msra.mxu0 0
  %419 = vmatprep.subr.bf16.mxu0 0
  %420 = vmatpush1.bf16.msra.mxu0 0
  %421 = vmatprep.subr.bf16.mxu0 0
  %422 = vmatpush1.bf16.msra.mxu0 0
  %423 = vmatprep.mubr.bf16.mxu0 0
  %424 = vmatmul.mubr.bf16.gmra.mrb[0].mxu0 %v370
  %v425 = vpop.f32.mrb[0].mxu0
  %v426 = vadd.f32 0.0, %v425
  %v427 = vpop.f32.mrb[0].mxu0
  %v428 = vpop.f32.mrb[0].mxu0
  %v429 = vadd.f32 0.0, %v428
  %v430 = vpop.f32.mrb[0].mxu0
  %431 = vmatprep.mubr.bf16.mxu0 0
  %432 = vmatmul.mubr.bf16.gmra.mrb[0].mxu0 %v373
  %v433 = vpop.f32.mrb[0].mxu0
  %v434 = vadd.f32 0.0, %v433
  %v435 = vpop.f32.mrb[0].mxu0
  %v436 = vpop.f32.mrb[0].mxu0
  %v437 = vadd.f32 0.0, %v436
  %v438 = vpop.f32.mrb[0].mxu0
  %439 = vmatprep.mubr.bf16.mxu0 0
  %440 = vmatmul.mubr.bf16.gmra.mrb[0].mxu0 %v376
  %v441 = vpop.f32.mrb[0].mxu0
  %v442 = vadd.f32 0.0, %v441
  %v443 = vpop.f32.mrb[0].mxu0
  %v444 = vpop.f32.mrb[0].mxu0
  %v445 = vadd.f32 0.0, %v444
  %v446 = vpop.f32.mrb[0].mxu0
  %447 = vmatprep.mubr.bf16.mxu0 0
  %448 = vmatmul.mubr.bf16.gmra.mrb[0].mxu0 %v379
  %v449 = vpop.f32.mrb[0].mxu0
  %v450 = vadd.f32 0.0, %v449
  %v451 = vpop.f32.mrb[0].mxu0
  %v452 = vpop.f32.mrb[0].mxu0
  %v453 = vadd.f32 0.0, %v452
  %v454 = vpop.f32.mrb[0].mxu0
  %455 = vmatprep.mubr.bf16.mxu0 0
  %456 = vmatmul.mubr.bf16.gmra.mrb[0].mxu0 %v382
  %v457 = vpop.f32.mrb[0].mxu0
  %v458 = vadd.f32 0.0, %v457
  %v459 = vpop.f32.mrb[0].mxu0
  %v460 = vpop.f32.mrb[0].mxu0
  %v461 = vadd.f32 0.0, %v460
  %v462 = vpop.f32.mrb[0].mxu0
  %463 = vmatprep.mubr.bf16.mxu0 0
  %464 = vmatmul.mubr.bf16.gmra.mrb[0].mxu0 %v385
  %v465 = vpop.f32.mrb[0].mxu0
  %v466 = vadd.f32 0.0, %v465
  %v467 = vpop.f32.mrb[0].mxu0
  %v468 = vpop.f32.mrb[0].mxu0
  %v469 = vpop.f32.mrb[0].mxu0
  %470 = vdwg.mxu0
  %v482 = vunpack.c.l.b16 %v317
  %v483 = vunpack.c.l.b16 %v318
  %v484 = vunpack.c.l.b16 %v319
  %v485 = vunpack.c.l.b16 %v320
  %v486 = vunpack.c.l.b16 %v321
  %v487 = vunpack.c.l.b16 %v322
  %v488 = vunpack.c.l.b16 %v323
  %v489 = vunpack.c.l.b16 %v324
  %v490 = vunpack.c.l.b16 %v325
  %v491 = vunpack.c.l.b16 %v326
  %v492 = vunpack.c.l.b16 %v327
  %v493 = vpack.c.b16 %v483, %v482
  %v494 = vpack.c.b16 %v485, %v484
  %v495 = vpack.c.b16 %v487, %v486
  %v496 = vpack.c.b16 %v489, %v488
  %v497 = vpack.c.b16 %v491, %v490
  %v498 = vpack.c.b16 %v492, %v492
  %v500 = vsel %vm368, %v493, 0
  %v503 = vsel %vm368, %v494, 0
  %v506 = vsel %vm368, %v495, 0
  %v509 = vsel %vm368, %v496, 0
  %v512 = vsel %vm368, %v497, 0
  %v515 = vsel %vm368, %v498, 0
  %v518 = vsel %vm387, %v314, 0
  %520 = vmatprep.subr.bf16.mxu0 0
  %521 = vmatpush1.bf16.msra.mxu0 %v299
  %522 = vmatprep.subr.bf16.mxu0 0
  %523 = vmatpush1.bf16.msra.mxu0 %v302
  %524 = vmatprep.subr.bf16.mxu0 0
  %525 = vmatpush1.bf16.msra.mxu0 %v305
  %526 = vmatprep.subr.bf16.mxu0 0
  %527 = vmatpush1.bf16.msra.mxu0 %v308
  %528 = vmatprep.subr.bf16.mxu0 0
  %529 = vmatpush1.bf16.msra.mxu0 %v311
  %530 = vmatprep.subr.bf16.mxu0 0
  %531 = vmatpush1.bf16.msra.mxu0 %v518
  %532 = vmatprep.subr.bf16.mxu0 0
  %533 = vmatpush1.bf16.msra.mxu0 0
  %534 = vmatprep.subr.bf16.mxu0 0
  %535 = vmatpush1.bf16.msra.mxu0 0
  %536 = vmatprep.subr.bf16.mxu0 0
  %537 = vmatpush1.bf16.msra.mxu0 0
  %538 = vmatprep.subr.bf16.mxu0 0
  %539 = vmatpush1.bf16.msra.mxu0 0
  %540 = vmatprep.subr.bf16.mxu0 0
  %541 = vmatpush1.bf16.msra.mxu0 0
  %542 = vmatprep.subr.bf16.mxu0 0
  %543 = vmatpush1.bf16.msra.mxu0 0
  %544 = vmatprep.subr.bf16.mxu0 0
  %545 = vmatpush1.bf16.msra.mxu0 0
  %546 = vmatprep.subr.bf16.mxu0 0
  %547 = vmatpush1.bf16.msra.mxu0 0
  %548 = vmatprep.subr.bf16.mxu0 0
  %549 = vmatpush1.bf16.msra.mxu0 0
  %550 = vmatprep.subr.bf16.mxu0 0
  %551 = vmatpush1.bf16.msra.mxu0 0
  %552 = vmatprep.mubr.bf16.mxu0 0
  %553 = vmatmul.mubr.bf16.gmra.mrb[0].mxu0 %v500
  %v554 = vpop.f32.mrb[0].mxu0
  %v555 = vadd.f32 %v426, %v554
  %v556 = vpop.f32.mrb[0].mxu0
  %v557 = vpop.f32.mrb[0].mxu0
  %v558 = vadd.f32 %v429, %v557
  %v559 = vpop.f32.mrb[0].mxu0
  %560 = vmatprep.mubr.bf16.mxu0 0
  %561 = vmatmul.mubr.bf16.gmra.mrb[0].mxu0 %v503
  %v562 = vpop.f32.mrb[0].mxu0
  %v563 = vadd.f32 %v434, %v562
  %v564 = vpop.f32.mrb[0].mxu0
  %v565 = vpop.f32.mrb[0].mxu0
  %v566 = vadd.f32 %v437, %v565
  %v567 = vpop.f32.mrb[0].mxu0
  %568 = vmatprep.mubr.bf16.mxu0 0
  %569 = vmatmul.mubr.bf16.gmra.mrb[0].mxu0 %v506
  %v570 = vpop.f32.mrb[0].mxu0
  %v571 = vadd.f32 %v442, %v570
  %v572 = vpop.f32.mrb[0].mxu0
  %v573 = vpop.f32.mrb[0].mxu0
  %v574 = vadd.f32 %v445, %v573
  %v575 = vpop.f32.mrb[0].mxu0
  %576 = vmatprep.mubr.bf16.mxu0 0
  %577 = vmatmul.mubr.bf16.gmra.mrb[0].mxu0 %v509
  %v578 = vpop.f32.mrb[0].mxu0
  %v579 = vadd.f32 %v450, %v578
  %v580 = vpop.f32.mrb[0].mxu0
  %v581 = vpop.f32.mrb[0].mxu0
  %v582 = vadd.f32 %v453, %v581
  %v583 = vpop.f32.mrb[0].mxu0
  %584 = vmatprep.mubr.bf16.mxu0 0
  %585 = vmatmul.mubr.bf16.gmra.mrb[0].mxu0 %v512
  %v586 = vpop.f32.mrb[0].mxu0
  %v587 = vadd.f32 %v458, %v586
  %v588 = vpop.f32.mrb[0].mxu0
  %v589 = vpop.f32.mrb[0].mxu0
  %v590 = vadd.f32 %v461, %v589
  %v591 = vpop.f32.mrb[0].mxu0
  %592 = vmatprep.mubr.bf16.mxu0 0
  %593 = vmatmul.mubr.bf16.gmra.mrb[0].mxu0 %v515
  %v594 = vpop.f32.mrb[0].mxu0
  %v595 = vadd.f32 %v466, %v594
  %v596 = vpop.f32.mrb[0].mxu0
  %v597 = vpop.f32.mrb[0].mxu0
  %v598 = vpop.f32.mrb[0].mxu0
  %599 = vdwg.mxu0
  %s600 = scalar_lea.vmem %s3, 88
  %v601 = vld [vmem:[%s600] sm:$0xf]
  %v602 = vld [vmem:[%s600 + $0x4] sm:$0xf]
  %v603 = vld [vmem:[%s600 + $0x8] sm:$0xf]
  %v604 = vld [vmem:[%s600 + $0xc] sm:$0xf]
  %v605 = vld [vmem:[%s600 + $0x10] sm:$0xf]
  %v606 = vld [vmem:[%s600 + $0x14] sm:$0xf]
  %v607 = vld [vmem:[%s600 + $0x18] sm:$0xf]
  %v608 = vld [vmem:[%s600 + $0x1c] sm:$0xf]
  %v609 = vld [vmem:[%s600 + $0x20] sm:$0xf]
  %v610 = vld [vmem:[%s600 + $0x24] sm:$0xf]
  %v611 = vld [vmem:[%s600 + $0x28] sm:$0x3]
  %v623 = vunpack.c.l.b16 %v601
  %v624 = vunpack.c.l.b16 %v602
  %v625 = vunpack.c.l.b16 %v603
  %v626 = vunpack.c.l.b16 %v604
  %v627 = vunpack.c.l.b16 %v605
  %v628 = vunpack.c.l.b16 %v606
  %v629 = vunpack.c.l.b16 %v607
  %v630 = vunpack.c.l.b16 %v608
  %v631 = vunpack.c.l.b16 %v609
  %v632 = vunpack.c.l.b16 %v610
  %v633 = vunpack.c.l.b16 %v611
  %v634 = vpack.c.b16 %v624, %v623
  %v635 = vpack.c.b16 %v626, %v625
  %v636 = vpack.c.b16 %v628, %v627
  %v637 = vpack.c.b16 %v630, %v629
  %v638 = vpack.c.b16 %v632, %v631
  %v639 = vpack.c.b16 %v633, %v633
  %v641 = vsel %vm368, %v634, 0
  %v644 = vsel %vm368, %v635, 0
  %v647 = vsel %vm368, %v636, 0
  %v650 = vsel %vm368, %v637, 0
  %v653 = vsel %vm368, %v638, 0
  %v656 = vsel %vm368, %v639, 0
  %v659 = vsel %vm387, %v316, 0
  %661 = vmatprep.subr.bf16.mxu0 0
  %662 = vmatpush1.bf16.msra.mxu0 %v301
  %663 = vmatprep.subr.bf16.mxu0 0
  %664 = vmatpush1.bf16.msra.mxu0 %v304
  %665 = vmatprep.subr.bf16.mxu0 0
  %666 = vmatpush1.bf16.msra.mxu0 %v307
  %667 = vmatprep.subr.bf16.mxu0 0
  %668 = vmatpush1.bf16.msra.mxu0 %v310
  %669 = vmatprep.subr.bf16.mxu0 0
  %670 = vmatpush1.bf16.msra.mxu0 %v313
  %671 = vmatprep.subr.bf16.mxu0 0
  %672 = vmatpush1.bf16.msra.mxu0 %v659
  %673 = vmatprep.subr.bf16.mxu0 0
  %674 = vmatpush1.bf16.msra.mxu0 0
  %675 = vmatprep.subr.bf16.mxu0 0
  %676 = vmatpush1.bf16.msra.mxu0 0
  %677 = vmatprep.subr.bf16.mxu0 0
  %678 = vmatpush1.bf16.msra.mxu0 0
  %679 = vmatprep.subr.bf16.mxu0 0
  %680 = vmatpush1.bf16.msra.mxu0 0
  %681 = vmatprep.subr.bf16.mxu0 0
  %682 = vmatpush1.bf16.msra.mxu0 0
  %683 = vmatprep.subr.bf16.mxu0 0
  %684 = vmatpush1.bf16.msra.mxu0 0
  %685 = vmatprep.subr.bf16.mxu0 0
  %686 = vmatpush1.bf16.msra.mxu0 0
  %687 = vmatprep.subr.bf16.mxu0 0
  %688 = vmatpush1.bf16.msra.mxu0 0
  %689 = vmatprep.subr.bf16.mxu0 0
  %690 = vmatpush1.bf16.msra.mxu0 0
  %691 = vmatprep.subr.bf16.mxu0 0
  %692 = vmatpush1.bf16.msra.mxu0 0
  %693 = vmatprep.mubr.bf16.mxu0 0
  %694 = vmatmul.mubr.bf16.gmra.mrb[0].mxu0 %v641
  %v695 = vpop.f32.mrb[0].mxu0
  %v696 = vadd.f32 0.0, %v695
  %v697 = vpop.f32.mrb[0].mxu0
  %v698 = vpop.f32.mrb[0].mxu0
  %v699 = vadd.f32 0.0, %v698
  %v700 = vpop.f32.mrb[0].mxu0
  %701 = vmatprep.mubr.bf16.mxu0 0
  %702 = vmatmul.mubr.bf16.gmra.mrb[0].mxu0 %v644
  %v703 = vpop.f32.mrb[0].mxu0
  %v704 = vadd.f32 0.0, %v703
  %v705 = vpop.f32.mrb[0].mxu0
  %v706 = vpop.f32.mrb[0].mxu0
  %v707 = vadd.f32 0.0, %v706
  %v708 = vpop.f32.mrb[0].mxu0
  %709 = vmatprep.mubr.bf16.mxu0 0
  %710 = vmatmul.mubr.bf16.gmra.mrb[0].mxu0 %v647
  %v711 = vpop.f32.mrb[0].mxu0
  %v712 = vadd.f32 0.0, %v711
  %v713 = vpop.f32.mrb[0].mxu0
  %v714 = vpop.f32.mrb[0].mxu0
  %v715 = vadd.f32 0.0, %v714
  %v716 = vpop.f32.mrb[0].mxu0
  %717 = vmatprep.mubr.bf16.mxu0 0
  %718 = vmatmul.mubr.bf16.gmra.mrb[0].mxu0 %v650
  %v719 = vpop.f32.mrb[0].mxu0
  %v720 = vadd.f32 0.0, %v719
  %v721 = vpop.f32.mrb[0].mxu0
  %v722 = vpop.f32.mrb[0].mxu0
  %v723 = vadd.f32 0.0, %v722
  %v724 = vpop.f32.mrb[0].mxu0
  %725 = vmatprep.mubr.bf16.mxu0 0
  %726 = vmatmul.mubr.bf16.gmra.mrb[0].mxu0 %v653
  %v727 = vpop.f32.mrb[0].mxu0
  %v728 = vadd.f32 0.0, %v727
  %v729 = vpop.f32.mrb[0].mxu0
  %v730 = vpop.f32.mrb[0].mxu0
  %v731 = vadd.f32 0.0, %v730
  %v732 = vpop.f32.mrb[0].mxu0
  %733 = vmatprep.mubr.bf16.mxu0 0
  %734 = vmatmul.mubr.bf16.gmra.mrb[0].mxu0 %v656
  %v735 = vpop.f32.mrb[0].mxu0
  %v736 = vadd.f32 0.0, %v735
  %v737 = vpop.f32.mrb[0].mxu0
  %v738 = vpop.f32.mrb[0].mxu0
  %v739 = vpop.f32.mrb[0].mxu0
  %740 = vdwg.mxu0
  %v741 = vadd.f32 %v555, %v696
  %v742 = vadd.f32 %v558, %v699
  %v743 = vadd.f32 %v563, %v704
  %v744 = vadd.f32 %v566, %v707
  %v745 = vadd.f32 %v571, %v712
  %v746 = vadd.f32 %v574, %v715
  %v747 = vadd.f32 %v579, %v720
  %v748 = vadd.f32 %v582, %v723
  %v749 = vadd.f32 %v587, %v728
  %v750 = vadd.f32 %v590, %v731
  %v751 = vadd.f32 %v595, %v736
  %v752 = vld [vmem:[%s2] sm:$0x1]
  %v754 = vlaneseq
  %v755 = vshrl.u32 %v754, 7
  %v756 = vsub.s32 0, %v755
  %v757 = vrot.slane %v752, %v756
  %v759 = vadd.f32 %v741, %v757
  %v760 = vadd.f32 %v742, %v757
  %v761 = vadd.f32 %v743, %v757
  %v762 = vadd.f32 %v744, %v757
  %v763 = vadd.f32 %v745, %v757
  %v764 = vadd.f32 %v746, %v757
  %v765 = vadd.f32 %v747, %v757
  %v766 = vadd.f32 %v748, %v757
  %v767 = vadd.f32 %v749, %v757
  %v768 = vadd.f32 %v750, %v757
  %v769 = vadd.f32 %v751, %v757
  %v770 = vmax.f32 %v759, 0.0
  %v771 = vmax.f32 %v760, 0.0
  %v772 = vmax.f32 %v761, 0.0
  %v773 = vmax.f32 %v762, 0.0
  %v774 = vmax.f32 %v763, 0.0
  %v775 = vmax.f32 %v764, 0.0
  %v776 = vmax.f32 %v765, 0.0
  %v777 = vmax.f32 %v766, 0.0
  %v778 = vmax.f32 %v767, 0.0
  %v779 = vmax.f32 %v768, 0.0
  %v780 = vmax.f32 %v769, 0.0
  %v781 = vpack.c.bf16 %v771, %v770
  %v782 = vpack.c.bf16 %v773, %v772
  %v783 = vpack.c.bf16 %v775, %v774
  %v784 = vpack.c.bf16 %v777, %v776
  %v785 = vpack.c.bf16 %v779, %v778
  %v786 = vpack.c.bf16 %v780, %v780
  %s787 = scalar_lea.vmem %s4, 256
  %v788 = vld [vmem:[%s787] sm:$0xf]
  %v789 = vld [vmem:[%s787 + $0x4] sm:$0xf]
  %v790 = vld [vmem:[%s787 + $0x8] sm:$0xf]
  %v791 = vld [vmem:[%s787 + $0xc] sm:$0xf]
  %v792 = vld [vmem:[%s787 + $0x10] sm:$0xf]
  %v793 = vld [vmem:[%s787 + $0x14] sm:$0xf]
  %v794 = vld [vmem:[%s787 + $0x18] sm:$0xf]
  %v795 = vld [vmem:[%s787 + $0x1c] sm:$0xf]
  %v796 = vld [vmem:[%s787 + $0x20] sm:$0xf]
  %v797 = vld [vmem:[%s787 + $0x24] sm:$0xf]
  %v798 = vld [vmem:[%s787 + $0x28] sm:$0xf]
  %v799 = vld [vmem:[%s787 + $0x2c] sm:$0xf]
  %v800 = vld [vmem:[%s787 + $0x30] sm:$0xf]
  %v801 = vld [vmem:[%s787 + $0x34] sm:$0xf]
  %v802 = vld [vmem:[%s787 + $0x38] sm:$0xf]
  %v803 = vld [vmem:[%s787 + $0x3c] sm:$0xf]
  %v804 = vld [vmem:[%s5] sm:$0x1]
  %v806 = vlaneseq
  %v807 = vshrl.u32 %v806, 7
  %v808 = vsub.s32 0, %v807
  %v809 = vrot.slane %v804, %v808
  %v827 = vunpack.c.l.b16 %v788
  %v828 = vunpack.c.l.b16 %v789
  %v829 = vunpack.c.l.b16 %v790
  %v830 = vunpack.c.l.b16 %v791
  %v831 = vunpack.c.l.b16 %v792
  %v832 = vunpack.c.l.b16 %v793
  %v833 = vunpack.c.l.b16 %v794
  %v834 = vunpack.c.l.b16 %v795
  %v835 = vunpack.c.l.b16 %v796
  %v836 = vunpack.c.l.b16 %v797
  %v837 = vunpack.c.l.b16 %v798
  %v838 = vunpack.c.l.b16 %v799
  %v839 = vunpack.c.l.b16 %v800
  %v840 = vunpack.c.l.b16 %v801
  %v841 = vunpack.c.l.b16 %v802
  %v842 = vunpack.c.l.b16 %v803
  %v843 = vpack.c.b16 %v828, %v827
  %v844 = vpack.c.b16 %v830, %v829
  %v845 = vpack.c.b16 %v832, %v831
  %v846 = vpack.c.b16 %v834, %v833
  %v847 = vpack.c.b16 %v836, %v835
  %v848 = vpack.c.b16 %v838, %v837
  %v849 = vpack.c.b16 %v840, %v839
  %v850 = vpack.c.b16 %v842, %v841
  %859 = vmatprep.subr.bf16.mxu0 0
  %860 = vmatpush1.bf16.msra.mxu0 %v843
  %861 = vmatprep.subr.bf16.mxu0 0
  %862 = vmatpush1.bf16.msra.mxu0 %v844
  %863 = vmatprep.subr.bf16.mxu0 0
  %864 = vmatpush1.bf16.msra.mxu0 %v845
  %865 = vmatprep.subr.bf16.mxu0 0
  %866 = vmatpush1.bf16.msra.mxu0 %v846
  %867 = vmatprep.subr.bf16.mxu0 0
  %868 = vmatpush1.bf16.msra.mxu0 %v847
  %869 = vmatprep.subr.bf16.mxu0 0
  %870 = vmatpush1.bf16.msra.mxu0 %v848
  %871 = vmatprep.subr.bf16.mxu0 0
  %872 = vmatpush1.bf16.msra.mxu0 %v849
  %873 = vmatprep.subr.bf16.mxu0 0
  %874 = vmatpush1.bf16.msra.mxu0 %v850
  %875 = vmatprep.subr.bf16.mxu0 0
  %876 = vmatpush1.bf16.msra.mxu0 0
  %877 = vmatprep.subr.bf16.mxu0 0
  %878 = vmatpush1.bf16.msra.mxu0 0
  %879 = vmatprep.subr.bf16.mxu0 0
  %880 = vmatpush1.bf16.msra.mxu0 0
  %881 = vmatprep.subr.bf16.mxu0 0
  %882 = vmatpush1.bf16.msra.mxu0 0
  %883 = vmatprep.subr.bf16.mxu0 0
  %884 = vmatpush1.bf16.msra.mxu0 0
  %885 = vmatprep.subr.bf16.mxu0 0
  %886 = vmatpush1.bf16.msra.mxu0 0
  %887 = vmatprep.subr.bf16.mxu0 0
  %888 = vmatpush1.bf16.msra.mxu0 0
  %889 = vmatprep.subr.bf16.mxu0 0
  %890 = vmatpush1.bf16.msra.mxu0 0
  %891 = vmatprep.mubr.bf16.mxu0 0
  %892 = vmatmul.mubr.bf16.gmra.mrb[0].mxu0 %v781
  %v893 = vpop.f32.mrb[0].mxu0
  %v894 = vadd.f32 %v809, %v893
  %v895 = vpop.f32.mrb[0].mxu0
  %v896 = vpop.f32.mrb[0].mxu0
  %v897 = vadd.f32 %v809, %v896
  %v898 = vpop.f32.mrb[0].mxu0
  %899 = vmatprep.mubr.bf16.mxu0 0
  %900 = vmatmul.mubr.bf16.gmra.mrb[0].mxu0 %v782
  %v901 = vpop.f32.mrb[0].mxu0
  %v902 = vadd.f32 %v809, %v901
  %v903 = vpop.f32.mrb[0].mxu0
  %v904 = vpop.f32.mrb[0].mxu0
  %v905 = vadd.f32 %v809, %v904
  %v906 = vpop.f32.mrb[0].mxu0
  %907 = vmatprep.mubr.bf16.mxu0 0
  %908 = vmatmul.mubr.bf16.gmra.mrb[0].mxu0 %v783
  %v909 = vpop.f32.mrb[0].mxu0
  %v910 = vadd.f32 %v809, %v909
  %v911 = vpop.f32.mrb[0].mxu0
  %v912 = vpop.f32.mrb[0].mxu0
  %v913 = vadd.f32 %v809, %v912
  %v914 = vpop.f32.mrb[0].mxu0
  %915 = vmatprep.mubr.bf16.mxu0 0
  %916 = vmatmul.mubr.bf16.gmra.mrb[0].mxu0 %v784
  %v917 = vpop.f32.mrb[0].mxu0
  %v918 = vadd.f32 %v809, %v917
  %v919 = vpop.f32.mrb[0].mxu0
  %v920 = vpop.f32.mrb[0].mxu0
  %v921 = vadd.f32 %v809, %v920
  %v922 = vpop.f32.mrb[0].mxu0
  %923 = vmatprep.mubr.bf16.mxu0 0
  %924 = vmatmul.mubr.bf16.gmra.mrb[0].mxu0 %v785
  %v925 = vpop.f32.mrb[0].mxu0
  %v926 = vadd.f32 %v809, %v925
  %v927 = vpop.f32.mrb[0].mxu0
  %v928 = vpop.f32.mrb[0].mxu0
  %v929 = vadd.f32 %v809, %v928
  %v930 = vpop.f32.mrb[0].mxu0
  %931 = vmatprep.mubr.bf16.mxu0 0
  %932 = vmatmul.mubr.bf16.gmra.mrb[0].mxu0 %v786
  %v933 = vpop.f32.mrb[0].mxu0
  %v934 = vadd.f32 %v809, %v933
  %v935 = vpop.f32.mrb[0].mxu0
  %v936 = vpop.f32.mrb[0].mxu0
  %v937 = vpop.f32.mrb[0].mxu0
  %938 = vdwg.mxu0
  %v939 = vld [vmem:[%s6] sm:$0xf]
  %v940 = vld [vmem:[%s6 + $0x4] sm:$0xf]
  %v941 = vld [vmem:[%s6 + $0x8] sm:$0xf]
  %v942 = vld [vmem:[%s6 + $0xc] sm:$0xf]
  %v943 = vld [vmem:[%s7] sm:$0x1]
  %v945 = vlaneseq
  %v946 = vshrl.u32 %v945, 7
  %v947 = vsub.s32 0, %v946
  %v948 = vrot.slane %v943, %v947
  %v954 = vunpack.c.l.b16 %v939
  %v955 = vunpack.c.l.b16 %v940
  %v956 = vunpack.c.l.b16 %v941
  %v957 = vunpack.c.l.b16 %v942
  %v958 = vpack.c.b16 %v955, %v954
  %v959 = vpack.c.b16 %v957, %v956
  %962 = vmatprep.subr.bf16.mxu0 0
  %963 = vmatpush1.bf16.msra.mxu0 %v958
  %964 = vmatprep.subr.bf16.mxu0 0
  %965 = vmatpush1.bf16.msra.mxu0 %v959
  %966 = vmatprep.subr.bf16.mxu0 0
  %967 = vmatpush1.bf16.msra.mxu0 0
  %968 = vmatprep.subr.bf16.mxu0 0
  %969 = vmatpush1.bf16.msra.mxu0 0
  %970 = vmatprep.subr.bf16.mxu0 0
  %971 = vmatpush1.bf16.msra.mxu0 0
  %972 = vmatprep.subr.bf16.mxu0 0
  %973 = vmatpush1.bf16.msra.mxu0 0
  %974 = vmatprep.subr.bf16.mxu0 0
  %975 = vmatpush1.bf16.msra.mxu0 0
  %976 = vmatprep.subr.bf16.mxu0 0
  %977 = vmatpush1.bf16.msra.mxu0 0
  %978 = vmatprep.subr.bf16.mxu0 0
  %979 = vmatpush1.bf16.msra.mxu0 0
  %980 = vmatprep.subr.bf16.mxu0 0
  %981 = vmatpush1.bf16.msra.mxu0 0
  %982 = vmatprep.subr.bf16.mxu0 0
  %983 = vmatpush1.bf16.msra.mxu0 0
  %984 = vmatprep.subr.bf16.mxu0 0
  %985 = vmatpush1.bf16.msra.mxu0 0
  %986 = vmatprep.subr.bf16.mxu0 0
  %987 = vmatpush1.bf16.msra.mxu0 0
  %988 = vmatprep.subr.bf16.mxu0 0
  %989 = vmatpush1.bf16.msra.mxu0 0
  %990 = vmatprep.subr.bf16.mxu0 0
  %991 = vmatpush1.bf16.msra.mxu0 0
  %992 = vmatprep.subr.bf16.mxu0 0
  %993 = vmatpush1.bf16.msra.mxu0 0
  %994 = vmatprep.mubr.bf16.mxu0 0
  %995 = vmatmul.mubr.bf16.gmra.mrb[0].mxu0 %v111
  %v996 = vpop.f32.mrb[0].mxu0
  %v997 = vadd.f32 %v948, %v996
  %v998 = vpop.f32.mrb[0].mxu0
  %v999 = vpop.f32.mrb[0].mxu0
  %v1000 = vadd.f32 %v948, %v999
  %v1001 = vpop.f32.mrb[0].mxu0
  %1002 = vmatprep.mubr.bf16.mxu0 0
  %1003 = vmatmul.mubr.bf16.gmra.mrb[0].mxu0 %v114
  %v1004 = vpop.f32.mrb[0].mxu0
  %v1005 = vadd.f32 %v948, %v1004
  %v1006 = vpop.f32.mrb[0].mxu0
  %v1007 = vpop.f32.mrb[0].mxu0
  %v1008 = vadd.f32 %v948, %v1007
  %v1009 = vpop.f32.mrb[0].mxu0
  %1010 = vmatprep.mubr.bf16.mxu0 0
  %1011 = vmatmul.mubr.bf16.gmra.mrb[0].mxu0 %v117
  %v1012 = vpop.f32.mrb[0].mxu0
  %v1013 = vadd.f32 %v948, %v1012
  %v1014 = vpop.f32.mrb[0].mxu0
  %v1015 = vpop.f32.mrb[0].mxu0
  %v1016 = vadd.f32 %v948, %v1015
  %v1017 = vpop.f32.mrb[0].mxu0
  %1018 = vmatprep.mubr.bf16.mxu0 0
  %1019 = vmatmul.mubr.bf16.gmra.mrb[0].mxu0 %v120
  %v1020 = vpop.f32.mrb[0].mxu0
  %v1021 = vadd.f32 %v948, %v1020
  %v1022 = vpop.f32.mrb[0].mxu0
  %v1023 = vpop.f32.mrb[0].mxu0
  %v1024 = vadd.f32 %v948, %v1023
  %v1025 = vpop.f32.mrb[0].mxu0
  %1026 = vmatprep.mubr.bf16.mxu0 0
  %1027 = vmatmul.mubr.bf16.gmra.mrb[0].mxu0 %v123
  %v1028 = vpop.f32.mrb[0].mxu0
  %v1029 = vadd.f32 %v948, %v1028
  %v1030 = vpop.f32.mrb[0].mxu0
  %v1031 = vpop.f32.mrb[0].mxu0
  %v1032 = vadd.f32 %v948, %v1031
  %v1033 = vpop.f32.mrb[0].mxu0
  %1034 = vmatprep.mubr.bf16.mxu0 0
  %1035 = vmatmul.mubr.bf16.gmra.mrb[0].mxu0 %v126
  %v1036 = vpop.f32.mrb[0].mxu0
  %v1037 = vadd.f32 %v948, %v1036
  %v1038 = vpop.f32.mrb[0].mxu0
  %v1039 = vpop.f32.mrb[0].mxu0
  %v1040 = vpop.f32.mrb[0].mxu0
  %1041 = vdwg.mxu0
  %v1042 = vadd.f32 %v894, %v997
  %v1043 = vadd.f32 %v897, %v1000
  %v1044 = vadd.f32 %v902, %v1005
  %v1045 = vadd.f32 %v905, %v1008
  %v1046 = vadd.f32 %v910, %v1013
  %v1047 = vadd.f32 %v913, %v1016
  %v1048 = vadd.f32 %v918, %v1021
  %v1049 = vadd.f32 %v921, %v1024
  %v1050 = vadd.f32 %v926, %v1029
  %v1051 = vadd.f32 %v929, %v1032
  %v1052 = vadd.f32 %v934, %v1037
  %v1053 = vmax.f32 %v1042, 0.0
  %v1054 = vmax.f32 %v1043, 0.0
  %v1055 = vmax.f32 %v1044, 0.0
  %v1056 = vmax.f32 %v1045, 0.0
  %v1057 = vmax.f32 %v1046, 0.0
  %v1058 = vmax.f32 %v1047, 0.0
  %v1059 = vmax.f32 %v1048, 0.0
  %v1060 = vmax.f32 %v1049, 0.0
  %v1061 = vmax.f32 %v1050, 0.0
  %v1062 = vmax.f32 %v1051, 0.0
  %v1063 = vmax.f32 %v1052, 0.0
  %v1064 = vpack.c.bf16 %v1054, %v1053
  %v1065 = vpack.c.bf16 %v1056, %v1055
  %v1066 = vpack.c.bf16 %v1058, %v1057
  %v1067 = vpack.c.bf16 %v1060, %v1059
  %v1068 = vpack.c.bf16 %v1062, %v1061
  %v1069 = vpack.c.bf16 %v1063, %v1063
  %v1076 = vunpack.c.l.b16 %v1064
  %v1077 = vunpack.c.h.b16 %v1064
  %v1078 = vunpack.c.l.b16 %v1065
  %v1079 = vunpack.c.h.b16 %v1065
  %v1080 = vunpack.c.l.b16 %v1066
  %v1081 = vunpack.c.h.b16 %v1066
  %v1082 = vunpack.c.l.b16 %v1067
  %v1083 = vunpack.c.h.b16 %v1067
  %v1084 = vunpack.c.l.b16 %v1068
  %v1085 = vunpack.c.h.b16 %v1068
  %v1086 = vunpack.c.l.b16 %v1069
  %v1087 = vpack.c.b16 %v1076, %v1076
  %v1088 = vpack.c.b16 %v1077, %v1077
  %v1089 = vpack.c.b16 %v1078, %v1078
  %v1090 = vpack.c.b16 %v1079, %v1079
  %v1091 = vpack.c.b16 %v1080, %v1080
  %v1092 = vpack.c.b16 %v1081, %v1081
  %v1093 = vpack.c.b16 %v1082, %v1082
  %v1094 = vpack.c.b16 %v1083, %v1083
  %v1095 = vpack.c.b16 %v1084, %v1084
  %v1096 = vpack.c.b16 %v1085, %v1085
  %v1097 = vpack.c.b16 %v1086, %v1086
  %1109 = vst [vmem:[%s8] sm:$0xf] %v1087
  %1110 = vst [vmem:[%s8 + $0x4] sm:$0xf] %v1088
  %1111 = vst [vmem:[%s8 + $0x8] sm:$0xf] %v1089
  %1112 = vst [vmem:[%s8 + $0xc] sm:$0xf] %v1090
  %1113 = vst [vmem:[%s8 + $0x10] sm:$0xf] %v1091
  %1114 = vst [vmem:[%s8 + $0x14] sm:$0xf] %v1092
  %1115 = vst [vmem:[%s8 + $0x18] sm:$0xf] %v1093
  %1116 = vst [vmem:[%s8 + $0x1c] sm:$0xf] %v1094
  %1117 = vst [vmem:[%s8 + $0x20] sm:$0xf] %v1095
  %1118 = vst [vmem:[%s8 + $0x24] sm:$0xf] %v1096
  %1119 = vst [vmem:[%s8 + $0x28] sm:$0x3] %v1097
  // Predicated region
  $region34: #{double_tpgcn_forward.19} parent=0 // pred_check
    _
  $region35: #{double_tpgcn_forward.19} parent=0 // pred_check_branch
    %1121 = sbr.rel (0) target = $region37
  $region36: #{double_tpgcn_forward.19} parent=0 // pred_region
    _
  $region37: #{double_tpgcn_forward.19} parent=0 // pred_fallthru
    _
  // Predicated region
  $region38: #{double_tpgcn_forward.19} parent=0 // pred_check
    _
  $region39: #{double_tpgcn_forward.19} parent=0 // pred_check_branch
    %1123 = sbr.rel (0) target = $region41
  $region40: #{double_tpgcn_forward.19} parent=0 // pred_region
    _
  $region41: #{double_tpgcn_forward.19} parent=0 // pred_fallthru
    _

// kernel: double_tpgcn_forward.21
$region0: #{double_tpgcn_forward.21}
  #allocation0 [shape = 'u32[]', space=smem, size = 0x4, offset = 0x4, fixed_abs, tag = 'smem constant byte address 0x4 - core index']
  #allocation1 [shape = 'u32[144,128]{1,0:T(1,128)}', space=vmem, size = 0x12000, scoped, tag = 'internal scratch']
  %s0 = inlined_call_operand.vmem [shape: bf16[84,128], index: 0, kind: input, shape index: {}]
  %s1 = inlined_call_operand.vmem [shape: bf16[128,768], index: 1, kind: input, shape index: {}]
  %s2 = inlined_call_operand.vmem [shape: f32[1,256], index: 2, kind: input, shape index: {}, may-alias: {2,5,7}]
  %s3 = inlined_call_operand.vmem [shape: bf16[3,84,84], index: 3, kind: input, shape index: {}]
  %s4 = inlined_call_operand.vmem [shape: bf16[9,256,256], index: 4, kind: input, shape index: {}]
  %s5 = inlined_call_operand.vmem [shape: f32[1,256], index: 5, kind: input, shape index: {}, may-alias: {2,5,7}]
  %s6 = inlined_call_operand.vmem [shape: bf16[128,256], index: 6, kind: input, shape index: {}]
  %s7 = inlined_call_operand.vmem [shape: f32[1,256], index: 7, kind: input, shape index: {}, may-alias: {2,5,7}]
  %s8 = inlined_call_operand.vmem [shape: bf16[84,256], index: 8, kind: output, shape index: {}]
  %s9 = sld [smem:[#allocation0]]
  $region42: #{double_tpgcn_forward.21} parent=0
    _
  %s11 = ssub.s32 1, %s9
  %s12 = scalar_select 0, %s11, %s9
  // Predicated region
  $region2: #{double_tpgcn_forward.21} parent=0 // pred_check
    _
  $region3: #{double_tpgcn_forward.21} parent=0 // pred_check_branch
    %14 = sbr.rel (0) target = $region5
  $region4: #{double_tpgcn_forward.21} parent=0 // pred_region
    _
  $region5: #{double_tpgcn_forward.21} parent=0 // pred_fallthru
    _
  // Predicated region
  $region6: #{double_tpgcn_forward.21} parent=0 // pred_check
    _
  $region7: #{double_tpgcn_forward.21} parent=0 // pred_check_branch
    %16 = sbr.rel (0) target = $region9
  $region8: #{double_tpgcn_forward.21} parent=0 // pred_region
    _
  $region9: #{double_tpgcn_forward.21} parent=0 // pred_fallthru
    _
  // Predicated region
  $region10: #{double_tpgcn_forward.21} parent=0 // pred_check
    _
  $region11: #{double_tpgcn_forward.21} parent=0 // pred_check_branch
    %18 = sbr.rel (0) target = $region13
  $region12: #{double_tpgcn_forward.21} parent=0 // pred_region
    _
  $region13: #{double_tpgcn_forward.21} parent=0 // pred_fallthru
    _
  // Predicated region
  $region14: #{double_tpgcn_forward.21} parent=0 // pred_check
    _
  $region15: #{double_tpgcn_forward.21} parent=0 // pred_check_branch
    %20 = sbr.rel (0) target = $region17
  $region16: #{double_tpgcn_forward.21} parent=0 // pred_region
    _
  $region17: #{double_tpgcn_forward.21} parent=0 // pred_fallthru
    _
  // Predicated region
  $region18: #{double_tpgcn_forward.21} parent=0 // pred_check
    _
  $region19: #{double_tpgcn_forward.21} parent=0 // pred_check_branch
    %22 = sbr.rel (0) target = $region21
  $region20: #{double_tpgcn_forward.21} parent=0 // pred_region
    _
  $region21: #{double_tpgcn_forward.21} parent=0 // pred_fallthru
    _
  // Predicated region
  $region22: #{double_tpgcn_forward.21} parent=0 // pred_check
    _
  $region23: #{double_tpgcn_forward.21} parent=0 // pred_check_branch
    %24 = sbr.rel (0) target = $region25
  $region24: #{double_tpgcn_forward.21} parent=0 // pred_region
    _
  $region25: #{double_tpgcn_forward.21} parent=0 // pred_fallthru
    _
  // Predicated region
  $region26: #{double_tpgcn_forward.21} parent=0 // pred_check
    _
  $region27: #{double_tpgcn_forward.21} parent=0 // pred_check_branch
    %26 = sbr.rel (0) target = $region29
  $region28: #{double_tpgcn_forward.21} parent=0 // pred_region
    _
  $region29: #{double_tpgcn_forward.21} parent=0 // pred_fallthru
    _
  // Predicated region
  $region30: #{double_tpgcn_forward.21} parent=0 // pred_check
    _
  $region31: #{double_tpgcn_forward.21} parent=0 // pred_check_branch
    %28 = sbr.rel (0) target = $region33
  $region32: #{double_tpgcn_forward.21} parent=0 // pred_region
    _
  $region33: #{double_tpgcn_forward.21} parent=0 // pred_fallthru
    _
  %v30 = vld [vmem:[%s0] sm:$0xf]
  %v31 = vld [vmem:[%s0 + $0x4] sm:$0xf]
  %v32 = vld [vmem:[%s0 + $0x8] sm:$0xf]
  %v33 = vld [vmem:[%s0 + $0xc] sm:$0xf]
  %v34 = vld [vmem:[%s0 + $0x10] sm:$0xf]
  %v35 = vld [vmem:[%s0 + $0x14] sm:$0xf]
  %v36 = vld [vmem:[%s0 + $0x18] sm:$0xf]
  %v37 = vld [vmem:[%s0 + $0x1c] sm:$0xf]
  %v38 = vld [vmem:[%s0 + $0x20] sm:$0xf]
  %v39 = vld [vmem:[%s0 + $0x24] sm:$0xf]
  %v40 = vld [vmem:[%s0 + $0x28] sm:$0x3]
  %v41 = vld [vmem:[%s1] sm:$0xff]
  %v42 = vld [vmem:[%s1 + $0x8] sm:$0xff]
  %v43 = vld [vmem:[%s1 + $0x10] sm:$0xff]
  %v44 = vld [vmem:[%s1 + $0x18] sm:$0xff]
  %v45 = vld [vmem:[%s1 + $0x20] sm:$0xff]
  %v46 = vld [vmem:[%s1 + $0x28] sm:$0xff]
  %v47 = vld [vmem:[%s1 + $0x30] sm:$0xff]
  %v48 = vld [vmem:[%s1 + $0x38] sm:$0xff]
  %v49 = vld [vmem:[%s1 + $0x40] sm:$0xff]
  %v50 = vld [vmem:[%s1 + $0x48] sm:$0xff]
  %v51 = vld [vmem:[%s1 + $0x50] sm:$0xff]
  %v52 = vld [vmem:[%s1 + $0x58] sm:$0xff]
  %v53 = vld [vmem:[%s1 + $0x60] sm:$0xff]
  %v54 = vld [vmem:[%s1 + $0x68] sm:$0xff]
  %v55 = vld [vmem:[%s1 + $0x70] sm:$0xff]
  %v56 = vld [vmem:[%s1 + $0x78] sm:$0xff]
  %v57 = vld [vmem:[%s1 + $0x80] sm:$0xff]
  %v58 = vld [vmem:[%s1 + $0x88] sm:$0xff]
  %v59 = vld [vmem:[%s1 + $0x90] sm:$0xff]
  %v60 = vld [vmem:[%s1 + $0x98] sm:$0xff]
  %v61 = vld [vmem:[%s1 + $0xa0] sm:$0xff]
  %v62 = vld [vmem:[%s1 + $0xa8] sm:$0xff]
  %v63 = vld [vmem:[%s1 + $0xb0] sm:$0xff]
  %v64 = vld [vmem:[%s1 + $0xb8] sm:$0xff]
  %v65 = vld [vmem:[%s1 + $0xc0] sm:$0xff]
  %v66 = vld [vmem:[%s1 + $0xc8] sm:$0xff]
  %v67 = vld [vmem:[%s1 + $0xd0] sm:$0xff]
  %v68 = vld [vmem:[%s1 + $0xd8] sm:$0xff]
  %v69 = vld [vmem:[%s1 + $0xe0] sm:$0xff]
  %v70 = vld [vmem:[%s1 + $0xe8] sm:$0xff]
  %v71 = vld [vmem:[%s1 + $0xf0] sm:$0xff]
  %v72 = vld [vmem:[%s1 + $0xf8] sm:$0xff]
  %v73 = vld [vmem:[%s1 + $0x100] sm:$0xff]
  %v74 = vld [vmem:[%s1 + $0x108] sm:$0xff]
  %v75 = vld [vmem:[%s1 + $0x110] sm:$0xff]
  %v76 = vld [vmem:[%s1 + $0x118] sm:$0xff]
  %v77 = vld [vmem:[%s1 + $0x120] sm:$0xff]
  %v78 = vld [vmem:[%s1 + $0x128] sm:$0xff]
  %v79 = vld [vmem:[%s1 + $0x130] sm:$0xff]
  %v80 = vld [vmem:[%s1 + $0x138] sm:$0xff]
  %v81 = vld [vmem:[%s1 + $0x140] sm:$0xff]
  %v82 = vld [vmem:[%s1 + $0x148] sm:$0xff]
  %v83 = vld [vmem:[%s1 + $0x150] sm:$0xff]
  %v84 = vld [vmem:[%s1 + $0x158] sm:$0xff]
  %v85 = vld [vmem:[%s1 + $0x160] sm:$0xff]
  %v86 = vld [vmem:[%s1 + $0x168] sm:$0xff]
  %v87 = vld [vmem:[%s1 + $0x170] sm:$0xff]
  %v88 = vld [vmem:[%s1 + $0x178] sm:$0xff]
  %v100 = vunpack.c.l.b16 %v30
  %v101 = vunpack.c.l.b16 %v31
  %v102 = vunpack.c.l.b16 %v32
  %v103 = vunpack.c.l.b16 %v33
  %v104 = vunpack.c.l.b16 %v34
  %v105 = vunpack.c.l.b16 %v35
  %v106 = vunpack.c.l.b16 %v36
  %v107 = vunpack.c.l.b16 %v37
  %v108 = vunpack.c.l.b16 %v38
  %v109 = vunpack.c.l.b16 %v39
  %v110 = vunpack.c.l.b16 %v40
  %v111 = vpack.c.b16 %v101, %v100
  %v112 = vpack.c.b16 %v103, %v102
  %v113 = vpack.c.b16 %v105, %v104
  %v114 = vpack.c.b16 %v107, %v106
  %v115 = vpack.c.b16 %v109, %v108
  %v116 = vpack.c.b16 %v110, %v110
  %v171 = vunpack.c.l.b16 %v41
  %v172 = vunpack.c.h.b16 %v41
  %v173 = vunpack.c.l.b16 %v42
  %v174 = vunpack.c.h.b16 %v42
  %v175 = vunpack.c.l.b16 %v43
  %v176 = vunpack.c.h.b16 %v43
  %v177 = vunpack.c.l.b16 %v44
  %v178 = vunpack.c.h.b16 %v44
  %v179 = vunpack.c.l.b16 %v45
  %v180 = vunpack.c.h.b16 %v45
  %v181 = vunpack.c.l.b16 %v46
  %v182 = vunpack.c.h.b16 %v46
  %v183 = vunpack.c.l.b16 %v47
  %v184 = vunpack.c.h.b16 %v47
  %v185 = vunpack.c.l.b16 %v48
  %v186 = vunpack.c.h.b16 %v48
  %v187 = vunpack.c.l.b16 %v49
  %v188 = vunpack.c.h.b16 %v49
  %v189 = vunpack.c.l.b16 %v50
  %v190 = vunpack.c.h.b16 %v50
  %v191 = vunpack.c.l.b16 %v51
  %v192 = vunpack.c.h.b16 %v51
  %v193 = vunpack.c.l.b16 %v52
  %v194 = vunpack.c.h.b16 %v52
  %v195 = vunpack.c.l.b16 %v53
  %v196 = vunpack.c.h.b16 %v53
  %v197 = vunpack.c.l.b16 %v54
  %v198 = vunpack.c.h.b16 %v54
  %v199 = vunpack.c.l.b16 %v55
  %v200 = vunpack.c.h.b16 %v55
  %v201 = vunpack.c.l.b16 %v56
  %v202 = vunpack.c.h.b16 %v56
  %v203 = vunpack.c.l.b16 %v57
  %v204 = vunpack.c.h.b16 %v57
  %v205 = vunpack.c.l.b16 %v58
  %v206 = vunpack.c.h.b16 %v58
  %v207 = vunpack.c.l.b16 %v59
  %v208 = vunpack.c.h.b16 %v59
  %v209 = vunpack.c.l.b16 %v60
  %v210 = vunpack.c.h.b16 %v60
  %v211 = vunpack.c.l.b16 %v61
  %v212 = vunpack.c.h.b16 %v61
  %v213 = vunpack.c.l.b16 %v62
  %v214 = vunpack.c.h.b16 %v62
  %v215 = vunpack.c.l.b16 %v63
  %v216 = vunpack.c.h.b16 %v63
  %v217 = vunpack.c.l.b16 %v64
  %v218 = vunpack.c.h.b16 %v64
  %v219 = vunpack.c.l.b16 %v65
  %v220 = vunpack.c.h.b16 %v65
  %v221 = vunpack.c.l.b16 %v66
  %v222 = vunpack.c.h.b16 %v66
  %v223 = vunpack.c.l.b16 %v67
  %v224 = vunpack.c.h.b16 %v67
  %v225 = vunpack.c.l.b16 %v68
  %v226 = vunpack.c.h.b16 %v68
  %v227 = vunpack.c.l.b16 %v69
  %v228 = vunpack.c.h.b16 %v69
  %v229 = vunpack.c.l.b16 %v70
  %v230 = vunpack.c.h.b16 %v70
  %v231 = vunpack.c.l.b16 %v71
  %v232 = vunpack.c.h.b16 %v71
  %v233 = vunpack.c.l.b16 %v72
  %v234 = vunpack.c.h.b16 %v72
  %v235 = vunpack.c.l.b16 %v73
  %v236 = vunpack.c.h.b16 %v73
  %v237 = vunpack.c.l.b16 %v74
  %v238 = vunpack.c.h.b16 %v74
  %v239 = vunpack.c.l.b16 %v75
  %v240 = vunpack.c.h.b16 %v75
  %v241 = vunpack.c.l.b16 %v76
  %v242 = vunpack.c.h.b16 %v76
  %v243 = vunpack.c.l.b16 %v77
  %v244 = vunpack.c.h.b16 %v77
  %v245 = vunpack.c.l.b16 %v78
  %v246 = vunpack.c.h.b16 %v78
  %v247 = vunpack.c.l.b16 %v79
  %v248 = vunpack.c.h.b16 %v79
  %v249 = vunpack.c.l.b16 %v80
  %v250 = vunpack.c.h.b16 %v80
  %v251 = vunpack.c.l.b16 %v81
  %v252 = vunpack.c.h.b16 %v81
  %v253 = vunpack.c.l.b16 %v82
  %v254 = vunpack.c.h.b16 %v82
  %v255 = vunpack.c.l.b16 %v83
  %v256 = vunpack.c.h.b16 %v83
  %v257 = vunpack.c.l.b16 %v84
  %v258 = vunpack.c.h.b16 %v84
  %v259 = vunpack.c.l.b16 %v85
  %v260 = vunpack.c.h.b16 %v85
  %v261 = vunpack.c.l.b16 %v86
  %v262 = vunpack.c.h.b16 %v86
  %v263 = vunpack.c.l.b16 %v87
  %v264 = vunpack.c.h.b16 %v87
  %v265 = vunpack.c.l.b16 %v88
  %v266 = vunpack.c.h.b16 %v88
  %v267 = vpack.c.b16 %v177, %v171
  %v268 = vpack.c.b16 %v178, %v172
  %v269 = vpack.c.b16 %v179, %v173
  %v270 = vpack.c.b16 %v180, %v174
  %v271 = vpack.c.b16 %v181, %v175
  %v272 = vpack.c.b16 %v182, %v176
  %v273 = vpack.c.b16 %v189, %v183
  %v274 = vpack.c.b16 %v190, %v184
  %v275 = vpack.c.b16 %v191, %v185
  %v276 = vpack.c.b16 %v192, %v186
  %v277 = vpack.c.b16 %v193, %v187
  %v278 = vpack.c.b16 %v194, %v188
  %v279 = vpack.c.b16 %v201, %v195
  %v280 = vpack.c.b16 %v202, %v196
  %v281 = vpack.c.b16 %v203, %v197
  %v282 = vpack.c.b16 %v204, %v198
  %v283 = vpack.c.b16 %v205, %v199
  %v284 = vpack.c.b16 %v206, %v200
  %v285 = vpack.c.b16 %v213, %v207
  %v286 = vpack.c.b16 %v214, %v208
  %v287 = vpack.c.b16 %v215, %v209
  %v288 = vpack.c.b16 %v216, %v210
  %v289 = vpack.c.b16 %v217, %v211
  %v290 = vpack.c.b16 %v218, %v212
  %v291 = vpack.c.b16 %v225, %v219
  %v292 = vpack.c.b16 %v226, %v220
  %v293 = vpack.c.b16 %v227, %v221
  %v294 = vpack.c.b16 %v228, %v222
  %v295 = vpack.c.b16 %v229, %v223
  %v296 = vpack.c.b16 %v230, %v224
  %v297 = vpack.c.b16 %v237, %v231
  %v298 = vpack.c.b16 %v238, %v232
  %v299 = vpack.c.b16 %v239, %v233
  %v300 = vpack.c.b16 %v240, %v234
  %v301 = vpack.c.b16 %v241, %v235
  %v302 = vpack.c.b16 %v242, %v236
  %v303 = vpack.c.b16 %v249, %v243
  %v304 = vpack.c.b16 %v250, %v244
  %v305 = vpack.c.b16 %v251, %v245
  %v306 = vpack.c.b16 %v252, %v246
  %v307 = vpack.c.b16 %v253, %v247
  %v308 = vpack.c.b16 %v254, %v248
  %v309 = vpack.c.b16 %v261, %v255
  %v310 = vpack.c.b16 %v262, %v256
  %v311 = vpack.c.b16 %v263, %v257
  %v312 = vpack.c.b16 %v264, %v258
  %v313 = vpack.c.b16 %v265, %v259
  %v314 = vpack.c.b16 %v266, %v260
  %363 = vmatprep.subr.bf16.mxu0 %v268
  %364 = vmatpush1.bf16.msra.mxu0 %v267
  %365 = vmatprep.subr.bf16.mxu0 %v274
  %366 = vmatpush1.bf16.msra.mxu0 %v273
  %367 = vmatprep.subr.bf16.mxu0 %v280
  %368 = vmatpush1.bf16.msra.mxu0 %v279
  %369 = vmatprep.subr.bf16.mxu0 %v286
  %370 = vmatpush1.bf16.msra.mxu0 %v285
  %371 = vmatprep.subr.bf16.mxu0 %v292
  %372 = vmatpush1.bf16.msra.mxu0 %v291
  %373 = vmatprep.subr.bf16.mxu0 %v298
  %374 = vmatpush1.bf16.msra.mxu0 %v297
  %375 = vmatprep.subr.bf16.mxu0 %v304
  %376 = vmatpush1.bf16.msra.mxu0 %v303
  %377 = vmatprep.subr.bf16.mxu0 %v310
  %378 = vmatpush1.bf16.msra.mxu0 %v309
  %379 = vmatprep.subr.bf16.mxu0 0
  %380 = vmatpush1.bf16.msra.mxu0 0
  %381 = vmatprep.subr.bf16.mxu0 0
  %382 = vmatpush1.bf16.msra.mxu0 0
  %383 = vmatprep.subr.bf16.mxu0 0
  %384 = vmatpush1.bf16.msra.mxu0 0
  %385 = vmatprep.subr.bf16.mxu0 0
  %386 = vmatpush1.bf16.msra.mxu0 0
  %387 = vmatprep.subr.bf16.mxu0 0
  %388 = vmatpush1.bf16.msra.mxu0 0
  %389 = vmatprep.subr.bf16.mxu0 0
  %390 = vmatpush1.bf16.msra.mxu0 0
  %391 = vmatprep.subr.bf16.mxu0 0
  %392 = vmatpush1.bf16.msra.mxu0 0
  %393 = vmatprep.subr.bf16.mxu0 0
  %394 = vmatpush1.bf16.msra.mxu0 0
  %395 = vmatprep.mubr.bf16.mxu0 0
  %396 = vmatmul.mubr.bf16.gmra.mrb[0].mxu0 %v111
  %v397 = vpop.f32.mrb[0].mxu0
  %v398 = vadd.f32 0.0, %v397
  %v399 = vpop.f32.mrb[0].mxu0
  %v400 = vadd.f32 0.0, %v399
  %v401 = vpop.f32.mrb[0].mxu0
  %v402 = vadd.f32 0.0, %v401
  %v403 = vpop.f32.mrb[0].mxu0
  %v404 = vadd.f32 0.0, %v403
  %405 = vmatprep.mubr.bf16.mxu0 0
  %406 = vmatmul.mubr.bf16.gmra.mrb[0].mxu0 %v112
  %v407 = vpop.f32.mrb[0].mxu0
  %v408 = vadd.f32 0.0, %v407
  %v409 = vpop.f32.mrb[0].mxu0
  %v410 = vadd.f32 0.0, %v409
  %v411 = vpop.f32.mrb[0].mxu0
  %v412 = vadd.f32 0.0, %v411
  %v413 = vpop.f32.mrb[0].mxu0
  %v414 = vadd.f32 0.0, %v413
  %415 = vmatprep.mubr.bf16.mxu0 0
  %416 = vmatmul.mubr.bf16.gmra.mrb[0].mxu0 %v113
  %v417 = vpop.f32.mrb[0].mxu0
  %v418 = vadd.f32 0.0, %v417
  %v419 = vpop.f32.mrb[0].mxu0
  %v420 = vadd.f32 0.0, %v419
  %v421 = vpop.f32.mrb[0].mxu0
  %v422 = vadd.f32 0.0, %v421
  %v423 = vpop.f32.mrb[0].mxu0
  %v424 = vadd.f32 0.0, %v423
  %425 = vmatprep.mubr.bf16.mxu0 0
  %426 = vmatmul.mubr.bf16.gmra.mrb[0].mxu0 %v114
  %v427 = vpop.f32.mrb[0].mxu0
  %v428 = vadd.f32 0.0, %v427
  %v429 = vpop.f32.mrb[0].mxu0
  %v430 = vadd.f32 0.0, %v429
  %v431 = vpop.f32.mrb[0].mxu0
  %v432 = vadd.f32 0.0, %v431
  %v433 = vpop.f32.mrb[0].mxu0
  %v434 = vadd.f32 0.0, %v433
  %435 = vmatprep.mubr.bf16.mxu0 0
  %436 = vmatmul.mubr.bf16.gmra.mrb[0].mxu0 %v115
  %v437 = vpop.f32.mrb[0].mxu0
  %v438 = vadd.f32 0.0, %v437
  %v439 = vpop.f32.mrb[0].mxu0
  %v440 = vadd.f32 0.0, %v439
  %v441 = vpop.f32.mrb[0].mxu0
  %v442 = vadd.f32 0.0, %v441
  %v443 = vpop.f32.mrb[0].mxu0
  %v444 = vadd.f32 0.0, %v443
  %445 = vmatprep.mubr.bf16.mxu0 0
  %446 = vmatmul.mubr.bf16.gmra.mrb[0].mxu0 %v116
  %v447 = vpop.f32.mrb[0].mxu0
  %v448 = vadd.f32 0.0, %v447
  %v449 = vpop.f32.mrb[0].mxu0
  %v450 = vadd.f32 0.0, %v449
  %v451 = vpop.f32.mrb[0].mxu0
  %v452 = vpop.f32.mrb[0].mxu0
  %453 = vdwg.mxu0
  %454 = vmatprep.subr.bf16.mxu0 %v270
  %455 = vmatpush1.bf16.msra.mxu0 %v269
  %456 = vmatprep.subr.bf16.mxu0 %v276
  %457 = vmatpush1.bf16.msra.mxu0 %v275
  %458 = vmatprep.subr.bf16.mxu0 %v282
  %459 = vmatpush1.bf16.msra.mxu0 %v281
  %460 = vmatprep.subr.bf16.mxu0 %v288
  %461 = vmatpush1.bf16.msra.mxu0 %v287
  %462 = vmatprep.subr.bf16.mxu0 %v294
  %463 = vmatpush1.bf16.msra.mxu0 %v293
  %464 = vmatprep.subr.bf16.mxu0 %v300
  %465 = vmatpush1.bf16.msra.mxu0 %v299
  %466 = vmatprep.subr.bf16.mxu0 %v306
  %467 = vmatpush1.bf16.msra.mxu0 %v305
  %468 = vmatprep.subr.bf16.mxu0 %v312
  %469 = vmatpush1.bf16.msra.mxu0 %v311
  %470 = vmatprep.subr.bf16.mxu0 0
  %471 = vmatpush1.bf16.msra.mxu0 0
  %472 = vmatprep.subr.bf16.mxu0 0
  %473 = vmatpush1.bf16.msra.mxu0 0
  %474 = vmatprep.subr.bf16.mxu0 0
  %475 = vmatpush1.bf16.msra.mxu0 0
  %476 = vmatprep.subr.bf16.mxu0 0
  %477 = vmatpush1.bf16.msra.mxu0 0
  %478 = vmatprep.subr.bf16.mxu0 0
  %479 = vmatpush1.bf16.msra.mxu0 0
  %480 = vmatprep.subr.bf16.mxu0 0
  %481 = vmatpush1.bf16.msra.mxu0 0
  %482 = vmatprep.subr.bf16.mxu0 0
  %483 = vmatpush1.bf16.msra.mxu0 0
  %484 = vmatprep.subr.bf16.mxu0 0
  %485 = vmatpush1.bf16.msra.mxu0 0
  %486 = vmatprep.mubr.bf16.mxu0 0
  %487 = vmatmul.mubr.bf16.gmra.mrb[0].mxu0 %v111
  %v488 = vpop.f32.mrb[0].mxu0
  %v489 = vadd.f32 0.0, %v488
  %v490 = vpop.f32.mrb[0].mxu0
  %v491 = vadd.f32 0.0, %v490
  %v492 = vpop.f32.mrb[0].mxu0
  %v493 = vadd.f32 0.0, %v492
  %v494 = vpop.f32.mrb[0].mxu0
  %v495 = vadd.f32 0.0, %v494
  %496 = vmatprep.mubr.bf16.mxu0 0
  %497 = vmatmul.mubr.bf16.gmra.mrb[0].mxu0 %v112
  %v498 = vpop.f32.mrb[0].mxu0
  %v499 = vadd.f32 0.0, %v498
  %v500 = vpop.f32.mrb[0].mxu0
  %v501 = vadd.f32 0.0, %v500
  %v502 = vpop.f32.mrb[0].mxu0
  %v503 = vadd.f32 0.0, %v502
  %v504 = vpop.f32.mrb[0].mxu0
  %v505 = vadd.f32 0.0, %v504
  %506 = vmatprep.mubr.bf16.mxu0 0
  %507 = vmatmul.mubr.bf16.gmra.mrb[0].mxu0 %v113
  %v508 = vpop.f32.mrb[0].mxu0
  %v509 = vadd.f32 0.0, %v508
  %v510 = vpop.f32.mrb[0].mxu0
  %v511 = vadd.f32 0.0, %v510
  %v512 = vpop.f32.mrb[0].mxu0
  %v513 = vadd.f32 0.0, %v512
  %v514 = vpop.f32.mrb[0].mxu0
  %v515 = vadd.f32 0.0, %v514
  %516 = vmatprep.mubr.bf16.mxu0 0
  %517 = vmatmul.mubr.bf16.gmra.mrb[0].mxu0 %v114
  %v518 = vpop.f32.mrb[0].mxu0
  %v519 = vadd.f32 0.0, %v518
  %v520 = vpop.f32.mrb[0].mxu0
  %v521 = vadd.f32 0.0, %v520
  %v522 = vpop.f32.mrb[0].mxu0
  %v523 = vadd.f32 0.0, %v522
  %v524 = vpop.f32.mrb[0].mxu0
  %v525 = vadd.f32 0.0, %v524
  %526 = vmatprep.mubr.bf16.mxu0 0
  %527 = vmatmul.mubr.bf16.gmra.mrb[0].mxu0 %v115
  %v528 = vpop.f32.mrb[0].mxu0
  %v529 = vadd.f32 0.0, %v528
  %v530 = vpop.f32.mrb[0].mxu0
  %v531 = vadd.f32 0.0, %v530
  %v532 = vpop.f32.mrb[0].mxu0
  %v533 = vadd.f32 0.0, %v532
  %v534 = vpop.f32.mrb[0].mxu0
  %v535 = vadd.f32 0.0, %v534
  %536 = vmatprep.mubr.bf16.mxu0 0
  %537 = vmatmul.mubr.bf16.gmra.mrb[0].mxu0 %v116
  %v538 = vpop.f32.mrb[0].mxu0
  %v539 = vadd.f32 0.0, %v538
  %v540 = vpop.f32.mrb[0].mxu0
  %v541 = vadd.f32 0.0, %v540
  %v542 = vpop.f32.mrb[0].mxu0
  %v543 = vpop.f32.mrb[0].mxu0
  %544 = vdwg.mxu0
  %545 = vmatprep.subr.bf16.mxu0 %v272
  %546 = vmatpush1.bf16.msra.mxu0 %v271
  %547 = vmatprep.subr.bf16.mxu0 %v278
  %548 = vmatpush1.bf16.msra.mxu0 %v277
  %549 = vmatprep.subr.bf16.mxu0 %v284
  %550 = vmatpush1.bf16.msra.mxu0 %v283
  %551 = vmatprep.subr.bf16.mxu0 %v290
  %552 = vmatpush1.bf16.msra.mxu0 %v289
  %553 = vmatprep.subr.bf16.mxu0 %v296
  %554 = vmatpush1.bf16.msra.mxu0 %v295
  %555 = vmatprep.subr.bf16.mxu0 %v302
  %556 = vmatpush1.bf16.msra.mxu0 %v301
  %557 = vmatprep.subr.bf16.mxu0 %v308
  %558 = vmatpush1.bf16.msra.mxu0 %v307
  %559 = vmatprep.subr.bf16.mxu0 %v314
  %560 = vmatpush1.bf16.msra.mxu0 %v313
  %561 = vmatprep.subr.bf16.mxu0 0
  %562 = vmatpush1.bf16.msra.mxu0 0
  %563 = vmatprep.subr.bf16.mxu0 0
  %564 = vmatpush1.bf16.msra.mxu0 0
  %565 = vmatprep.subr.bf16.mxu0 0
  %566 = vmatpush1.bf16.msra.mxu0 0
  %567 = vmatprep.subr.bf16.mxu0 0
  %568 = vmatpush1.bf16.msra.mxu0 0
  %569 = vmatprep.subr.bf16.mxu0 0
  %570 = vmatpush1.bf16.msra.mxu0 0
  %571 = vmatprep.subr.bf16.mxu0 0
  %572 = vmatpush1.bf16.msra.mxu0 0
  %573 = vmatprep.subr.bf16.mxu0 0
  %574 = vmatpush1.bf16.msra.mxu0 0
  %575 = vmatprep.subr.bf16.mxu0 0
  %576 = vmatpush1.bf16.msra.mxu0 0
  %577 = vmatprep.mubr.bf16.mxu0 0
  %578 = vmatmul.mubr.bf16.gmra.mrb[0].mxu0 %v111
  %v579 = vpop.f32.mrb[0].mxu0
  %v580 = vadd.f32 0.0, %v579
  %v581 = vpop.f32.mrb[0].mxu0
  %v582 = vadd.f32 0.0, %v581
  %v583 = vpop.f32.mrb[0].mxu0
  %v584 = vadd.f32 0.0, %v583
  %v585 = vpop.f32.mrb[0].mxu0
  %v586 = vadd.f32 0.0, %v585
  %587 = vmatprep.mubr.bf16.mxu0 0
  %588 = vmatmul.mubr.bf16.gmra.mrb[0].mxu0 %v112
  %v589 = vpop.f32.mrb[0].mxu0
  %v590 = vadd.f32 0.0, %v589
  %v591 = vpop.f32.mrb[0].mxu0
  %v592 = vadd.f32 0.0, %v591
  %v593 = vpop.f32.mrb[0].mxu0
  %v594 = vadd.f32 0.0, %v593
  %v595 = vpop.f32.mrb[0].mxu0
  %v596 = vadd.f32 0.0, %v595
  %597 = vmatprep.mubr.bf16.mxu0 0
  %598 = vmatmul.mubr.bf16.gmra.mrb[0].mxu0 %v113
  %v599 = vpop.f32.mrb[0].mxu0
  %v600 = vadd.f32 0.0, %v599
  %v601 = vpop.f32.mrb[0].mxu0
  %v602 = vadd.f32 0.0, %v601
  %v603 = vpop.f32.mrb[0].mxu0
  %v604 = vadd.f32 0.0, %v603
  %v605 = vpop.f32.mrb[0].mxu0
  %v606 = vadd.f32 0.0, %v605
  %607 = vmatprep.mubr.bf16.mxu0 0
  %608 = vmatmul.mubr.bf16.gmra.mrb[0].mxu0 %v114
  %v609 = vpop.f32.mrb[0].mxu0
  %v610 = vadd.f32 0.0, %v609
  %v611 = vpop.f32.mrb[0].mxu0
  %v612 = vadd.f32 0.0, %v611
  %v613 = vpop.f32.mrb[0].mxu0
  %v614 = vadd.f32 0.0, %v613
  %v615 = vpop.f32.mrb[0].mxu0
  %v616 = vadd.f32 0.0, %v615
  %617 = vmatprep.mubr.bf16.mxu0 0
  %618 = vmatmul.mubr.bf16.gmra.mrb[0].mxu0 %v115
  %v619 = vpop.f32.mrb[0].mxu0
  %v620 = vadd.f32 0.0, %v619
  %v621 = vpop.f32.mrb[0].mxu0
  %v622 = vadd.f32 0.0, %v621
  %v623 = vpop.f32.mrb[0].mxu0
  %v624 = vadd.f32 0.0, %v623
  %v625 = vpop.f32.mrb[0].mxu0
  %v626 = vadd.f32 0.0, %v625
  %627 = vmatprep.mubr.bf16.mxu0 0
  %628 = vmatmul.mubr.bf16.gmra.mrb[0].mxu0 %v116
  %v629 = vpop.f32.mrb[0].mxu0
  %v630 = vadd.f32 0.0, %v629
  %v631 = vpop.f32.mrb[0].mxu0
  %v632 = vadd.f32 0.0, %v631
  %v633 = vpop.f32.mrb[0].mxu0
  %v634 = vpop.f32.mrb[0].mxu0
  %635 = vdwg.mxu0
  %v636 = vpack.c.bf16 %v402, %v398
  %v637 = vpack.c.bf16 %v404, %v400
  %v638 = vpack.c.bf16 %v493, %v489
  %v639 = vpack.c.bf16 %v495, %v491
  %v640 = vpack.c.bf16 %v584, %v580
  %v641 = vpack.c.bf16 %v586, %v582
  %v642 = vpack.c.bf16 %v412, %v408
  %v643 = vpack.c.bf16 %v414, %v410
  %v644 = vpack.c.bf16 %v503, %v499
  %v645 = vpack.c.bf16 %v505, %v501
  %v646 = vpack.c.bf16 %v594, %v590
  %v647 = vpack.c.bf16 %v596, %v592
  %v648 = vpack.c.bf16 %v422, %v418
  %v649 = vpack.c.bf16 %v424, %v420
  %v650 = vpack.c.bf16 %v513, %v509
  %v651 = vpack.c.bf16 %v515, %v511
  %v652 = vpack.c.bf16 %v604, %v600
  %v653 = vpack.c.bf16 %v606, %v602
  %v654 = vpack.c.bf16 %v432, %v428
  %v655 = vpack.c.bf16 %v434, %v430
  %v656 = vpack.c.bf16 %v523, %v519
  %v657 = vpack.c.bf16 %v525, %v521
  %v658 = vpack.c.bf16 %v614, %v610
  %v659 = vpack.c.bf16 %v616, %v612
  %v660 = vpack.c.bf16 %v442, %v438
  %v661 = vpack.c.bf16 %v444, %v440
  %v662 = vpack.c.bf16 %v533, %v529
  %v663 = vpack.c.bf16 %v535, %v531
  %v664 = vpack.c.bf16 %v624, %v620
  %v665 = vpack.c.bf16 %v626, %v622
  %v666 = vpack.c.bf16 %v448, %v448
  %v667 = vpack.c.bf16 %v450, %v450
  %v668 = vpack.c.bf16 %v539, %v539
  %v669 = vpack.c.bf16 %v541, %v541
  %v670 = vpack.c.bf16 %v630, %v630
  %v671 = vpack.c.bf16 %v632, %v632
  %v672 = vld [vmem:[%s3] sm:$0xf]
  %v673 = vld [vmem:[%s3 + $0x4] sm:$0xf]
  %v674 = vld [vmem:[%s3 + $0x8] sm:$0xf]
  %v675 = vld [vmem:[%s3 + $0xc] sm:$0xf]
  %v676 = vld [vmem:[%s3 + $0x10] sm:$0xf]
  %v677 = vld [vmem:[%s3 + $0x14] sm:$0xf]
  %v678 = vld [vmem:[%s3 + $0x18] sm:$0xf]
  %v679 = vld [vmem:[%s3 + $0x1c] sm:$0xf]
  %v680 = vld [vmem:[%s3 + $0x20] sm:$0xf]
  %v681 = vld [vmem:[%s3 + $0x24] sm:$0xf]
  %v682 = vld [vmem:[%s3 + $0x28] sm:$0x3]
  %s683 = scalar_lea.vmem %s3, 44
  %v684 = vld [vmem:[%s683] sm:$0xf]
  %v685 = vld [vmem:[%s683 + $0x4] sm:$0xf]
  %v686 = vld [vmem:[%s683 + $0x8] sm:$0xf]
  %v687 = vld [vmem:[%s683 + $0xc] sm:$0xf]
  %v688 = vld [vmem:[%s683 + $0x10] sm:$0xf]
  %v689 = vld [vmem:[%s683 + $0x14] sm:$0xf]
  %v690 = vld [vmem:[%s683 + $0x18] sm:$0xf]
  %v691 = vld [vmem:[%s683 + $0x1c] sm:$0xf]
  %v692 = vld [vmem:[%s683 + $0x20] sm:$0xf]
  %v693 = vld [vmem:[%s683 + $0x24] sm:$0xf]
  %v694 = vld [vmem:[%s683 + $0x28] sm:$0x3]
  %v706 = vunpack.c.l.b16 %v684
  %v707 = vunpack.c.l.b16 %v685
  %v708 = vunpack.c.l.b16 %v686
  %v709 = vunpack.c.l.b16 %v687
  %v710 = vunpack.c.l.b16 %v688
  %v711 = vunpack.c.l.b16 %v689
  %v712 = vunpack.c.l.b16 %v690
  %v713 = vunpack.c.l.b16 %v691
  %v714 = vunpack.c.l.b16 %v692
  %v715 = vunpack.c.l.b16 %v693
  %v716 = vunpack.c.l.b16 %v694
  %v717 = vpack.c.b16 %v707, %v706
  %v718 = vpack.c.b16 %v709, %v708
  %v719 = vpack.c.b16 %v711, %v710
  %v720 = vpack.c.b16 %v713, %v712
  %v721 = vpack.c.b16 %v715, %v714
  %v722 = vpack.c.b16 %v716, %v716
  %vm723 = vcmask 687104
  %v725 = vsel %vm723, %v717, 0
  %v728 = vsel %vm723, %v718, 0
  %v731 = vsel %vm723, %v719, 0
  %v734 = vsel %vm723, %v720, 0
  %v737 = vsel %vm723, %v721, 0
  %v740 = vsel %vm723, %v722, 0
  %vm742 = vcmask 1041408
  %v744 = vsel %vm742, %v668, 0
  %v747 = vsel %vm742, %v669, 0
  %749 = vmatprep.subr.bf16.mxu0 %v639
  %750 = vmatpush1.bf16.msra.mxu0 %v638
  %751 = vmatprep.subr.bf16.mxu0 %v645
  %752 = vmatpush1.bf16.msra.mxu0 %v644
  %753 = vmatprep.subr.bf16.mxu0 %v651
  %754 = vmatpush1.bf16.msra.mxu0 %v650
  %755 = vmatprep.subr.bf16.mxu0 %v657
  %756 = vmatpush1.bf16.msra.mxu0 %v656
  %757 = vmatprep.subr.bf16.mxu0 %v663
  %758 = vmatpush1.bf16.msra.mxu0 %v662
  %759 = vmatprep.subr.bf16.mxu0 %v747
  %760 = vmatpush1.bf16.msra.mxu0 %v744
  %761 = vmatprep.subr.bf16.mxu0 0
  %762 = vmatpush1.bf16.msra.mxu0 0
  %763 = vmatprep.subr.bf16.mxu0 0
  %764 = vmatpush1.bf16.msra.mxu0 0
  %765 = vmatprep.subr.bf16.mxu0 0
  %766 = vmatpush1.bf16.msra.mxu0 0
  %767 = vmatprep.subr.bf16.mxu0 0
  %768 = vmatpush1.bf16.msra.mxu0 0
  %769 = vmatprep.subr.bf16.mxu0 0
  %770 = vmatpush1.bf16.msra.mxu0 0
  %771 = vmatprep.subr.bf16.mxu0 0
  %772 = vmatpush1.bf16.msra.mxu0 0
  %773 = vmatprep.subr.bf16.mxu0 0
  %774 = vmatpush1.bf16.msra.mxu0 0
  %775 = vmatprep.subr.bf16.mxu0 0
  %776 = vmatpush1.bf16.msra.mxu0 0
  %777 = vmatprep.subr.bf16.mxu0 0
  %778 = vmatpush1.bf16.msra.mxu0 0
  %779 = vmatprep.subr.bf16.mxu0 0
  %780 = vmatpush1.bf16.msra.mxu0 0
  %781 = vmatprep.mubr.bf16.mxu0 0
  %782 = vmatmul.mubr.bf16.gmra.mrb[0].mxu0 %v725
  %v783 = vpop.f32.mrb[0].mxu0
  %v784 = vadd.f32 0.0, %v783
  %v785 = vpop.f32.mrb[0].mxu0
  %v786 = vadd.f32 0.0, %v785
  %v787 = vpop.f32.mrb[0].mxu0
  %v788 = vadd.f32 0.0, %v787
  %v789 = vpop.f32.mrb[0].mxu0
  %v790 = vadd.f32 0.0, %v789
  %791 = vmatprep.mubr.bf16.mxu0 0
  %792 = vmatmul.mubr.bf16.gmra.mrb[0].mxu0 %v728
  %v793 = vpop.f32.mrb[0].mxu0
  %v794 = vadd.f32 0.0, %v793
  %v795 = vpop.f32.mrb[0].mxu0
  %v796 = vadd.f32 0.0, %v795
  %v797 = vpop.f32.mrb[0].mxu0
  %v798 = vadd.f32 0.0, %v797
  %v799 = vpop.f32.mrb[0].mxu0
  %v800 = vadd.f32 0.0, %v799
  %801 = vmatprep.mubr.bf16.mxu0 0
  %802 = vmatmul.mubr.bf16.gmra.mrb[0].mxu0 %v731
  %v803 = vpop.f32.mrb[0].mxu0
  %v804 = vadd.f32 0.0, %v803
  %v805 = vpop.f32.mrb[0].mxu0
  %v806 = vadd.f32 0.0, %v805
  %v807 = vpop.f32.mrb[0].mxu0
  %v808 = vadd.f32 0.0, %v807
  %v809 = vpop.f32.mrb[0].mxu0
  %v810 = vadd.f32 0.0, %v809
  %811 = vmatprep.mubr.bf16.mxu0 0
  %812 = vmatmul.mubr.bf16.gmra.mrb[0].mxu0 %v734
  %v813 = vpop.f32.mrb[0].mxu0
  %v814 = vadd.f32 0.0, %v813
  %v815 = vpop.f32.mrb[0].mxu0
  %v816 = vadd.f32 0.0, %v815
  %v817 = vpop.f32.mrb[0].mxu0
  %v818 = vadd.f32 0.0, %v817
  %v819 = vpop.f32.mrb[0].mxu0
  %v820 = vadd.f32 0.0, %v819
  %821 = vmatprep.mubr.bf16.mxu0 0
  %822 = vmatmul.mubr.bf16.gmra.mrb[0].mxu0 %v737
  %v823 = vpop.f32.mrb[0].mxu0
  %v824 = vadd.f32 0.0, %v823
  %v825 = vpop.f32.mrb[0].mxu0
  %v826 = vadd.f32 0.0, %v825
  %v827 = vpop.f32.mrb[0].mxu0
  %v828 = vadd.f32 0.0, %v827
  %v829 = vpop.f32.mrb[0].mxu0
  %v830 = vadd.f32 0.0, %v829
  %831 = vmatprep.mubr.bf16.mxu0 0
  %832 = vmatmul.mubr.bf16.gmra.mrb[0].mxu0 %v740
  %v833 = vpop.f32.mrb[0].mxu0
  %v834 = vadd.f32 0.0, %v833
  %v835 = vpop.f32.mrb[0].mxu0
  %v836 = vadd.f32 0.0, %v835
  %v837 = vpop.f32.mrb[0].mxu0
  %v838 = vpop.f32.mrb[0].mxu0
  %839 = vdwg.mxu0
  %v851 = vunpack.c.l.b16 %v672
  %v852 = vunpack.c.l.b16 %v673
  %v853 = vunpack.c.l.b16 %v674
  %v854 = vunpack.c.l.b16 %v675
  %v855 = vunpack.c.l.b16 %v676
  %v856 = vunpack.c.l.b16 %v677
  %v857 = vunpack.c.l.b16 %v678
  %v858 = vunpack.c.l.b16 %v679
  %v859 = vunpack.c.l.b16 %v680
  %v860 = vunpack.c.l.b16 %v681
  %v861 = vunpack.c.l.b16 %v682
  %v862 = vpack.c.b16 %v852, %v851
  %v863 = vpack.c.b16 %v854, %v853
  %v864 = vpack.c.b16 %v856, %v855
  %v865 = vpack.c.b16 %v858, %v857
  %v866 = vpack.c.b16 %v860, %v859
  %v867 = vpack.c.b16 %v861, %v861
  %v869 = vsel %vm723, %v862, 0
  %v872 = vsel %vm723, %v863, 0
  %v875 = vsel %vm723, %v864, 0
  %v878 = vsel %vm723, %v865, 0
  %v881 = vsel %vm723, %v866, 0
  %v884 = vsel %vm723, %v867, 0
  %v887 = vsel %vm742, %v666, 0
  %v890 = vsel %vm742, %v667, 0
  %892 = vmatprep.subr.bf16.mxu0 %v637
  %893 = vmatpush1.bf16.msra.mxu0 %v636
  %894 = vmatprep.subr.bf16.mxu0 %v643
  %895 = vmatpush1.bf16.msra.mxu0 %v642
  %896 = vmatprep.subr.bf16.mxu0 %v649
  %897 = vmatpush1.bf16.msra.mxu0 %v648
  %898 = vmatprep.subr.bf16.mxu0 %v655
  %899 = vmatpush1.bf16.msra.mxu0 %v654
  %900 = vmatprep.subr.bf16.mxu0 %v661
  %901 = vmatpush1.bf16.msra.mxu0 %v660
  %902 = vmatprep.subr.bf16.mxu0 %v890
  %903 = vmatpush1.bf16.msra.mxu0 %v887
  %904 = vmatprep.subr.bf16.mxu0 0
  %905 = vmatpush1.bf16.msra.mxu0 0
  %906 = vmatprep.subr.bf16.mxu0 0
  %907 = vmatpush1.bf16.msra.mxu0 0
  %908 = vmatprep.subr.bf16.mxu0 0
  %909 = vmatpush1.bf16.msra.mxu0 0
  %910 = vmatprep.subr.bf16.mxu0 0
  %911 = vmatpush1.bf16.msra.mxu0 0
  %912 = vmatprep.subr.bf16.mxu0 0
  %913 = vmatpush1.bf16.msra.mxu0 0
  %914 = vmatprep.subr.bf16.mxu0 0
  %915 = vmatpush1.bf16.msra.mxu0 0
  %916 = vmatprep.subr.bf16.mxu0 0
  %917 = vmatpush1.bf16.msra.mxu0 0
  %918 = vmatprep.subr.bf16.mxu0 0
  %919 = vmatpush1.bf16.msra.mxu0 0
  %920 = vmatprep.subr.bf16.mxu0 0
  %921 = vmatpush1.bf16.msra.mxu0 0
  %922 = vmatprep.subr.bf16.mxu0 0
  %923 = vmatpush1.bf16.msra.mxu0 0
  %924 = vmatprep.mubr.bf16.mxu0 0
  %925 = vmatmul.mubr.bf16.gmra.mrb[0].mxu0 %v869
  %v926 = vpop.f32.mrb[0].mxu0
  %v927 = vadd.f32 %v784, %v926
  %v928 = vpop.f32.mrb[0].mxu0
  %v929 = vadd.f32 %v786, %v928
  %v930 = vpop.f32.mrb[0].mxu0
  %v931 = vadd.f32 %v788, %v930
  %v932 = vpop.f32.mrb[0].mxu0
  %v933 = vadd.f32 %v790, %v932
  %934 = vmatprep.mubr.bf16.mxu0 0
  %935 = vmatmul.mubr.bf16.gmra.mrb[0].mxu0 %v872
  %v936 = vpop.f32.mrb[0].mxu0
  %v937 = vadd.f32 %v794, %v936
  %v938 = vpop.f32.mrb[0].mxu0
  %v939 = vadd.f32 %v796, %v938
  %v940 = vpop.f32.mrb[0].mxu0
  %v941 = vadd.f32 %v798, %v940
  %v942 = vpop.f32.mrb[0].mxu0
  %v943 = vadd.f32 %v800, %v942
  %944 = vmatprep.mubr.bf16.mxu0 0
  %945 = vmatmul.mubr.bf16.gmra.mrb[0].mxu0 %v875
  %v946 = vpop.f32.mrb[0].mxu0
  %v947 = vadd.f32 %v804, %v946
  %v948 = vpop.f32.mrb[0].mxu0
  %v949 = vadd.f32 %v806, %v948
  %v950 = vpop.f32.mrb[0].mxu0
  %v951 = vadd.f32 %v808, %v950
  %v952 = vpop.f32.mrb[0].mxu0
  %v953 = vadd.f32 %v810, %v952
  %954 = vmatprep.mubr.bf16.mxu0 0
  %955 = vmatmul.mubr.bf16.gmra.mrb[0].mxu0 %v878
  %v956 = vpop.f32.mrb[0].mxu0
  %v957 = vadd.f32 %v814, %v956
  %v958 = vpop.f32.mrb[0].mxu0
  %v959 = vadd.f32 %v816, %v958
  %v960 = vpop.f32.mrb[0].mxu0
  %v961 = vadd.f32 %v818, %v960
  %v962 = vpop.f32.mrb[0].mxu0
  %v963 = vadd.f32 %v820, %v962
  %964 = vmatprep.mubr.bf16.mxu0 0
  %965 = vmatmul.mubr.bf16.gmra.mrb[0].mxu0 %v881
  %v966 = vpop.f32.mrb[0].mxu0
  %v967 = vadd.f32 %v824, %v966
  %v968 = vpop.f32.mrb[0].mxu0
  %v969 = vadd.f32 %v826, %v968
  %v970 = vpop.f32.mrb[0].mxu0
  %v971 = vadd.f32 %v828, %v970
  %v972 = vpop.f32.mrb[0].mxu0
  %v973 = vadd.f32 %v830, %v972
  %974 = vmatprep.mubr.bf16.mxu0 0
  %975 = vmatmul.mubr.bf16.gmra.mrb[0].mxu0 %v884
  %v976 = vpop.f32.mrb[0].mxu0
  %v977 = vadd.f32 %v834, %v976
  %v978 = vpop.f32.mrb[0].mxu0
  %v979 = vadd.f32 %v836, %v978
  %v980 = vpop.f32.mrb[0].mxu0
  %v981 = vpop.f32.mrb[0].mxu0
  %982 = vdwg.mxu0
  %s983 = scalar_lea.vmem %s3, 88
  %v984 = vld [vmem:[%s983] sm:$0xf]
  %v985 = vld [vmem:[%s983 + $0x4] sm:$0xf]
  %v986 = vld [vmem:[%s983 + $0x8] sm:$0xf]
  %v987 = vld [vmem:[%s983 + $0xc] sm:$0xf]
  %v988 = vld [vmem:[%s983 + $0x10] sm:$0xf]
  %v989 = vld [vmem:[%s983 + $0x14] sm:$0xf]
  %v990 = vld [vmem:[%s983 + $0x18] sm:$0xf]
  %v991 = vld [vmem:[%s983 + $0x1c] sm:$0xf]
  %v992 = vld [vmem:[%s983 + $0x20] sm:$0xf]
  %v993 = vld [vmem:[%s983 + $0x24] sm:$0xf]
  %v994 = vld [vmem:[%s983 + $0x28] sm:$0x3]
  %v1006 = vunpack.c.l.b16 %v984
  %v1007 = vunpack.c.l.b16 %v985
  %v1008 = vunpack.c.l.b16 %v986
  %v1009 = vunpack.c.l.b16 %v987
  %v1010 = vunpack.c.l.b16 %v988
  %v1011 = vunpack.c.l.b16 %v989
  %v1012 = vunpack.c.l.b16 %v990
  %v1013 = vunpack.c.l.b16 %v991
  %v1014 = vunpack.c.l.b16 %v992
  %v1015 = vunpack.c.l.b16 %v993
  %v1016 = vunpack.c.l.b16 %v994
  %v1017 = vpack.c.b16 %v1007, %v1006
  %v1018 = vpack.c.b16 %v1009, %v1008
  %v1019 = vpack.c.b16 %v1011, %v1010
  %v1020 = vpack.c.b16 %v1013, %v1012
  %v1021 = vpack.c.b16 %v1015, %v1014
  %v1022 = vpack.c.b16 %v1016, %v1016
  %v1024 = vsel %vm723, %v1017, 0
  %v1027 = vsel %vm723, %v1018, 0
  %v1030 = vsel %vm723, %v1019, 0
  %v1033 = vsel %vm723, %v1020, 0
  %v1036 = vsel %vm723, %v1021, 0
  %v1039 = vsel %vm723, %v1022, 0
  %v1042 = vsel %vm742, %v670, 0
  %v1045 = vsel %vm742, %v671, 0
  %1047 = vmatprep.subr.bf16.mxu0 %v641
  %1048 = vmatpush1.bf16.msra.mxu0 %v640
  %1049 = vmatprep.subr.bf16.mxu0 %v647
  %1050 = vmatpush1.bf16.msra.mxu0 %v646
  %1051 = vmatprep.subr.bf16.mxu0 %v653
  %1052 = vmatpush1.bf16.msra.mxu0 %v652
  %1053 = vmatprep.subr.bf16.mxu0 %v659
  %1054 = vmatpush1.bf16.msra.mxu0 %v658
  %1055 = vmatprep.subr.bf16.mxu0 %v665
  %1056 = vmatpush1.bf16.msra.mxu0 %v664
  %1057 = vmatprep.subr.bf16.mxu0 %v1045
  %1058 = vmatpush1.bf16.msra.mxu0 %v1042
  %1059 = vmatprep.subr.bf16.mxu0 0
  %1060 = vmatpush1.bf16.msra.mxu0 0
  %1061 = vmatprep.subr.bf16.mxu0 0
  %1062 = vmatpush1.bf16.msra.mxu0 0
  %1063 = vmatprep.subr.bf16.mxu0 0
  %1064 = vmatpush1.bf16.msra.mxu0 0
  %1065 = vmatprep.subr.bf16.mxu0 0
  %1066 = vmatpush1.bf16.msra.mxu0 0
  %1067 = vmatprep.subr.bf16.mxu0 0
  %1068 = vmatpush1.bf16.msra.mxu0 0
  %1069 = vmatprep.subr.bf16.mxu0 0
  %1070 = vmatpush1.bf16.msra.mxu0 0
  %1071 = vmatprep.subr.bf16.mxu0 0
  %1072 = vmatpush1.bf16.msra.mxu0 0
  %1073 = vmatprep.subr.bf16.mxu0 0
  %1074 = vmatpush1.bf16.msra.mxu0 0
  %1075 = vmatprep.subr.bf16.mxu0 0
  %1076 = vmatpush1.bf16.msra.mxu0 0
  %1077 = vmatprep.subr.bf16.mxu0 0
  %1078 = vmatpush1.bf16.msra.mxu0 0
  %1079 = vmatprep.mubr.bf16.mxu0 0
  %1080 = vmatmul.mubr.bf16.gmra.mrb[0].mxu0 %v1024
  %v1081 = vpop.f32.mrb[0].mxu0
  %v1082 = vadd.f32 0.0, %v1081
  %v1083 = vpop.f32.mrb[0].mxu0
  %v1084 = vadd.f32 0.0, %v1083
  %v1085 = vpop.f32.mrb[0].mxu0
  %v1086 = vadd.f32 0.0, %v1085
  %v1087 = vpop.f32.mrb[0].mxu0
  %v1088 = vadd.f32 0.0, %v1087
  %1089 = vmatprep.mubr.bf16.mxu0 0
  %1090 = vmatmul.mubr.bf16.gmra.mrb[0].mxu0 %v1027
  %v1091 = vpop.f32.mrb[0].mxu0
  %v1092 = vadd.f32 0.0, %v1091
  %v1093 = vpop.f32.mrb[0].mxu0
  %v1094 = vadd.f32 0.0, %v1093
  %v1095 = vpop.f32.mrb[0].mxu0
  %v1096 = vadd.f32 0.0, %v1095
  %v1097 = vpop.f32.mrb[0].mxu0
  %v1098 = vadd.f32 0.0, %v1097
  %1099 = vmatprep.mubr.bf16.mxu0 0
  %1100 = vmatmul.mubr.bf16.gmra.mrb[0].mxu0 %v1030
  %v1101 = vpop.f32.mrb[0].mxu0
  %v1102 = vadd.f32 0.0, %v1101
  %v1103 = vpop.f32.mrb[0].mxu0
  %v1104 = vadd.f32 0.0, %v1103
  %v1105 = vpop.f32.mrb[0].mxu0
  %v1106 = vadd.f32 0.0, %v1105
  %v1107 = vpop.f32.mrb[0].mxu0
  %v1108 = vadd.f32 0.0, %v1107
  %1109 = vmatprep.mubr.bf16.mxu0 0
  %1110 = vmatmul.mubr.bf16.gmra.mrb[0].mxu0 %v1033
  %v1111 = vpop.f32.mrb[0].mxu0
  %v1112 = vadd.f32 0.0, %v1111
  %v1113 = vpop.f32.mrb[0].mxu0
  %v1114 = vadd.f32 0.0, %v1113
  %v1115 = vpop.f32.mrb[0].mxu0
  %v1116 = vadd.f32 0.0, %v1115
  %v1117 = vpop.f32.mrb[0].mxu0
  %v1118 = vadd.f32 0.0, %v1117
  %1119 = vmatprep.mubr.bf16.mxu0 0
  %1120 = vmatmul.mubr.bf16.gmra.mrb[0].mxu0 %v1036
  %v1121 = vpop.f32.mrb[0].mxu0
  %v1122 = vadd.f32 0.0, %v1121
  %v1123 = vpop.f32.mrb[0].mxu0
  %v1124 = vadd.f32 0.0, %v1123
  %v1125 = vpop.f32.mrb[0].mxu0
  %v1126 = vadd.f32 0.0, %v1125
  %v1127 = vpop.f32.mrb[0].mxu0
  %v1128 = vadd.f32 0.0, %v1127
  %1129 = vmatprep.mubr.bf16.mxu0 0
  %1130 = vmatmul.mubr.bf16.gmra.mrb[0].mxu0 %v1039
  %v1131 = vpop.f32.mrb[0].mxu0
  %v1132 = vadd.f32 0.0, %v1131
  %v1133 = vpop.f32.mrb[0].mxu0
  %v1134 = vadd.f32 0.0, %v1133
  %v1135 = vpop.f32.mrb[0].mxu0
  %v1136 = vpop.f32.mrb[0].mxu0
  %1137 = vdwg.mxu0
  %v1138 = vadd.f32 %v927, %v1082
  %v1139 = vadd.f32 %v929, %v1084
  %v1140 = vadd.f32 %v931, %v1086
  %v1141 = vadd.f32 %v933, %v1088
  %v1142 = vadd.f32 %v937, %v1092
  %v1143 = vadd.f32 %v939, %v1094
  %v1144 = vadd.f32 %v941, %v1096
  %v1145 = vadd.f32 %v943, %v1098
  %v1146 = vadd.f32 %v947, %v1102
  %v1147 = vadd.f32 %v949, %v1104
  %v1148 = vadd.f32 %v951, %v1106
  %v1149 = vadd.f32 %v953, %v1108
  %v1150 = vadd.f32 %v957, %v1112
  %v1151 = vadd.f32 %v959, %v1114
  %v1152 = vadd.f32 %v961, %v1116
  %v1153 = vadd.f32 %v963, %v1118
  %v1154 = vadd.f32 %v967, %v1122
  %v1155 = vadd.f32 %v969, %v1124
  %v1156 = vadd.f32 %v971, %v1126
  %v1157 = vadd.f32 %v973, %v1128
  %v1158 = vadd.f32 %v977, %v1132
  %v1159 = vadd.f32 %v979, %v1134
  %v1160 = vld [vmem:[%s2] sm:$0x3]
  %v1162 = vlaneseq
  %v1163 = vshrl.u32 %v1162, 7
  %v1164 = vsub.s32 0, %v1163
  %v1165 = vrot.slane %v1160, %v1164
  %v1166 = vlaneseq
  %v1167 = vshrl.u32 %v1166, 7
  %v1168 = vsub.s32 1, %v1167
  %v1169 = vrot.slane %v1160, %v1168
  %v1172 = vadd.f32 %v1138, %v1165
  %v1173 = vadd.f32 %v1139, %v1169
  %v1174 = vadd.f32 %v1140, %v1165
  %v1175 = vadd.f32 %v1141, %v1169
  %v1176 = vadd.f32 %v1142, %v1165
  %v1177 = vadd.f32 %v1143, %v1169
  %v1178 = vadd.f32 %v1144, %v1165
  %v1179 = vadd.f32 %v1145, %v1169
  %v1180 = vadd.f32 %v1146, %v1165
  %v1181 = vadd.f32 %v1147, %v1169
  %v1182 = vadd.f32 %v1148, %v1165
  %v1183 = vadd.f32 %v1149, %v1169
  %v1184 = vadd.f32 %v1150, %v1165
  %v1185 = vadd.f32 %v1151, %v1169
  %v1186 = vadd.f32 %v1152, %v1165
  %v1187 = vadd.f32 %v1153, %v1169
  %v1188 = vadd.f32 %v1154, %v1165
  %v1189 = vadd.f32 %v1155, %v1169
  %v1190 = vadd.f32 %v1156, %v1165
  %v1191 = vadd.f32 %v1157, %v1169
  %v1192 = vadd.f32 %v1158, %v1165
  %v1193 = vadd.f32 %v1159, %v1169
  %v1194 = vmax.f32 %v1172, 0.0
  %v1195 = vmax.f32 %v1173, 0.0
  %v1196 = vmax.f32 %v1174, 0.0
  %v1197 = vmax.f32 %v1175, 0.0
  %v1198 = vmax.f32 %v1176, 0.0
  %v1199 = vmax.f32 %v1177, 0.0
  %v1200 = vmax.f32 %v1178, 0.0
  %v1201 = vmax.f32 %v1179, 0.0
  %v1202 = vmax.f32 %v1180, 0.0
  %v1203 = vmax.f32 %v1181, 0.0
  %v1204 = vmax.f32 %v1182, 0.0
  %v1205 = vmax.f32 %v1183, 0.0
  %v1206 = vmax.f32 %v1184, 0.0
  %v1207 = vmax.f32 %v1185, 0.0
  %v1208 = vmax.f32 %v1186, 0.0
  %v1209 = vmax.f32 %v1187, 0.0
  %v1210 = vmax.f32 %v1188, 0.0
  %v1211 = vmax.f32 %v1189, 0.0
  %v1212 = vmax.f32 %v1190, 0.0
  %v1213 = vmax.f32 %v1191, 0.0
  %v1214 = vmax.f32 %v1192, 0.0
  %v1215 = vmax.f32 %v1193, 0.0
  %v1216 = vpack.c.bf16 %v1196, %v1194
  %v1217 = vpack.c.bf16 %v1197, %v1195
  %v1218 = vpack.c.bf16 %v1200, %v1198
  %v1219 = vpack.c.bf16 %v1201, %v1199
  %v1220 = vpack.c.bf16 %v1204, %v1202
  %v1221 = vpack.c.bf16 %v1205, %v1203
  %v1222 = vpack.c.bf16 %v1208, %v1206
  %v1223 = vpack.c.bf16 %v1209, %v1207
  %v1224 = vpack.c.bf16 %v1212, %v1210
  %v1225 = vpack.c.bf16 %v1213, %v1211
  %v1226 = vpack.c.bf16 %v1214, %v1214
  %v1227 = vpack.c.bf16 %v1215, %v1215
  %s1228 = scalar_lea.vmem %s4, 1024
  %v1229 = vld [vmem:[%s1228] sm:$0xff]
  %v1230 = vld [vmem:[%s1228 + $0x8] sm:$0xff]
  %v1231 = vld [vmem:[%s1228 + $0x10] sm:$0xff]
  %v1232 = vld [vmem:[%s1228 + $0x18] sm:$0xff]
  %v1233 = vld [vmem:[%s1228 + $0x20] sm:$0xff]
  %v1234 = vld [vmem:[%s1228 + $0x28] sm:$0xff]
  %v1235 = vld [vmem:[%s1228 + $0x30] sm:$0xff]
  %v1236 = vld [vmem:[%s1228 + $0x38] sm:$0xff]
  %v1237 = vld [vmem:[%s1228 + $0x40] sm:$0xff]
  %v1238 = vld [vmem:[%s1228 + $0x48] sm:$0xff]
  %v1239 = vld [vmem:[%s1228 + $0x50] sm:$0xff]
  %v1240 = vld [vmem:[%s1228 + $0x58] sm:$0xff]
  %v1241 = vld [vmem:[%s1228 + $0x60] sm:$0xff]
  %v1242 = vld [vmem:[%s1228 + $0x68] sm:$0xff]
  %v1243 = vld [vmem:[%s1228 + $0x70] sm:$0xff]
  %v1244 = vld [vmem:[%s1228 + $0x78] sm:$0xff]
  %v1245 = vld [vmem:[%s1228 + $0x80] sm:$0xff]
  %v1246 = vld [vmem:[%s1228 + $0x88] sm:$0xff]
  %v1247 = vld [vmem:[%s1228 + $0x90] sm:$0xff]
  %v1248 = vld [vmem:[%s1228 + $0x98] sm:$0xff]
  %v1249 = vld [vmem:[%s1228 + $0xa0] sm:$0xff]
  %v1250 = vld [vmem:[%s1228 + $0xa8] sm:$0xff]
  %v1251 = vld [vmem:[%s1228 + $0xb0] sm:$0xff]
  %v1252 = vld [vmem:[%s1228 + $0xb8] sm:$0xff]
  %v1253 = vld [vmem:[%s1228 + $0xc0] sm:$0xff]
  %v1254 = vld [vmem:[%s1228 + $0xc8] sm:$0xff]
  %v1255 = vld [vmem:[%s1228 + $0xd0] sm:$0xff]
  %v1256 = vld [vmem:[%s1228 + $0xd8] sm:$0xff]
  %v1257 = vld [vmem:[%s1228 + $0xe0] sm:$0xff]
  %v1258 = vld [vmem:[%s1228 + $0xe8] sm:$0xff]
  %v1259 = vld [vmem:[%s1228 + $0xf0] sm:$0xff]
  %v1260 = vld [vmem:[%s1228 + $0xf8] sm:$0xff]
  %v1261 = vld [vmem:[%s5] sm:$0x3]
  %v1263 = vlaneseq
  %v1264 = vshrl.u32 %v1263, 7
  %v1265 = vsub.s32 0, %v1264
  %v1266 = vrot.slane %v1261, %v1265
  %v1267 = vlaneseq
  %v1268 = vshrl.u32 %v1267, 7
  %v1269 = vsub.s32 1, %v1268
  %v1270 = vrot.slane %v1261, %v1269
  %v1305 = vunpack.c.l.b16 %v1229
  %v1306 = vunpack.c.h.b16 %v1229
  %v1307 = vunpack.c.l.b16 %v1230
  %v1308 = vunpack.c.h.b16 %v1230
  %v1309 = vunpack.c.l.b16 %v1231
  %v1310 = vunpack.c.h.b16 %v1231
  %v1311 = vunpack.c.l.b16 %v1232
  %v1312 = vunpack.c.h.b16 %v1232
  %v1313 = vunpack.c.l.b16 %v1233
  %v1314 = vunpack.c.h.b16 %v1233
  %v1315 = vunpack.c.l.b16 %v1234
  %v1316 = vunpack.c.h.b16 %v1234
  %v1317 = vunpack.c.l.b16 %v1235
  %v1318 = vunpack.c.h.b16 %v1235
  %v1319 = vunpack.c.l.b16 %v1236
  %v1320 = vunpack.c.h.b16 %v1236
  %v1321 = vunpack.c.l.b16 %v1237
  %v1322 = vunpack.c.h.b16 %v1237
  %v1323 = vunpack.c.l.b16 %v1238
  %v1324 = vunpack.c.h.b16 %v1238
  %v1325 = vunpack.c.l.b16 %v1239
  %v1326 = vunpack.c.h.b16 %v1239
  %v1327 = vunpack.c.l.b16 %v1240
  %v1328 = vunpack.c.h.b16 %v1240
  %v1329 = vunpack.c.l.b16 %v1241
  %v1330 = vunpack.c.h.b16 %v1241
  %v1331 = vunpack.c.l.b16 %v1242
  %v1332 = vunpack.c.h.b16 %v1242
  %v1333 = vunpack.c.l.b16 %v1243
  %v1334 = vunpack.c.h.b16 %v1243
  %v1335 = vunpack.c.l.b16 %v1244
  %v1336 = vunpack.c.h.b16 %v1244
  %v1337 = vunpack.c.l.b16 %v1245
  %v1338 = vunpack.c.h.b16 %v1245
  %v1339 = vunpack.c.l.b16 %v1246
  %v1340 = vunpack.c.h.b16 %v1246
  %v1341 = vunpack.c.l.b16 %v1247
  %v1342 = vunpack.c.h.b16 %v1247
  %v1343 = vunpack.c.l.b16 %v1248
  %v1344 = vunpack.c.h.b16 %v1248
  %v1345 = vunpack.c.l.b16 %v1249
  %v1346 = vunpack.c.h.b16 %v1249
  %v1347 = vunpack.c.l.b16 %v1250
  %v1348 = vunpack.c.h.b16 %v1250
  %v1349 = vunpack.c.l.b16 %v1251
  %v1350 = vunpack.c.h.b16 %v1251
  %v1351 = vunpack.c.l.b16 %v1252
  %v1352 = vunpack.c.h.b16 %v1252
  %v1353 = vunpack.c.l.b16 %v1253
  %v1354 = vunpack.c.h.b16 %v1253
  %v1355 = vunpack.c.l.b16 %v1254
  %v1356 = vunpack.c.h.b16 %v1254
  %v1357 = vunpack.c.l.b16 %v1255
  %v1358 = vunpack.c.h.b16 %v1255
  %v1359 = vunpack.c.l.b16 %v1256
  %v1360 = vunpack.c.h.b16 %v1256
  %v1361 = vunpack.c.l.b16 %v1257
  %v1362 = vunpack.c.h.b16 %v1257
  %v1363 = vunpack.c.l.b16 %v1258
  %v1364 = vunpack.c.h.b16 %v1258
  %v1365 = vunpack.c.l.b16 %v1259
  %v1366 = vunpack.c.h.b16 %v1259
  %v1367 = vunpack.c.l.b16 %v1260
  %v1368 = vunpack.c.h.b16 %v1260
  %v1369 = vpack.c.b16 %v1307, %v1305
  %v1370 = vpack.c.b16 %v1308, %v1306
  %v1371 = vpack.c.b16 %v1311, %v1309
  %v1372 = vpack.c.b16 %v1312, %v1310
  %v1373 = vpack.c.b16 %v1315, %v1313
  %v1374 = vpack.c.b16 %v1316, %v1314
  %v1375 = vpack.c.b16 %v1319, %v1317
  %v1376 = vpack.c.b16 %v1320, %v1318
  %v1377 = vpack.c.b16 %v1323, %v1321
  %v1378 = vpack.c.b16 %v1324, %v1322
  %v1379 = vpack.c.b16 %v1327, %v1325
  %v1380 = vpack.c.b16 %v1328, %v1326
  %v1381 = vpack.c.b16 %v1331, %v1329
  %v1382 = vpack.c.b16 %v1332, %v1330
  %v1383 = vpack.c.b16 %v1335, %v1333
  %v1384 = vpack.c.b16 %v1336, %v1334
  %v1385 = vpack.c.b16 %v1339, %v1337
  %v1386 = vpack.c.b16 %v1340, %v1338
  %v1387 = vpack.c.b16 %v1343, %v1341
  %v1388 = vpack.c.b16 %v1344, %v1342
  %v1389 = vpack.c.b16 %v1347, %v1345
  %v1390 = vpack.c.b16 %v1348, %v1346
  %v1391 = vpack.c.b16 %v1351, %v1349
  %v1392 = vpack.c.b16 %v1352, %v1350
  %v1393 = vpack.c.b16 %v1355, %v1353
  %v1394 = vpack.c.b16 %v1356, %v1354
  %v1395 = vpack.c.b16 %v1359, %v1357
  %v1396 = vpack.c.b16 %v1360, %v1358
  %v1397 = vpack.c.b16 %v1363, %v1361
  %v1398 = vpack.c.b16 %v1364, %v1362
  %v1399 = vpack.c.b16 %v1367, %v1365
  %v1400 = vpack.c.b16 %v1368, %v1366
  %1433 = vmatprep.subr.bf16.mxu0 %v1370
  %1434 = vmatpush1.bf16.msra.mxu0 %v1369
  %1435 = vmatprep.subr.bf16.mxu0 %v1372
  %1436 = vmatpush1.bf16.msra.mxu0 %v1371
  %1437 = vmatprep.subr.bf16.mxu0 %v1374
  %1438 = vmatpush1.bf16.msra.mxu0 %v1373
  %1439 = vmatprep.subr.bf16.mxu0 %v1376
  %1440 = vmatpush1.bf16.msra.mxu0 %v1375
  %1441 = vmatprep.subr.bf16.mxu0 %v1378
  %1442 = vmatpush1.bf16.msra.mxu0 %v1377
  %1443 = vmatprep.subr.bf16.mxu0 %v1380
  %1444 = vmatpush1.bf16.msra.mxu0 %v1379
  %1445 = vmatprep.subr.bf16.mxu0 %v1382
  %1446 = vmatpush1.bf16.msra.mxu0 %v1381
  %1447 = vmatprep.subr.bf16.mxu0 %v1384
  %1448 = vmatpush1.bf16.msra.mxu0 %v1383
  %1449 = vmatprep.subr.bf16.mxu0 %v1386
  %1450 = vmatpush1.bf16.msra.mxu0 %v1385
  %1451 = vmatprep.subr.bf16.mxu0 %v1388
  %1452 = vmatpush1.bf16.msra.mxu0 %v1387
  %1453 = vmatprep.subr.bf16.mxu0 %v1390
  %1454 = vmatpush1.bf16.msra.mxu0 %v1389
  %1455 = vmatprep.subr.bf16.mxu0 %v1392
  %1456 = vmatpush1.bf16.msra.mxu0 %v1391
  %1457 = vmatprep.subr.bf16.mxu0 %v1394
  %1458 = vmatpush1.bf16.msra.mxu0 %v1393
  %1459 = vmatprep.subr.bf16.mxu0 %v1396
  %1460 = vmatpush1.bf16.msra.mxu0 %v1395
  %1461 = vmatprep.subr.bf16.mxu0 %v1398
  %1462 = vmatpush1.bf16.msra.mxu0 %v1397
  %1463 = vmatprep.subr.bf16.mxu0 %v1400
  %1464 = vmatpush1.bf16.msra.mxu0 %v1399
  %1465 = vmatprep.mubr.bf16.mxu0 %v1217
  %1466 = vmatmul.mubr.bf16.gmra.mrb[0].mxu0 %v1216
  %v1467 = vpop.f32.mrb[0].mxu0
  %v1468 = vadd.f32 %v1266, %v1467
  %v1469 = vpop.f32.mrb[0].mxu0
  %v1470 = vadd.f32 %v1270, %v1469
  %v1471 = vpop.f32.mrb[0].mxu0
  %v1472 = vadd.f32 %v1266, %v1471
  %v1473 = vpop.f32.mrb[0].mxu0
  %v1474 = vadd.f32 %v1270, %v1473
  %1475 = vmatprep.mubr.bf16.mxu0 %v1219
  %1476 = vmatmul.mubr.bf16.gmra.mrb[0].mxu0 %v1218
  %v1477 = vpop.f32.mrb[0].mxu0
  %v1478 = vadd.f32 %v1266, %v1477
  %v1479 = vpop.f32.mrb[0].mxu0
  %v1480 = vadd.f32 %v1270, %v1479
  %v1481 = vpop.f32.mrb[0].mxu0
  %v1482 = vadd.f32 %v1266, %v1481
  %v1483 = vpop.f32.mrb[0].mxu0
  %v1484 = vadd.f32 %v1270, %v1483
  %1485 = vmatprep.mubr.bf16.mxu0 %v1221
  %1486 = vmatmul.mubr.bf16.gmra.mrb[0].mxu0 %v1220
  %v1487 = vpop.f32.mrb[0].mxu0
  %v1488 = vadd.f32 %v1266, %v1487
  %v1489 = vpop.f32.mrb[0].mxu0
  %v1490 = vadd.f32 %v1270, %v1489
  %v1491 = vpop.f32.mrb[0].mxu0
  %v1492 = vadd.f32 %v1266, %v1491
  %v1493 = vpop.f32.mrb[0].mxu0
  %v1494 = vadd.f32 %v1270, %v1493
  %1495 = vmatprep.mubr.bf16.mxu0 %v1223
  %1496 = vmatmul.mubr.bf16.gmra.mrb[0].mxu0 %v1222
  %v1497 = vpop.f32.mrb[0].mxu0
  %v1498 = vadd.f32 %v1266, %v1497
  %v1499 = vpop.f32.mrb[0].mxu0
  %v1500 = vadd.f32 %v1270, %v1499
  %v1501 = vpop.f32.mrb[0].mxu0
  %v1502 = vadd.f32 %v1266, %v1501
  %v1503 = vpop.f32.mrb[0].mxu0
  %v1504 = vadd.f32 %v1270, %v1503
  %1505 = vmatprep.mubr.bf16.mxu0 %v1225
  %1506 = vmatmul.mubr.bf16.gmra.mrb[0].mxu0 %v1224
  %v1507 = vpop.f32.mrb[0].mxu0
  %v1508 = vadd.f32 %v1266, %v1507
  %v1509 = vpop.f32.mrb[0].mxu0
  %v1510 = vadd.f32 %v1270, %v1509
  %v1511 = vpop.f32.mrb[0].mxu0
  %v1512 = vadd.f32 %v1266, %v1511
  %v1513 = vpop.f32.mrb[0].mxu0
  %v1514 = vadd.f32 %v1270, %v1513
  %1515 = vmatprep.mubr.bf16.mxu0 %v1227
  %1516 = vmatmul.mubr.bf16.gmra.mrb[0].mxu0 %v1226
  %v1517 = vpop.f32.mrb[0].mxu0
  %v1518 = vadd.f32 %v1266, %v1517
  %v1519 = vpop.f32.mrb[0].mxu0
  %v1520 = vadd.f32 %v1270, %v1519
  %v1521 = vpop.f32.mrb[0].mxu0
  %v1522 = vpop.f32.mrb[0].mxu0
  %1523 = vdwg.mxu0
  %v1524 = vld [vmem:[%s6] sm:$0xff]
  %v1525 = vld [vmem:[%s6 + $0x8] sm:$0xff]
  %v1526 = vld [vmem:[%s6 + $0x10] sm:$0xff]
  %v1527 = vld [vmem:[%s6 + $0x18] sm:$0xff]
  %v1528 = vld [vmem:[%s6 + $0x20] sm:$0xff]
  %v1529 = vld [vmem:[%s6 + $0x28] sm:$0xff]
  %v1530 = vld [vmem:[%s6 + $0x30] sm:$0xff]
  %v1531 = vld [vmem:[%s6 + $0x38] sm:$0xff]
  %v1532 = vld [vmem:[%s6 + $0x40] sm:$0xff]
  %v1533 = vld [vmem:[%s6 + $0x48] sm:$0xff]
  %v1534 = vld [vmem:[%s6 + $0x50] sm:$0xff]
  %v1535 = vld [vmem:[%s6 + $0x58] sm:$0xff]
  %v1536 = vld [vmem:[%s6 + $0x60] sm:$0xff]
  %v1537 = vld [vmem:[%s6 + $0x68] sm:$0xff]
  %v1538 = vld [vmem:[%s6 + $0x70] sm:$0xff]
  %v1539 = vld [vmem:[%s6 + $0x78] sm:$0xff]
  %v1540 = vld [vmem:[%s7] sm:$0x3]
  %v1542 = vlaneseq
  %v1543 = vshrl.u32 %v1542, 7
  %v1544 = vsub.s32 0, %v1543
  %v1545 = vrot.slane %v1540, %v1544
  %v1546 = vlaneseq
  %v1547 = vshrl.u32 %v1546, 7
  %v1548 = vsub.s32 1, %v1547
  %v1549 = vrot.slane %v1540, %v1548
  %v1568 = vunpack.c.l.b16 %v1524
  %v1569 = vunpack.c.h.b16 %v1524
  %v1570 = vunpack.c.l.b16 %v1525
  %v1571 = vunpack.c.h.b16 %v1525
  %v1572 = vunpack.c.l.b16 %v1526
  %v1573 = vunpack.c.h.b16 %v1526
  %v1574 = vunpack.c.l.b16 %v1527
  %v1575 = vunpack.c.h.b16 %v1527
  %v1576 = vunpack.c.l.b16 %v1528
  %v1577 = vunpack.c.h.b16 %v1528
  %v1578 = vunpack.c.l.b16 %v1529
  %v1579 = vunpack.c.h.b16 %v1529
  %v1580 = vunpack.c.l.b16 %v1530
  %v1581 = vunpack.c.h.b16 %v1530
  %v1582 = vunpack.c.l.b16 %v1531
  %v1583 = vunpack.c.h.b16 %v1531
  %v1584 = vunpack.c.l.b16 %v1532
  %v1585 = vunpack.c.h.b16 %v1532
  %v1586 = vunpack.c.l.b16 %v1533
  %v1587 = vunpack.c.h.b16 %v1533
  %v1588 = vunpack.c.l.b16 %v1534
  %v1589 = vunpack.c.h.b16 %v1534
  %v1590 = vunpack.c.l.b16 %v1535
  %v1591 = vunpack.c.h.b16 %v1535
  %v1592 = vunpack.c.l.b16 %v1536
  %v1593 = vunpack.c.h.b16 %v1536
  %v1594 = vunpack.c.l.b16 %v1537
  %v1595 = vunpack.c.h.b16 %v1537
  %v1596 = vunpack.c.l.b16 %v1538
  %v1597 = vunpack.c.h.b16 %v1538
  %v1598 = vunpack.c.l.b16 %v1539
  %v1599 = vunpack.c.h.b16 %v1539
  %v1600 = vpack.c.b16 %v1570, %v1568
  %v1601 = vpack.c.b16 %v1571, %v1569
  %v1602 = vpack.c.b16 %v1574, %v1572
  %v1603 = vpack.c.b16 %v1575, %v1573
  %v1604 = vpack.c.b16 %v1578, %v1576
  %v1605 = vpack.c.b16 %v1579, %v1577
  %v1606 = vpack.c.b16 %v1582, %v1580
  %v1607 = vpack.c.b16 %v1583, %v1581
  %v1608 = vpack.c.b16 %v1586, %v1584
  %v1609 = vpack.c.b16 %v1587, %v1585
  %v1610 = vpack.c.b16 %v1590, %v1588
  %v1611 = vpack.c.b16 %v1591, %v1589
  %v1612 = vpack.c.b16 %v1594, %v1592
  %v1613 = vpack.c.b16 %v1595, %v1593
  %v1614 = vpack.c.b16 %v1598, %v1596
  %v1615 = vpack.c.b16 %v1599, %v1597
  %1632 = vmatprep.subr.bf16.mxu0 %v1601
  %1633 = vmatpush1.bf16.msra.mxu0 %v1600
  %1634 = vmatprep.subr.bf16.mxu0 %v1603
  %1635 = vmatpush1.bf16.msra.mxu0 %v1602
  %1636 = vmatprep.subr.bf16.mxu0 %v1605
  %1637 = vmatpush1.bf16.msra.mxu0 %v1604
  %1638 = vmatprep.subr.bf16.mxu0 %v1607
  %1639 = vmatpush1.bf16.msra.mxu0 %v1606
  %1640 = vmatprep.subr.bf16.mxu0 %v1609
  %1641 = vmatpush1.bf16.msra.mxu0 %v1608
  %1642 = vmatprep.subr.bf16.mxu0 %v1611
  %1643 = vmatpush1.bf16.msra.mxu0 %v1610
  %1644 = vmatprep.subr.bf16.mxu0 %v1613
  %1645 = vmatpush1.bf16.msra.mxu0 %v1612
  %1646 = vmatprep.subr.bf16.mxu0 %v1615
  %1647 = vmatpush1.bf16.msra.mxu0 %v1614
  %1648 = vmatprep.subr.bf16.mxu0 0
  %1649 = vmatpush1.bf16.msra.mxu0 0
  %1650 = vmatprep.subr.bf16.mxu0 0
  %1651 = vmatpush1.bf16.msra.mxu0 0
  %1652 = vmatprep.subr.bf16.mxu0 0
  %1653 = vmatpush1.bf16.msra.mxu0 0
  %1654 = vmatprep.subr.bf16.mxu0 0
  %1655 = vmatpush1.bf16.msra.mxu0 0
  %1656 = vmatprep.subr.bf16.mxu0 0
  %1657 = vmatpush1.bf16.msra.mxu0 0
  %1658 = vmatprep.subr.bf16.mxu0 0
  %1659 = vmatpush1.bf16.msra.mxu0 0
  %1660 = vmatprep.subr.bf16.mxu0 0
  %1661 = vmatpush1.bf16.msra.mxu0 0
  %1662 = vmatprep.subr.bf16.mxu0 0
  %1663 = vmatpush1.bf16.msra.mxu0 0
  %1664 = vmatprep.mubr.bf16.mxu0 0
  %1665 = vmatmul.mubr.bf16.gmra.mrb[0].mxu0 %v111
  %v1666 = vpop.f32.mrb[0].mxu0
  %v1667 = vadd.f32 %v1545, %v1666
  %v1668 = vpop.f32.mrb[0].mxu0
  %v1669 = vadd.f32 %v1549, %v1668
  %v1670 = vpop.f32.mrb[0].mxu0
  %v1671 = vadd.f32 %v1545, %v1670
  %v1672 = vpop.f32.mrb[0].mxu0
  %v1673 = vadd.f32 %v1549, %v1672
  %1674 = vmatprep.mubr.bf16.mxu0 0
  %1675 = vmatmul.mubr.bf16.gmra.mrb[0].mxu0 %v112
  %v1676 = vpop.f32.mrb[0].mxu0
  %v1677 = vadd.f32 %v1545, %v1676
  %v1678 = vpop.f32.mrb[0].mxu0
  %v1679 = vadd.f32 %v1549, %v1678
  %v1680 = vpop.f32.mrb[0].mxu0
  %v1681 = vadd.f32 %v1545, %v1680
  %v1682 = vpop.f32.mrb[0].mxu0
  %v1683 = vadd.f32 %v1549, %v1682
  %1684 = vmatprep.mubr.bf16.mxu0 0
  %1685 = vmatmul.mubr.bf16.gmra.mrb[0].mxu0 %v113
  %v1686 = vpop.f32.mrb[0].mxu0
  %v1687 = vadd.f32 %v1545, %v1686
  %v1688 = vpop.f32.mrb[0].mxu0
  %v1689 = vadd.f32 %v1549, %v1688
  %v1690 = vpop.f32.mrb[0].mxu0
  %v1691 = vadd.f32 %v1545, %v1690
  %v1692 = vpop.f32.mrb[0].mxu0
  %v1693 = vadd.f32 %v1549, %v1692
  %1694 = vmatprep.mubr.bf16.mxu0 0
  %1695 = vmatmul.mubr.bf16.gmra.mrb[0].mxu0 %v114
  %v1696 = vpop.f32.mrb[0].mxu0
  %v1697 = vadd.f32 %v1545, %v1696
  %v1698 = vpop.f32.mrb[0].mxu0
  %v1699 = vadd.f32 %v1549, %v1698
  %v1700 = vpop.f32.mrb[0].mxu0
  %v1701 = vadd.f32 %v1545, %v1700
  %v1702 = vpop.f32.mrb[0].mxu0
  %v1703 = vadd.f32 %v1549, %v1702
  %1704 = vmatprep.mubr.bf16.mxu0 0
  %1705 = vmatmul.mubr.bf16.gmra.mrb[0].mxu0 %v115
  %v1706 = vpop.f32.mrb[0].mxu0
  %v1707 = vadd.f32 %v1545, %v1706
  %v1708 = vpop.f32.mrb[0].mxu0
  %v1709 = vadd.f32 %v1549, %v1708
  %v1710 = vpop.f32.mrb[0].mxu0
  %v1711 = vadd.f32 %v1545, %v1710
  %v1712 = vpop.f32.mrb[0].mxu0
  %v1713 = vadd.f32 %v1549, %v1712
  %1714 = vmatprep.mubr.bf16.mxu0 0
  %1715 = vmatmul.mubr.bf16.gmra.mrb[0].mxu0 %v116
  %v1716 = vpop.f32.mrb[0].mxu0
  %v1717 = vadd.f32 %v1545, %v1716
  %v1718 = vpop.f32.mrb[0].mxu0
  %v1719 = vadd.f32 %v1549, %v1718
  %v1720 = vpop.f32.mrb[0].mxu0
  %v1721 = vpop.f32.mrb[0].mxu0
  %1722 = vdwg.mxu0
  %v1723 = vadd.f32 %v1468, %v1667
  %v1724 = vadd.f32 %v1470, %v1669
  %v1725 = vadd.f32 %v1472, %v1671
  %v1726 = vadd.f32 %v1474, %v1673
  %v1727 = vadd.f32 %v1478, %v1677
  %v1728 = vadd.f32 %v1480, %v1679
  %v1729 = vadd.f32 %v1482, %v1681
  %v1730 = vadd.f32 %v1484, %v1683
  %v1731 = vadd.f32 %v1488, %v1687
  %v1732 = vadd.f32 %v1490, %v1689
  %v1733 = vadd.f32 %v1492, %v1691
  %v1734 = vadd.f32 %v1494, %v1693
  %v1735 = vadd.f32 %v1498, %v1697
  %v1736 = vadd.f32 %v1500, %v1699
  %v1737 = vadd.f32 %v1502, %v1701
  %v1738 = vadd.f32 %v1504, %v1703
  %v1739 = vadd.f32 %v1508, %v1707
  %v1740 = vadd.f32 %v1510, %v1709
  %v1741 = vadd.f32 %v1512, %v1711
  %v1742 = vadd.f32 %v1514, %v1713
  %v1743 = vadd.f32 %v1518, %v1717
  %v1744 = vadd.f32 %v1520, %v1719
  %v1745 = vmax.f32 %v1723, 0.0
  %v1746 = vmax.f32 %v1724, 0.0
  %v1747 = vmax.f32 %v1725, 0.0
  %v1748 = vmax.f32 %v1726, 0.0
  %v1749 = vmax.f32 %v1727, 0.0
  %v1750 = vmax.f32 %v1728, 0.0
  %v1751 = vmax.f32 %v1729, 0.0
  %v1752 = vmax.f32 %v1730, 0.0
  %v1753 = vmax.f32 %v1731, 0.0
  %v1754 = vmax.f32 %v1732, 0.0
  %v1755 = vmax.f32 %v1733, 0.0
  %v1756 = vmax.f32 %v1734, 0.0
  %v1757 = vmax.f32 %v1735, 0.0
  %v1758 = vmax.f32 %v1736, 0.0
  %v1759 = vmax.f32 %v1737, 0.0
  %v1760 = vmax.f32 %v1738, 0.0
  %v1761 = vmax.f32 %v1739, 0.0
  %v1762 = vmax.f32 %v1740, 0.0
  %v1763 = vmax.f32 %v1741, 0.0
  %v1764 = vmax.f32 %v1742, 0.0
  %v1765 = vmax.f32 %v1743, 0.0
  %v1766 = vmax.f32 %v1744, 0.0
  %v1767 = vpack.c.bf16 %v1747, %v1745
  %v1768 = vpack.c.bf16 %v1748, %v1746
  %v1769 = vpack.c.bf16 %v1751, %v1749
  %v1770 = vpack.c.bf16 %v1752, %v1750
  %v1771 = vpack.c.bf16 %v1755, %v1753
  %v1772 = vpack.c.bf16 %v1756, %v1754
  %v1773 = vpack.c.bf16 %v1759, %v1757
  %v1774 = vpack.c.bf16 %v1760, %v1758
  %v1775 = vpack.c.bf16 %v1763, %v1761
  %v1776 = vpack.c.bf16 %v1764, %v1762
  %v1777 = vpack.c.bf16 %v1765, %v1765
  %v1778 = vpack.c.bf16 %v1766, %v1766
  %v1791 = vunpack.c.l.b16 %v1767
  %v1792 = vunpack.c.l.b16 %v1768
  %v1793 = vunpack.c.h.b16 %v1767
  %v1794 = vunpack.c.h.b16 %v1768
  %v1795 = vunpack.c.l.b16 %v1769
  %v1796 = vunpack.c.l.b16 %v1770
  %v1797 = vunpack.c.h.b16 %v1769
  %v1798 = vunpack.c.h.b16 %v1770
  %v1799 = vunpack.c.l.b16 %v1771
  %v1800 = vunpack.c.l.b16 %v1772
  %v1801 = vunpack.c.h.b16 %v1771
  %v1802 = vunpack.c.h.b16 %v1772
  %v1803 = vunpack.c.l.b16 %v1773
  %v1804 = vunpack.c.l.b16 %v1774
  %v1805 = vunpack.c.h.b16 %v1773
  %v1806 = vunpack.c.h.b16 %v1774
  %v1807 = vunpack.c.l.b16 %v1775
  %v1808 = vunpack.c.l.b16 %v1776
  %v1809 = vunpack.c.h.b16 %v1775
  %v1810 = vunpack.c.h.b16 %v1776
  %v1811 = vunpack.c.l.b16 %v1777
  %v1812 = vunpack.c.l.b16 %v1778
  %v1813 = vpack.c.b16 %v1792, %v1791
  %v1814 = vpack.c.b16 %v1794, %v1793
  %v1815 = vpack.c.b16 %v1796, %v1795
  %v1816 = vpack.c.b16 %v1798, %v1797
  %v1817 = vpack.c.b16 %v1800, %v1799
  %v1818 = vpack.c.b16 %v1802, %v1801
  %v1819 = vpack.c.b16 %v1804, %v1803
  %v1820 = vpack.c.b16 %v1806, %v1805
  %v1821 = vpack.c.b16 %v1808, %v1807
  %v1822 = vpack.c.b16 %v1810, %v1809
  %v1823 = vpack.c.b16 %v1812, %v1811
  %1835 = vst [vmem:[%s8] sm:$0xff] %v1813
  %1836 = vst [vmem:[%s8 + $0x8] sm:$0xff] %v1814
  %1837 = vst [vmem:[%s8 + $0x10] sm:$0xff] %v1815
  %1838 = vst [vmem:[%s8 + $0x18] sm:$0xff] %v1816
  %1839 = vst [vmem:[%s8 + $0x20] sm:$0xff] %v1817
  %1840 = vst [vmem:[%s8 + $0x28] sm:$0xff] %v1818
  %1841 = vst [vmem:[%s8 + $0x30] sm:$0xff] %v1819
  %1842 = vst [vmem:[%s8 + $0x38] sm:$0xff] %v1820
  %1843 = vst [vmem:[%s8 + $0x40] sm:$0xff] %v1821
  %1844 = vst [vmem:[%s8 + $0x48] sm:$0xff] %v1822
  %1845 = vst [vmem:[%s8 + $0x50] sm:$0x33] %v1823
  // Predicated region
  $region34: #{double_tpgcn_forward.21} parent=0 // pred_check
    _
  $region35: #{double_tpgcn_forward.21} parent=0 // pred_check_branch
    %1847 = sbr.rel (0) target = $region37
  $region36: #{double_tpgcn_forward.21} parent=0 // pred_region
    _
  $region37: #{double_tpgcn_forward.21} parent=0 // pred_fallthru
    _
  // Predicated region
  $region38: #{double_tpgcn_forward.21} parent=0 // pred_check
    _
  $region39: #{double_tpgcn_forward.21} parent=0 // pred_check_branch
    %1849 = sbr.rel (0) target = $region41
  $region40: #{double_tpgcn_forward.21} parent=0 // pred_region
    _
  $region41: #{double_tpgcn_forward.21} parent=0 // pred_fallthru
    _

// kernel: double_tpgcn_forward.20
$region0: #{double_tpgcn_forward.20}
  #allocation0 [shape = 'u32[]', space=smem, size = 0x4, offset = 0x4, fixed_abs, tag = 'smem constant byte address 0x4 - core index']
  #allocation1 [shape = 'u32[144,128]{1,0:T(1,128)}', space=vmem, size = 0x12000, scoped, tag = 'internal scratch']
  %s0 = inlined_call_operand.vmem [shape: bf16[84,128], index: 0, kind: input, shape index: {}]
  %s1 = inlined_call_operand.vmem [shape: bf16[128,384], index: 1, kind: input, shape index: {}]
  %s2 = inlined_call_operand.vmem [shape: f32[1,128], index: 2, kind: input, shape index: {}, may-alias: {2,5}]
  %s3 = inlined_call_operand.vmem [shape: bf16[3,84,84], index: 3, kind: input, shape index: {}]
  %s4 = inlined_call_operand.vmem [shape: bf16[9,128,128], index: 4, kind: input, shape index: {}]
  %s5 = inlined_call_operand.vmem [shape: f32[1,128], index: 5, kind: input, shape index: {}, may-alias: {2,5}]
  %s6 = inlined_call_operand.vmem [shape: bf16[84,128], index: 6, kind: output, shape index: {}]
  %s7 = sld [smem:[#allocation0]]
  $region34: #{double_tpgcn_forward.20} parent=0
    _
  %s9 = ssub.s32 1, %s7
  %s10 = scalar_select 0, %s9, %s7
  // Predicated region
  $region2: #{double_tpgcn_forward.20} parent=0 // pred_check
    _
  $region3: #{double_tpgcn_forward.20} parent=0 // pred_check_branch
    %12 = sbr.rel (0) target = $region5
  $region4: #{double_tpgcn_forward.20} parent=0 // pred_region
    _
  $region5: #{double_tpgcn_forward.20} parent=0 // pred_fallthru
    _
  // Predicated region
  $region6: #{double_tpgcn_forward.20} parent=0 // pred_check
    _
  $region7: #{double_tpgcn_forward.20} parent=0 // pred_check_branch
    %14 = sbr.rel (0) target = $region9
  $region8: #{double_tpgcn_forward.20} parent=0 // pred_region
    _
  $region9: #{double_tpgcn_forward.20} parent=0 // pred_fallthru
    _
  // Predicated region
  $region10: #{double_tpgcn_forward.20} parent=0 // pred_check
    _
  $region11: #{double_tpgcn_forward.20} parent=0 // pred_check_branch
    %16 = sbr.rel (0) target = $region13
  $region12: #{double_tpgcn_forward.20} parent=0 // pred_region
    _
  $region13: #{double_tpgcn_forward.20} parent=0 // pred_fallthru
    _
  // Predicated region
  $region14: #{double_tpgcn_forward.20} parent=0 // pred_check
    _
  $region15: #{double_tpgcn_forward.20} parent=0 // pred_check_branch
    %18 = sbr.rel (0) target = $region17
  $region16: #{double_tpgcn_forward.20} parent=0 // pred_region
    _
  $region17: #{double_tpgcn_forward.20} parent=0 // pred_fallthru
    _
  // Predicated region
  $region18: #{double_tpgcn_forward.20} parent=0 // pred_check
    _
  $region19: #{double_tpgcn_forward.20} parent=0 // pred_check_branch
    %20 = sbr.rel (0) target = $region21
  $region20: #{double_tpgcn_forward.20} parent=0 // pred_region
    _
  $region21: #{double_tpgcn_forward.20} parent=0 // pred_fallthru
    _
  // Predicated region
  $region22: #{double_tpgcn_forward.20} parent=0 // pred_check
    _
  $region23: #{double_tpgcn_forward.20} parent=0 // pred_check_branch
    %22 = sbr.rel (0) target = $region25
  $region24: #{double_tpgcn_forward.20} parent=0 // pred_region
    _
  $region25: #{double_tpgcn_forward.20} parent=0 // pred_fallthru
    _
  %v24 = vld [vmem:[%s0] sm:$0xf]
  %v25 = vld [vmem:[%s0 + $0x4] sm:$0xf]
  %v26 = vld [vmem:[%s0 + $0x8] sm:$0xf]
  %v27 = vld [vmem:[%s0 + $0xc] sm:$0xf]
  %v28 = vld [vmem:[%s0 + $0x10] sm:$0xf]
  %v29 = vld [vmem:[%s0 + $0x14] sm:$0xf]
  %v30 = vld [vmem:[%s0 + $0x18] sm:$0xf]
  %v31 = vld [vmem:[%s0 + $0x1c] sm:$0xf]
  %v32 = vld [vmem:[%s0 + $0x20] sm:$0xf]
  %v33 = vld [vmem:[%s0 + $0x24] sm:$0xf]
  %v34 = vld [vmem:[%s0 + $0x28] sm:$0x3]
  %v35 = vld [vmem:[%s1] sm:$0xff]
  %v36 = vld [vmem:[%s1 + $0x8] sm:$0xf]
  %v37 = vld [vmem:[%s1 + $0xc] sm:$0xff]
  %v38 = vld [vmem:[%s1 + $0x14] sm:$0xf]
  %v39 = vld [vmem:[%s1 + $0x18] sm:$0xff]
  %v40 = vld [vmem:[%s1 + $0x20] sm:$0xf]
  %v41 = vld [vmem:[%s1 + $0x24] sm:$0xff]
  %v42 = vld [vmem:[%s1 + $0x2c] sm:$0xf]
  %v43 = vld [vmem:[%s1 + $0x30] sm:$0xff]
  %v44 = vld [vmem:[%s1 + $0x38] sm:$0xf]
  %v45 = vld [vmem:[%s1 + $0x3c] sm:$0xff]
  %v46 = vld [vmem:[%s1 + $0x44] sm:$0xf]
  %v47 = vld [vmem:[%s1 + $0x48] sm:$0xff]
  %v48 = vld [vmem:[%s1 + $0x50] sm:$0xf]
  %v49 = vld [vmem:[%s1 + $0x54] sm:$0xff]
  %v50 = vld [vmem:[%s1 + $0x5c] sm:$0xf]
  %v51 = vld [vmem:[%s1 + $0x60] sm:$0xff]
  %v52 = vld [vmem:[%s1 + $0x68] sm:$0xf]
  %v53 = vld [vmem:[%s1 + $0x6c] sm:$0xff]
  %v54 = vld [vmem:[%s1 + $0x74] sm:$0xf]
  %v55 = vld [vmem:[%s1 + $0x78] sm:$0xff]
  %v56 = vld [vmem:[%s1 + $0x80] sm:$0xf]
  %v57 = vld [vmem:[%s1 + $0x84] sm:$0xff]
  %v58 = vld [vmem:[%s1 + $0x8c] sm:$0xf]
  %v59 = vld [vmem:[%s1 + $0x90] sm:$0xff]
  %v60 = vld [vmem:[%s1 + $0x98] sm:$0xf]
  %v61 = vld [vmem:[%s1 + $0x9c] sm:$0xff]
  %v62 = vld [vmem:[%s1 + $0xa4] sm:$0xf]
  %v63 = vld [vmem:[%s1 + $0xa8] sm:$0xff]
  %v64 = vld [vmem:[%s1 + $0xb0] sm:$0xf]
  %v65 = vld [vmem:[%s1 + $0xb4] sm:$0xff]
  %v66 = vld [vmem:[%s1 + $0xbc] sm:$0xf]
  %v78 = vunpack.c.l.b16 %v24
  %v79 = vunpack.c.l.b16 %v25
  %v80 = vunpack.c.l.b16 %v26
  %v81 = vunpack.c.l.b16 %v27
  %v82 = vunpack.c.l.b16 %v28
  %v83 = vunpack.c.l.b16 %v29
  %v84 = vunpack.c.l.b16 %v30
  %v85 = vunpack.c.l.b16 %v31
  %v86 = vunpack.c.l.b16 %v32
  %v87 = vunpack.c.l.b16 %v33
  %v88 = vunpack.c.l.b16 %v34
  %v89 = vpack.c.b16 %v79, %v78
  %v90 = vpack.c.b16 %v81, %v80
  %v91 = vpack.c.b16 %v83, %v82
  %v92 = vpack.c.b16 %v85, %v84
  %v93 = vpack.c.b16 %v87, %v86
  %v94 = vpack.c.b16 %v88, %v88
  %v133 = vunpack.c.l.b16 %v35
  %v134 = vunpack.c.h.b16 %v35
  %v135 = vunpack.c.l.b16 %v36
  %v136 = vunpack.c.l.b16 %v37
  %v137 = vunpack.c.h.b16 %v37
  %v138 = vunpack.c.l.b16 %v38
  %v139 = vunpack.c.l.b16 %v39
  %v140 = vunpack.c.h.b16 %v39
  %v141 = vunpack.c.l.b16 %v40
  %v142 = vunpack.c.l.b16 %v41
  %v143 = vunpack.c.h.b16 %v41
  %v144 = vunpack.c.l.b16 %v42
  %v145 = vunpack.c.l.b16 %v43
  %v146 = vunpack.c.h.b16 %v43
  %v147 = vunpack.c.l.b16 %v44
  %v148 = vunpack.c.l.b16 %v45
  %v149 = vunpack.c.h.b16 %v45
  %v150 = vunpack.c.l.b16 %v46
  %v151 = vunpack.c.l.b16 %v47
  %v152 = vunpack.c.h.b16 %v47
  %v153 = vunpack.c.l.b16 %v48
  %v154 = vunpack.c.l.b16 %v49
  %v155 = vunpack.c.h.b16 %v49
  %v156 = vunpack.c.l.b16 %v50
  %v157 = vunpack.c.l.b16 %v51
  %v158 = vunpack.c.h.b16 %v51
  %v159 = vunpack.c.l.b16 %v52
  %v160 = vunpack.c.l.b16 %v53
  %v161 = vunpack.c.h.b16 %v53
  %v162 = vunpack.c.l.b16 %v54
  %v163 = vunpack.c.l.b16 %v55
  %v164 = vunpack.c.h.b16 %v55
  %v165 = vunpack.c.l.b16 %v56
  %v166 = vunpack.c.l.b16 %v57
  %v167 = vunpack.c.h.b16 %v57
  %v168 = vunpack.c.l.b16 %v58
  %v169 = vunpack.c.l.b16 %v59
  %v170 = vunpack.c.h.b16 %v59
  %v171 = vunpack.c.l.b16 %v60
  %v172 = vunpack.c.l.b16 %v61
  %v173 = vunpack.c.h.b16 %v61
  %v174 = vunpack.c.l.b16 %v62
  %v175 = vunpack.c.l.b16 %v63
  %v176 = vunpack.c.h.b16 %v63
  %v177 = vunpack.c.l.b16 %v64
  %v178 = vunpack.c.l.b16 %v65
  %v179 = vunpack.c.h.b16 %v65
  %v180 = vunpack.c.l.b16 %v66
  %v181 = vpack.c.b16 %v136, %v133
  %v182 = vpack.c.b16 %v137, %v134
  %v183 = vpack.c.b16 %v138, %v135
  %v184 = vpack.c.b16 %v142, %v139
  %v185 = vpack.c.b16 %v143, %v140
  %v186 = vpack.c.b16 %v144, %v141
  %v187 = vpack.c.b16 %v148, %v145
  %v188 = vpack.c.b16 %v149, %v146
  %v189 = vpack.c.b16 %v150, %v147
  %v190 = vpack.c.b16 %v154, %v151
  %v191 = vpack.c.b16 %v155, %v152
  %v192 = vpack.c.b16 %v156, %v153
  %v193 = vpack.c.b16 %v160, %v157
  %v194 = vpack.c.b16 %v161, %v158
  %v195 = vpack.c.b16 %v162, %v159
  %v196 = vpack.c.b16 %v166, %v163
  %v197 = vpack.c.b16 %v167, %v164
  %v198 = vpack.c.b16 %v168, %v165
  %v199 = vpack.c.b16 %v172, %v169
  %v200 = vpack.c.b16 %v173, %v170
  %v201 = vpack.c.b16 %v174, %v171
  %v202 = vpack.c.b16 %v178, %v175
  %v203 = vpack.c.b16 %v179, %v176
  %v204 = vpack.c.b16 %v180, %v177
  %229 = vmatprep.subr.bf16.mxu0 %v182
  %230 = vmatpush1.bf16.msra.mxu0 %v181
  %231 = vmatprep.subr.bf16.mxu0 %v185
  %232 = vmatpush1.bf16.msra.mxu0 %v184
  %233 = vmatprep.subr.bf16.mxu0 %v188
  %234 = vmatpush1.bf16.msra.mxu0 %v187
  %235 = vmatprep.subr.bf16.mxu0 %v191
  %236 = vmatpush1.bf16.msra.mxu0 %v190
  %237 = vmatprep.subr.bf16.mxu0 %v194
  %238 = vmatpush1.bf16.msra.mxu0 %v193
  %239 = vmatprep.subr.bf16.mxu0 %v197
  %240 = vmatpush1.bf16.msra.mxu0 %v196
  %241 = vmatprep.subr.bf16.mxu0 %v200
  %242 = vmatpush1.bf16.msra.mxu0 %v199
  %243 = vmatprep.subr.bf16.mxu0 %v203
  %244 = vmatpush1.bf16.msra.mxu0 %v202
  %245 = vmatprep.subr.bf16.mxu0 0
  %246 = vmatpush1.bf16.msra.mxu0 0
  %247 = vmatprep.subr.bf16.mxu0 0
  %248 = vmatpush1.bf16.msra.mxu0 0
  %249 = vmatprep.subr.bf16.mxu0 0
  %250 = vmatpush1.bf16.msra.mxu0 0
  %251 = vmatprep.subr.bf16.mxu0 0
  %252 = vmatpush1.bf16.msra.mxu0 0
  %253 = vmatprep.subr.bf16.mxu0 0
  %254 = vmatpush1.bf16.msra.mxu0 0
  %255 = vmatprep.subr.bf16.mxu0 0
  %256 = vmatpush1.bf16.msra.mxu0 0
  %257 = vmatprep.subr.bf16.mxu0 0
  %258 = vmatpush1.bf16.msra.mxu0 0
  %259 = vmatprep.subr.bf16.mxu0 0
  %260 = vmatpush1.bf16.msra.mxu0 0
  %261 = vmatprep.mubr.bf16.mxu0 0
  %262 = vmatmul.mubr.bf16.gmra.mrb[0].mxu0 %v89
  %v263 = vpop.f32.mrb[0].mxu0
  %v264 = vadd.f32 0.0, %v263
  %v265 = vpop.f32.mrb[0].mxu0
  %v266 = vadd.f32 0.0, %v265
  %v267 = vpop.f32.mrb[0].mxu0
  %v268 = vadd.f32 0.0, %v267
  %v269 = vpop.f32.mrb[0].mxu0
  %v270 = vadd.f32 0.0, %v269
  %271 = vmatprep.mubr.bf16.mxu0 0
  %272 = vmatmul.mubr.bf16.gmra.mrb[0].mxu0 %v90
  %v273 = vpop.f32.mrb[0].mxu0
  %v274 = vadd.f32 0.0, %v273
  %v275 = vpop.f32.mrb[0].mxu0
  %v276 = vadd.f32 0.0, %v275
  %v277 = vpop.f32.mrb[0].mxu0
  %v278 = vadd.f32 0.0, %v277
  %v279 = vpop.f32.mrb[0].mxu0
  %v280 = vadd.f32 0.0, %v279
  %281 = vmatprep.mubr.bf16.mxu0 0
  %282 = vmatmul.mubr.bf16.gmra.mrb[0].mxu0 %v91
  %v283 = vpop.f32.mrb[0].mxu0
  %v284 = vadd.f32 0.0, %v283
  %v285 = vpop.f32.mrb[0].mxu0
  %v286 = vadd.f32 0.0, %v285
  %v287 = vpop.f32.mrb[0].mxu0
  %v288 = vadd.f32 0.0, %v287
  %v289 = vpop.f32.mrb[0].mxu0
  %v290 = vadd.f32 0.0, %v289
  %291 = vmatprep.mubr.bf16.mxu0 0
  %292 = vmatmul.mubr.bf16.gmra.mrb[0].mxu0 %v92
  %v293 = vpop.f32.mrb[0].mxu0
  %v294 = vadd.f32 0.0, %v293
  %v295 = vpop.f32.mrb[0].mxu0
  %v296 = vadd.f32 0.0, %v295
  %v297 = vpop.f32.mrb[0].mxu0
  %v298 = vadd.f32 0.0, %v297
  %v299 = vpop.f32.mrb[0].mxu0
  %v300 = vadd.f32 0.0, %v299
  %301 = vmatprep.mubr.bf16.mxu0 0
  %302 = vmatmul.mubr.bf16.gmra.mrb[0].mxu0 %v93
  %v303 = vpop.f32.mrb[0].mxu0
  %v304 = vadd.f32 0.0, %v303
  %v305 = vpop.f32.mrb[0].mxu0
  %v306 = vadd.f32 0.0, %v305
  %v307 = vpop.f32.mrb[0].mxu0
  %v308 = vadd.f32 0.0, %v307
  %v309 = vpop.f32.mrb[0].mxu0
  %v310 = vadd.f32 0.0, %v309
  %311 = vmatprep.mubr.bf16.mxu0 0
  %312 = vmatmul.mubr.bf16.gmra.mrb[0].mxu0 %v94
  %v313 = vpop.f32.mrb[0].mxu0
  %v314 = vadd.f32 0.0, %v313
  %v315 = vpop.f32.mrb[0].mxu0
  %v316 = vadd.f32 0.0, %v315
  %v317 = vpop.f32.mrb[0].mxu0
  %v318 = vpop.f32.mrb[0].mxu0
  %319 = vdwg.mxu0
  %320 = vmatprep.subr.bf16.mxu0 0
  %321 = vmatpush1.bf16.msra.mxu0 %v183
  %322 = vmatprep.subr.bf16.mxu0 0
  %323 = vmatpush1.bf16.msra.mxu0 %v186
  %324 = vmatprep.subr.bf16.mxu0 0
  %325 = vmatpush1.bf16.msra.mxu0 %v189
  %326 = vmatprep.subr.bf16.mxu0 0
  %327 = vmatpush1.bf16.msra.mxu0 %v192
  %328 = vmatprep.subr.bf16.mxu0 0
  %329 = vmatpush1.bf16.msra.mxu0 %v195
  %330 = vmatprep.subr.bf16.mxu0 0
  %331 = vmatpush1.bf16.msra.mxu0 %v198
  %332 = vmatprep.subr.bf16.mxu0 0
  %333 = vmatpush1.bf16.msra.mxu0 %v201
  %334 = vmatprep.subr.bf16.mxu0 0
  %335 = vmatpush1.bf16.msra.mxu0 %v204
  %336 = vmatprep.subr.bf16.mxu0 0
  %337 = vmatpush1.bf16.msra.mxu0 0
  %338 = vmatprep.subr.bf16.mxu0 0
  %339 = vmatpush1.bf16.msra.mxu0 0
  %340 = vmatprep.subr.bf16.mxu0 0
  %341 = vmatpush1.bf16.msra.mxu0 0
  %342 = vmatprep.subr.bf16.mxu0 0
  %343 = vmatpush1.bf16.msra.mxu0 0
  %344 = vmatprep.subr.bf16.mxu0 0
  %345 = vmatpush1.bf16.msra.mxu0 0
  %346 = vmatprep.subr.bf16.mxu0 0
  %347 = vmatpush1.bf16.msra.mxu0 0
  %348 = vmatprep.subr.bf16.mxu0 0
  %349 = vmatpush1.bf16.msra.mxu0 0
  %350 = vmatprep.subr.bf16.mxu0 0
  %351 = vmatpush1.bf16.msra.mxu0 0
  %352 = vmatprep.mubr.bf16.mxu0 0
  %353 = vmatmul.mubr.bf16.gmra.mrb[0].mxu0 %v89
  %v354 = vpop.f32.mrb[0].mxu0
  %v355 = vadd.f32 0.0, %v354
  %v356 = vpop.f32.mrb[0].mxu0
  %v357 = vpop.f32.mrb[0].mxu0
  %v358 = vadd.f32 0.0, %v357
  %v359 = vpop.f32.mrb[0].mxu0
  %360 = vmatprep.mubr.bf16.mxu0 0
  %361 = vmatmul.mubr.bf16.gmra.mrb[0].mxu0 %v90
  %v362 = vpop.f32.mrb[0].mxu0
  %v363 = vadd.f32 0.0, %v362
  %v364 = vpop.f32.mrb[0].mxu0
  %v365 = vpop.f32.mrb[0].mxu0
  %v366 = vadd.f32 0.0, %v365
  %v367 = vpop.f32.mrb[0].mxu0
  %368 = vmatprep.mubr.bf16.mxu0 0
  %369 = vmatmul.mubr.bf16.gmra.mrb[0].mxu0 %v91
  %v370 = vpop.f32.mrb[0].mxu0
  %v371 = vadd.f32 0.0, %v370
  %v372 = vpop.f32.mrb[0].mxu0
  %v373 = vpop.f32.mrb[0].mxu0
  %v374 = vadd.f32 0.0, %v373
  %v375 = vpop.f32.mrb[0].mxu0
  %376 = vmatprep.mubr.bf16.mxu0 0
  %377 = vmatmul.mubr.bf16.gmra.mrb[0].mxu0 %v92
  %v378 = vpop.f32.mrb[0].mxu0
  %v379 = vadd.f32 0.0, %v378
  %v380 = vpop.f32.mrb[0].mxu0
  %v381 = vpop.f32.mrb[0].mxu0
  %v382 = vadd.f32 0.0, %v381
  %v383 = vpop.f32.mrb[0].mxu0
  %384 = vmatprep.mubr.bf16.mxu0 0
  %385 = vmatmul.mubr.bf16.gmra.mrb[0].mxu0 %v93
  %v386 = vpop.f32.mrb[0].mxu0
  %v387 = vadd.f32 0.0, %v386
  %v388 = vpop.f32.mrb[0].mxu0
  %v389 = vpop.f32.mrb[0].mxu0
  %v390 = vadd.f32 0.0, %v389
  %v391 = vpop.f32.mrb[0].mxu0
  %392 = vmatprep.mubr.bf16.mxu0 0
  %393 = vmatmul.mubr.bf16.gmra.mrb[0].mxu0 %v94
  %v394 = vpop.f32.mrb[0].mxu0
  %v395 = vadd.f32 0.0, %v394
  %v396 = vpop.f32.mrb[0].mxu0
  %v397 = vpop.f32.mrb[0].mxu0
  %v398 = vpop.f32.mrb[0].mxu0
  %399 = vdwg.mxu0
  %v400 = vpack.c.bf16 %v268, %v264
  %v401 = vpack.c.bf16 %v270, %v266
  %v402 = vpack.c.bf16 %v358, %v355
  %v403 = vpack.c.bf16 %v278, %v274
  %v404 = vpack.c.bf16 %v280, %v276
  %v405 = vpack.c.bf16 %v366, %v363
  %v406 = vpack.c.bf16 %v288, %v284
  %v407 = vpack.c.bf16 %v290, %v286
  %v408 = vpack.c.bf16 %v374, %v371
  %v409 = vpack.c.bf16 %v298, %v294
  %v410 = vpack.c.bf16 %v300, %v296
  %v411 = vpack.c.bf16 %v382, %v379
  %v412 = vpack.c.bf16 %v308, %v304
  %v413 = vpack.c.bf16 %v310, %v306
  %v414 = vpack.c.bf16 %v390, %v387
  %v415 = vpack.c.bf16 %v314, %v314
  %v416 = vpack.c.bf16 %v316, %v316
  %v417 = vpack.c.bf16 %v395, %v395
  %v418 = vld [vmem:[%s3] sm:$0xf]
  %v419 = vld [vmem:[%s3 + $0x4] sm:$0xf]
  %v420 = vld [vmem:[%s3 + $0x8] sm:$0xf]
  %v421 = vld [vmem:[%s3 + $0xc] sm:$0xf]
  %v422 = vld [vmem:[%s3 + $0x10] sm:$0xf]
  %v423 = vld [vmem:[%s3 + $0x14] sm:$0xf]
  %v424 = vld [vmem:[%s3 + $0x18] sm:$0xf]
  %v425 = vld [vmem:[%s3 + $0x1c] sm:$0xf]
  %v426 = vld [vmem:[%s3 + $0x20] sm:$0xf]
  %v427 = vld [vmem:[%s3 + $0x24] sm:$0xf]
  %v428 = vld [vmem:[%s3 + $0x28] sm:$0x3]
  %s429 = scalar_lea.vmem %s3, 44
  %v430 = vld [vmem:[%s429] sm:$0xf]
  %v431 = vld [vmem:[%s429 + $0x4] sm:$0xf]
  %v432 = vld [vmem:[%s429 + $0x8] sm:$0xf]
  %v433 = vld [vmem:[%s429 + $0xc] sm:$0xf]
  %v434 = vld [vmem:[%s429 + $0x10] sm:$0xf]
  %v435 = vld [vmem:[%s429 + $0x14] sm:$0xf]
  %v436 = vld [vmem:[%s429 + $0x18] sm:$0xf]
  %v437 = vld [vmem:[%s429 + $0x1c] sm:$0xf]
  %v438 = vld [vmem:[%s429 + $0x20] sm:$0xf]
  %v439 = vld [vmem:[%s429 + $0x24] sm:$0xf]
  %v440 = vld [vmem:[%s429 + $0x28] sm:$0x3]
  %v452 = vunpack.c.l.b16 %v430
  %v453 = vunpack.c.l.b16 %v431
  %v454 = vunpack.c.l.b16 %v432
  %v455 = vunpack.c.l.b16 %v433
  %v456 = vunpack.c.l.b16 %v434
  %v457 = vunpack.c.l.b16 %v435
  %v458 = vunpack.c.l.b16 %v436
  %v459 = vunpack.c.l.b16 %v437
  %v460 = vunpack.c.l.b16 %v438
  %v461 = vunpack.c.l.b16 %v439
  %v462 = vunpack.c.l.b16 %v440
  %v463 = vpack.c.b16 %v453, %v452
  %v464 = vpack.c.b16 %v455, %v454
  %v465 = vpack.c.b16 %v457, %v456
  %v466 = vpack.c.b16 %v459, %v458
  %v467 = vpack.c.b16 %v461, %v460
  %v468 = vpack.c.b16 %v462, %v462
  %vm469 = vcmask 687104
  %v471 = vsel %vm469, %v463, 0
  %v474 = vsel %vm469, %v464, 0
  %v477 = vsel %vm469, %v465, 0
  %v480 = vsel %vm469, %v466, 0
  %v483 = vsel %vm469, %v467, 0
  %v486 = vsel %vm469, %v468, 0
  %vm488 = vcmask 1041408
  %v490 = vsel %vm488, %v416, 0
  %492 = vmatprep.subr.bf16.mxu0 0
  %493 = vmatpush1.bf16.msra.mxu0 %v401
  %494 = vmatprep.subr.bf16.mxu0 0
  %495 = vmatpush1.bf16.msra.mxu0 %v404
  %496 = vmatprep.subr.bf16.mxu0 0
  %497 = vmatpush1.bf16.msra.mxu0 %v407
  %498 = vmatprep.subr.bf16.mxu0 0
  %499 = vmatpush1.bf16.msra.mxu0 %v410
  %500 = vmatprep.subr.bf16.mxu0 0
  %501 = vmatpush1.bf16.msra.mxu0 %v413
  %502 = vmatprep.subr.bf16.mxu0 0
  %503 = vmatpush1.bf16.msra.mxu0 %v490
  %504 = vmatprep.subr.bf16.mxu0 0
  %505 = vmatpush1.bf16.msra.mxu0 0
  %506 = vmatprep.subr.bf16.mxu0 0
  %507 = vmatpush1.bf16.msra.mxu0 0
  %508 = vmatprep.subr.bf16.mxu0 0
  %509 = vmatpush1.bf16.msra.mxu0 0
  %510 = vmatprep.subr.bf16.mxu0 0
  %511 = vmatpush1.bf16.msra.mxu0 0
  %512 = vmatprep.subr.bf16.mxu0 0
  %513 = vmatpush1.bf16.msra.mxu0 0
  %514 = vmatprep.subr.bf16.mxu0 0
  %515 = vmatpush1.bf16.msra.mxu0 0
  %516 = vmatprep.subr.bf16.mxu0 0
  %517 = vmatpush1.bf16.msra.mxu0 0
  %518 = vmatprep.subr.bf16.mxu0 0
  %519 = vmatpush1.bf16.msra.mxu0 0
  %520 = vmatprep.subr.bf16.mxu0 0
  %521 = vmatpush1.bf16.msra.mxu0 0
  %522 = vmatprep.subr.bf16.mxu0 0
  %523 = vmatpush1.bf16.msra.mxu0 0
  %524 = vmatprep.mubr.bf16.mxu0 0
  %525 = vmatmul.mubr.bf16.gmra.mrb[0].mxu0 %v471
  %v526 = vpop.f32.mrb[0].mxu0
  %v527 = vadd.f32 0.0, %v526
  %v528 = vpop.f32.mrb[0].mxu0
  %v529 = vpop.f32.mrb[0].mxu0
  %v530 = vadd.f32 0.0, %v529
  %v531 = vpop.f32.mrb[0].mxu0
  %532 = vmatprep.mubr.bf16.mxu0 0
  %533 = vmatmul.mubr.bf16.gmra.mrb[0].mxu0 %v474
  %v534 = vpop.f32.mrb[0].mxu0
  %v535 = vadd.f32 0.0, %v534
  %v536 = vpop.f32.mrb[0].mxu0
  %v537 = vpop.f32.mrb[0].mxu0
  %v538 = vadd.f32 0.0, %v537
  %v539 = vpop.f32.mrb[0].mxu0
  %540 = vmatprep.mubr.bf16.mxu0 0
  %541 = vmatmul.mubr.bf16.gmra.mrb[0].mxu0 %v477
  %v542 = vpop.f32.mrb[0].mxu0
  %v543 = vadd.f32 0.0, %v542
  %v544 = vpop.f32.mrb[0].mxu0
  %v545 = vpop.f32.mrb[0].mxu0
  %v546 = vadd.f32 0.0, %v545
  %v547 = vpop.f32.mrb[0].mxu0
  %548 = vmatprep.mubr.bf16.mxu0 0
  %549 = vmatmul.mubr.bf16.gmra.mrb[0].mxu0 %v480
  %v550 = vpop.f32.mrb[0].mxu0
  %v551 = vadd.f32 0.0, %v550
  %v552 = vpop.f32.mrb[0].mxu0
  %v553 = vpop.f32.mrb[0].mxu0
  %v554 = vadd.f32 0.0, %v553
  %v555 = vpop.f32.mrb[0].mxu0
  %556 = vmatprep.mubr.bf16.mxu0 0
  %557 = vmatmul.mubr.bf16.gmra.mrb[0].mxu0 %v483
  %v558 = vpop.f32.mrb[0].mxu0
  %v559 = vadd.f32 0.0, %v558
  %v560 = vpop.f32.mrb[0].mxu0
  %v561 = vpop.f32.mrb[0].mxu0
  %v562 = vadd.f32 0.0, %v561
  %v563 = vpop.f32.mrb[0].mxu0
  %564 = vmatprep.mubr.bf16.mxu0 0
  %565 = vmatmul.mubr.bf16.gmra.mrb[0].mxu0 %v486
  %v566 = vpop.f32.mrb[0].mxu0
  %v567 = vadd.f32 0.0, %v566
  %v568 = vpop.f32.mrb[0].mxu0
  %v569 = vpop.f32.mrb[0].mxu0
  %v570 = vpop.f32.mrb[0].mxu0
  %571 = vdwg.mxu0
  %v583 = vunpack.c.l.b16 %v418
  %v584 = vunpack.c.l.b16 %v419
  %v585 = vunpack.c.l.b16 %v420
  %v586 = vunpack.c.l.b16 %v421
  %v587 = vunpack.c.l.b16 %v422
  %v588 = vunpack.c.l.b16 %v423
  %v589 = vunpack.c.l.b16 %v424
  %v590 = vunpack.c.l.b16 %v425
  %v591 = vunpack.c.l.b16 %v426
  %v592 = vunpack.c.l.b16 %v427
  %v593 = vunpack.c.l.b16 %v428
  %v594 = vpack.c.b16 %v584, %v583
  %v595 = vpack.c.b16 %v586, %v585
  %v596 = vpack.c.b16 %v588, %v587
  %v597 = vpack.c.b16 %v590, %v589
  %v598 = vpack.c.b16 %v592, %v591
  %v599 = vpack.c.b16 %v593, %v593
  %v601 = vsel %vm469, %v594, 0
  %v604 = vsel %vm469, %v595, 0
  %v607 = vsel %vm469, %v596, 0
  %v610 = vsel %vm469, %v597, 0
  %v613 = vsel %vm469, %v598, 0
  %v616 = vsel %vm469, %v599, 0
  %v619 = vsel %vm488, %v415, 0
  %621 = vmatprep.subr.bf16.mxu0 0
  %622 = vmatpush1.bf16.msra.mxu0 %v400
  %623 = vmatprep.subr.bf16.mxu0 0
  %624 = vmatpush1.bf16.msra.mxu0 %v403
  %625 = vmatprep.subr.bf16.mxu0 0
  %626 = vmatpush1.bf16.msra.mxu0 %v406
  %627 = vmatprep.subr.bf16.mxu0 0
  %628 = vmatpush1.bf16.msra.mxu0 %v409
  %629 = vmatprep.subr.bf16.mxu0 0
  %630 = vmatpush1.bf16.msra.mxu0 %v412
  %631 = vmatprep.subr.bf16.mxu0 0
  %632 = vmatpush1.bf16.msra.mxu0 %v619
  %633 = vmatprep.subr.bf16.mxu0 0
  %634 = vmatpush1.bf16.msra.mxu0 0
  %635 = vmatprep.subr.bf16.mxu0 0
  %636 = vmatpush1.bf16.msra.mxu0 0
  %637 = vmatprep.subr.bf16.mxu0 0
  %638 = vmatpush1.bf16.msra.mxu0 0
  %639 = vmatprep.subr.bf16.mxu0 0
  %640 = vmatpush1.bf16.msra.mxu0 0
  %641 = vmatprep.subr.bf16.mxu0 0
  %642 = vmatpush1.bf16.msra.mxu0 0
  %643 = vmatprep.subr.bf16.mxu0 0
  %644 = vmatpush1.bf16.msra.mxu0 0
  %645 = vmatprep.subr.bf16.mxu0 0
  %646 = vmatpush1.bf16.msra.mxu0 0
  %647 = vmatprep.subr.bf16.mxu0 0
  %648 = vmatpush1.bf16.msra.mxu0 0
  %649 = vmatprep.subr.bf16.mxu0 0
  %650 = vmatpush1.bf16.msra.mxu0 0
  %651 = vmatprep.subr.bf16.mxu0 0
  %652 = vmatpush1.bf16.msra.mxu0 0
  %653 = vmatprep.mubr.bf16.mxu0 0
  %654 = vmatmul.mubr.bf16.gmra.mrb[0].mxu0 %v601
  %v655 = vpop.f32.mrb[0].mxu0
  %v656 = vadd.f32 %v527, %v655
  %v657 = vpop.f32.mrb[0].mxu0
  %v658 = vpop.f32.mrb[0].mxu0
  %v659 = vadd.f32 %v530, %v658
  %v660 = vpop.f32.mrb[0].mxu0
  %661 = vmatprep.mubr.bf16.mxu0 0
  %662 = vmatmul.mubr.bf16.gmra.mrb[0].mxu0 %v604
  %v663 = vpop.f32.mrb[0].mxu0
  %v664 = vadd.f32 %v535, %v663
  %v665 = vpop.f32.mrb[0].mxu0
  %v666 = vpop.f32.mrb[0].mxu0
  %v667 = vadd.f32 %v538, %v666
  %v668 = vpop.f32.mrb[0].mxu0
  %669 = vmatprep.mubr.bf16.mxu0 0
  %670 = vmatmul.mubr.bf16.gmra.mrb[0].mxu0 %v607
  %v671 = vpop.f32.mrb[0].mxu0
  %v672 = vadd.f32 %v543, %v671
  %v673 = vpop.f32.mrb[0].mxu0
  %v674 = vpop.f32.mrb[0].mxu0
  %v675 = vadd.f32 %v546, %v674
  %v676 = vpop.f32.mrb[0].mxu0
  %677 = vmatprep.mubr.bf16.mxu0 0
  %678 = vmatmul.mubr.bf16.gmra.mrb[0].mxu0 %v610
  %v679 = vpop.f32.mrb[0].mxu0
  %v680 = vadd.f32 %v551, %v679
  %v681 = vpop.f32.mrb[0].mxu0
  %v682 = vpop.f32.mrb[0].mxu0
  %v683 = vadd.f32 %v554, %v682
  %v684 = vpop.f32.mrb[0].mxu0
  %685 = vmatprep.mubr.bf16.mxu0 0
  %686 = vmatmul.mubr.bf16.gmra.mrb[0].mxu0 %v613
  %v687 = vpop.f32.mrb[0].mxu0
  %v688 = vadd.f32 %v559, %v687
  %v689 = vpop.f32.mrb[0].mxu0
  %v690 = vpop.f32.mrb[0].mxu0
  %v691 = vadd.f32 %v562, %v690
  %v692 = vpop.f32.mrb[0].mxu0
  %693 = vmatprep.mubr.bf16.mxu0 0
  %694 = vmatmul.mubr.bf16.gmra.mrb[0].mxu0 %v616
  %v695 = vpop.f32.mrb[0].mxu0
  %v696 = vadd.f32 %v567, %v695
  %v697 = vpop.f32.mrb[0].mxu0
  %v698 = vpop.f32.mrb[0].mxu0
  %v699 = vpop.f32.mrb[0].mxu0
  %700 = vdwg.mxu0
  %s701 = scalar_lea.vmem %s3, 88
  %v702 = vld [vmem:[%s701] sm:$0xf]
  %v703 = vld [vmem:[%s701 + $0x4] sm:$0xf]
  %v704 = vld [vmem:[%s701 + $0x8] sm:$0xf]
  %v705 = vld [vmem:[%s701 + $0xc] sm:$0xf]
  %v706 = vld [vmem:[%s701 + $0x10] sm:$0xf]
  %v707 = vld [vmem:[%s701 + $0x14] sm:$0xf]
  %v708 = vld [vmem:[%s701 + $0x18] sm:$0xf]
  %v709 = vld [vmem:[%s701 + $0x1c] sm:$0xf]
  %v710 = vld [vmem:[%s701 + $0x20] sm:$0xf]
  %v711 = vld [vmem:[%s701 + $0x24] sm:$0xf]
  %v712 = vld [vmem:[%s701 + $0x28] sm:$0x3]
  %v724 = vunpack.c.l.b16 %v702
  %v725 = vunpack.c.l.b16 %v703
  %v726 = vunpack.c.l.b16 %v704
  %v727 = vunpack.c.l.b16 %v705
  %v728 = vunpack.c.l.b16 %v706
  %v729 = vunpack.c.l.b16 %v707
  %v730 = vunpack.c.l.b16 %v708
  %v731 = vunpack.c.l.b16 %v709
  %v732 = vunpack.c.l.b16 %v710
  %v733 = vunpack.c.l.b16 %v711
  %v734 = vunpack.c.l.b16 %v712
  %v735 = vpack.c.b16 %v725, %v724
  %v736 = vpack.c.b16 %v727, %v726
  %v737 = vpack.c.b16 %v729, %v728
  %v738 = vpack.c.b16 %v731, %v730
  %v739 = vpack.c.b16 %v733, %v732
  %v740 = vpack.c.b16 %v734, %v734
  %v742 = vsel %vm469, %v735, 0
  %v745 = vsel %vm469, %v736, 0
  %v748 = vsel %vm469, %v737, 0
  %v751 = vsel %vm469, %v738, 0
  %v754 = vsel %vm469, %v739, 0
  %v757 = vsel %vm469, %v740, 0
  %v760 = vsel %vm488, %v417, 0
  %762 = vmatprep.subr.bf16.mxu0 0
  %763 = vmatpush1.bf16.msra.mxu0 %v402
  %764 = vmatprep.subr.bf16.mxu0 0
  %765 = vmatpush1.bf16.msra.mxu0 %v405
  %766 = vmatprep.subr.bf16.mxu0 0
  %767 = vmatpush1.bf16.msra.mxu0 %v408
  %768 = vmatprep.subr.bf16.mxu0 0
  %769 = vmatpush1.bf16.msra.mxu0 %v411
  %770 = vmatprep.subr.bf16.mxu0 0
  %771 = vmatpush1.bf16.msra.mxu0 %v414
  %772 = vmatprep.subr.bf16.mxu0 0
  %773 = vmatpush1.bf16.msra.mxu0 %v760
  %774 = vmatprep.subr.bf16.mxu0 0
  %775 = vmatpush1.bf16.msra.mxu0 0
  %776 = vmatprep.subr.bf16.mxu0 0
  %777 = vmatpush1.bf16.msra.mxu0 0
  %778 = vmatprep.subr.bf16.mxu0 0
  %779 = vmatpush1.bf16.msra.mxu0 0
  %780 = vmatprep.subr.bf16.mxu0 0
  %781 = vmatpush1.bf16.msra.mxu0 0
  %782 = vmatprep.subr.bf16.mxu0 0
  %783 = vmatpush1.bf16.msra.mxu0 0
  %784 = vmatprep.subr.bf16.mxu0 0
  %785 = vmatpush1.bf16.msra.mxu0 0
  %786 = vmatprep.subr.bf16.mxu0 0
  %787 = vmatpush1.bf16.msra.mxu0 0
  %788 = vmatprep.subr.bf16.mxu0 0
  %789 = vmatpush1.bf16.msra.mxu0 0
  %790 = vmatprep.subr.bf16.mxu0 0
  %791 = vmatpush1.bf16.msra.mxu0 0
  %792 = vmatprep.subr.bf16.mxu0 0
  %793 = vmatpush1.bf16.msra.mxu0 0
  %794 = vmatprep.mubr.bf16.mxu0 0
  %795 = vmatmul.mubr.bf16.gmra.mrb[0].mxu0 %v742
  %v796 = vpop.f32.mrb[0].mxu0
  %v797 = vadd.f32 0.0, %v796
  %v798 = vpop.f32.mrb[0].mxu0
  %v799 = vpop.f32.mrb[0].mxu0
  %v800 = vadd.f32 0.0, %v799
  %v801 = vpop.f32.mrb[0].mxu0
  %802 = vmatprep.mubr.bf16.mxu0 0
  %803 = vmatmul.mubr.bf16.gmra.mrb[0].mxu0 %v745
  %v804 = vpop.f32.mrb[0].mxu0
  %v805 = vadd.f32 0.0, %v804
  %v806 = vpop.f32.mrb[0].mxu0
  %v807 = vpop.f32.mrb[0].mxu0
  %v808 = vadd.f32 0.0, %v807
  %v809 = vpop.f32.mrb[0].mxu0
  %810 = vmatprep.mubr.bf16.mxu0 0
  %811 = vmatmul.mubr.bf16.gmra.mrb[0].mxu0 %v748
  %v812 = vpop.f32.mrb[0].mxu0
  %v813 = vadd.f32 0.0, %v812
  %v814 = vpop.f32.mrb[0].mxu0
  %v815 = vpop.f32.mrb[0].mxu0
  %v816 = vadd.f32 0.0, %v815
  %v817 = vpop.f32.mrb[0].mxu0
  %818 = vmatprep.mubr.bf16.mxu0 0
  %819 = vmatmul.mubr.bf16.gmra.mrb[0].mxu0 %v751
  %v820 = vpop.f32.mrb[0].mxu0
  %v821 = vadd.f32 0.0, %v820
  %v822 = vpop.f32.mrb[0].mxu0
  %v823 = vpop.f32.mrb[0].mxu0
  %v824 = vadd.f32 0.0, %v823
  %v825 = vpop.f32.mrb[0].mxu0
  %826 = vmatprep.mubr.bf16.mxu0 0
  %827 = vmatmul.mubr.bf16.gmra.mrb[0].mxu0 %v754
  %v828 = vpop.f32.mrb[0].mxu0
  %v829 = vadd.f32 0.0, %v828
  %v830 = vpop.f32.mrb[0].mxu0
  %v831 = vpop.f32.mrb[0].mxu0
  %v832 = vadd.f32 0.0, %v831
  %v833 = vpop.f32.mrb[0].mxu0
  %834 = vmatprep.mubr.bf16.mxu0 0
  %835 = vmatmul.mubr.bf16.gmra.mrb[0].mxu0 %v757
  %v836 = vpop.f32.mrb[0].mxu0
  %v837 = vadd.f32 0.0, %v836
  %v838 = vpop.f32.mrb[0].mxu0
  %v839 = vpop.f32.mrb[0].mxu0
  %v840 = vpop.f32.mrb[0].mxu0
  %841 = vdwg.mxu0
  %v842 = vadd.f32 %v656, %v797
  %v843 = vadd.f32 %v659, %v800
  %v844 = vadd.f32 %v664, %v805
  %v845 = vadd.f32 %v667, %v808
  %v846 = vadd.f32 %v672, %v813
  %v847 = vadd.f32 %v675, %v816
  %v848 = vadd.f32 %v680, %v821
  %v849 = vadd.f32 %v683, %v824
  %v850 = vadd.f32 %v688, %v829
  %v851 = vadd.f32 %v691, %v832
  %v852 = vadd.f32 %v696, %v837
  %v853 = vld [vmem:[%s2] sm:$0x1]
  %v855 = vlaneseq
  %v856 = vshrl.u32 %v855, 7
  %v857 = vsub.s32 0, %v856
  %v858 = vrot.slane %v853, %v857
  %v860 = vadd.f32 %v842, %v858
  %v861 = vadd.f32 %v843, %v858
  %v862 = vadd.f32 %v844, %v858
  %v863 = vadd.f32 %v845, %v858
  %v864 = vadd.f32 %v846, %v858
  %v865 = vadd.f32 %v847, %v858
  %v866 = vadd.f32 %v848, %v858
  %v867 = vadd.f32 %v849, %v858
  %v868 = vadd.f32 %v850, %v858
  %v869 = vadd.f32 %v851, %v858
  %v870 = vadd.f32 %v852, %v858
  %v871 = vmax.f32 %v860, 0.0
  %v872 = vmax.f32 %v861, 0.0
  %v873 = vmax.f32 %v862, 0.0
  %v874 = vmax.f32 %v863, 0.0
  %v875 = vmax.f32 %v864, 0.0
  %v876 = vmax.f32 %v865, 0.0
  %v877 = vmax.f32 %v866, 0.0
  %v878 = vmax.f32 %v867, 0.0
  %v879 = vmax.f32 %v868, 0.0
  %v880 = vmax.f32 %v869, 0.0
  %v881 = vmax.f32 %v870, 0.0
  %v882 = vpack.c.bf16 %v872, %v871
  %v883 = vpack.c.bf16 %v874, %v873
  %v884 = vpack.c.bf16 %v876, %v875
  %v885 = vpack.c.bf16 %v878, %v877
  %v886 = vpack.c.bf16 %v880, %v879
  %v887 = vpack.c.bf16 %v881, %v881
  %s888 = scalar_lea.vmem %s4, 256
  %v889 = vld [vmem:[%s888] sm:$0xf]
  %v890 = vld [vmem:[%s888 + $0x4] sm:$0xf]
  %v891 = vld [vmem:[%s888 + $0x8] sm:$0xf]
  %v892 = vld [vmem:[%s888 + $0xc] sm:$0xf]
  %v893 = vld [vmem:[%s888 + $0x10] sm:$0xf]
  %v894 = vld [vmem:[%s888 + $0x14] sm:$0xf]
  %v895 = vld [vmem:[%s888 + $0x18] sm:$0xf]
  %v896 = vld [vmem:[%s888 + $0x1c] sm:$0xf]
  %v897 = vld [vmem:[%s888 + $0x20] sm:$0xf]
  %v898 = vld [vmem:[%s888 + $0x24] sm:$0xf]
  %v899 = vld [vmem:[%s888 + $0x28] sm:$0xf]
  %v900 = vld [vmem:[%s888 + $0x2c] sm:$0xf]
  %v901 = vld [vmem:[%s888 + $0x30] sm:$0xf]
  %v902 = vld [vmem:[%s888 + $0x34] sm:$0xf]
  %v903 = vld [vmem:[%s888 + $0x38] sm:$0xf]
  %v904 = vld [vmem:[%s888 + $0x3c] sm:$0xf]
  %v905 = vld [vmem:[%s5] sm:$0x1]
  %v907 = vlaneseq
  %v908 = vshrl.u32 %v907, 7
  %v909 = vsub.s32 0, %v908
  %v910 = vrot.slane %v905, %v909
  %v928 = vunpack.c.l.b16 %v889
  %v929 = vunpack.c.l.b16 %v890
  %v930 = vunpack.c.l.b16 %v891
  %v931 = vunpack.c.l.b16 %v892
  %v932 = vunpack.c.l.b16 %v893
  %v933 = vunpack.c.l.b16 %v894
  %v934 = vunpack.c.l.b16 %v895
  %v935 = vunpack.c.l.b16 %v896
  %v936 = vunpack.c.l.b16 %v897
  %v937 = vunpack.c.l.b16 %v898
  %v938 = vunpack.c.l.b16 %v899
  %v939 = vunpack.c.l.b16 %v900
  %v940 = vunpack.c.l.b16 %v901
  %v941 = vunpack.c.l.b16 %v902
  %v942 = vunpack.c.l.b16 %v903
  %v943 = vunpack.c.l.b16 %v904
  %v944 = vpack.c.b16 %v929, %v928
  %v945 = vpack.c.b16 %v931, %v930
  %v946 = vpack.c.b16 %v933, %v932
  %v947 = vpack.c.b16 %v935, %v934
  %v948 = vpack.c.b16 %v937, %v936
  %v949 = vpack.c.b16 %v939, %v938
  %v950 = vpack.c.b16 %v941, %v940
  %v951 = vpack.c.b16 %v943, %v942
  %960 = vmatprep.subr.bf16.mxu0 0
  %961 = vmatpush1.bf16.msra.mxu0 %v944
  %962 = vmatprep.subr.bf16.mxu0 0
  %963 = vmatpush1.bf16.msra.mxu0 %v945
  %964 = vmatprep.subr.bf16.mxu0 0
  %965 = vmatpush1.bf16.msra.mxu0 %v946
  %966 = vmatprep.subr.bf16.mxu0 0
  %967 = vmatpush1.bf16.msra.mxu0 %v947
  %968 = vmatprep.subr.bf16.mxu0 0
  %969 = vmatpush1.bf16.msra.mxu0 %v948
  %970 = vmatprep.subr.bf16.mxu0 0
  %971 = vmatpush1.bf16.msra.mxu0 %v949
  %972 = vmatprep.subr.bf16.mxu0 0
  %973 = vmatpush1.bf16.msra.mxu0 %v950
  %974 = vmatprep.subr.bf16.mxu0 0
  %975 = vmatpush1.bf16.msra.mxu0 %v951
  %976 = vmatprep.subr.bf16.mxu0 0
  %977 = vmatpush1.bf16.msra.mxu0 0
  %978 = vmatprep.subr.bf16.mxu0 0
  %979 = vmatpush1.bf16.msra.mxu0 0
  %980 = vmatprep.subr.bf16.mxu0 0
  %981 = vmatpush1.bf16.msra.mxu0 0
  %982 = vmatprep.subr.bf16.mxu0 0
  %983 = vmatpush1.bf16.msra.mxu0 0
  %984 = vmatprep.subr.bf16.mxu0 0
  %985 = vmatpush1.bf16.msra.mxu0 0
  %986 = vmatprep.subr.bf16.mxu0 0
  %987 = vmatpush1.bf16.msra.mxu0 0
  %988 = vmatprep.subr.bf16.mxu0 0
  %989 = vmatpush1.bf16.msra.mxu0 0
  %990 = vmatprep.subr.bf16.mxu0 0
  %991 = vmatpush1.bf16.msra.mxu0 0
  %992 = vmatprep.mubr.bf16.mxu0 0
  %993 = vmatmul.mubr.bf16.gmra.mrb[0].mxu0 %v882
  %v994 = vpop.f32.mrb[0].mxu0
  %v995 = vadd.f32 %v910, %v994
  %v996 = vpop.f32.mrb[0].mxu0
  %v997 = vpop.f32.mrb[0].mxu0
  %v998 = vadd.f32 %v910, %v997
  %v999 = vpop.f32.mrb[0].mxu0
  %1000 = vmatprep.mubr.bf16.mxu0 0
  %1001 = vmatmul.mubr.bf16.gmra.mrb[0].mxu0 %v883
  %v1002 = vpop.f32.mrb[0].mxu0
  %v1003 = vadd.f32 %v910, %v1002
  %v1004 = vpop.f32.mrb[0].mxu0
  %v1005 = vpop.f32.mrb[0].mxu0
  %v1006 = vadd.f32 %v910, %v1005
  %v1007 = vpop.f32.mrb[0].mxu0
  %1008 = vmatprep.mubr.bf16.mxu0 0
  %1009 = vmatmul.mubr.bf16.gmra.mrb[0].mxu0 %v884
  %v1010 = vpop.f32.mrb[0].mxu0
  %v1011 = vadd.f32 %v910, %v1010
  %v1012 = vpop.f32.mrb[0].mxu0
  %v1013 = vpop.f32.mrb[0].mxu0
  %v1014 = vadd.f32 %v910, %v1013
  %v1015 = vpop.f32.mrb[0].mxu0
  %1016 = vmatprep.mubr.bf16.mxu0 0
  %1017 = vmatmul.mubr.bf16.gmra.mrb[0].mxu0 %v885
  %v1018 = vpop.f32.mrb[0].mxu0
  %v1019 = vadd.f32 %v910, %v1018
  %v1020 = vpop.f32.mrb[0].mxu0
  %v1021 = vpop.f32.mrb[0].mxu0
  %v1022 = vadd.f32 %v910, %v1021
  %v1023 = vpop.f32.mrb[0].mxu0
  %1024 = vmatprep.mubr.bf16.mxu0 0
  %1025 = vmatmul.mubr.bf16.gmra.mrb[0].mxu0 %v886
  %v1026 = vpop.f32.mrb[0].mxu0
  %v1027 = vadd.f32 %v910, %v1026
  %v1028 = vpop.f32.mrb[0].mxu0
  %v1029 = vpop.f32.mrb[0].mxu0
  %v1030 = vadd.f32 %v910, %v1029
  %v1031 = vpop.f32.mrb[0].mxu0
  %1032 = vmatprep.mubr.bf16.mxu0 0
  %1033 = vmatmul.mubr.bf16.gmra.mrb[0].mxu0 %v887
  %v1034 = vpop.f32.mrb[0].mxu0
  %v1035 = vadd.f32 %v910, %v1034
  %v1036 = vpop.f32.mrb[0].mxu0
  %v1037 = vpop.f32.mrb[0].mxu0
  %v1038 = vpop.f32.mrb[0].mxu0
  %1039 = vdwg.mxu0
  %v1040 = vunpack.c.l.bf16 %v24
  %v1041 = vunpack.c.l.bf16 %v25
  %v1042 = vunpack.c.l.bf16 %v26
  %v1043 = vunpack.c.l.bf16 %v27
  %v1044 = vunpack.c.l.bf16 %v28
  %v1045 = vunpack.c.l.bf16 %v29
  %v1046 = vunpack.c.l.bf16 %v30
  %v1047 = vunpack.c.l.bf16 %v31
  %v1048 = vunpack.c.l.bf16 %v32
  %v1049 = vunpack.c.l.bf16 %v33
  %v1050 = vunpack.c.l.bf16 %v34
  %v1051 = vadd.f32 %v995, %v1040
  %v1052 = vadd.f32 %v998, %v1041
  %v1053 = vadd.f32 %v1003, %v1042
  %v1054 = vadd.f32 %v1006, %v1043
  %v1055 = vadd.f32 %v1011, %v1044
  %v1056 = vadd.f32 %v1014, %v1045
  %v1057 = vadd.f32 %v1019, %v1046
  %v1058 = vadd.f32 %v1022, %v1047
  %v1059 = vadd.f32 %v1027, %v1048
  %v1060 = vadd.f32 %v1030, %v1049
  %v1061 = vadd.f32 %v1035, %v1050
  %v1062 = vmax.f32 %v1051, 0.0
  %v1063 = vmax.f32 %v1052, 0.0
  %v1064 = vmax.f32 %v1053, 0.0
  %v1065 = vmax.f32 %v1054, 0.0
  %v1066 = vmax.f32 %v1055, 0.0
  %v1067 = vmax.f32 %v1056, 0.0
  %v1068 = vmax.f32 %v1057, 0.0
  %v1069 = vmax.f32 %v1058, 0.0
  %v1070 = vmax.f32 %v1059, 0.0
  %v1071 = vmax.f32 %v1060, 0.0
  %v1072 = vmax.f32 %v1061, 0.0
  %v1073 = vpack.c.bf16 %v1063, %v1062
  %v1074 = vpack.c.bf16 %v1065, %v1064
  %v1075 = vpack.c.bf16 %v1067, %v1066
  %v1076 = vpack.c.bf16 %v1069, %v1068
  %v1077 = vpack.c.bf16 %v1071, %v1070
  %v1078 = vpack.c.bf16 %v1072, %v1072
  %v1085 = vunpack.c.l.b16 %v1073
  %v1086 = vunpack.c.h.b16 %v1073
  %v1087 = vunpack.c.l.b16 %v1074
  %v1088 = vunpack.c.h.b16 %v1074
  %v1089 = vunpack.c.l.b16 %v1075
  %v1090 = vunpack.c.h.b16 %v1075
  %v1091 = vunpack.c.l.b16 %v1076
  %v1092 = vunpack.c.h.b16 %v1076
  %v1093 = vunpack.c.l.b16 %v1077
  %v1094 = vunpack.c.h.b16 %v1077
  %v1095 = vunpack.c.l.b16 %v1078
  %v1096 = vpack.c.b16 %v1085, %v1085
  %v1097 = vpack.c.b16 %v1086, %v1086
  %v1098 = vpack.c.b16 %v1087, %v1087
  %v1099 = vpack.c.b16 %v1088, %v1088
  %v1100 = vpack.c.b16 %v1089, %v1089
  %v1101 = vpack.c.b16 %v1090, %v1090
  %v1102 = vpack.c.b16 %v1091, %v1091
  %v1103 = vpack.c.b16 %v1092, %v1092
  %v1104 = vpack.c.b16 %v1093, %v1093
  %v1105 = vpack.c.b16 %v1094, %v1094
  %v1106 = vpack.c.b16 %v1095, %v1095
  %1118 = vst [vmem:[%s6] sm:$0xf] %v1096
  %1119 = vst [vmem:[%s6 + $0x4] sm:$0xf] %v1097
  %1120 = vst [vmem:[%s6 + $0x8] sm:$0xf] %v1098
  %1121 = vst [vmem:[%s6 + $0xc] sm:$0xf] %v1099
  %1122 = vst [vmem:[%s6 + $0x10] sm:$0xf] %v1100
  %1123 = vst [vmem:[%s6 + $0x14] sm:$0xf] %v1101
  %1124 = vst [vmem:[%s6 + $0x18] sm:$0xf] %v1102
  %1125 = vst [vmem:[%s6 + $0x1c] sm:$0xf] %v1103
  %1126 = vst [vmem:[%s6 + $0x20] sm:$0xf] %v1104
  %1127 = vst [vmem:[%s6 + $0x24] sm:$0xf] %v1105
  %1128 = vst [vmem:[%s6 + $0x28] sm:$0x3] %v1106
  // Predicated region
  $region26: #{double_tpgcn_forward.20} parent=0 // pred_check
    _
  $region27: #{double_tpgcn_forward.20} parent=0 // pred_check_branch
    %1130 = sbr.rel (0) target = $region29
  $region28: #{double_tpgcn_forward.20} parent=0 // pred_region
    _
  $region29: #{double_tpgcn_forward.20} parent=0 // pred_fallthru
    _
  // Predicated region
  $region30: #{double_tpgcn_forward.20} parent=0 // pred_check
    _
  $region31: #{double_tpgcn_forward.20} parent=0 // pred_check_branch
    %1132 = sbr.rel (0) target = $region33
  $region32: #{double_tpgcn_forward.20} parent=0 // pred_region
    _
  $region33: #{double_tpgcn_forward.20} parent=0 // pred_fallthru
    _

// kernel: double_tpgcn_forward.23
$region0: #{double_tpgcn_forward.23}
  #allocation0 [shape = 'u32[]', space=smem, size = 0x4, offset = 0x4, fixed_abs, tag = 'smem constant byte address 0x4 - core index']
  #allocation1 [shape = 'u32[144,128]{1,0:T(1,128)}', space=vmem, size = 0x12000, scoped, tag = 'internal scratch']
  %s0 = inlined_call_operand.vmem [shape: bf16[2,42,256], index: 0, kind: input, shape index: {}]
  %s1 = inlined_call_operand.vmem [shape: bf16[2,42,256], index: 1, kind: input, shape index: {}]
  %s2 = inlined_call_operand.vmem [shape: bf16[256,54], index: 2, kind: input, shape index: {}]
  %s3 = inlined_call_operand.vmem [shape: f32[1,54], index: 3, kind: input, shape index: {}]
  %s4 = inlined_call_operand.vmem [shape: bf16[256,54], index: 4, kind: input, shape index: {}]
  %s5 = inlined_call_operand.vmem [shape: f32[1,54], index: 5, kind: input, shape index: {}]
  %s6 = inlined_call_operand.vmem [shape: f32[2,54], index: 6, kind: output, shape index: {0}]
  %s7 = inlined_call_operand.vmem [shape: f32[2,54], index: 7, kind: output, shape index: {1}]
  %8 = xla_tuple %s6, %s7
  %s9 = sld [smem:[#allocation0]]
  $region42: #{double_tpgcn_forward.23} parent=0
    _
  %s11 = ssub.s32 1, %s9
  %s12 = scalar_select 0, %s11, %s9
  // Predicated region
  $region2: #{double_tpgcn_forward.23} parent=0 // pred_check
    _
  $region3: #{double_tpgcn_forward.23} parent=0 // pred_check_branch
    %14 = sbr.rel (0) target = $region5
  $region4: #{double_tpgcn_forward.23} parent=0 // pred_region
    _
  $region5: #{double_tpgcn_forward.23} parent=0 // pred_fallthru
    _
  // Predicated region
  $region6: #{double_tpgcn_forward.23} parent=0 // pred_check
    _
  $region7: #{double_tpgcn_forward.23} parent=0 // pred_check_branch
    %16 = sbr.rel (0) target = $region9
  $region8: #{double_tpgcn_forward.23} parent=0 // pred_region
    _
  $region9: #{double_tpgcn_forward.23} parent=0 // pred_fallthru
    _
  // Predicated region
  $region10: #{double_tpgcn_forward.23} parent=0 // pred_check
    _
  $region11: #{double_tpgcn_forward.23} parent=0 // pred_check_branch
    %18 = sbr.rel (0) target = $region13
  $region12: #{double_tpgcn_forward.23} parent=0 // pred_region
    _
  $region13: #{double_tpgcn_forward.23} parent=0 // pred_fallthru
    _
  // Predicated region
  $region14: #{double_tpgcn_forward.23} parent=0 // pred_check
    _
  $region15: #{double_tpgcn_forward.23} parent=0 // pred_check_branch
    %20 = sbr.rel (0) target = $region17
  $region16: #{double_tpgcn_forward.23} parent=0 // pred_region
    _
  $region17: #{double_tpgcn_forward.23} parent=0 // pred_fallthru
    _
  // Predicated region
  $region18: #{double_tpgcn_forward.23} parent=0 // pred_check
    _
  $region19: #{double_tpgcn_forward.23} parent=0 // pred_check_branch
    %22 = sbr.rel (0) target = $region21
  $region20: #{double_tpgcn_forward.23} parent=0 // pred_region
    _
  $region21: #{double_tpgcn_forward.23} parent=0 // pred_fallthru
    _
  // Predicated region
  $region22: #{double_tpgcn_forward.23} parent=0 // pred_check
    _
  $region23: #{double_tpgcn_forward.23} parent=0 // pred_check_branch
    %24 = sbr.rel (0) target = $region25
  $region24: #{double_tpgcn_forward.23} parent=0 // pred_region
    _
  $region25: #{double_tpgcn_forward.23} parent=0 // pred_fallthru
    _
  %v26 = vld [vmem:[%s0] sm:$0xff]
  %v27 = vld [vmem:[%s0 + $0x8] sm:$0xff]
  %v28 = vld [vmem:[%s0 + $0x10] sm:$0xff]
  %v29 = vld [vmem:[%s0 + $0x18] sm:$0xff]
  %v30 = vld [vmem:[%s0 + $0x20] sm:$0xff]
  %v31 = vld [vmem:[%s0 + $0x28] sm:$0x11]
  %v32 = vld [vmem:[%s0 + $0x30] sm:$0xff]
  %v33 = vld [vmem:[%s0 + $0x38] sm:$0xff]
  %v34 = vld [vmem:[%s0 + $0x40] sm:$0xff]
  %v35 = vld [vmem:[%s0 + $0x48] sm:$0xff]
  %v36 = vld [vmem:[%s0 + $0x50] sm:$0xff]
  %v37 = vld [vmem:[%s0 + $0x58] sm:$0x11]
  %v38 = vunpack.c.l.bf16 %v26
  %v39 = vunpack.c.h.bf16 %v26
  %v40 = vunpack.c.l.bf16 %v27
  %v41 = vunpack.c.h.bf16 %v27
  %v42 = vunpack.c.l.bf16 %v28
  %v43 = vunpack.c.h.bf16 %v28
  %v44 = vunpack.c.l.bf16 %v29
  %v45 = vunpack.c.h.bf16 %v29
  %v46 = vunpack.c.l.bf16 %v30
  %v47 = vunpack.c.h.bf16 %v30
  %v48 = vunpack.c.l.bf16 %v31
  %v49 = vunpack.c.h.bf16 %v31
  %v50 = vunpack.c.l.bf16 %v32
  %v51 = vunpack.c.h.bf16 %v32
  %v52 = vunpack.c.l.bf16 %v33
  %v53 = vunpack.c.h.bf16 %v33
  %v54 = vunpack.c.l.bf16 %v34
  %v55 = vunpack.c.h.bf16 %v34
  %v56 = vunpack.c.l.bf16 %v35
  %v57 = vunpack.c.h.bf16 %v35
  %v58 = vunpack.c.l.bf16 %v36
  %v59 = vunpack.c.h.bf16 %v36
  %v60 = vunpack.c.l.bf16 %v37
  %v61 = vunpack.c.h.bf16 %v37
  %v62 = vadd.f32 %v38, %v40
  %v63 = vadd.f32 %v62, %v42
  %v64 = vadd.f32 %v63, %v44
  %v65 = vadd.f32 %v64, %v46
  %vm66 = vcmask 1041408
  %v67 = vsel %vm66, %v48, 0.0
  %v68 = vadd.f32 %v65, %v67
  %v69 = vrot.slane %v68, 4
  %v70 = vadd.f32 %v68, %v69
  %v71 = vrot.slane %v70, 2
  %v72 = vadd.f32 %v70, %v71
  %v73 = vrot.slane %v72, 1
  %v74 = vadd.f32 %v72, %v73
  %v75 = vadd.f32 %v39, %v41
  %v76 = vadd.f32 %v75, %v43
  %v77 = vadd.f32 %v76, %v45
  %v78 = vadd.f32 %v77, %v47
  %v79 = vsel %vm66, %v49, 0.0
  %v80 = vadd.f32 %v78, %v79
  %v81 = vrot.slane %v80, 4
  %v82 = vadd.f32 %v80, %v81
  %v83 = vrot.slane %v82, 2
  %v84 = vadd.f32 %v82, %v83
  %v85 = vrot.slane %v84, 1
  %v86 = vadd.f32 %v84, %v85
  %v87 = vadd.f32 %v50, %v52
  %v88 = vadd.f32 %v87, %v54
  %v89 = vadd.f32 %v88, %v56
  %v90 = vadd.f32 %v89, %v58
  %v91 = vsel %vm66, %v60, 0.0
  %v92 = vadd.f32 %v90, %v91
  %v93 = vrot.slane %v92, 4
  %v94 = vadd.f32 %v92, %v93
  %v95 = vrot.slane %v94, 2
  %v96 = vadd.f32 %v94, %v95
  %v97 = vrot.slane %v96, 1
  %v98 = vadd.f32 %v96, %v97
  %v99 = vadd.f32 %v51, %v53
  %v100 = vadd.f32 %v99, %v55
  %v101 = vadd.f32 %v100, %v57
  %v102 = vadd.f32 %v101, %v59
  %v103 = vsel %vm66, %v61, 0.0
  %v104 = vadd.f32 %v102, %v103
  %v105 = vrot.slane %v104, 4
  %v106 = vadd.f32 %v104, %v105
  %v107 = vrot.slane %v106, 2
  %v108 = vadd.f32 %v106, %v107
  %v109 = vrot.slane %v108, 1
  %v110 = vadd.f32 %v108, %v109
  %v111 = vmul.f32 %v74, 0.023809524
  %v112 = vmul.f32 %v86, 0.023809524
  %v113 = vmul.f32 %v98, 0.023809524
  %v114 = vmul.f32 %v110, 0.023809524
  %v115 = vpack.c.bf16 %v111, %v111
  %v116 = vpack.c.bf16 %v112, %v112
  %v117 = vpack.c.bf16 %v113, %v113
  %v118 = vpack.c.bf16 %v114, %v114
  %v119 = vld [vmem:[%s1] sm:$0xff]
  %v120 = vld [vmem:[%s1 + $0x8] sm:$0xff]
  %v121 = vld [vmem:[%s1 + $0x10] sm:$0xff]
  %v122 = vld [vmem:[%s1 + $0x18] sm:$0xff]
  %v123 = vld [vmem:[%s1 + $0x20] sm:$0xff]
  %v124 = vld [vmem:[%s1 + $0x28] sm:$0x11]
  %v125 = vld [vmem:[%s1 + $0x30] sm:$0xff]
  %v126 = vld [vmem:[%s1 + $0x38] sm:$0xff]
  %v127 = vld [vmem:[%s1 + $0x40] sm:$0xff]
  %v128 = vld [vmem:[%s1 + $0x48] sm:$0xff]
  %v129 = vld [vmem:[%s1 + $0x50] sm:$0xff]
  %v130 = vld [vmem:[%s1 + $0x58] sm:$0x11]
  %v131 = vunpack.c.l.bf16 %v119
  %v132 = vunpack.c.h.bf16 %v119
  %v133 = vunpack.c.l.bf16 %v120
  %v134 = vunpack.c.h.bf16 %v120
  %v135 = vunpack.c.l.bf16 %v121
  %v136 = vunpack.c.h.bf16 %v121
  %v137 = vunpack.c.l.bf16 %v122
  %v138 = vunpack.c.h.bf16 %v122
  %v139 = vunpack.c.l.bf16 %v123
  %v140 = vunpack.c.h.bf16 %v123
  %v141 = vunpack.c.l.bf16 %v124
  %v142 = vunpack.c.h.bf16 %v124
  %v143 = vunpack.c.l.bf16 %v125
  %v144 = vunpack.c.h.bf16 %v125
  %v145 = vunpack.c.l.bf16 %v126
  %v146 = vunpack.c.h.bf16 %v126
  %v147 = vunpack.c.l.bf16 %v127
  %v148 = vunpack.c.h.bf16 %v127
  %v149 = vunpack.c.l.bf16 %v128
  %v150 = vunpack.c.h.bf16 %v128
  %v151 = vunpack.c.l.bf16 %v129
  %v152 = vunpack.c.h.bf16 %v129
  %v153 = vunpack.c.l.bf16 %v130
  %v154 = vunpack.c.h.bf16 %v130
  %v155 = vadd.f32 %v131, %v133
  %v156 = vadd.f32 %v155, %v135
  %v157 = vadd.f32 %v156, %v137
  %v158 = vadd.f32 %v157, %v139
  %v159 = vsel %vm66, %v141, 0.0
  %v160 = vadd.f32 %v158, %v159
  %v161 = vrot.slane %v160, 4
  %v162 = vadd.f32 %v160, %v161
  %v163 = vrot.slane %v162, 2
  %v164 = vadd.f32 %v162, %v163
  %v165 = vrot.slane %v164, 1
  %v166 = vadd.f32 %v164, %v165
  %v167 = vadd.f32 %v132, %v134
  %v168 = vadd.f32 %v167, %v136
  %v169 = vadd.f32 %v168, %v138
  %v170 = vadd.f32 %v169, %v140
  %v171 = vsel %vm66, %v142, 0.0
  %v172 = vadd.f32 %v170, %v171
  %v173 = vrot.slane %v172, 4
  %v174 = vadd.f32 %v172, %v173
  %v175 = vrot.slane %v174, 2
  %v176 = vadd.f32 %v174, %v175
  %v177 = vrot.slane %v176, 1
  %v178 = vadd.f32 %v176, %v177
  %v179 = vadd.f32 %v143, %v145
  %v180 = vadd.f32 %v179, %v147
  %v181 = vadd.f32 %v180, %v149
  %v182 = vadd.f32 %v181, %v151
  %v183 = vsel %vm66, %v153, 0.0
  %v184 = vadd.f32 %v182, %v183
  %v185 = vrot.slane %v184, 4
  %v186 = vadd.f32 %v184, %v185
  %v187 = vrot.slane %v186, 2
  %v188 = vadd.f32 %v186, %v187
  %v189 = vrot.slane %v188, 1
  %v190 = vadd.f32 %v188, %v189
  %v191 = vadd.f32 %v144, %v146
  %v192 = vadd.f32 %v191, %v148
  %v193 = vadd.f32 %v192, %v150
  %v194 = vadd.f32 %v193, %v152
  %v195 = vsel %vm66, %v154, 0.0
  %v196 = vadd.f32 %v194, %v195
  %v197 = vrot.slane %v196, 4
  %v198 = vadd.f32 %v196, %v197
  %v199 = vrot.slane %v198, 2
  %v200 = vadd.f32 %v198, %v199
  %v201 = vrot.slane %v200, 1
  %v202 = vadd.f32 %v200, %v201
  %v203 = vmul.f32 %v166, 0.023809524
  %v204 = vmul.f32 %v178, 0.023809524
  %v205 = vmul.f32 %v190, 0.023809524
  %v206 = vmul.f32 %v202, 0.023809524
  %v207 = vpack.c.bf16 %v203, %v203
  %v208 = vpack.c.bf16 %v204, %v204
  %v209 = vpack.c.bf16 %v205, %v205
  %v210 = vpack.c.bf16 %v206, %v206
  %v211 = vld [vmem:[%s2] sm:$0xf]
  %v212 = vld [vmem:[%s2 + $0x4] sm:$0xf]
  %v213 = vld [vmem:[%s2 + $0x8] sm:$0xf]
  %v214 = vld [vmem:[%s2 + $0xc] sm:$0xf]
  %v215 = vld [vmem:[%s2 + $0x10] sm:$0xf]
  %v216 = vld [vmem:[%s2 + $0x14] sm:$0xf]
  %v217 = vld [vmem:[%s2 + $0x18] sm:$0xf]
  %v218 = vld [vmem:[%s2 + $0x1c] sm:$0xf]
  %v219 = vld [vmem:[%s2 + $0x20] sm:$0xf]
  %v220 = vld [vmem:[%s2 + $0x24] sm:$0xf]
  %v221 = vld [vmem:[%s2 + $0x28] sm:$0xf]
  %v222 = vld [vmem:[%s2 + $0x2c] sm:$0xf]
  %v223 = vld [vmem:[%s2 + $0x30] sm:$0xf]
  %v224 = vld [vmem:[%s2 + $0x34] sm:$0xf]
  %v225 = vld [vmem:[%s2 + $0x38] sm:$0xf]
  %v226 = vld [vmem:[%s2 + $0x3c] sm:$0xf]
  %v227 = vld [vmem:[%s2 + $0x40] sm:$0xf]
  %v228 = vld [vmem:[%s2 + $0x44] sm:$0xf]
  %v229 = vld [vmem:[%s2 + $0x48] sm:$0xf]
  %v230 = vld [vmem:[%s2 + $0x4c] sm:$0xf]
  %v231 = vld [vmem:[%s2 + $0x50] sm:$0xf]
  %v232 = vld [vmem:[%s2 + $0x54] sm:$0xf]
  %v233 = vld [vmem:[%s2 + $0x58] sm:$0xf]
  %v234 = vld [vmem:[%s2 + $0x5c] sm:$0xf]
  %v235 = vld [vmem:[%s2 + $0x60] sm:$0xf]
  %v236 = vld [vmem:[%s2 + $0x64] sm:$0xf]
  %v237 = vld [vmem:[%s2 + $0x68] sm:$0xf]
  %v238 = vld [vmem:[%s2 + $0x6c] sm:$0xf]
  %v239 = vld [vmem:[%s2 + $0x70] sm:$0xf]
  %v240 = vld [vmem:[%s2 + $0x74] sm:$0xf]
  %v241 = vld [vmem:[%s2 + $0x78] sm:$0xf]
  %v242 = vld [vmem:[%s2 + $0x7c] sm:$0xf]
  %v243 = vld [vmem:[%s3] sm:$0x1]
  %v245 = vlaneseq
  %v246 = vshrl.u32 %v245, 7
  %v247 = vsub.s32 0, %v246
  %v248 = vrot.slane %v243, %v247
  %v254 = vunpack.c.l.b16 %v115
  %v255 = vunpack.c.l.b16 %v116
  %v256 = vunpack.c.l.b16 %v117
  %v257 = vunpack.c.l.b16 %v118
  %vm258 = vcmask 1041409
  %v259 = vsel %vm258, %v256, %v254
  %v260 = vsel %vm258, %v257, %v255
  %v261 = vpack.c.b16 %v259, %v259
  %v262 = vpack.c.b16 %v260, %v260
  %v297 = vunpack.c.l.b16 %v211
  %v298 = vunpack.c.l.b16 %v212
  %v299 = vunpack.c.l.b16 %v213
  %v300 = vunpack.c.l.b16 %v214
  %v301 = vunpack.c.l.b16 %v215
  %v302 = vunpack.c.l.b16 %v216
  %v303 = vunpack.c.l.b16 %v217
  %v304 = vunpack.c.l.b16 %v218
  %v305 = vunpack.c.l.b16 %v219
  %v306 = vunpack.c.l.b16 %v220
  %v307 = vunpack.c.l.b16 %v221
  %v308 = vunpack.c.l.b16 %v222
  %v309 = vunpack.c.l.b16 %v223
  %v310 = vunpack.c.l.b16 %v224
  %v311 = vunpack.c.l.b16 %v225
  %v312 = vunpack.c.l.b16 %v226
  %v313 = vunpack.c.l.b16 %v227
  %v314 = vunpack.c.l.b16 %v228
  %v315 = vunpack.c.l.b16 %v229
  %v316 = vunpack.c.l.b16 %v230
  %v317 = vunpack.c.l.b16 %v231
  %v318 = vunpack.c.l.b16 %v232
  %v319 = vunpack.c.l.b16 %v233
  %v320 = vunpack.c.l.b16 %v234
  %v321 = vunpack.c.l.b16 %v235
  %v322 = vunpack.c.l.b16 %v236
  %v323 = vunpack.c.l.b16 %v237
  %v324 = vunpack.c.l.b16 %v238
  %v325 = vunpack.c.l.b16 %v239
  %v326 = vunpack.c.l.b16 %v240
  %v327 = vunpack.c.l.b16 %v241
  %v328 = vunpack.c.l.b16 %v242
  %v329 = vpack.c.b16 %v298, %v297
  %v330 = vpack.c.b16 %v300, %v299
  %v331 = vpack.c.b16 %v302, %v301
  %v332 = vpack.c.b16 %v304, %v303
  %v333 = vpack.c.b16 %v306, %v305
  %v334 = vpack.c.b16 %v308, %v307
  %v335 = vpack.c.b16 %v310, %v309
  %v336 = vpack.c.b16 %v312, %v311
  %v337 = vpack.c.b16 %v314, %v313
  %v338 = vpack.c.b16 %v316, %v315
  %v339 = vpack.c.b16 %v318, %v317
  %v340 = vpack.c.b16 %v320, %v319
  %v341 = vpack.c.b16 %v322, %v321
  %v342 = vpack.c.b16 %v324, %v323
  %v343 = vpack.c.b16 %v326, %v325
  %v344 = vpack.c.b16 %v328, %v327
  %361 = vmatprep.subr.bf16.mxu0 0
  %362 = vmatpush1.bf16.msra.mxu0 %v329
  %363 = vmatprep.subr.bf16.mxu0 0
  %364 = vmatpush1.bf16.msra.mxu0 %v330
  %365 = vmatprep.subr.bf16.mxu0 0
  %366 = vmatpush1.bf16.msra.mxu0 %v331
  %367 = vmatprep.subr.bf16.mxu0 0
  %368 = vmatpush1.bf16.msra.mxu0 %v332
  %369 = vmatprep.subr.bf16.mxu0 0
  %370 = vmatpush1.bf16.msra.mxu0 %v333
  %371 = vmatprep.subr.bf16.mxu0 0
  %372 = vmatpush1.bf16.msra.mxu0 %v334
  %373 = vmatprep.subr.bf16.mxu0 0
  %374 = vmatpush1.bf16.msra.mxu0 %v335
  %375 = vmatprep.subr.bf16.mxu0 0
  %376 = vmatpush1.bf16.msra.mxu0 %v336
  %377 = vmatprep.subr.bf16.mxu0 0
  %378 = vmatpush1.bf16.msra.mxu0 %v337
  %379 = vmatprep.subr.bf16.mxu0 0
  %380 = vmatpush1.bf16.msra.mxu0 %v338
  %381 = vmatprep.subr.bf16.mxu0 0
  %382 = vmatpush1.bf16.msra.mxu0 %v339
  %383 = vmatprep.subr.bf16.mxu0 0
  %384 = vmatpush1.bf16.msra.mxu0 %v340
  %385 = vmatprep.subr.bf16.mxu0 0
  %386 = vmatpush1.bf16.msra.mxu0 %v341
  %387 = vmatprep.subr.bf16.mxu0 0
  %388 = vmatpush1.bf16.msra.mxu0 %v342
  %389 = vmatprep.subr.bf16.mxu0 0
  %390 = vmatpush1.bf16.msra.mxu0 %v343
  %391 = vmatprep.subr.bf16.mxu0 0
  %392 = vmatpush1.bf16.msra.mxu0 %v344
  %393 = vmatprep.mubr.bf16.mxu0 %v262
  %394 = vmatmul.mubr.bf16.gmra.mrb[0].mxu0 %v261
  %v395 = vpop.f32.mrb[0].mxu0
  %v396 = vadd.f32 %v248, %v395
  %v397 = vpop.f32.mrb[0].mxu0
  %v398 = vpop.f32.mrb[0].mxu0
  %v399 = vpop.f32.mrb[0].mxu0
  %400 = vdwg.mxu0
  %vm401 = vcmask 435200
  %402 = vst.msk [vmem:[%s6] sm:$0x3] %vm401, %v396
  %v403 = vld [vmem:[%s4] sm:$0xf]
  %v404 = vld [vmem:[%s4 + $0x4] sm:$0xf]
  %v405 = vld [vmem:[%s4 + $0x8] sm:$0xf]
  %v406 = vld [vmem:[%s4 + $0xc] sm:$0xf]
  %v407 = vld [vmem:[%s4 + $0x10] sm:$0xf]
  %v408 = vld [vmem:[%s4 + $0x14] sm:$0xf]
  %v409 = vld [vmem:[%s4 + $0x18] sm:$0xf]
  %v410 = vld [vmem:[%s4 + $0x1c] sm:$0xf]
  %v411 = vld [vmem:[%s4 + $0x20] sm:$0xf]
  %v412 = vld [vmem:[%s4 + $0x24] sm:$0xf]
  %v413 = vld [vmem:[%s4 + $0x28] sm:$0xf]
  %v414 = vld [vmem:[%s4 + $0x2c] sm:$0xf]
  %v415 = vld [vmem:[%s4 + $0x30] sm:$0xf]
  %v416 = vld [vmem:[%s4 + $0x34] sm:$0xf]
  %v417 = vld [vmem:[%s4 + $0x38] sm:$0xf]
  %v418 = vld [vmem:[%s4 + $0x3c] sm:$0xf]
  %v419 = vld [vmem:[%s4 + $0x40] sm:$0xf]
  %v420 = vld [vmem:[%s4 + $0x44] sm:$0xf]
  %v421 = vld [vmem:[%s4 + $0x48] sm:$0xf]
  %v422 = vld [vmem:[%s4 + $0x4c] sm:$0xf]
  %v423 = vld [vmem:[%s4 + $0x50] sm:$0xf]
  %v424 = vld [vmem:[%s4 + $0x54] sm:$0xf]
  %v425 = vld [vmem:[%s4 + $0x58] sm:$0xf]
  %v426 = vld [vmem:[%s4 + $0x5c] sm:$0xf]
  %v427 = vld [vmem:[%s4 + $0x60] sm:$0xf]
  %v428 = vld [vmem:[%s4 + $0x64] sm:$0xf]
  %v429 = vld [vmem:[%s4 + $0x68] sm:$0xf]
  %v430 = vld [vmem:[%s4 + $0x6c] sm:$0xf]
  %v431 = vld [vmem:[%s4 + $0x70] sm:$0xf]
  %v432 = vld [vmem:[%s4 + $0x74] sm:$0xf]
  %v433 = vld [vmem:[%s4 + $0x78] sm:$0xf]
  %v434 = vld [vmem:[%s4 + $0x7c] sm:$0xf]
  %v435 = vld [vmem:[%s5] sm:$0x1]
  %v437 = vlaneseq
  %v438 = vshrl.u32 %v437, 7
  %v439 = vsub.s32 0, %v438
  %v440 = vrot.slane %v435, %v439
  %v446 = vunpack.c.l.b16 %v207
  %v447 = vunpack.c.l.b16 %v208
  %v448 = vunpack.c.l.b16 %v209
  %v449 = vunpack.c.l.b16 %v210
  %v450 = vsel %vm258, %v448, %v446
  %v451 = vsel %vm258, %v449, %v447
  %v452 = vpack.c.b16 %v450, %v450
  %v453 = vpack.c.b16 %v451, %v451
  %v488 = vunpack.c.l.b16 %v403
  %v489 = vunpack.c.l.b16 %v404
  %v490 = vunpack.c.l.b16 %v405
  %v491 = vunpack.c.l.b16 %v406
  %v492 = vunpack.c.l.b16 %v407
  %v493 = vunpack.c.l.b16 %v408
  %v494 = vunpack.c.l.b16 %v409
  %v495 = vunpack.c.l.b16 %v410
  %v496 = vunpack.c.l.b16 %v411
  %v497 = vunpack.c.l.b16 %v412
  %v498 = vunpack.c.l.b16 %v413
  %v499 = vunpack.c.l.b16 %v414
  %v500 = vunpack.c.l.b16 %v415
  %v501 = vunpack.c.l.b16 %v416
  %v502 = vunpack.c.l.b16 %v417
  %v503 = vunpack.c.l.b16 %v418
  %v504 = vunpack.c.l.b16 %v419
  %v505 = vunpack.c.l.b16 %v420
  %v506 = vunpack.c.l.b16 %v421
  %v507 = vunpack.c.l.b16 %v422
  %v508 = vunpack.c.l.b16 %v423
  %v509 = vunpack.c.l.b16 %v424
  %v510 = vunpack.c.l.b16 %v425
  %v511 = vunpack.c.l.b16 %v426
  %v512 = vunpack.c.l.b16 %v427
  %v513 = vunpack.c.l.b16 %v428
  %v514 = vunpack.c.l.b16 %v429
  %v515 = vunpack.c.l.b16 %v430
  %v516 = vunpack.c.l.b16 %v431
  %v517 = vunpack.c.l.b16 %v432
  %v518 = vunpack.c.l.b16 %v433
  %v519 = vunpack.c.l.b16 %v434
  %v520 = vpack.c.b16 %v489, %v488
  %v521 = vpack.c.b16 %v491, %v490
  %v522 = vpack.c.b16 %v493, %v492
  %v523 = vpack.c.b16 %v495, %v494
  %v524 = vpack.c.b16 %v497, %v496
  %v525 = vpack.c.b16 %v499, %v498
  %v526 = vpack.c.b16 %v501, %v500
  %v527 = vpack.c.b16 %v503, %v502
  %v528 = vpack.c.b16 %v505, %v504
  %v529 = vpack.c.b16 %v507, %v506
  %v530 = vpack.c.b16 %v509, %v508
  %v531 = vpack.c.b16 %v511, %v510
  %v532 = vpack.c.b16 %v513, %v512
  %v533 = vpack.c.b16 %v515, %v514
  %v534 = vpack.c.b16 %v517, %v516
  %v535 = vpack.c.b16 %v519, %v518
  %552 = vmatprep.subr.bf16.mxu0 0
  %553 = vmatpush1.bf16.msra.mxu0 %v520
  %554 = vmatprep.subr.bf16.mxu0 0
  %555 = vmatpush1.bf16.msra.mxu0 %v521
  %556 = vmatprep.subr.bf16.mxu0 0
  %557 = vmatpush1.bf16.msra.mxu0 %v522
  %558 = vmatprep.subr.bf16.mxu0 0
  %559 = vmatpush1.bf16.msra.mxu0 %v523
  %560 = vmatprep.subr.bf16.mxu0 0
  %561 = vmatpush1.bf16.msra.mxu0 %v524
  %562 = vmatprep.subr.bf16.mxu0 0
  %563 = vmatpush1.bf16.msra.mxu0 %v525
  %564 = vmatprep.subr.bf16.mxu0 0
  %565 = vmatpush1.bf16.msra.mxu0 %v526
  %566 = vmatprep.subr.bf16.mxu0 0
  %567 = vmatpush1.bf16.msra.mxu0 %v527
  %568 = vmatprep.subr.bf16.mxu0 0
  %569 = vmatpush1.bf16.msra.mxu0 %v528
  %570 = vmatprep.subr.bf16.mxu0 0
  %571 = vmatpush1.bf16.msra.mxu0 %v529
  %572 = vmatprep.subr.bf16.mxu0 0
  %573 = vmatpush1.bf16.msra.mxu0 %v530
  %574 = vmatprep.subr.bf16.mxu0 0
  %575 = vmatpush1.bf16.msra.mxu0 %v531
  %576 = vmatprep.subr.bf16.mxu0 0
  %577 = vmatpush1.bf16.msra.mxu0 %v532
  %578 = vmatprep.subr.bf16.mxu0 0
  %579 = vmatpush1.bf16.msra.mxu0 %v533
  %580 = vmatprep.subr.bf16.mxu0 0
  %581 = vmatpush1.bf16.msra.mxu0 %v534
  %582 = vmatprep.subr.bf16.mxu0 0
  %583 = vmatpush1.bf16.msra.mxu0 %v535
  %584 = vmatprep.mubr.bf16.mxu0 %v453
  %585 = vmatmul.mubr.bf16.gmra.mrb[0].mxu0 %v452
  %v586 = vpop.f32.mrb[0].mxu0
  %v587 = vadd.f32 %v440, %v586
  %v588 = vpop.f32.mrb[0].mxu0
  %v589 = vpop.f32.mrb[0].mxu0
  %v590 = vpop.f32.mrb[0].mxu0
  %591 = vdwg.mxu0
  %592 = vst.msk [vmem:[%s7] sm:$0x3] %vm401, %v587
  // Predicated region
  $region26: #{double_tpgcn_forward.23} parent=0 // pred_check
    _
  $region27: #{double_tpgcn_forward.23} parent=0 // pred_check_branch
    %594 = sbr.rel (0) target = $region29
  $region28: #{double_tpgcn_forward.23} parent=0 // pred_region
    _
  $region29: #{double_tpgcn_forward.23} parent=0 // pred_fallthru
    _
  // Predicated region
  $region30: #{double_tpgcn_forward.23} parent=0 // pred_check
    _
  $region31: #{double_tpgcn_forward.23} parent=0 // pred_check_branch
    %596 = sbr.rel (0) target = $region33
  $region32: #{double_tpgcn_forward.23} parent=0 // pred_region
    _
  $region33: #{double_tpgcn_forward.23} parent=0 // pred_fallthru
    _
  // Predicated region
  $region34: #{double_tpgcn_forward.23} parent=0 // pred_check
    _
  $region35: #{double_tpgcn_forward.23} parent=0 // pred_check_branch
    %598 = sbr.rel (0) target = $region37
  $region36: #{double_tpgcn_forward.23} parent=0 // pred_region
    _
  $region37: #{double_tpgcn_forward.23} parent=0 // pred_fallthru
    _
  // Predicated region
  $region38: #{double_tpgcn_forward.23} parent=0 // pred_check
    _
  $region39: #{double_tpgcn_forward.23} parent=0 // pred_check_branch
    %600 = sbr.rel (0) target = $region41
  $region40: #{double_tpgcn_forward.23} parent=0 // pred_region
    _
  $region41: #{double_tpgcn_forward.23} parent=0 // pred_fallthru
    _

// kernel: double_tpgcn_forward.22
$region0: #{double_tpgcn_forward.22}
  #allocation0 [shape = 'u32[]', space=smem, size = 0x4, offset = 0x4, fixed_abs, tag = 'smem constant byte address 0x4 - core index']
  #allocation1 [shape = 'u32[144,128]{1,0:T(1,128)}', space=vmem, size = 0x12000, scoped, tag = 'internal scratch']
  %s0 = inlined_call_operand.vmem [shape: bf16[84,256], index: 0, kind: input, shape index: {}]
  %s1 = inlined_call_operand.vmem [shape: bf16[256,768], index: 1, kind: input, shape index: {}]
  %s2 = inlined_call_operand.vmem [shape: f32[1,256], index: 2, kind: input, shape index: {}, may-alias: {2,5}]
  %s3 = inlined_call_operand.vmem [shape: bf16[3,84,84], index: 3, kind: input, shape index: {}]
  %s4 = inlined_call_operand.vmem [shape: bf16[9,256,256], index: 4, kind: input, shape index: {}]
  %s5 = inlined_call_operand.vmem [shape: f32[1,256], index: 5, kind: input, shape index: {}, may-alias: {2,5}]
  %s6 = inlined_call_operand.vmem [shape: bf16[84,256], index: 6, kind: output, shape index: {}]
  %s7 = sld [smem:[#allocation0]]
  $region34: #{double_tpgcn_forward.22} parent=0
    _
  %s9 = ssub.s32 1, %s7
  %s10 = scalar_select 0, %s9, %s7
  // Predicated region
  $region2: #{double_tpgcn_forward.22} parent=0 // pred_check
    _
  $region3: #{double_tpgcn_forward.22} parent=0 // pred_check_branch
    %12 = sbr.rel (0) target = $region5
  $region4: #{double_tpgcn_forward.22} parent=0 // pred_region
    _
  $region5: #{double_tpgcn_forward.22} parent=0 // pred_fallthru
    _
  // Predicated region
  $region6: #{double_tpgcn_forward.22} parent=0 // pred_check
    _
  $region7: #{double_tpgcn_forward.22} parent=0 // pred_check_branch
    %14 = sbr.rel (0) target = $region9
  $region8: #{double_tpgcn_forward.22} parent=0 // pred_region
    _
  $region9: #{double_tpgcn_forward.22} parent=0 // pred_fallthru
    _
  // Predicated region
  $region10: #{double_tpgcn_forward.22} parent=0 // pred_check
    _
  $region11: #{double_tpgcn_forward.22} parent=0 // pred_check_branch
    %16 = sbr.rel (0) target = $region13
  $region12: #{double_tpgcn_forward.22} parent=0 // pred_region
    _
  $region13: #{double_tpgcn_forward.22} parent=0 // pred_fallthru
    _
  // Predicated region
  $region14: #{double_tpgcn_forward.22} parent=0 // pred_check
    _
  $region15: #{double_tpgcn_forward.22} parent=0 // pred_check_branch
    %18 = sbr.rel (0) target = $region17
  $region16: #{double_tpgcn_forward.22} parent=0 // pred_region
    _
  $region17: #{double_tpgcn_forward.22} parent=0 // pred_fallthru
    _
  // Predicated region
  $region18: #{double_tpgcn_forward.22} parent=0 // pred_check
    _
  $region19: #{double_tpgcn_forward.22} parent=0 // pred_check_branch
    %20 = sbr.rel (0) target = $region21
  $region20: #{double_tpgcn_forward.22} parent=0 // pred_region
    _
  $region21: #{double_tpgcn_forward.22} parent=0 // pred_fallthru
    _
  // Predicated region
  $region22: #{double_tpgcn_forward.22} parent=0 // pred_check
    _
  $region23: #{double_tpgcn_forward.22} parent=0 // pred_check_branch
    %22 = sbr.rel (0) target = $region25
  $region24: #{double_tpgcn_forward.22} parent=0 // pred_region
    _
  $region25: #{double_tpgcn_forward.22} parent=0 // pred_fallthru
    _
  %v24 = vld [vmem:[%s0] sm:$0xff]
  %v25 = vld [vmem:[%s0 + $0x8] sm:$0xff]
  %v26 = vld [vmem:[%s0 + $0x10] sm:$0xff]
  %v27 = vld [vmem:[%s0 + $0x18] sm:$0xff]
  %v28 = vld [vmem:[%s0 + $0x20] sm:$0xff]
  %v29 = vld [vmem:[%s0 + $0x28] sm:$0xff]
  %v30 = vld [vmem:[%s0 + $0x30] sm:$0xff]
  %v31 = vld [vmem:[%s0 + $0x38] sm:$0xff]
  %v32 = vld [vmem:[%s0 + $0x40] sm:$0xff]
  %v33 = vld [vmem:[%s0 + $0x48] sm:$0xff]
  %v34 = vld [vmem:[%s0 + $0x50] sm:$0x33]
  %v35 = vld [vmem:[%s1] sm:$0xff]
  %v36 = vld [vmem:[%s1 + $0x8] sm:$0xff]
  %v37 = vld [vmem:[%s1 + $0x10] sm:$0xff]
  %v38 = vld [vmem:[%s1 + $0x18] sm:$0xff]
  %v39 = vld [vmem:[%s1 + $0x20] sm:$0xff]
  %v40 = vld [vmem:[%s1 + $0x28] sm:$0xff]
  %v41 = vld [vmem:[%s1 + $0x30] sm:$0xff]
  %v42 = vld [vmem:[%s1 + $0x38] sm:$0xff]
  %v43 = vld [vmem:[%s1 + $0x40] sm:$0xff]
  %v44 = vld [vmem:[%s1 + $0x48] sm:$0xff]
  %v45 = vld [vmem:[%s1 + $0x50] sm:$0xff]
  %v46 = vld [vmem:[%s1 + $0x58] sm:$0xff]
  %v47 = vld [vmem:[%s1 + $0x60] sm:$0xff]
  %v48 = vld [vmem:[%s1 + $0x68] sm:$0xff]
  %v49 = vld [vmem:[%s1 + $0x70] sm:$0xff]
  %v50 = vld [vmem:[%s1 + $0x78] sm:$0xff]
  %v51 = vld [vmem:[%s1 + $0x80] sm:$0xff]
  %v52 = vld [vmem:[%s1 + $0x88] sm:$0xff]
  %v53 = vld [vmem:[%s1 + $0x90] sm:$0xff]
  %v54 = vld [vmem:[%s1 + $0x98] sm:$0xff]
  %v55 = vld [vmem:[%s1 + $0xa0] sm:$0xff]
  %v56 = vld [vmem:[%s1 + $0xa8] sm:$0xff]
  %v57 = vld [vmem:[%s1 + $0xb0] sm:$0xff]
  %v58 = vld [vmem:[%s1 + $0xb8] sm:$0xff]
  %v59 = vld [vmem:[%s1 + $0xc0] sm:$0xff]
  %v60 = vld [vmem:[%s1 + $0xc8] sm:$0xff]
  %v61 = vld [vmem:[%s1 + $0xd0] sm:$0xff]
  %v62 = vld [vmem:[%s1 + $0xd8] sm:$0xff]
  %v63 = vld [vmem:[%s1 + $0xe0] sm:$0xff]
  %v64 = vld [vmem:[%s1 + $0xe8] sm:$0xff]
  %v65 = vld [vmem:[%s1 + $0xf0] sm:$0xff]
  %v66 = vld [vmem:[%s1 + $0xf8] sm:$0xff]
  %v67 = vld [vmem:[%s1 + $0x100] sm:$0xff]
  %v68 = vld [vmem:[%s1 + $0x108] sm:$0xff]
  %v69 = vld [vmem:[%s1 + $0x110] sm:$0xff]
  %v70 = vld [vmem:[%s1 + $0x118] sm:$0xff]
  %v71 = vld [vmem:[%s1 + $0x120] sm:$0xff]
  %v72 = vld [vmem:[%s1 + $0x128] sm:$0xff]
  %v73 = vld [vmem:[%s1 + $0x130] sm:$0xff]
  %v74 = vld [vmem:[%s1 + $0x138] sm:$0xff]
  %v75 = vld [vmem:[%s1 + $0x140] sm:$0xff]
  %v76 = vld [vmem:[%s1 + $0x148] sm:$0xff]
  %v77 = vld [vmem:[%s1 + $0x150] sm:$0xff]
  %v78 = vld [vmem:[%s1 + $0x158] sm:$0xff]
  %v79 = vld [vmem:[%s1 + $0x160] sm:$0xff]
  %v80 = vld [vmem:[%s1 + $0x168] sm:$0xff]
  %v81 = vld [vmem:[%s1 + $0x170] sm:$0xff]
  %v82 = vld [vmem:[%s1 + $0x178] sm:$0xff]
  %v83 = vld [vmem:[%s1 + $0x180] sm:$0xff]
  %v84 = vld [vmem:[%s1 + $0x188] sm:$0xff]
  %v85 = vld [vmem:[%s1 + $0x190] sm:$0xff]
  %v86 = vld [vmem:[%s1 + $0x198] sm:$0xff]
  %v87 = vld [vmem:[%s1 + $0x1a0] sm:$0xff]
  %v88 = vld [vmem:[%s1 + $0x1a8] sm:$0xff]
  %v89 = vld [vmem:[%s1 + $0x1b0] sm:$0xff]
  %v90 = vld [vmem:[%s1 + $0x1b8] sm:$0xff]
  %v91 = vld [vmem:[%s1 + $0x1c0] sm:$0xff]
  %v92 = vld [vmem:[%s1 + $0x1c8] sm:$0xff]
  %v93 = vld [vmem:[%s1 + $0x1d0] sm:$0xff]
  %v94 = vld [vmem:[%s1 + $0x1d8] sm:$0xff]
  %v95 = vld [vmem:[%s1 + $0x1e0] sm:$0xff]
  %v96 = vld [vmem:[%s1 + $0x1e8] sm:$0xff]
  %v97 = vld [vmem:[%s1 + $0x1f0] sm:$0xff]
  %v98 = vld [vmem:[%s1 + $0x1f8] sm:$0xff]
  %v99 = vld [vmem:[%s1 + $0x200] sm:$0xff]
  %v100 = vld [vmem:[%s1 + $0x208] sm:$0xff]
  %v101 = vld [vmem:[%s1 + $0x210] sm:$0xff]
  %v102 = vld [vmem:[%s1 + $0x218] sm:$0xff]
  %v103 = vld [vmem:[%s1 + $0x220] sm:$0xff]
  %v104 = vld [vmem:[%s1 + $0x228] sm:$0xff]
  %v105 = vld [vmem:[%s1 + $0x230] sm:$0xff]
  %v106 = vld [vmem:[%s1 + $0x238] sm:$0xff]
  %v107 = vld [vmem:[%s1 + $0x240] sm:$0xff]
  %v108 = vld [vmem:[%s1 + $0x248] sm:$0xff]
  %v109 = vld [vmem:[%s1 + $0x250] sm:$0xff]
  %v110 = vld [vmem:[%s1 + $0x258] sm:$0xff]
  %v111 = vld [vmem:[%s1 + $0x260] sm:$0xff]
  %v112 = vld [vmem:[%s1 + $0x268] sm:$0xff]
  %v113 = vld [vmem:[%s1 + $0x270] sm:$0xff]
  %v114 = vld [vmem:[%s1 + $0x278] sm:$0xff]
  %v115 = vld [vmem:[%s1 + $0x280] sm:$0xff]
  %v116 = vld [vmem:[%s1 + $0x288] sm:$0xff]
  %v117 = vld [vmem:[%s1 + $0x290] sm:$0xff]
  %v118 = vld [vmem:[%s1 + $0x298] sm:$0xff]
  %v119 = vld [vmem:[%s1 + $0x2a0] sm:$0xff]
  %v120 = vld [vmem:[%s1 + $0x2a8] sm:$0xff]
  %v121 = vld [vmem:[%s1 + $0x2b0] sm:$0xff]
  %v122 = vld [vmem:[%s1 + $0x2b8] sm:$0xff]
  %v123 = vld [vmem:[%s1 + $0x2c0] sm:$0xff]
  %v124 = vld [vmem:[%s1 + $0x2c8] sm:$0xff]
  %v125 = vld [vmem:[%s1 + $0x2d0] sm:$0xff]
  %v126 = vld [vmem:[%s1 + $0x2d8] sm:$0xff]
  %v127 = vld [vmem:[%s1 + $0x2e0] sm:$0xff]
  %v128 = vld [vmem:[%s1 + $0x2e8] sm:$0xff]
  %v129 = vld [vmem:[%s1 + $0x2f0] sm:$0xff]
  %v130 = vld [vmem:[%s1 + $0x2f8] sm:$0xff]
  %v142 = vunpack.c.l.b16 %v24
  %v143 = vunpack.c.h.b16 %v24
  %v144 = vunpack.c.l.b16 %v25
  %v145 = vunpack.c.h.b16 %v25
  %v146 = vunpack.c.l.b16 %v26
  %v147 = vunpack.c.h.b16 %v26
  %v148 = vunpack.c.l.b16 %v27
  %v149 = vunpack.c.h.b16 %v27
  %v150 = vunpack.c.l.b16 %v28
  %v151 = vunpack.c.h.b16 %v28
  %v152 = vunpack.c.l.b16 %v29
  %v153 = vunpack.c.h.b16 %v29
  %v154 = vunpack.c.l.b16 %v30
  %v155 = vunpack.c.h.b16 %v30
  %v156 = vunpack.c.l.b16 %v31
  %v157 = vunpack.c.h.b16 %v31
  %v158 = vunpack.c.l.b16 %v32
  %v159 = vunpack.c.h.b16 %v32
  %v160 = vunpack.c.l.b16 %v33
  %v161 = vunpack.c.h.b16 %v33
  %v162 = vunpack.c.l.b16 %v34
  %v163 = vunpack.c.h.b16 %v34
  %v164 = vpack.c.b16 %v144, %v142
  %v165 = vpack.c.b16 %v145, %v143
  %v166 = vpack.c.b16 %v148, %v146
  %v167 = vpack.c.b16 %v149, %v147
  %v168 = vpack.c.b16 %v152, %v150
  %v169 = vpack.c.b16 %v153, %v151
  %v170 = vpack.c.b16 %v156, %v154
  %v171 = vpack.c.b16 %v157, %v155
  %v172 = vpack.c.b16 %v160, %v158
  %v173 = vpack.c.b16 %v161, %v159
  %v174 = vpack.c.b16 %v162, %v162
  %v175 = vpack.c.b16 %v163, %v163
  %v284 = vunpack.c.l.b16 %v35
  %v285 = vunpack.c.h.b16 %v35
  %v286 = vunpack.c.l.b16 %v36
  %v287 = vunpack.c.h.b16 %v36
  %v288 = vunpack.c.l.b16 %v37
  %v289 = vunpack.c.h.b16 %v37
  %v290 = vunpack.c.l.b16 %v38
  %v291 = vunpack.c.h.b16 %v38
  %v292 = vunpack.c.l.b16 %v39
  %v293 = vunpack.c.h.b16 %v39
  %v294 = vunpack.c.l.b16 %v40
  %v295 = vunpack.c.h.b16 %v40
  %v296 = vunpack.c.l.b16 %v41
  %v297 = vunpack.c.h.b16 %v41
  %v298 = vunpack.c.l.b16 %v42
  %v299 = vunpack.c.h.b16 %v42
  %v300 = vunpack.c.l.b16 %v43
  %v301 = vunpack.c.h.b16 %v43
  %v302 = vunpack.c.l.b16 %v44
  %v303 = vunpack.c.h.b16 %v44
  %v304 = vunpack.c.l.b16 %v45
  %v305 = vunpack.c.h.b16 %v45
  %v306 = vunpack.c.l.b16 %v46
  %v307 = vunpack.c.h.b16 %v46
  %v308 = vunpack.c.l.b16 %v47
  %v309 = vunpack.c.h.b16 %v47
  %v310 = vunpack.c.l.b16 %v48
  %v311 = vunpack.c.h.b16 %v48
  %v312 = vunpack.c.l.b16 %v49
  %v313 = vunpack.c.h.b16 %v49
  %v314 = vunpack.c.l.b16 %v50
  %v315 = vunpack.c.h.b16 %v50
  %v316 = vunpack.c.l.b16 %v51
  %v317 = vunpack.c.h.b16 %v51
  %v318 = vunpack.c.l.b16 %v52
  %v319 = vunpack.c.h.b16 %v52
  %v320 = vunpack.c.l.b16 %v53
  %v321 = vunpack.c.h.b16 %v53
  %v322 = vunpack.c.l.b16 %v54
  %v323 = vunpack.c.h.b16 %v54
  %v324 = vunpack.c.l.b16 %v55
  %v325 = vunpack.c.h.b16 %v55
  %v326 = vunpack.c.l.b16 %v56
  %v327 = vunpack.c.h.b16 %v56
  %v328 = vunpack.c.l.b16 %v57
  %v329 = vunpack.c.h.b16 %v57
  %v330 = vunpack.c.l.b16 %v58
  %v331 = vunpack.c.h.b16 %v58
  %v332 = vunpack.c.l.b16 %v59
  %v333 = vunpack.c.h.b16 %v59
  %v334 = vunpack.c.l.b16 %v60
  %v335 = vunpack.c.h.b16 %v60
  %v336 = vunpack.c.l.b16 %v61
  %v337 = vunpack.c.h.b16 %v61
  %v338 = vunpack.c.l.b16 %v62
  %v339 = vunpack.c.h.b16 %v62
  %v340 = vunpack.c.l.b16 %v63
  %v341 = vunpack.c.h.b16 %v63
  %v342 = vunpack.c.l.b16 %v64
  %v343 = vunpack.c.h.b16 %v64
  %v344 = vunpack.c.l.b16 %v65
  %v345 = vunpack.c.h.b16 %v65
  %v346 = vunpack.c.l.b16 %v66
  %v347 = vunpack.c.h.b16 %v66
  %v348 = vunpack.c.l.b16 %v67
  %v349 = vunpack.c.h.b16 %v67
  %v350 = vunpack.c.l.b16 %v68
  %v351 = vunpack.c.h.b16 %v68
  %v352 = vunpack.c.l.b16 %v69
  %v353 = vunpack.c.h.b16 %v69
  %v354 = vunpack.c.l.b16 %v70
  %v355 = vunpack.c.h.b16 %v70
  %v356 = vunpack.c.l.b16 %v71
  %v357 = vunpack.c.h.b16 %v71
  %v358 = vunpack.c.l.b16 %v72
  %v359 = vunpack.c.h.b16 %v72
  %v360 = vunpack.c.l.b16 %v73
  %v361 = vunpack.c.h.b16 %v73
  %v362 = vunpack.c.l.b16 %v74
  %v363 = vunpack.c.h.b16 %v74
  %v364 = vunpack.c.l.b16 %v75
  %v365 = vunpack.c.h.b16 %v75
  %v366 = vunpack.c.l.b16 %v76
  %v367 = vunpack.c.h.b16 %v76
  %v368 = vunpack.c.l.b16 %v77
  %v369 = vunpack.c.h.b16 %v77
  %v370 = vunpack.c.l.b16 %v78
  %v371 = vunpack.c.h.b16 %v78
  %v372 = vunpack.c.l.b16 %v79
  %v373 = vunpack.c.h.b16 %v79
  %v374 = vunpack.c.l.b16 %v80
  %v375 = vunpack.c.h.b16 %v80
  %v376 = vunpack.c.l.b16 %v81
  %v377 = vunpack.c.h.b16 %v81
  %v378 = vunpack.c.l.b16 %v82
  %v379 = vunpack.c.h.b16 %v82
  %v380 = vunpack.c.l.b16 %v83
  %v381 = vunpack.c.h.b16 %v83
  %v382 = vunpack.c.l.b16 %v84
  %v383 = vunpack.c.h.b16 %v84
  %v384 = vunpack.c.l.b16 %v85
  %v385 = vunpack.c.h.b16 %v85
  %v386 = vunpack.c.l.b16 %v86
  %v387 = vunpack.c.h.b16 %v86
  %v388 = vunpack.c.l.b16 %v87
  %v389 = vunpack.c.h.b16 %v87
  %v390 = vunpack.c.l.b16 %v88
  %v391 = vunpack.c.h.b16 %v88
  %v392 = vunpack.c.l.b16 %v89
  %v393 = vunpack.c.h.b16 %v89
  %v394 = vunpack.c.l.b16 %v90
  %v395 = vunpack.c.h.b16 %v90
  %v396 = vunpack.c.l.b16 %v91
  %v397 = vunpack.c.h.b16 %v91
  %v398 = vunpack.c.l.b16 %v92
  %v399 = vunpack.c.h.b16 %v92
  %v400 = vunpack.c.l.b16 %v93
  %v401 = vunpack.c.h.b16 %v93
  %v402 = vunpack.c.l.b16 %v94
  %v403 = vunpack.c.h.b16 %v94
  %v404 = vunpack.c.l.b16 %v95
  %v405 = vunpack.c.h.b16 %v95
  %v406 = vunpack.c.l.b16 %v96
  %v407 = vunpack.c.h.b16 %v96
  %v408 = vunpack.c.l.b16 %v97
  %v409 = vunpack.c.h.b16 %v97
  %v410 = vunpack.c.l.b16 %v98
  %v411 = vunpack.c.h.b16 %v98
  %v412 = vunpack.c.l.b16 %v99
  %v413 = vunpack.c.h.b16 %v99
  %v414 = vunpack.c.l.b16 %v100
  %v415 = vunpack.c.h.b16 %v100
  %v416 = vunpack.c.l.b16 %v101
  %v417 = vunpack.c.h.b16 %v101
  %v418 = vunpack.c.l.b16 %v102
  %v419 = vunpack.c.h.b16 %v102
  %v420 = vunpack.c.l.b16 %v103
  %v421 = vunpack.c.h.b16 %v103
  %v422 = vunpack.c.l.b16 %v104
  %v423 = vunpack.c.h.b16 %v104
  %v424 = vunpack.c.l.b16 %v105
  %v425 = vunpack.c.h.b16 %v105
  %v426 = vunpack.c.l.b16 %v106
  %v427 = vunpack.c.h.b16 %v106
  %v428 = vunpack.c.l.b16 %v107
  %v429 = vunpack.c.h.b16 %v107
  %v430 = vunpack.c.l.b16 %v108
  %v431 = vunpack.c.h.b16 %v108
  %v432 = vunpack.c.l.b16 %v109
  %v433 = vunpack.c.h.b16 %v109
  %v434 = vunpack.c.l.b16 %v110
  %v435 = vunpack.c.h.b16 %v110
  %v436 = vunpack.c.l.b16 %v111
  %v437 = vunpack.c.h.b16 %v111
  %v438 = vunpack.c.l.b16 %v112
  %v439 = vunpack.c.h.b16 %v112
  %v440 = vunpack.c.l.b16 %v113
  %v441 = vunpack.c.h.b16 %v113
  %v442 = vunpack.c.l.b16 %v114
  %v443 = vunpack.c.h.b16 %v114
  %v444 = vunpack.c.l.b16 %v115
  %v445 = vunpack.c.h.b16 %v115
  %v446 = vunpack.c.l.b16 %v116
  %v447 = vunpack.c.h.b16 %v116
  %v448 = vunpack.c.l.b16 %v117
  %v449 = vunpack.c.h.b16 %v117
  %v450 = vunpack.c.l.b16 %v118
  %v451 = vunpack.c.h.b16 %v118
  %v452 = vunpack.c.l.b16 %v119
  %v453 = vunpack.c.h.b16 %v119
  %v454 = vunpack.c.l.b16 %v120
  %v455 = vunpack.c.h.b16 %v120
  %v456 = vunpack.c.l.b16 %v121
  %v457 = vunpack.c.h.b16 %v121
  %v458 = vunpack.c.l.b16 %v122
  %v459 = vunpack.c.h.b16 %v122
  %v460 = vunpack.c.l.b16 %v123
  %v461 = vunpack.c.h.b16 %v123
  %v462 = vunpack.c.l.b16 %v124
  %v463 = vunpack.c.h.b16 %v124
  %v464 = vunpack.c.l.b16 %v125
  %v465 = vunpack.c.h.b16 %v125
  %v466 = vunpack.c.l.b16 %v126
  %v467 = vunpack.c.h.b16 %v126
  %v468 = vunpack.c.l.b16 %v127
  %v469 = vunpack.c.h.b16 %v127
  %v470 = vunpack.c.l.b16 %v128
  %v471 = vunpack.c.h.b16 %v128
  %v472 = vunpack.c.l.b16 %v129
  %v473 = vunpack.c.h.b16 %v129
  %v474 = vunpack.c.l.b16 %v130
  %v475 = vunpack.c.h.b16 %v130
  %v476 = vpack.c.b16 %v290, %v284
  %v477 = vpack.c.b16 %v291, %v285
  %v478 = vpack.c.b16 %v292, %v286
  %v479 = vpack.c.b16 %v293, %v287
  %v480 = vpack.c.b16 %v294, %v288
  %v481 = vpack.c.b16 %v295, %v289
  %v482 = vpack.c.b16 %v302, %v296
  %v483 = vpack.c.b16 %v303, %v297
  %v484 = vpack.c.b16 %v304, %v298
  %v485 = vpack.c.b16 %v305, %v299
  %v486 = vpack.c.b16 %v306, %v300
  %v487 = vpack.c.b16 %v307, %v301
  %v488 = vpack.c.b16 %v314, %v308
  %v489 = vpack.c.b16 %v315, %v309
  %v490 = vpack.c.b16 %v316, %v310
  %v491 = vpack.c.b16 %v317, %v311
  %v492 = vpack.c.b16 %v318, %v312
  %v493 = vpack.c.b16 %v319, %v313
  %v494 = vpack.c.b16 %v326, %v320
  %v495 = vpack.c.b16 %v327, %v321
  %v496 = vpack.c.b16 %v328, %v322
  %v497 = vpack.c.b16 %v329, %v323
  %v498 = vpack.c.b16 %v330, %v324
  %v499 = vpack.c.b16 %v331, %v325
  %v500 = vpack.c.b16 %v338, %v332
  %v501 = vpack.c.b16 %v339, %v333
  %v502 = vpack.c.b16 %v340, %v334
  %v503 = vpack.c.b16 %v341, %v335
  %v504 = vpack.c.b16 %v342, %v336
  %v505 = vpack.c.b16 %v343, %v337
  %v506 = vpack.c.b16 %v350, %v344
  %v507 = vpack.c.b16 %v351, %v345
  %v508 = vpack.c.b16 %v352, %v346
  %v509 = vpack.c.b16 %v353, %v347
  %v510 = vpack.c.b16 %v354, %v348
  %v511 = vpack.c.b16 %v355, %v349
  %v512 = vpack.c.b16 %v362, %v356
  %v513 = vpack.c.b16 %v363, %v357
  %v514 = vpack.c.b16 %v364, %v358
  %v515 = vpack.c.b16 %v365, %v359
  %v516 = vpack.c.b16 %v366, %v360
  %v517 = vpack.c.b16 %v367, %v361
  %v518 = vpack.c.b16 %v374, %v368
  %v519 = vpack.c.b16 %v375, %v369
  %v520 = vpack.c.b16 %v376, %v370
  %v521 = vpack.c.b16 %v377, %v371
  %v522 = vpack.c.b16 %v378, %v372
  %v523 = vpack.c.b16 %v379, %v373
  %v524 = vpack.c.b16 %v386, %v380
  %v525 = vpack.c.b16 %v387, %v381
  %v526 = vpack.c.b16 %v388, %v382
  %v527 = vpack.c.b16 %v389, %v383
  %v528 = vpack.c.b16 %v390, %v384
  %v529 = vpack.c.b16 %v391, %v385
  %v530 = vpack.c.b16 %v398, %v392
  %v531 = vpack.c.b16 %v399, %v393
  %v532 = vpack.c.b16 %v400, %v394
  %v533 = vpack.c.b16 %v401, %v395
  %v534 = vpack.c.b16 %v402, %v396
  %v535 = vpack.c.b16 %v403, %v397
  %v536 = vpack.c.b16 %v410, %v404
  %v537 = vpack.c.b16 %v411, %v405
  %v538 = vpack.c.b16 %v412, %v406
  %v539 = vpack.c.b16 %v413, %v407
  %v540 = vpack.c.b16 %v414, %v408
  %v541 = vpack.c.b16 %v415, %v409
  %v542 = vpack.c.b16 %v422, %v416
  %v543 = vpack.c.b16 %v423, %v417
  %v544 = vpack.c.b16 %v424, %v418
  %v545 = vpack.c.b16 %v425, %v419
  %v546 = vpack.c.b16 %v426, %v420
  %v547 = vpack.c.b16 %v427, %v421
  %v548 = vpack.c.b16 %v434, %v428
  %v549 = vpack.c.b16 %v435, %v429
  %v550 = vpack.c.b16 %v436, %v430
  %v551 = vpack.c.b16 %v437, %v431
  %v552 = vpack.c.b16 %v438, %v432
  %v553 = vpack.c.b16 %v439, %v433
  %v554 = vpack.c.b16 %v446, %v440
  %v555 = vpack.c.b16 %v447, %v441
  %v556 = vpack.c.b16 %v448, %v442
  %v557 = vpack.c.b16 %v449, %v443
  %v558 = vpack.c.b16 %v450, %v444
  %v559 = vpack.c.b16 %v451, %v445
  %v560 = vpack.c.b16 %v458, %v452
  %v561 = vpack.c.b16 %v459, %v453
  %v562 = vpack.c.b16 %v460, %v454
  %v563 = vpack.c.b16 %v461, %v455
  %v564 = vpack.c.b16 %v462, %v456
  %v565 = vpack.c.b16 %v463, %v457
  %v566 = vpack.c.b16 %v470, %v464
  %v567 = vpack.c.b16 %v471, %v465
  %v568 = vpack.c.b16 %v472, %v466
  %v569 = vpack.c.b16 %v473, %v467
  %v570 = vpack.c.b16 %v474, %v468
  %v571 = vpack.c.b16 %v475, %v469
  %668 = vmatprep.subr.bf16.mxu0 %v477
  %669 = vmatpush1.bf16.msra.mxu0 %v476
  %670 = vmatprep.subr.bf16.mxu0 %v483
  %671 = vmatpush1.bf16.msra.mxu0 %v482
  %672 = vmatprep.subr.bf16.mxu0 %v489
  %673 = vmatpush1.bf16.msra.mxu0 %v488
  %674 = vmatprep.subr.bf16.mxu0 %v495
  %675 = vmatpush1.bf16.msra.mxu0 %v494
  %676 = vmatprep.subr.bf16.mxu0 %v501
  %677 = vmatpush1.bf16.msra.mxu0 %v500
  %678 = vmatprep.subr.bf16.mxu0 %v507
  %679 = vmatpush1.bf16.msra.mxu0 %v506
  %680 = vmatprep.subr.bf16.mxu0 %v513
  %681 = vmatpush1.bf16.msra.mxu0 %v512
  %682 = vmatprep.subr.bf16.mxu0 %v519
  %683 = vmatpush1.bf16.msra.mxu0 %v518
  %684 = vmatprep.subr.bf16.mxu0 %v525
  %685 = vmatpush1.bf16.msra.mxu0 %v524
  %686 = vmatprep.subr.bf16.mxu0 %v531
  %687 = vmatpush1.bf16.msra.mxu0 %v530
  %688 = vmatprep.subr.bf16.mxu0 %v537
  %689 = vmatpush1.bf16.msra.mxu0 %v536
  %690 = vmatprep.subr.bf16.mxu0 %v543
  %691 = vmatpush1.bf16.msra.mxu0 %v542
  %692 = vmatprep.subr.bf16.mxu0 %v549
  %693 = vmatpush1.bf16.msra.mxu0 %v548
  %694 = vmatprep.subr.bf16.mxu0 %v555
  %695 = vmatpush1.bf16.msra.mxu0 %v554
  %696 = vmatprep.subr.bf16.mxu0 %v561
  %697 = vmatpush1.bf16.msra.mxu0 %v560
  %698 = vmatprep.subr.bf16.mxu0 %v567
  %699 = vmatpush1.bf16.msra.mxu0 %v566
  %700 = vmatprep.mubr.bf16.mxu0 %v165
  %701 = vmatmul.mubr.bf16.gmra.mrb[0].mxu0 %v164
  %v702 = vpop.f32.mrb[0].mxu0
  %v703 = vadd.f32 0.0, %v702
  %v704 = vpop.f32.mrb[0].mxu0
  %v705 = vadd.f32 0.0, %v704
  %v706 = vpop.f32.mrb[0].mxu0
  %v707 = vadd.f32 0.0, %v706
  %v708 = vpop.f32.mrb[0].mxu0
  %v709 = vadd.f32 0.0, %v708
  %710 = vmatprep.mubr.bf16.mxu0 %v167
  %711 = vmatmul.mubr.bf16.gmra.mrb[0].mxu0 %v166
  %v712 = vpop.f32.mrb[0].mxu0
  %v713 = vadd.f32 0.0, %v712
  %v714 = vpop.f32.mrb[0].mxu0
  %v715 = vadd.f32 0.0, %v714
  %v716 = vpop.f32.mrb[0].mxu0
  %v717 = vadd.f32 0.0, %v716
  %v718 = vpop.f32.mrb[0].mxu0
  %v719 = vadd.f32 0.0, %v718
  %720 = vmatprep.mubr.bf16.mxu0 %v169
  %721 = vmatmul.mubr.bf16.gmra.mrb[0].mxu0 %v168
  %v722 = vpop.f32.mrb[0].mxu0
  %v723 = vadd.f32 0.0, %v722
  %v724 = vpop.f32.mrb[0].mxu0
  %v725 = vadd.f32 0.0, %v724
  %v726 = vpop.f32.mrb[0].mxu0
  %v727 = vadd.f32 0.0, %v726
  %v728 = vpop.f32.mrb[0].mxu0
  %v729 = vadd.f32 0.0, %v728
  %730 = vmatprep.mubr.bf16.mxu0 %v171
  %731 = vmatmul.mubr.bf16.gmra.mrb[0].mxu0 %v170
  %v732 = vpop.f32.mrb[0].mxu0
  %v733 = vadd.f32 0.0, %v732
  %v734 = vpop.f32.mrb[0].mxu0
  %v735 = vadd.f32 0.0, %v734
  %v736 = vpop.f32.mrb[0].mxu0
  %v737 = vadd.f32 0.0, %v736
  %v738 = vpop.f32.mrb[0].mxu0
  %v739 = vadd.f32 0.0, %v738
  %740 = vmatprep.mubr.bf16.mxu0 %v173
  %741 = vmatmul.mubr.bf16.gmra.mrb[0].mxu0 %v172
  %v742 = vpop.f32.mrb[0].mxu0
  %v743 = vadd.f32 0.0, %v742
  %v744 = vpop.f32.mrb[0].mxu0
  %v745 = vadd.f32 0.0, %v744
  %v746 = vpop.f32.mrb[0].mxu0
  %v747 = vadd.f32 0.0, %v746
  %v748 = vpop.f32.mrb[0].mxu0
  %v749 = vadd.f32 0.0, %v748
  %750 = vmatprep.mubr.bf16.mxu0 %v175
  %751 = vmatmul.mubr.bf16.gmra.mrb[0].mxu0 %v174
  %v752 = vpop.f32.mrb[0].mxu0
  %v753 = vadd.f32 0.0, %v752
  %v754 = vpop.f32.mrb[0].mxu0
  %v755 = vadd.f32 0.0, %v754
  %v756 = vpop.f32.mrb[0].mxu0
  %v757 = vpop.f32.mrb[0].mxu0
  %758 = vdwg.mxu0
  %759 = vmatprep.subr.bf16.mxu0 %v479
  %760 = vmatpush1.bf16.msra.mxu0 %v478
  %761 = vmatprep.subr.bf16.mxu0 %v485
  %762 = vmatpush1.bf16.msra.mxu0 %v484
  %763 = vmatprep.subr.bf16.mxu0 %v491
  %764 = vmatpush1.bf16.msra.mxu0 %v490
  %765 = vmatprep.subr.bf16.mxu0 %v497
  %766 = vmatpush1.bf16.msra.mxu0 %v496
  %767 = vmatprep.subr.bf16.mxu0 %v503
  %768 = vmatpush1.bf16.msra.mxu0 %v502
  %769 = vmatprep.subr.bf16.mxu0 %v509
  %770 = vmatpush1.bf16.msra.mxu0 %v508
  %771 = vmatprep.subr.bf16.mxu0 %v515
  %772 = vmatpush1.bf16.msra.mxu0 %v514
  %773 = vmatprep.subr.bf16.mxu0 %v521
  %774 = vmatpush1.bf16.msra.mxu0 %v520
  %775 = vmatprep.subr.bf16.mxu0 %v527
  %776 = vmatpush1.bf16.msra.mxu0 %v526
  %777 = vmatprep.subr.bf16.mxu0 %v533
  %778 = vmatpush1.bf16.msra.mxu0 %v532
  %779 = vmatprep.subr.bf16.mxu0 %v539
  %780 = vmatpush1.bf16.msra.mxu0 %v538
  %781 = vmatprep.subr.bf16.mxu0 %v545
  %782 = vmatpush1.bf16.msra.mxu0 %v544
  %783 = vmatprep.subr.bf16.mxu0 %v551
  %784 = vmatpush1.bf16.msra.mxu0 %v550
  %785 = vmatprep.subr.bf16.mxu0 %v557
  %786 = vmatpush1.bf16.msra.mxu0 %v556
  %787 = vmatprep.subr.bf16.mxu0 %v563
  %788 = vmatpush1.bf16.msra.mxu0 %v562
  %789 = vmatprep.subr.bf16.mxu0 %v569
  %790 = vmatpush1.bf16.msra.mxu0 %v568
  %791 = vmatprep.mubr.bf16.mxu0 %v165
  %792 = vmatmul.mubr.bf16.gmra.mrb[0].mxu0 %v164
  %v793 = vpop.f32.mrb[0].mxu0
  %v794 = vadd.f32 0.0, %v793
  %v795 = vpop.f32.mrb[0].mxu0
  %v796 = vadd.f32 0.0, %v795
  %v797 = vpop.f32.mrb[0].mxu0
  %v798 = vadd.f32 0.0, %v797
  %v799 = vpop.f32.mrb[0].mxu0
  %v800 = vadd.f32 0.0, %v799
  %801 = vmatprep.mubr.bf16.mxu0 %v167
  %802 = vmatmul.mubr.bf16.gmra.mrb[0].mxu0 %v166
  %v803 = vpop.f32.mrb[0].mxu0
  %v804 = vadd.f32 0.0, %v803
  %v805 = vpop.f32.mrb[0].mxu0
  %v806 = vadd.f32 0.0, %v805
  %v807 = vpop.f32.mrb[0].mxu0
  %v808 = vadd.f32 0.0, %v807
  %v809 = vpop.f32.mrb[0].mxu0
  %v810 = vadd.f32 0.0, %v809
  %811 = vmatprep.mubr.bf16.mxu0 %v169
  %812 = vmatmul.mubr.bf16.gmra.mrb[0].mxu0 %v168
  %v813 = vpop.f32.mrb[0].mxu0
  %v814 = vadd.f32 0.0, %v813
  %v815 = vpop.f32.mrb[0].mxu0
  %v816 = vadd.f32 0.0, %v815
  %v817 = vpop.f32.mrb[0].mxu0
  %v818 = vadd.f32 0.0, %v817
  %v819 = vpop.f32.mrb[0].mxu0
  %v820 = vadd.f32 0.0, %v819
  %821 = vmatprep.mubr.bf16.mxu0 %v171
  %822 = vmatmul.mubr.bf16.gmra.mrb[0].mxu0 %v170
  %v823 = vpop.f32.mrb[0].mxu0
  %v824 = vadd.f32 0.0, %v823
  %v825 = vpop.f32.mrb[0].mxu0
  %v826 = vadd.f32 0.0, %v825
  %v827 = vpop.f32.mrb[0].mxu0
  %v828 = vadd.f32 0.0, %v827
  %v829 = vpop.f32.mrb[0].mxu0
  %v830 = vadd.f32 0.0, %v829
  %831 = vmatprep.mubr.bf16.mxu0 %v173
  %832 = vmatmul.mubr.bf16.gmra.mrb[0].mxu0 %v172
  %v833 = vpop.f32.mrb[0].mxu0
  %v834 = vadd.f32 0.0, %v833
  %v835 = vpop.f32.mrb[0].mxu0
  %v836 = vadd.f32 0.0, %v835
  %v837 = vpop.f32.mrb[0].mxu0
  %v838 = vadd.f32 0.0, %v837
  %v839 = vpop.f32.mrb[0].mxu0
  %v840 = vadd.f32 0.0, %v839
  %841 = vmatprep.mubr.bf16.mxu0 %v175
  %842 = vmatmul.mubr.bf16.gmra.mrb[0].mxu0 %v174
  %v843 = vpop.f32.mrb[0].mxu0
  %v844 = vadd.f32 0.0, %v843
  %v845 = vpop.f32.mrb[0].mxu0
  %v846 = vadd.f32 0.0, %v845
  %v847 = vpop.f32.mrb[0].mxu0
  %v848 = vpop.f32.mrb[0].mxu0
  %849 = vdwg.mxu0
  %850 = vmatprep.subr.bf16.mxu0 %v481
  %851 = vmatpush1.bf16.msra.mxu0 %v480
  %852 = vmatprep.subr.bf16.mxu0 %v487
  %853 = vmatpush1.bf16.msra.mxu0 %v486
  %854 = vmatprep.subr.bf16.mxu0 %v493
  %855 = vmatpush1.bf16.msra.mxu0 %v492
  %856 = vmatprep.subr.bf16.mxu0 %v499
  %857 = vmatpush1.bf16.msra.mxu0 %v498
  %858 = vmatprep.subr.bf16.mxu0 %v505
  %859 = vmatpush1.bf16.msra.mxu0 %v504
  %860 = vmatprep.subr.bf16.mxu0 %v511
  %861 = vmatpush1.bf16.msra.mxu0 %v510
  %862 = vmatprep.subr.bf16.mxu0 %v517
  %863 = vmatpush1.bf16.msra.mxu0 %v516
  %864 = vmatprep.subr.bf16.mxu0 %v523
  %865 = vmatpush1.bf16.msra.mxu0 %v522
  %866 = vmatprep.subr.bf16.mxu0 %v529
  %867 = vmatpush1.bf16.msra.mxu0 %v528
  %868 = vmatprep.subr.bf16.mxu0 %v535
  %869 = vmatpush1.bf16.msra.mxu0 %v534
  %870 = vmatprep.subr.bf16.mxu0 %v541
  %871 = vmatpush1.bf16.msra.mxu0 %v540
  %872 = vmatprep.subr.bf16.mxu0 %v547
  %873 = vmatpush1.bf16.msra.mxu0 %v546
  %874 = vmatprep.subr.bf16.mxu0 %v553
  %875 = vmatpush1.bf16.msra.mxu0 %v552
  %876 = vmatprep.subr.bf16.mxu0 %v559
  %877 = vmatpush1.bf16.msra.mxu0 %v558
  %878 = vmatprep.subr.bf16.mxu0 %v565
  %879 = vmatpush1.bf16.msra.mxu0 %v564
  %880 = vmatprep.subr.bf16.mxu0 %v571
  %881 = vmatpush1.bf16.msra.mxu0 %v570
  %882 = vmatprep.mubr.bf16.mxu0 %v165
  %883 = vmatmul.mubr.bf16.gmra.mrb[0].mxu0 %v164
  %v884 = vpop.f32.mrb[0].mxu0
  %v885 = vadd.f32 0.0, %v884
  %v886 = vpop.f32.mrb[0].mxu0
  %v887 = vadd.f32 0.0, %v886
  %v888 = vpop.f32.mrb[0].mxu0
  %v889 = vadd.f32 0.0, %v888
  %v890 = vpop.f32.mrb[0].mxu0
  %v891 = vadd.f32 0.0, %v890
  %892 = vmatprep.mubr.bf16.mxu0 %v167
  %893 = vmatmul.mubr.bf16.gmra.mrb[0].mxu0 %v166
  %v894 = vpop.f32.mrb[0].mxu0
  %v895 = vadd.f32 0.0, %v894
  %v896 = vpop.f32.mrb[0].mxu0
  %v897 = vadd.f32 0.0, %v896
  %v898 = vpop.f32.mrb[0].mxu0
  %v899 = vadd.f32 0.0, %v898
  %v900 = vpop.f32.mrb[0].mxu0
  %v901 = vadd.f32 0.0, %v900
  %902 = vmatprep.mubr.bf16.mxu0 %v169
  %903 = vmatmul.mubr.bf16.gmra.mrb[0].mxu0 %v168
  %v904 = vpop.f32.mrb[0].mxu0
  %v905 = vadd.f32 0.0, %v904
  %v906 = vpop.f32.mrb[0].mxu0
  %v907 = vadd.f32 0.0, %v906
  %v908 = vpop.f32.mrb[0].mxu0
  %v909 = vadd.f32 0.0, %v908
  %v910 = vpop.f32.mrb[0].mxu0
  %v911 = vadd.f32 0.0, %v910
  %912 = vmatprep.mubr.bf16.mxu0 %v171
  %913 = vmatmul.mubr.bf16.gmra.mrb[0].mxu0 %v170
  %v914 = vpop.f32.mrb[0].mxu0
  %v915 = vadd.f32 0.0, %v914
  %v916 = vpop.f32.mrb[0].mxu0
  %v917 = vadd.f32 0.0, %v916
  %v918 = vpop.f32.mrb[0].mxu0
  %v919 = vadd.f32 0.0, %v918
  %v920 = vpop.f32.mrb[0].mxu0
  %v921 = vadd.f32 0.0, %v920
  %922 = vmatprep.mubr.bf16.mxu0 %v173
  %923 = vmatmul.mubr.bf16.gmra.mrb[0].mxu0 %v172
  %v924 = vpop.f32.mrb[0].mxu0
  %v925 = vadd.f32 0.0, %v924
  %v926 = vpop.f32.mrb[0].mxu0
  %v927 = vadd.f32 0.0, %v926
  %v928 = vpop.f32.mrb[0].mxu0
  %v929 = vadd.f32 0.0, %v928
  %v930 = vpop.f32.mrb[0].mxu0
  %v931 = vadd.f32 0.0, %v930
  %932 = vmatprep.mubr.bf16.mxu0 %v175
  %933 = vmatmul.mubr.bf16.gmra.mrb[0].mxu0 %v174
  %v934 = vpop.f32.mrb[0].mxu0
  %v935 = vadd.f32 0.0, %v934
  %v936 = vpop.f32.mrb[0].mxu0
  %v937 = vadd.f32 0.0, %v936
  %v938 = vpop.f32.mrb[0].mxu0
  %v939 = vpop.f32.mrb[0].mxu0
  %940 = vdwg.mxu0
  %v941 = vpack.c.bf16 %v707, %v703
  %v942 = vpack.c.bf16 %v709, %v705
  %v943 = vpack.c.bf16 %v798, %v794
  %v944 = vpack.c.bf16 %v800, %v796
  %v945 = vpack.c.bf16 %v889, %v885
  %v946 = vpack.c.bf16 %v891, %v887
  %v947 = vpack.c.bf16 %v717, %v713
  %v948 = vpack.c.bf16 %v719, %v715
  %v949 = vpack.c.bf16 %v808, %v804
  %v950 = vpack.c.bf16 %v810, %v806
  %v951 = vpack.c.bf16 %v899, %v895
  %v952 = vpack.c.bf16 %v901, %v897
  %v953 = vpack.c.bf16 %v727, %v723
  %v954 = vpack.c.bf16 %v729, %v725
  %v955 = vpack.c.bf16 %v818, %v814
  %v956 = vpack.c.bf16 %v820, %v816
  %v957 = vpack.c.bf16 %v909, %v905
  %v958 = vpack.c.bf16 %v911, %v907
  %v959 = vpack.c.bf16 %v737, %v733
  %v960 = vpack.c.bf16 %v739, %v735
  %v961 = vpack.c.bf16 %v828, %v824
  %v962 = vpack.c.bf16 %v830, %v826
  %v963 = vpack.c.bf16 %v919, %v915
  %v964 = vpack.c.bf16 %v921, %v917
  %v965 = vpack.c.bf16 %v747, %v743
  %v966 = vpack.c.bf16 %v749, %v745
  %v967 = vpack.c.bf16 %v838, %v834
  %v968 = vpack.c.bf16 %v840, %v836
  %v969 = vpack.c.bf16 %v929, %v925
  %v970 = vpack.c.bf16 %v931, %v927
  %v971 = vpack.c.bf16 %v753, %v753
  %v972 = vpack.c.bf16 %v755, %v755
  %v973 = vpack.c.bf16 %v844, %v844
  %v974 = vpack.c.bf16 %v846, %v846
  %v975 = vpack.c.bf16 %v935, %v935
  %v976 = vpack.c.bf16 %v937, %v937
  %v977 = vld [vmem:[%s3] sm:$0xf]
  %v978 = vld [vmem:[%s3 + $0x4] sm:$0xf]
  %v979 = vld [vmem:[%s3 + $0x8] sm:$0xf]
  %v980 = vld [vmem:[%s3 + $0xc] sm:$0xf]
  %v981 = vld [vmem:[%s3 + $0x10] sm:$0xf]
  %v982 = vld [vmem:[%s3 + $0x14] sm:$0xf]
  %v983 = vld [vmem:[%s3 + $0x18] sm:$0xf]
  %v984 = vld [vmem:[%s3 + $0x1c] sm:$0xf]
  %v985 = vld [vmem:[%s3 + $0x20] sm:$0xf]
  %v986 = vld [vmem:[%s3 + $0x24] sm:$0xf]
  %v987 = vld [vmem:[%s3 + $0x28] sm:$0x3]
  %s988 = scalar_lea.vmem %s3, 44
  %v989 = vld [vmem:[%s988] sm:$0xf]
  %v990 = vld [vmem:[%s988 + $0x4] sm:$0xf]
  %v991 = vld [vmem:[%s988 + $0x8] sm:$0xf]
  %v992 = vld [vmem:[%s988 + $0xc] sm:$0xf]
  %v993 = vld [vmem:[%s988 + $0x10] sm:$0xf]
  %v994 = vld [vmem:[%s988 + $0x14] sm:$0xf]
  %v995 = vld [vmem:[%s988 + $0x18] sm:$0xf]
  %v996 = vld [vmem:[%s988 + $0x1c] sm:$0xf]
  %v997 = vld [vmem:[%s988 + $0x20] sm:$0xf]
  %v998 = vld [vmem:[%s988 + $0x24] sm:$0xf]
  %v999 = vld [vmem:[%s988 + $0x28] sm:$0x3]
  %v1011 = vunpack.c.l.b16 %v989
  %v1012 = vunpack.c.l.b16 %v990
  %v1013 = vunpack.c.l.b16 %v991
  %v1014 = vunpack.c.l.b16 %v992
  %v1015 = vunpack.c.l.b16 %v993
  %v1016 = vunpack.c.l.b16 %v994
  %v1017 = vunpack.c.l.b16 %v995
  %v1018 = vunpack.c.l.b16 %v996
  %v1019 = vunpack.c.l.b16 %v997
  %v1020 = vunpack.c.l.b16 %v998
  %v1021 = vunpack.c.l.b16 %v999
  %v1022 = vpack.c.b16 %v1012, %v1011
  %v1023 = vpack.c.b16 %v1014, %v1013
  %v1024 = vpack.c.b16 %v1016, %v1015
  %v1025 = vpack.c.b16 %v1018, %v1017
  %v1026 = vpack.c.b16 %v1020, %v1019
  %v1027 = vpack.c.b16 %v1021, %v1021
  %vm1028 = vcmask 687104
  %v1030 = vsel %vm1028, %v1022, 0
  %v1033 = vsel %vm1028, %v1023, 0
  %v1036 = vsel %vm1028, %v1024, 0
  %v1039 = vsel %vm1028, %v1025, 0
  %v1042 = vsel %vm1028, %v1026, 0
  %v1045 = vsel %vm1028, %v1027, 0
  %vm1047 = vcmask 1041408
  %v1049 = vsel %vm1047, %v973, 0
  %v1052 = vsel %vm1047, %v974, 0
  %1054 = vmatprep.subr.bf16.mxu0 %v944
  %1055 = vmatpush1.bf16.msra.mxu0 %v943
  %1056 = vmatprep.subr.bf16.mxu0 %v950
  %1057 = vmatpush1.bf16.msra.mxu0 %v949
  %1058 = vmatprep.subr.bf16.mxu0 %v956
  %1059 = vmatpush1.bf16.msra.mxu0 %v955
  %1060 = vmatprep.subr.bf16.mxu0 %v962
  %1061 = vmatpush1.bf16.msra.mxu0 %v961
  %1062 = vmatprep.subr.bf16.mxu0 %v968
  %1063 = vmatpush1.bf16.msra.mxu0 %v967
  %1064 = vmatprep.subr.bf16.mxu0 %v1052
  %1065 = vmatpush1.bf16.msra.mxu0 %v1049
  %1066 = vmatprep.subr.bf16.mxu0 0
  %1067 = vmatpush1.bf16.msra.mxu0 0
  %1068 = vmatprep.subr.bf16.mxu0 0
  %1069 = vmatpush1.bf16.msra.mxu0 0
  %1070 = vmatprep.subr.bf16.mxu0 0
  %1071 = vmatpush1.bf16.msra.mxu0 0
  %1072 = vmatprep.subr.bf16.mxu0 0
  %1073 = vmatpush1.bf16.msra.mxu0 0
  %1074 = vmatprep.subr.bf16.mxu0 0
  %1075 = vmatpush1.bf16.msra.mxu0 0
  %1076 = vmatprep.subr.bf16.mxu0 0
  %1077 = vmatpush1.bf16.msra.mxu0 0
  %1078 = vmatprep.subr.bf16.mxu0 0
  %1079 = vmatpush1.bf16.msra.mxu0 0
  %1080 = vmatprep.subr.bf16.mxu0 0
  %1081 = vmatpush1.bf16.msra.mxu0 0
  %1082 = vmatprep.subr.bf16.mxu0 0
  %1083 = vmatpush1.bf16.msra.mxu0 0
  %1084 = vmatprep.subr.bf16.mxu0 0
  %1085 = vmatpush1.bf16.msra.mxu0 0
  %1086 = vmatprep.mubr.bf16.mxu0 0
  %1087 = vmatmul.mubr.bf16.gmra.mrb[0].mxu0 %v1030
  %v1088 = vpop.f32.mrb[0].mxu0
  %v1089 = vadd.f32 0.0, %v1088
  %v1090 = vpop.f32.mrb[0].mxu0
  %v1091 = vadd.f32 0.0, %v1090
  %v1092 = vpop.f32.mrb[0].mxu0
  %v1093 = vadd.f32 0.0, %v1092
  %v1094 = vpop.f32.mrb[0].mxu0
  %v1095 = vadd.f32 0.0, %v1094
  %1096 = vmatprep.mubr.bf16.mxu0 0
  %1097 = vmatmul.mubr.bf16.gmra.mrb[0].mxu0 %v1033
  %v1098 = vpop.f32.mrb[0].mxu0
  %v1099 = vadd.f32 0.0, %v1098
  %v1100 = vpop.f32.mrb[0].mxu0
  %v1101 = vadd.f32 0.0, %v1100
  %v1102 = vpop.f32.mrb[0].mxu0
  %v1103 = vadd.f32 0.0, %v1102
  %v1104 = vpop.f32.mrb[0].mxu0
  %v1105 = vadd.f32 0.0, %v1104
  %1106 = vmatprep.mubr.bf16.mxu0 0
  %1107 = vmatmul.mubr.bf16.gmra.mrb[0].mxu0 %v1036
  %v1108 = vpop.f32.mrb[0].mxu0
  %v1109 = vadd.f32 0.0, %v1108
  %v1110 = vpop.f32.mrb[0].mxu0
  %v1111 = vadd.f32 0.0, %v1110
  %v1112 = vpop.f32.mrb[0].mxu0
  %v1113 = vadd.f32 0.0, %v1112
  %v1114 = vpop.f32.mrb[0].mxu0
  %v1115 = vadd.f32 0.0, %v1114
  %1116 = vmatprep.mubr.bf16.mxu0 0
  %1117 = vmatmul.mubr.bf16.gmra.mrb[0].mxu0 %v1039
  %v1118 = vpop.f32.mrb[0].mxu0
  %v1119 = vadd.f32 0.0, %v1118
  %v1120 = vpop.f32.mrb[0].mxu0
  %v1121 = vadd.f32 0.0, %v1120
  %v1122 = vpop.f32.mrb[0].mxu0
  %v1123 = vadd.f32 0.0, %v1122
  %v1124 = vpop.f32.mrb[0].mxu0
  %v1125 = vadd.f32 0.0, %v1124
  %1126 = vmatprep.mubr.bf16.mxu0 0
  %1127 = vmatmul.mubr.bf16.gmra.mrb[0].mxu0 %v1042
  %v1128 = vpop.f32.mrb[0].mxu0
  %v1129 = vadd.f32 0.0, %v1128
  %v1130 = vpop.f32.mrb[0].mxu0
  %v1131 = vadd.f32 0.0, %v1130
  %v1132 = vpop.f32.mrb[0].mxu0
  %v1133 = vadd.f32 0.0, %v1132
  %v1134 = vpop.f32.mrb[0].mxu0
  %v1135 = vadd.f32 0.0, %v1134
  %1136 = vmatprep.mubr.bf16.mxu0 0
  %1137 = vmatmul.mubr.bf16.gmra.mrb[0].mxu0 %v1045
  %v1138 = vpop.f32.mrb[0].mxu0
  %v1139 = vadd.f32 0.0, %v1138
  %v1140 = vpop.f32.mrb[0].mxu0
  %v1141 = vadd.f32 0.0, %v1140
  %v1142 = vpop.f32.mrb[0].mxu0
  %v1143 = vpop.f32.mrb[0].mxu0
  %1144 = vdwg.mxu0
  %v1156 = vunpack.c.l.b16 %v977
  %v1157 = vunpack.c.l.b16 %v978
  %v1158 = vunpack.c.l.b16 %v979
  %v1159 = vunpack.c.l.b16 %v980
  %v1160 = vunpack.c.l.b16 %v981
  %v1161 = vunpack.c.l.b16 %v982
  %v1162 = vunpack.c.l.b16 %v983
  %v1163 = vunpack.c.l.b16 %v984
  %v1164 = vunpack.c.l.b16 %v985
  %v1165 = vunpack.c.l.b16 %v986
  %v1166 = vunpack.c.l.b16 %v987
  %v1167 = vpack.c.b16 %v1157, %v1156
  %v1168 = vpack.c.b16 %v1159, %v1158
  %v1169 = vpack.c.b16 %v1161, %v1160
  %v1170 = vpack.c.b16 %v1163, %v1162
  %v1171 = vpack.c.b16 %v1165, %v1164
  %v1172 = vpack.c.b16 %v1166, %v1166
  %v1174 = vsel %vm1028, %v1167, 0
  %v1177 = vsel %vm1028, %v1168, 0
  %v1180 = vsel %vm1028, %v1169, 0
  %v1183 = vsel %vm1028, %v1170, 0
  %v1186 = vsel %vm1028, %v1171, 0
  %v1189 = vsel %vm1028, %v1172, 0
  %v1192 = vsel %vm1047, %v971, 0
  %v1195 = vsel %vm1047, %v972, 0
  %1197 = vmatprep.subr.bf16.mxu0 %v942
  %1198 = vmatpush1.bf16.msra.mxu0 %v941
  %1199 = vmatprep.subr.bf16.mxu0 %v948
  %1200 = vmatpush1.bf16.msra.mxu0 %v947
  %1201 = vmatprep.subr.bf16.mxu0 %v954
  %1202 = vmatpush1.bf16.msra.mxu0 %v953
  %1203 = vmatprep.subr.bf16.mxu0 %v960
  %1204 = vmatpush1.bf16.msra.mxu0 %v959
  %1205 = vmatprep.subr.bf16.mxu0 %v966
  %1206 = vmatpush1.bf16.msra.mxu0 %v965
  %1207 = vmatprep.subr.bf16.mxu0 %v1195
  %1208 = vmatpush1.bf16.msra.mxu0 %v1192
  %1209 = vmatprep.subr.bf16.mxu0 0
  %1210 = vmatpush1.bf16.msra.mxu0 0
  %1211 = vmatprep.subr.bf16.mxu0 0
  %1212 = vmatpush1.bf16.msra.mxu0 0
  %1213 = vmatprep.subr.bf16.mxu0 0
  %1214 = vmatpush1.bf16.msra.mxu0 0
  %1215 = vmatprep.subr.bf16.mxu0 0
  %1216 = vmatpush1.bf16.msra.mxu0 0
  %1217 = vmatprep.subr.bf16.mxu0 0
  %1218 = vmatpush1.bf16.msra.mxu0 0
  %1219 = vmatprep.subr.bf16.mxu0 0
  %1220 = vmatpush1.bf16.msra.mxu0 0
  %1221 = vmatprep.subr.bf16.mxu0 0
  %1222 = vmatpush1.bf16.msra.mxu0 0
  %1223 = vmatprep.subr.bf16.mxu0 0
  %1224 = vmatpush1.bf16.msra.mxu0 0
  %1225 = vmatprep.subr.bf16.mxu0 0
  %1226 = vmatpush1.bf16.msra.mxu0 0
  %1227 = vmatprep.subr.bf16.mxu0 0
  %1228 = vmatpush1.bf16.msra.mxu0 0
  %1229 = vmatprep.mubr.bf16.mxu0 0
  %1230 = vmatmul.mubr.bf16.gmra.mrb[0].mxu0 %v1174
  %v1231 = vpop.f32.mrb[0].mxu0
  %v1232 = vadd.f32 %v1089, %v1231
  %v1233 = vpop.f32.mrb[0].mxu0
  %v1234 = vadd.f32 %v1091, %v1233
  %v1235 = vpop.f32.mrb[0].mxu0
  %v1236 = vadd.f32 %v1093, %v1235
  %v1237 = vpop.f32.mrb[0].mxu0
  %v1238 = vadd.f32 %v1095, %v1237
  %1239 = vmatprep.mubr.bf16.mxu0 0
  %1240 = vmatmul.mubr.bf16.gmra.mrb[0].mxu0 %v1177
  %v1241 = vpop.f32.mrb[0].mxu0
  %v1242 = vadd.f32 %v1099, %v1241
  %v1243 = vpop.f32.mrb[0].mxu0
  %v1244 = vadd.f32 %v1101, %v1243
  %v1245 = vpop.f32.mrb[0].mxu0
  %v1246 = vadd.f32 %v1103, %v1245
  %v1247 = vpop.f32.mrb[0].mxu0
  %v1248 = vadd.f32 %v1105, %v1247
  %1249 = vmatprep.mubr.bf16.mxu0 0
  %1250 = vmatmul.mubr.bf16.gmra.mrb[0].mxu0 %v1180
  %v1251 = vpop.f32.mrb[0].mxu0
  %v1252 = vadd.f32 %v1109, %v1251
  %v1253 = vpop.f32.mrb[0].mxu0
  %v1254 = vadd.f32 %v1111, %v1253
  %v1255 = vpop.f32.mrb[0].mxu0
  %v1256 = vadd.f32 %v1113, %v1255
  %v1257 = vpop.f32.mrb[0].mxu0
  %v1258 = vadd.f32 %v1115, %v1257
  %1259 = vmatprep.mubr.bf16.mxu0 0
  %1260 = vmatmul.mubr.bf16.gmra.mrb[0].mxu0 %v1183
  %v1261 = vpop.f32.mrb[0].mxu0
  %v1262 = vadd.f32 %v1119, %v1261
  %v1263 = vpop.f32.mrb[0].mxu0
  %v1264 = vadd.f32 %v1121, %v1263
  %v1265 = vpop.f32.mrb[0].mxu0
  %v1266 = vadd.f32 %v1123, %v1265
  %v1267 = vpop.f32.mrb[0].mxu0
  %v1268 = vadd.f32 %v1125, %v1267
  %1269 = vmatprep.mubr.bf16.mxu0 0
  %1270 = vmatmul.mubr.bf16.gmra.mrb[0].mxu0 %v1186
  %v1271 = vpop.f32.mrb[0].mxu0
  %v1272 = vadd.f32 %v1129, %v1271
  %v1273 = vpop.f32.mrb[0].mxu0
  %v1274 = vadd.f32 %v1131, %v1273
  %v1275 = vpop.f32.mrb[0].mxu0
  %v1276 = vadd.f32 %v1133, %v1275
  %v1277 = vpop.f32.mrb[0].mxu0
  %v1278 = vadd.f32 %v1135, %v1277
  %1279 = vmatprep.mubr.bf16.mxu0 0
  %1280 = vmatmul.mubr.bf16.gmra.mrb[0].mxu0 %v1189
  %v1281 = vpop.f32.mrb[0].mxu0
  %v1282 = vadd.f32 %v1139, %v1281
  %v1283 = vpop.f32.mrb[0].mxu0
  %v1284 = vadd.f32 %v1141, %v1283
  %v1285 = vpop.f32.mrb[0].mxu0
  %v1286 = vpop.f32.mrb[0].mxu0
  %1287 = vdwg.mxu0
  %s1288 = scalar_lea.vmem %s3, 88
  %v1289 = vld [vmem:[%s1288] sm:$0xf]
  %v1290 = vld [vmem:[%s1288 + $0x4] sm:$0xf]
  %v1291 = vld [vmem:[%s1288 + $0x8] sm:$0xf]
  %v1292 = vld [vmem:[%s1288 + $0xc] sm:$0xf]
  %v1293 = vld [vmem:[%s1288 + $0x10] sm:$0xf]
  %v1294 = vld [vmem:[%s1288 + $0x14] sm:$0xf]
  %v1295 = vld [vmem:[%s1288 + $0x18] sm:$0xf]
  %v1296 = vld [vmem:[%s1288 + $0x1c] sm:$0xf]
  %v1297 = vld [vmem:[%s1288 + $0x20] sm:$0xf]
  %v1298 = vld [vmem:[%s1288 + $0x24] sm:$0xf]
  %v1299 = vld [vmem:[%s1288 + $0x28] sm:$0x3]
  %v1311 = vunpack.c.l.b16 %v1289
  %v1312 = vunpack.c.l.b16 %v1290
  %v1313 = vunpack.c.l.b16 %v1291
  %v1314 = vunpack.c.l.b16 %v1292
  %v1315 = vunpack.c.l.b16 %v1293
  %v1316 = vunpack.c.l.b16 %v1294
  %v1317 = vunpack.c.l.b16 %v1295
  %v1318 = vunpack.c.l.b16 %v1296
  %v1319 = vunpack.c.l.b16 %v1297
  %v1320 = vunpack.c.l.b16 %v1298
  %v1321 = vunpack.c.l.b16 %v1299
  %v1322 = vpack.c.b16 %v1312, %v1311
  %v1323 = vpack.c.b16 %v1314, %v1313
  %v1324 = vpack.c.b16 %v1316, %v1315
  %v1325 = vpack.c.b16 %v1318, %v1317
  %v1326 = vpack.c.b16 %v1320, %v1319
  %v1327 = vpack.c.b16 %v1321, %v1321
  %v1329 = vsel %vm1028, %v1322, 0
  %v1332 = vsel %vm1028, %v1323, 0
  %v1335 = vsel %vm1028, %v1324, 0
  %v1338 = vsel %vm1028, %v1325, 0
  %v1341 = vsel %vm1028, %v1326, 0
  %v1344 = vsel %vm1028, %v1327, 0
  %v1347 = vsel %vm1047, %v975, 0
  %v1350 = vsel %vm1047, %v976, 0
  %1352 = vmatprep.subr.bf16.mxu0 %v946
  %1353 = vmatpush1.bf16.msra.mxu0 %v945
  %1354 = vmatprep.subr.bf16.mxu0 %v952
  %1355 = vmatpush1.bf16.msra.mxu0 %v951
  %1356 = vmatprep.subr.bf16.mxu0 %v958
  %1357 = vmatpush1.bf16.msra.mxu0 %v957
  %1358 = vmatprep.subr.bf16.mxu0 %v964
  %1359 = vmatpush1.bf16.msra.mxu0 %v963
  %1360 = vmatprep.subr.bf16.mxu0 %v970
  %1361 = vmatpush1.bf16.msra.mxu0 %v969
  %1362 = vmatprep.subr.bf16.mxu0 %v1350
  %1363 = vmatpush1.bf16.msra.mxu0 %v1347
  %1364 = vmatprep.subr.bf16.mxu0 0
  %1365 = vmatpush1.bf16.msra.mxu0 0
  %1366 = vmatprep.subr.bf16.mxu0 0
  %1367 = vmatpush1.bf16.msra.mxu0 0
  %1368 = vmatprep.subr.bf16.mxu0 0
  %1369 = vmatpush1.bf16.msra.mxu0 0
  %1370 = vmatprep.subr.bf16.mxu0 0
  %1371 = vmatpush1.bf16.msra.mxu0 0
  %1372 = vmatprep.subr.bf16.mxu0 0
  %1373 = vmatpush1.bf16.msra.mxu0 0
  %1374 = vmatprep.subr.bf16.mxu0 0
  %1375 = vmatpush1.bf16.msra.mxu0 0
  %1376 = vmatprep.subr.bf16.mxu0 0
  %1377 = vmatpush1.bf16.msra.mxu0 0
  %1378 = vmatprep.subr.bf16.mxu0 0
  %1379 = vmatpush1.bf16.msra.mxu0 0
  %1380 = vmatprep.subr.bf16.mxu0 0
  %1381 = vmatpush1.bf16.msra.mxu0 0
  %1382 = vmatprep.subr.bf16.mxu0 0
  %1383 = vmatpush1.bf16.msra.mxu0 0
  %1384 = vmatprep.mubr.bf16.mxu0 0
  %1385 = vmatmul.mubr.bf16.gmra.mrb[0].mxu0 %v1329
  %v1386 = vpop.f32.mrb[0].mxu0
  %v1387 = vadd.f32 0.0, %v1386
  %v1388 = vpop.f32.mrb[0].mxu0
  %v1389 = vadd.f32 0.0, %v1388
  %v1390 = vpop.f32.mrb[0].mxu0
  %v1391 = vadd.f32 0.0, %v1390
  %v1392 = vpop.f32.mrb[0].mxu0
  %v1393 = vadd.f32 0.0, %v1392
  %1394 = vmatprep.mubr.bf16.mxu0 0
  %1395 = vmatmul.mubr.bf16.gmra.mrb[0].mxu0 %v1332
  %v1396 = vpop.f32.mrb[0].mxu0
  %v1397 = vadd.f32 0.0, %v1396
  %v1398 = vpop.f32.mrb[0].mxu0
  %v1399 = vadd.f32 0.0, %v1398
  %v1400 = vpop.f32.mrb[0].mxu0
  %v1401 = vadd.f32 0.0, %v1400
  %v1402 = vpop.f32.mrb[0].mxu0
  %v1403 = vadd.f32 0.0, %v1402
  %1404 = vmatprep.mubr.bf16.mxu0 0
  %1405 = vmatmul.mubr.bf16.gmra.mrb[0].mxu0 %v1335
  %v1406 = vpop.f32.mrb[0].mxu0
  %v1407 = vadd.f32 0.0, %v1406
  %v1408 = vpop.f32.mrb[0].mxu0
  %v1409 = vadd.f32 0.0, %v1408
  %v1410 = vpop.f32.mrb[0].mxu0
  %v1411 = vadd.f32 0.0, %v1410
  %v1412 = vpop.f32.mrb[0].mxu0
  %v1413 = vadd.f32 0.0, %v1412
  %1414 = vmatprep.mubr.bf16.mxu0 0
  %1415 = vmatmul.mubr.bf16.gmra.mrb[0].mxu0 %v1338
  %v1416 = vpop.f32.mrb[0].mxu0
  %v1417 = vadd.f32 0.0, %v1416
  %v1418 = vpop.f32.mrb[0].mxu0
  %v1419 = vadd.f32 0.0, %v1418
  %v1420 = vpop.f32.mrb[0].mxu0
  %v1421 = vadd.f32 0.0, %v1420
  %v1422 = vpop.f32.mrb[0].mxu0
  %v1423 = vadd.f32 0.0, %v1422
  %1424 = vmatprep.mubr.bf16.mxu0 0
  %1425 = vmatmul.mubr.bf16.gmra.mrb[0].mxu0 %v1341
  %v1426 = vpop.f32.mrb[0].mxu0
  %v1427 = vadd.f32 0.0, %v1426
  %v1428 = vpop.f32.mrb[0].mxu0
  %v1429 = vadd.f32 0.0, %v1428
  %v1430 = vpop.f32.mrb[0].mxu0
  %v1431 = vadd.f32 0.0, %v1430
  %v1432 = vpop.f32.mrb[0].mxu0
  %v1433 = vadd.f32 0.0, %v1432
  %1434 = vmatprep.mubr.bf16.mxu0 0
  %1435 = vmatmul.mubr.bf16.gmra.mrb[0].mxu0 %v1344
  %v1436 = vpop.f32.mrb[0].mxu0
  %v1437 = vadd.f32 0.0, %v1436
  %v1438 = vpop.f32.mrb[0].mxu0
  %v1439 = vadd.f32 0.0, %v1438
  %v1440 = vpop.f32.mrb[0].mxu0
  %v1441 = vpop.f32.mrb[0].mxu0
  %1442 = vdwg.mxu0
  %v1443 = vadd.f32 %v1232, %v1387
  %v1444 = vadd.f32 %v1234, %v1389
  %v1445 = vadd.f32 %v1236, %v1391
  %v1446 = vadd.f32 %v1238, %v1393
  %v1447 = vadd.f32 %v1242, %v1397
  %v1448 = vadd.f32 %v1244, %v1399
  %v1449 = vadd.f32 %v1246, %v1401
  %v1450 = vadd.f32 %v1248, %v1403
  %v1451 = vadd.f32 %v1252, %v1407
  %v1452 = vadd.f32 %v1254, %v1409
  %v1453 = vadd.f32 %v1256, %v1411
  %v1454 = vadd.f32 %v1258, %v1413
  %v1455 = vadd.f32 %v1262, %v1417
  %v1456 = vadd.f32 %v1264, %v1419
  %v1457 = vadd.f32 %v1266, %v1421
  %v1458 = vadd.f32 %v1268, %v1423
  %v1459 = vadd.f32 %v1272, %v1427
  %v1460 = vadd.f32 %v1274, %v1429
  %v1461 = vadd.f32 %v1276, %v1431
  %v1462 = vadd.f32 %v1278, %v1433
  %v1463 = vadd.f32 %v1282, %v1437
  %v1464 = vadd.f32 %v1284, %v1439
  %v1465 = vld [vmem:[%s2] sm:$0x3]
  %v1467 = vlaneseq
  %v1468 = vshrl.u32 %v1467, 7
  %v1469 = vsub.s32 0, %v1468
  %v1470 = vrot.slane %v1465, %v1469
  %v1471 = vlaneseq
  %v1472 = vshrl.u32 %v1471, 7
  %v1473 = vsub.s32 1, %v1472
  %v1474 = vrot.slane %v1465, %v1473
  %v1477 = vadd.f32 %v1443, %v1470
  %v1478 = vadd.f32 %v1444, %v1474
  %v1479 = vadd.f32 %v1445, %v1470
  %v1480 = vadd.f32 %v1446, %v1474
  %v1481 = vadd.f32 %v1447, %v1470
  %v1482 = vadd.f32 %v1448, %v1474
  %v1483 = vadd.f32 %v1449, %v1470
  %v1484 = vadd.f32 %v1450, %v1474
  %v1485 = vadd.f32 %v1451, %v1470
  %v1486 = vadd.f32 %v1452, %v1474
  %v1487 = vadd.f32 %v1453, %v1470
  %v1488 = vadd.f32 %v1454, %v1474
  %v1489 = vadd.f32 %v1455, %v1470
  %v1490 = vadd.f32 %v1456, %v1474
  %v1491 = vadd.f32 %v1457, %v1470
  %v1492 = vadd.f32 %v1458, %v1474
  %v1493 = vadd.f32 %v1459, %v1470
  %v1494 = vadd.f32 %v1460, %v1474
  %v1495 = vadd.f32 %v1461, %v1470
  %v1496 = vadd.f32 %v1462, %v1474
  %v1497 = vadd.f32 %v1463, %v1470
  %v1498 = vadd.f32 %v1464, %v1474
  %v1499 = vmax.f32 %v1477, 0.0
  %v1500 = vmax.f32 %v1478, 0.0
  %v1501 = vmax.f32 %v1479, 0.0
  %v1502 = vmax.f32 %v1480, 0.0
  %v1503 = vmax.f32 %v1481, 0.0
  %v1504 = vmax.f32 %v1482, 0.0
  %v1505 = vmax.f32 %v1483, 0.0
  %v1506 = vmax.f32 %v1484, 0.0
  %v1507 = vmax.f32 %v1485, 0.0
  %v1508 = vmax.f32 %v1486, 0.0
  %v1509 = vmax.f32 %v1487, 0.0
  %v1510 = vmax.f32 %v1488, 0.0
  %v1511 = vmax.f32 %v1489, 0.0
  %v1512 = vmax.f32 %v1490, 0.0
  %v1513 = vmax.f32 %v1491, 0.0
  %v1514 = vmax.f32 %v1492, 0.0
  %v1515 = vmax.f32 %v1493, 0.0
  %v1516 = vmax.f32 %v1494, 0.0
  %v1517 = vmax.f32 %v1495, 0.0
  %v1518 = vmax.f32 %v1496, 0.0
  %v1519 = vmax.f32 %v1497, 0.0
  %v1520 = vmax.f32 %v1498, 0.0
  %v1521 = vpack.c.bf16 %v1501, %v1499
  %v1522 = vpack.c.bf16 %v1502, %v1500
  %v1523 = vpack.c.bf16 %v1505, %v1503
  %v1524 = vpack.c.bf16 %v1506, %v1504
  %v1525 = vpack.c.bf16 %v1509, %v1507
  %v1526 = vpack.c.bf16 %v1510, %v1508
  %v1527 = vpack.c.bf16 %v1513, %v1511
  %v1528 = vpack.c.bf16 %v1514, %v1512
  %v1529 = vpack.c.bf16 %v1517, %v1515
  %v1530 = vpack.c.bf16 %v1518, %v1516
  %v1531 = vpack.c.bf16 %v1519, %v1519
  %v1532 = vpack.c.bf16 %v1520, %v1520
  %s1533 = scalar_lea.vmem %s4, 1024
  %v1534 = vld [vmem:[%s1533] sm:$0xff]
  %v1535 = vld [vmem:[%s1533 + $0x8] sm:$0xff]
  %v1536 = vld [vmem:[%s1533 + $0x10] sm:$0xff]
  %v1537 = vld [vmem:[%s1533 + $0x18] sm:$0xff]
  %v1538 = vld [vmem:[%s1533 + $0x20] sm:$0xff]
  %v1539 = vld [vmem:[%s1533 + $0x28] sm:$0xff]
  %v1540 = vld [vmem:[%s1533 + $0x30] sm:$0xff]
  %v1541 = vld [vmem:[%s1533 + $0x38] sm:$0xff]
  %v1542 = vld [vmem:[%s1533 + $0x40] sm:$0xff]
  %v1543 = vld [vmem:[%s1533 + $0x48] sm:$0xff]
  %v1544 = vld [vmem:[%s1533 + $0x50] sm:$0xff]
  %v1545 = vld [vmem:[%s1533 + $0x58] sm:$0xff]
  %v1546 = vld [vmem:[%s1533 + $0x60] sm:$0xff]
  %v1547 = vld [vmem:[%s1533 + $0x68] sm:$0xff]
  %v1548 = vld [vmem:[%s1533 + $0x70] sm:$0xff]
  %v1549 = vld [vmem:[%s1533 + $0x78] sm:$0xff]
  %v1550 = vld [vmem:[%s1533 + $0x80] sm:$0xff]
  %v1551 = vld [vmem:[%s1533 + $0x88] sm:$0xff]
  %v1552 = vld [vmem:[%s1533 + $0x90] sm:$0xff]
  %v1553 = vld [vmem:[%s1533 + $0x98] sm:$0xff]
  %v1554 = vld [vmem:[%s1533 + $0xa0] sm:$0xff]
  %v1555 = vld [vmem:[%s1533 + $0xa8] sm:$0xff]
  %v1556 = vld [vmem:[%s1533 + $0xb0] sm:$0xff]
  %v1557 = vld [vmem:[%s1533 + $0xb8] sm:$0xff]
  %v1558 = vld [vmem:[%s1533 + $0xc0] sm:$0xff]
  %v1559 = vld [vmem:[%s1533 + $0xc8] sm:$0xff]
  %v1560 = vld [vmem:[%s1533 + $0xd0] sm:$0xff]
  %v1561 = vld [vmem:[%s1533 + $0xd8] sm:$0xff]
  %v1562 = vld [vmem:[%s1533 + $0xe0] sm:$0xff]
  %v1563 = vld [vmem:[%s1533 + $0xe8] sm:$0xff]
  %v1564 = vld [vmem:[%s1533 + $0xf0] sm:$0xff]
  %v1565 = vld [vmem:[%s1533 + $0xf8] sm:$0xff]
  %v1566 = vld [vmem:[%s5] sm:$0x3]
  %v1568 = vlaneseq
  %v1569 = vshrl.u32 %v1568, 7
  %v1570 = vsub.s32 0, %v1569
  %v1571 = vrot.slane %v1566, %v1570
  %v1572 = vlaneseq
  %v1573 = vshrl.u32 %v1572, 7
  %v1574 = vsub.s32 1, %v1573
  %v1575 = vrot.slane %v1566, %v1574
  %v1610 = vunpack.c.l.b16 %v1534
  %v1611 = vunpack.c.h.b16 %v1534
  %v1612 = vunpack.c.l.b16 %v1535
  %v1613 = vunpack.c.h.b16 %v1535
  %v1614 = vunpack.c.l.b16 %v1536
  %v1615 = vunpack.c.h.b16 %v1536
  %v1616 = vunpack.c.l.b16 %v1537
  %v1617 = vunpack.c.h.b16 %v1537
  %v1618 = vunpack.c.l.b16 %v1538
  %v1619 = vunpack.c.h.b16 %v1538
  %v1620 = vunpack.c.l.b16 %v1539
  %v1621 = vunpack.c.h.b16 %v1539
  %v1622 = vunpack.c.l.b16 %v1540
  %v1623 = vunpack.c.h.b16 %v1540
  %v1624 = vunpack.c.l.b16 %v1541
  %v1625 = vunpack.c.h.b16 %v1541
  %v1626 = vunpack.c.l.b16 %v1542
  %v1627 = vunpack.c.h.b16 %v1542
  %v1628 = vunpack.c.l.b16 %v1543
  %v1629 = vunpack.c.h.b16 %v1543
  %v1630 = vunpack.c.l.b16 %v1544
  %v1631 = vunpack.c.h.b16 %v1544
  %v1632 = vunpack.c.l.b16 %v1545
  %v1633 = vunpack.c.h.b16 %v1545
  %v1634 = vunpack.c.l.b16 %v1546
  %v1635 = vunpack.c.h.b16 %v1546
  %v1636 = vunpack.c.l.b16 %v1547
  %v1637 = vunpack.c.h.b16 %v1547
  %v1638 = vunpack.c.l.b16 %v1548
  %v1639 = vunpack.c.h.b16 %v1548
  %v1640 = vunpack.c.l.b16 %v1549
  %v1641 = vunpack.c.h.b16 %v1549
  %v1642 = vunpack.c.l.b16 %v1550
  %v1643 = vunpack.c.h.b16 %v1550
  %v1644 = vunpack.c.l.b16 %v1551
  %v1645 = vunpack.c.h.b16 %v1551
  %v1646 = vunpack.c.l.b16 %v1552
  %v1647 = vunpack.c.h.b16 %v1552
  %v1648 = vunpack.c.l.b16 %v1553
  %v1649 = vunpack.c.h.b16 %v1553
  %v1650 = vunpack.c.l.b16 %v1554
  %v1651 = vunpack.c.h.b16 %v1554
  %v1652 = vunpack.c.l.b16 %v1555
  %v1653 = vunpack.c.h.b16 %v1555
  %v1654 = vunpack.c.l.b16 %v1556
  %v1655 = vunpack.c.h.b16 %v1556
  %v1656 = vunpack.c.l.b16 %v1557
  %v1657 = vunpack.c.h.b16 %v1557
  %v1658 = vunpack.c.l.b16 %v1558
  %v1659 = vunpack.c.h.b16 %v1558
  %v1660 = vunpack.c.l.b16 %v1559
  %v1661 = vunpack.c.h.b16 %v1559
  %v1662 = vunpack.c.l.b16 %v1560
  %v1663 = vunpack.c.h.b16 %v1560
  %v1664 = vunpack.c.l.b16 %v1561
  %v1665 = vunpack.c.h.b16 %v1561
  %v1666 = vunpack.c.l.b16 %v1562
  %v1667 = vunpack.c.h.b16 %v1562
  %v1668 = vunpack.c.l.b16 %v1563
  %v1669 = vunpack.c.h.b16 %v1563
  %v1670 = vunpack.c.l.b16 %v1564
  %v1671 = vunpack.c.h.b16 %v1564
  %v1672 = vunpack.c.l.b16 %v1565
  %v1673 = vunpack.c.h.b16 %v1565
  %v1674 = vpack.c.b16 %v1612, %v1610
  %v1675 = vpack.c.b16 %v1613, %v1611
  %v1676 = vpack.c.b16 %v1616, %v1614
  %v1677 = vpack.c.b16 %v1617, %v1615
  %v1678 = vpack.c.b16 %v1620, %v1618
  %v1679 = vpack.c.b16 %v1621, %v1619
  %v1680 = vpack.c.b16 %v1624, %v1622
  %v1681 = vpack.c.b16 %v1625, %v1623
  %v1682 = vpack.c.b16 %v1628, %v1626
  %v1683 = vpack.c.b16 %v1629, %v1627
  %v1684 = vpack.c.b16 %v1632, %v1630
  %v1685 = vpack.c.b16 %v1633, %v1631
  %v1686 = vpack.c.b16 %v1636, %v1634
  %v1687 = vpack.c.b16 %v1637, %v1635
  %v1688 = vpack.c.b16 %v1640, %v1638
  %v1689 = vpack.c.b16 %v1641, %v1639
  %v1690 = vpack.c.b16 %v1644, %v1642
  %v1691 = vpack.c.b16 %v1645, %v1643
  %v1692 = vpack.c.b16 %v1648, %v1646
  %v1693 = vpack.c.b16 %v1649, %v1647
  %v1694 = vpack.c.b16 %v1652, %v1650
  %v1695 = vpack.c.b16 %v1653, %v1651
  %v1696 = vpack.c.b16 %v1656, %v1654
  %v1697 = vpack.c.b16 %v1657, %v1655
  %v1698 = vpack.c.b16 %v1660, %v1658
  %v1699 = vpack.c.b16 %v1661, %v1659
  %v1700 = vpack.c.b16 %v1664, %v1662
  %v1701 = vpack.c.b16 %v1665, %v1663
  %v1702 = vpack.c.b16 %v1668, %v1666
  %v1703 = vpack.c.b16 %v1669, %v1667
  %v1704 = vpack.c.b16 %v1672, %v1670
  %v1705 = vpack.c.b16 %v1673, %v1671
  %1738 = vmatprep.subr.bf16.mxu0 %v1675
  %1739 = vmatpush1.bf16.msra.mxu0 %v1674
  %1740 = vmatprep.subr.bf16.mxu0 %v1677
  %1741 = vmatpush1.bf16.msra.mxu0 %v1676
  %1742 = vmatprep.subr.bf16.mxu0 %v1679
  %1743 = vmatpush1.bf16.msra.mxu0 %v1678
  %1744 = vmatprep.subr.bf16.mxu0 %v1681
  %1745 = vmatpush1.bf16.msra.mxu0 %v1680
  %1746 = vmatprep.subr.bf16.mxu0 %v1683
  %1747 = vmatpush1.bf16.msra.mxu0 %v1682
  %1748 = vmatprep.subr.bf16.mxu0 %v1685
  %1749 = vmatpush1.bf16.msra.mxu0 %v1684
  %1750 = vmatprep.subr.bf16.mxu0 %v1687
  %1751 = vmatpush1.bf16.msra.mxu0 %v1686
  %1752 = vmatprep.subr.bf16.mxu0 %v1689
  %1753 = vmatpush1.bf16.msra.mxu0 %v1688
  %1754 = vmatprep.subr.bf16.mxu0 %v1691
  %1755 = vmatpush1.bf16.msra.mxu0 %v1690
  %1756 = vmatprep.subr.bf16.mxu0 %v1693
  %1757 = vmatpush1.bf16.msra.mxu0 %v1692
  %1758 = vmatprep.subr.bf16.mxu0 %v1695
  %1759 = vmatpush1.bf16.msra.mxu0 %v1694
  %1760 = vmatprep.subr.bf16.mxu0 %v1697
  %1761 = vmatpush1.bf16.msra.mxu0 %v1696
  %1762 = vmatprep.subr.bf16.mxu0 %v1699
  %1763 = vmatpush1.bf16.msra.mxu0 %v1698
  %1764 = vmatprep.subr.bf16.mxu0 %v1701
  %1765 = vmatpush1.bf16.msra.mxu0 %v1700
  %1766 = vmatprep.subr.bf16.mxu0 %v1703
  %1767 = vmatpush1.bf16.msra.mxu0 %v1702
  %1768 = vmatprep.subr.bf16.mxu0 %v1705
  %1769 = vmatpush1.bf16.msra.mxu0 %v1704
  %1770 = vmatprep.mubr.bf16.mxu0 %v1522
  %1771 = vmatmul.mubr.bf16.gmra.mrb[0].mxu0 %v1521
  %v1772 = vpop.f32.mrb[0].mxu0
  %v1773 = vadd.f32 %v1571, %v1772
  %v1774 = vpop.f32.mrb[0].mxu0
  %v1775 = vadd.f32 %v1575, %v1774
  %v1776 = vpop.f32.mrb[0].mxu0
  %v1777 = vadd.f32 %v1571, %v1776
  %v1778 = vpop.f32.mrb[0].mxu0
  %v1779 = vadd.f32 %v1575, %v1778
  %1780 = vmatprep.mubr.bf16.mxu0 %v1524
  %1781 = vmatmul.mubr.bf16.gmra.mrb[0].mxu0 %v1523
  %v1782 = vpop.f32.mrb[0].mxu0
  %v1783 = vadd.f32 %v1571, %v1782
  %v1784 = vpop.f32.mrb[0].mxu0
  %v1785 = vadd.f32 %v1575, %v1784
  %v1786 = vpop.f32.mrb[0].mxu0
  %v1787 = vadd.f32 %v1571, %v1786
  %v1788 = vpop.f32.mrb[0].mxu0
  %v1789 = vadd.f32 %v1575, %v1788
  %1790 = vmatprep.mubr.bf16.mxu0 %v1526
  %1791 = vmatmul.mubr.bf16.gmra.mrb[0].mxu0 %v1525
  %v1792 = vpop.f32.mrb[0].mxu0
  %v1793 = vadd.f32 %v1571, %v1792
  %v1794 = vpop.f32.mrb[0].mxu0
  %v1795 = vadd.f32 %v1575, %v1794
  %v1796 = vpop.f32.mrb[0].mxu0
  %v1797 = vadd.f32 %v1571, %v1796
  %v1798 = vpop.f32.mrb[0].mxu0
  %v1799 = vadd.f32 %v1575, %v1798
  %1800 = vmatprep.mubr.bf16.mxu0 %v1528
  %1801 = vmatmul.mubr.bf16.gmra.mrb[0].mxu0 %v1527
  %v1802 = vpop.f32.mrb[0].mxu0
  %v1803 = vadd.f32 %v1571, %v1802
  %v1804 = vpop.f32.mrb[0].mxu0
  %v1805 = vadd.f32 %v1575, %v1804
  %v1806 = vpop.f32.mrb[0].mxu0
  %v1807 = vadd.f32 %v1571, %v1806
  %v1808 = vpop.f32.mrb[0].mxu0
  %v1809 = vadd.f32 %v1575, %v1808
  %1810 = vmatprep.mubr.bf16.mxu0 %v1530
  %1811 = vmatmul.mubr.bf16.gmra.mrb[0].mxu0 %v1529
  %v1812 = vpop.f32.mrb[0].mxu0
  %v1813 = vadd.f32 %v1571, %v1812
  %v1814 = vpop.f32.mrb[0].mxu0
  %v1815 = vadd.f32 %v1575, %v1814
  %v1816 = vpop.f32.mrb[0].mxu0
  %v1817 = vadd.f32 %v1571, %v1816
  %v1818 = vpop.f32.mrb[0].mxu0
  %v1819 = vadd.f32 %v1575, %v1818
  %1820 = vmatprep.mubr.bf16.mxu0 %v1532
  %1821 = vmatmul.mubr.bf16.gmra.mrb[0].mxu0 %v1531
  %v1822 = vpop.f32.mrb[0].mxu0
  %v1823 = vadd.f32 %v1571, %v1822
  %v1824 = vpop.f32.mrb[0].mxu0
  %v1825 = vadd.f32 %v1575, %v1824
  %v1826 = vpop.f32.mrb[0].mxu0
  %v1827 = vpop.f32.mrb[0].mxu0
  %1828 = vdwg.mxu0
  %v1829 = vunpack.c.l.bf16 %v24
  %v1830 = vunpack.c.h.bf16 %v24
  %v1831 = vunpack.c.l.bf16 %v25
  %v1832 = vunpack.c.h.bf16 %v25
  %v1833 = vunpack.c.l.bf16 %v26
  %v1834 = vunpack.c.h.bf16 %v26
  %v1835 = vunpack.c.l.bf16 %v27
  %v1836 = vunpack.c.h.bf16 %v27
  %v1837 = vunpack.c.l.bf16 %v28
  %v1838 = vunpack.c.h.bf16 %v28
  %v1839 = vunpack.c.l.bf16 %v29
  %v1840 = vunpack.c.h.bf16 %v29
  %v1841 = vunpack.c.l.bf16 %v30
  %v1842 = vunpack.c.h.bf16 %v30
  %v1843 = vunpack.c.l.bf16 %v31
  %v1844 = vunpack.c.h.bf16 %v31
  %v1845 = vunpack.c.l.bf16 %v32
  %v1846 = vunpack.c.h.bf16 %v32
  %v1847 = vunpack.c.l.bf16 %v33
  %v1848 = vunpack.c.h.bf16 %v33
  %v1849 = vunpack.c.l.bf16 %v34
  %v1850 = vunpack.c.h.bf16 %v34
  %v1851 = vadd.f32 %v1773, %v1829
  %v1852 = vadd.f32 %v1775, %v1830
  %v1853 = vadd.f32 %v1777, %v1831
  %v1854 = vadd.f32 %v1779, %v1832
  %v1855 = vadd.f32 %v1783, %v1833
  %v1856 = vadd.f32 %v1785, %v1834
  %v1857 = vadd.f32 %v1787, %v1835
  %v1858 = vadd.f32 %v1789, %v1836
  %v1859 = vadd.f32 %v1793, %v1837
  %v1860 = vadd.f32 %v1795, %v1838
  %v1861 = vadd.f32 %v1797, %v1839
  %v1862 = vadd.f32 %v1799, %v1840
  %v1863 = vadd.f32 %v1803, %v1841
  %v1864 = vadd.f32 %v1805, %v1842
  %v1865 = vadd.f32 %v1807, %v1843
  %v1866 = vadd.f32 %v1809, %v1844
  %v1867 = vadd.f32 %v1813, %v1845
  %v1868 = vadd.f32 %v1815, %v1846
  %v1869 = vadd.f32 %v1817, %v1847
  %v1870 = vadd.f32 %v1819, %v1848
  %v1871 = vadd.f32 %v1823, %v1849
  %v1872 = vadd.f32 %v1825, %v1850
  %v1873 = vmax.f32 %v1851, 0.0
  %v1874 = vmax.f32 %v1852, 0.0
  %v1875 = vmax.f32 %v1853, 0.0
  %v1876 = vmax.f32 %v1854, 0.0
  %v1877 = vmax.f32 %v1855, 0.0
  %v1878 = vmax.f32 %v1856, 0.0
  %v1879 = vmax.f32 %v1857, 0.0
  %v1880 = vmax.f32 %v1858, 0.0
  %v1881 = vmax.f32 %v1859, 0.0
  %v1882 = vmax.f32 %v1860, 0.0
  %v1883 = vmax.f32 %v1861, 0.0
  %v1884 = vmax.f32 %v1862, 0.0
  %v1885 = vmax.f32 %v1863, 0.0
  %v1886 = vmax.f32 %v1864, 0.0
  %v1887 = vmax.f32 %v1865, 0.0
  %v1888 = vmax.f32 %v1866, 0.0
  %v1889 = vmax.f32 %v1867, 0.0
  %v1890 = vmax.f32 %v1868, 0.0
  %v1891 = vmax.f32 %v1869, 0.0
  %v1892 = vmax.f32 %v1870, 0.0
  %v1893 = vmax.f32 %v1871, 0.0
  %v1894 = vmax.f32 %v1872, 0.0
  %v1895 = vpack.c.bf16 %v1875, %v1873
  %v1896 = vpack.c.bf16 %v1876, %v1874
  %v1897 = vpack.c.bf16 %v1879, %v1877
  %v1898 = vpack.c.bf16 %v1880, %v1878
  %v1899 = vpack.c.bf16 %v1883, %v1881
  %v1900 = vpack.c.bf16 %v1884, %v1882
  %v1901 = vpack.c.bf16 %v1887, %v1885
  %v1902 = vpack.c.bf16 %v1888, %v1886
  %v1903 = vpack.c.bf16 %v1891, %v1889
  %v1904 = vpack.c.bf16 %v1892, %v1890
  %v1905 = vpack.c.bf16 %v1893, %v1893
  %v1906 = vpack.c.bf16 %v1894, %v1894
  %v1919 = vunpack.c.l.b16 %v1895
  %v1920 = vunpack.c.l.b16 %v1896
  %v1921 = vunpack.c.h.b16 %v1895
  %v1922 = vunpack.c.h.b16 %v1896
  %v1923 = vunpack.c.l.b16 %v1897
  %v1924 = vunpack.c.l.b16 %v1898
  %v1925 = vunpack.c.h.b16 %v1897
  %v1926 = vunpack.c.h.b16 %v1898
  %v1927 = vunpack.c.l.b16 %v1899
  %v1928 = vunpack.c.l.b16 %v1900
  %v1929 = vunpack.c.h.b16 %v1899
  %v1930 = vunpack.c.h.b16 %v1900
  %v1931 = vunpack.c.l.b16 %v1901
  %v1932 = vunpack.c.l.b16 %v1902
  %v1933 = vunpack.c.h.b16 %v1901
  %v1934 = vunpack.c.h.b16 %v1902
  %v1935 = vunpack.c.l.b16 %v1903
  %v1936 = vunpack.c.l.b16 %v1904
  %v1937 = vunpack.c.h.b16 %v1903
  %v1938 = vunpack.c.h.b16 %v1904
  %v1939 = vunpack.c.l.b16 %v1905
  %v1940 = vunpack.c.l.b16 %v1906
  %v1941 = vpack.c.b16 %v1920, %v1919
  %v1942 = vpack.c.b16 %v1922, %v1921
  %v1943 = vpack.c.b16 %v1924, %v1923
  %v1944 = vpack.c.b16 %v1926, %v1925
  %v1945 = vpack.c.b16 %v1928, %v1927
  %v1946 = vpack.c.b16 %v1930, %v1929
  %v1947 = vpack.c.b16 %v1932, %v1931
  %v1948 = vpack.c.b16 %v1934, %v1933
  %v1949 = vpack.c.b16 %v1936, %v1935
  %v1950 = vpack.c.b16 %v1938, %v1937
  %v1951 = vpack.c.b16 %v1940, %v1939
  %1963 = vst [vmem:[%s6] sm:$0xff] %v1941
  %1964 = vst [vmem:[%s6 + $0x8] sm:$0xff] %v1942
  %1965 = vst [vmem:[%s6 + $0x10] sm:$0xff] %v1943
  %1966 = vst [vmem:[%s6 + $0x18] sm:$0xff] %v1944
  %1967 = vst [vmem:[%s6 + $0x20] sm:$0xff] %v1945
  %1968 = vst [vmem:[%s6 + $0x28] sm:$0xff] %v1946
  %1969 = vst [vmem:[%s6 + $0x30] sm:$0xff] %v1947
  %1970 = vst [vmem:[%s6 + $0x38] sm:$0xff] %v1948
  %1971 = vst [vmem:[%s6 + $0x40] sm:$0xff] %v1949
  %1972 = vst [vmem:[%s6 + $0x48] sm:$0xff] %v1950
  %1973 = vst [vmem:[%s6 + $0x50] sm:$0x33] %v1951
  // Predicated region
  $region26: #{double_tpgcn_forward.22} parent=0 // pred_check
    _
  $region27: #{double_tpgcn_forward.22} parent=0 // pred_check_branch
    %1975 = sbr.rel (0) target = $region29
  $region28: #{double_tpgcn_forward.22} parent=0 // pred_region
    _
  $region29: #{double_tpgcn_forward.22} parent=0 // pred_fallthru
    _
  // Predicated region
  $region30: #{double_tpgcn_forward.22} parent=0 // pred_check
    _
  $region31: #{double_tpgcn_forward.22} parent=0 // pred_check_branch
    %1977 = sbr.rel (0) target = $region33
  $region32: #{double_tpgcn_forward.22} parent=0 // pred_region
    _
  $region33: #{double_tpgcn_forward.22} parent=0 // pred_fallthru
    _

</llo_original>
